<compile_context>
chip_gen: v5e
topology: v5e:2x2
jax: 0.10.0
libtpu: 0.0.40
codegen_flags: <defaults>
</compile_context>

<pallas_src>
import jax
import jax.numpy as jnp
from jax import lax
from jax.experimental import pallas as pl
from jax.experimental.pallas import tpu as pltpu
import numpy as np


def bottleneck_kernel(x_ref, w1_ref, b1_ref, w2_ref, b2_ref, w3_ref, b3_ref,
                      o_ref, col_ref):
    """Fused conv1x1+bn+relu -> conv3x3+bn+relu (im2col) -> conv1x1+bn -> +res -> relu."""
    NB, H, W, Cin = x_ref.shape
    P = w1_ref.shape[1]
    M = NB * H * W

    # Single load of the activation block; conv1 operand (bf16) and the f32 residual
    # are both derived from it (no second full-tile VMEM load).
    x = x_ref[...].reshape(M, Cin)                                 # (M, Cin) bf16

    # ---- conv1 (1x1, BN scale pre-folded) + bias + relu : channel matmul on the MXU ----
    h1 = jnp.dot(x, w1_ref[...], preferred_element_type=jnp.float32)
    h1 = jnp.maximum(h1 + b1_ref[...], 0.0)                        # (M, P) f32

    # ---- conv2 (3x3, stride=1, pad=1, BN scale pre-folded) as ONE im2col matmul ----
    # Boundary masks, hoisted out of the tap loop.  Masks / rolls stay in f32 so the
    # elementwise path is safe on v5e (no bf16 VPU); only the stored MXU operand is bf16.
    pos = lax.broadcasted_iota(jnp.int32, (M, 1), 0)
    rc = pos % (H * W)                                             # flat offset inside image
    cc = pos % W                                                   # column inside row
    not_top = (rc >= W).astype(jnp.float32)                        # row >= 1
    not_bot = (rc < (H - 1) * W).astype(jnp.float32)               # row <= H-2
    not_lft = (cc >= 1).astype(jnp.float32)                        # col >= 1
    not_rgt = (cc <= W - 2).astype(jnp.float32)                    # col <= W-2
    row_mask = (not_top, None, not_bot)
    col_mask = (not_lft, None, not_rgt)

    # Images are major in the flat M axis, so the masks also kill any cross-image bleed
    # from the wrap-around of the roll (same argument as the previously validated kernel).
    for t in range(9):
        dy, dx = t // 3 - 1, t % 3 - 1
        off = dy * W + dx
        shifted = h1 if off == 0 else pltpu.roll(h1, shift=(-off) % M, axis=0)
        m = None
        for part in (row_mask[dy + 1], col_mask[dx + 1]):
            if part is not None:
                m = part if m is None else m * part
        tap = shifted if m is None else shifted * m
        col_ref[:, t * P:(t + 1) * P] = tap.astype(jnp.bfloat16)   # lane-concat im2col

    h2 = jnp.dot(col_ref[...], w2_ref[...], preferred_element_type=jnp.float32)
    h2 = jnp.maximum(h2 + b2_ref[...], 0.0).astype(jnp.bfloat16)   # (M, P)

    # ---- conv3 (1x1, BN scale pre-folded) + bias ----
    h3 = jnp.dot(h2, w3_ref[...], preferred_element_type=jnp.float32) + b3_ref[...]

    # ---- identity residual (stride=1, downsample=None) + relu, accumulate in f32 ----
    out = jnp.maximum(h3 + x.astype(jnp.float32), 0.0)
    o_ref[...] = out.reshape(NB, H, W, Cin).astype(o_ref.dtype)


def _fold_bn(gamma, beta, mean, var, eps):
    s = gamma / jnp.sqrt(var + eps)
    return s, beta - mean * s


def _prepare_weights(params, eps):
    (w1, g1, be1, m1, v1,
     w2, g2, be2, m2, v2,
     w3, g3, be3, m3, v3) = params
    P = w1.shape[0]
    s1, b1 = _fold_bn(g1, be1, m1, v1, eps)
    s2, b2 = _fold_bn(g2, be2, m2, v2, eps)
    s3, b3 = _fold_bn(g3, be3, m3, v3, eps)
    # BN scales folded into bf16 matmul weights (per output channel); kernel adds bias only.
    w1m = (jnp.transpose(w1[:, :, 0, 0], (1, 0)) * s1[None, :]).astype(jnp.bfloat16)
    w2m = (jnp.transpose(w2, (2, 3, 1, 0)).reshape(9 * P, P)        # rows = (tap, in_ch)
           * s2[None, :]).astype(jnp.bfloat16)
    w3m = (jnp.transpose(w3[:, :, 0, 0], (1, 0)) * s3[None, :]).astype(jnp.bfloat16)
    return (w1m, b1[None, :].astype(jnp.float32),
            w2m, b2[None, :].astype(jnp.float32),
            w3m, b3[None, :].astype(jnp.float32))


def bottleneck_forward_nhwc(x_nhwc, params, eps=1e-5):
    """Core entry point: NHWC activations, bf16 in / bf16 out (HBM-traffic optimal)."""
    N, H, W, Cin = x_nhwc.shape
    w1m, b1, w2m, b2, w3m, b3 = _prepare_weights(params, eps)
    P = w1m.shape[1]
    Cout = 4 * P
    assert Cin == Cout, "identity residual requires inplanes == planes * expansion"
    # TODO(synk): stride != 1 / downsample branch not implemented (the PyTorch module
    #             delegates that path to an external downsample module anyway).

    x = x_nhwc.astype(jnp.bfloat16)        # no-op when the backbone already runs bf16

    # Per-generation VMEM budget (never above physical; respects v7x's 64 MiB).
    try:
        vmem_phys = int(pltpu.get_tpu_info().vmem_capacity_bytes)
    except Exception:
        vmem_phys = 64 * 2**20             # conservative v7x-sized fallback
    vmem_budget = min(int(0.85 * vmem_phys), 96 * 2**20)

    def vmem_need(d):
        M = d * H * W
        io = 2 * 2 * M * (Cin + Cout) * 2                   # double-buffered bf16 in+out blocks
        wgt = 2 * ((Cin * P + 9 * P * P + P * Cout) * 2 + (2 * P + Cout) * 4)
        scratch = M * 9 * P * 2                             # im2col bf16 scratch
        work = 2 * M * (P + Cout) * 4                       # f32 h1 / conv3 accum headroom
        return io + wgt + scratch + work

    # Images per grid step: byte-based target (~2 MiB of in+out per step to amortize the
    # ~0.35us fixed step cost), capped by the VMEM budget; batch axis stays "parallel".
    target_io = 2 * 2**20
    divisors = [d for d in range(1, N + 1) if N % d == 0]
    nb = next((d for d in divisors if d * H * W * (Cin + Cout) * 2 >= target_io), N)
    while nb > 1 and vmem_need(nb) > vmem_budget:
        nb = max(d for d in divisors if d < nb)
    # TODO(synk): for very large H*W add an H-tile grid axis with a 1-row halo so blocks
    #             stay inside v7x's 64 MiB VMEM and both TensorCores get work when N//nb==1.

    vmem_limit = int(min(vmem_budget, max(32 * 2**20, 2 * vmem_need(nb))))

    def const_spec(arr):
        nd = arr.ndim
        # Block index never changes across the grid, so these are only DMA'd once.
        return pl.BlockSpec(arr.shape, lambda n, _nd=nd: (0,) * _nd)

    out = pl.pallas_call(
        bottleneck_kernel,
        out_shape=jax.ShapeDtypeStruct((N, H, W, Cout), jnp.bfloat16),
        grid_spec=pltpu.PrefetchScalarGridSpec(
            num_scalar_prefetch=0,
            grid=(N // nb,),
            in_specs=[
                pl.BlockSpec((nb, H, W, Cin), lambda n: (n, 0, 0, 0)),
                const_spec(w1m), const_spec(b1),
                const_spec(w2m), const_spec(b2),
                const_spec(w3m), const_spec(b3),
            ],
            out_specs=pl.BlockSpec((nb, H, W, Cout), lambda n: (n, 0, 0, 0)),
            scratch_shapes=[pltpu.VMEM((nb * H * W, 9 * P), jnp.bfloat16)],
        ),
        compiler_params=pltpu.CompilerParams(
            dimension_semantics=("parallel",),
            vmem_limit_bytes=vmem_limit,
        ),
    )(x, w1m, b1, w2m, b2, w3m, b3)
    return out


def bottleneck_forward(x_nchw, params, eps=1e-5):
    """NCHW-in / NCHW-out wrapper matching the PyTorch module interface.

    The transposes + f32->bf16 cast here exist only to present the PyTorch NCHW/f32
    interface for testing; inside an NHWC bf16 backbone call `bottleneck_forward_nhwc`
    directly so this extra HBM traffic disappears.
    """
    x = jnp.transpose(x_nchw, (0, 2, 3, 1))
    out = bottleneck_forward_nhwc(x, params, eps)
    return jnp.transpose(out, (0, 3, 1, 2))


def ref_forward(x, params, eps=1e-5):
    """Plain-JAX f32 reference (NCHW, OIHW) matching the PyTorch module semantics."""
    (w1, g1, be1, m1, v1,
     w2, g2, be2, m2, v2,
     w3, g3, be3, m3, v3) = params

    def conv(x, w, pad=0):
        return lax.conv_general_dilated(
            x, w, (1, 1), [(pad, pad), (pad, pad)],
            dimension_numbers=('NCHW', 'OIHW', 'NCHW'))

    def bn(x, g, b, m, v):
        s = g / jnp.sqrt(v + eps)
        bb = b - m * s
        return x * s[None, :, None, None] + bb[None, :, None, None]

    out = jax.nn.relu(bn(conv(x, w1), g1, be1, m1, v1))
    out = jax.nn.relu(bn(conv(out, w2, pad=1), g2, be2, m2, v2))
    out = bn(conv(out, w3), g3, be3, m3, v3)
    return jax.nn.relu(out + x)


if __name__ == "__main__":
    key = jax.random.PRNGKey(0)
    ks = jax.random.split(key, 8)

    N, planes, H, W = 2, 32, 16, 16
    inplanes = planes * 4          # 128 -> identity residual valid (downsample=None)

    def norm(k, shape, scale=0.1):
        return scale * jax.random.normal(k, shape, jnp.float32)

    # Conv weights in PyTorch OIHW layout.
    w1 = norm(ks[0], (planes, inplanes, 1, 1))
    w2 = norm(ks[1], (planes, planes, 3, 3))
    w3 = norm(ks[2], (planes * 4, planes, 1, 1))

    def bn_params(k, c):
        k1, k2, k3, k4 = jax.random.split(k, 4)
        g = 1.0 + 0.1 * jax.random.normal(k1, (c,), jnp.float32)
        b = 0.1 * jax.random.normal(k2, (c,), jnp.float32)
        m = 0.1 * jax.random.normal(k3, (c,), jnp.float32)
        v = 1.0 + 0.1 * jax.random.uniform(k4, (c,), jnp.float32)
        return g, b, m, v

    g1, be1, m1, v1 = bn_params(ks[3], planes)
    g2, be2, m2, v2 = bn_params(ks[4], planes)
    g3, be3, m3, v3 = bn_params(ks[5], planes * 4)

    params = (w1, g1, be1, m1, v1,
              w2, g2, be2, m2, v2,
              w3, g3, be3, m3, v3)

    x = jax.random.normal(ks[6], (N, inplanes, H, W), jnp.float32)   # NCHW input

    out = jax.block_until_ready(bottleneck_forward(x, params))
    ref = jax.block_until_ready(ref_forward(x, params))
    # bf16 I/O + bf16 MXU operands (f32 accumulation) vs. the pure-f32 reference.
    np.testing.assert_allclose(np.asarray(out).astype(np.float32), np.asarray(ref),
                               rtol=5e-2, atol=1e-1)
    print("KERNEL_OK")
</pallas_src>

<mosaic_0001>
module attributes {stable_mosaic.version = 11 : i64} {
  func.func @bottleneck_kernel(%arg0: i32, %arg1: memref<2x16x16x128xbf16, #tpu.memory_space<vmem>>, %arg2: memref<128x32xbf16, #tpu.memory_space<vmem>>, %arg3: memref<1x32xf32, #tpu.memory_space<vmem>>, %arg4: memref<288x32xbf16, #tpu.memory_space<vmem>>, %arg5: memref<1x32xf32, #tpu.memory_space<vmem>>, %arg6: memref<32x128xbf16, #tpu.memory_space<vmem>>, %arg7: memref<1x128xf32, #tpu.memory_space<vmem>>, %arg8: memref<2x16x16x128xbf16, #tpu.memory_space<vmem>>, %arg9: memref<512x288xbf16, #tpu.memory_space<vmem>>) attributes {dimension_semantics = [#tpu.dimension_semantics<parallel>], iteration_bounds = array<i64: 1>, scalar_prefetch = 0 : i64, scratch_operands = 1 : i64, tpu.core_type = #tpu.core_type<tc>, window_params = [{transform_indices = @transform_0, window_bounds = array<i64: 2, 16, 16, 128>}, {pipeline_mode = #tpu.pipeline_mode<synchronous>, transform_indices = @transform_1, window_bounds = array<i64: 128, 32>}, {pipeline_mode = #tpu.pipeline_mode<synchronous>, transform_indices = @transform_2, window_bounds = array<i64: 1, 32>}, {pipeline_mode = #tpu.pipeline_mode<synchronous>, transform_indices = @transform_3, window_bounds = array<i64: 288, 32>}, {pipeline_mode = #tpu.pipeline_mode<synchronous>, transform_indices = @transform_4, window_bounds = array<i64: 1, 32>}, {pipeline_mode = #tpu.pipeline_mode<synchronous>, transform_indices = @transform_5, window_bounds = array<i64: 32, 128>}, {pipeline_mode = #tpu.pipeline_mode<synchronous>, transform_indices = @transform_6, window_bounds = array<i64: 1, 128>}, {transform_indices = @transform_7, window_bounds = array<i64: 2, 16, 16, 128>}]} {
    %c0 = arith.constant 0 : index
    %c0_0 = arith.constant 0 : index
    %c0_1 = arith.constant 0 : index
    %c0_2 = arith.constant 0 : index
    %0 = vector.load %arg1[%c0, %c0_0, %c0_1, %c0_2] : memref<2x16x16x128xbf16, #tpu.memory_space<vmem>>, vector<2x16x16x128xbf16>
    %1 = vector.shape_cast %0 : vector<2x16x16x128xbf16> to vector<512x128xbf16>
    %c0_3 = arith.constant 0 : index
    %c0_4 = arith.constant 0 : index
    %2 = vector.load %arg2[%c0_3, %c0_4] : memref<128x32xbf16, #tpu.memory_space<vmem>>, vector<128x32xbf16>
    %cst = arith.constant dense<0.000000e+00> : vector<512x32xf32>
    %3 = tpu.matmul %1, %2, %cst {dimension_numbers = #tpu.dot_dimension_numbers<[1], [0], [0], [1], [0, 0, 1, 1], [], []>} : vector<512x128xbf16>, vector<128x32xbf16>, vector<512x32xf32> -> vector<512x32xf32>
    %c0_5 = arith.constant 0 : index
    %c0_6 = arith.constant 0 : index
    %4 = vector.load %arg3[%c0_5, %c0_6] : memref<1x32xf32, #tpu.memory_space<vmem>>, vector<1x32xf32>
    %5 = vector.broadcast %4 : vector<1x32xf32> to vector<512x32xf32>
    %6 = arith.addf %3, %5 : vector<512x32xf32>
    %cst_7 = arith.constant 0.000000e+00 : f32
    %7 = vector.broadcast %cst_7 : f32 to vector<512x32xf32>
    %8 = arith.maximumf %6, %7 : vector<512x32xf32>
    %9 = tpu.iota {dimensions = array<i32: 0>} : vector<512x1xi32>
    %c256_i32 = arith.constant 256 : i32
    %c0_i32 = arith.constant 0 : i32
    %10 = arith.cmpi eq, %c256_i32, %c0_i32 : i32
    %c1_i32 = arith.constant 1 : i32
    %11 = arith.select %10, %c1_i32, %c256_i32 : i32
    %12 = vector.broadcast %11 : i32 to vector<512x1xi32>
    %13 = arith.remsi %9, %12 : vector<512x1xi32>
    %c0_i32_8 = arith.constant 0 : i32
    %14 = vector.broadcast %c0_i32_8 : i32 to vector<512x1xi32>
    %15 = arith.cmpi ne, %13, %14 : vector<512x1xi32>
    %c0_i32_9 = arith.constant 0 : i32
    %16 = vector.broadcast %c0_i32_9 : i32 to vector<512x1xi32>
    %17 = arith.cmpi slt, %13, %16 : vector<512x1xi32>
    %c0_i32_10 = arith.constant 0 : i32
    %18 = arith.cmpi slt, %11, %c0_i32_10 : i32
    %19 = vector.broadcast %18 : i1 to vector<512x1xi1>
    %20 = vector.broadcast %19 : vector<512x1xi1> to vector<512x1xi1>
    %21 = arith.xori %17, %20 : vector<512x1xi1>
    %22 = arith.andi %21, %15 : vector<512x1xi1>
    %23 = vector.broadcast %11 : i32 to vector<512x1xi32>
    %24 = arith.addi %13, %23 : vector<512x1xi32>
    %25 = arith.select %22, %24, %13 : vector<512x1xi1>, vector<512x1xi32>
    %c16_i32 = arith.constant 16 : i32
    %c0_i32_11 = arith.constant 0 : i32
    %26 = arith.cmpi eq, %c16_i32, %c0_i32_11 : i32
    %c1_i32_12 = arith.constant 1 : i32
    %27 = arith.select %26, %c1_i32_12, %c16_i32 : i32
    %28 = vector.broadcast %27 : i32 to vector<512x1xi32>
    %29 = arith.remsi %9, %28 : vector<512x1xi32>
    %c0_i32_13 = arith.constant 0 : i32
    %30 = vector.broadcast %c0_i32_13 : i32 to vector<512x1xi32>
    %31 = arith.cmpi ne, %29, %30 : vector<512x1xi32>
    %c0_i32_14 = arith.constant 0 : i32
    %32 = vector.broadcast %c0_i32_14 : i32 to vector<512x1xi32>
    %33 = arith.cmpi slt, %29, %32 : vector<512x1xi32>
    %c0_i32_15 = arith.constant 0 : i32
    %34 = arith.cmpi slt, %27, %c0_i32_15 : i32
    %35 = vector.broadcast %34 : i1 to vector<512x1xi1>
    %36 = vector.broadcast %35 : vector<512x1xi1> to vector<512x1xi1>
    %37 = arith.xori %33, %36 : vector<512x1xi1>
    %38 = arith.andi %37, %31 : vector<512x1xi1>
    %39 = vector.broadcast %27 : i32 to vector<512x1xi32>
    %40 = arith.addi %29, %39 : vector<512x1xi32>
    %41 = arith.select %38, %40, %29 : vector<512x1xi1>, vector<512x1xi32>
    %c16_i32_16 = arith.constant 16 : i32
    %42 = vector.broadcast %c16_i32_16 : i32 to vector<512x1xi32>
    %43 = arith.cmpi sge, %25, %42 : vector<512x1xi32>
    %44 = arith.extui %43 : vector<512x1xi1> to vector<512x1xi32>
    %45 = arith.sitofp %44 : vector<512x1xi32> to vector<512x1xf32>
    %c240_i32 = arith.constant 240 : i32
    %46 = vector.broadcast %c240_i32 : i32 to vector<512x1xi32>
    %47 = arith.cmpi slt, %25, %46 : vector<512x1xi32>
    %48 = arith.extui %47 : vector<512x1xi1> to vector<512x1xi32>
    %49 = arith.sitofp %48 : vector<512x1xi32> to vector<512x1xf32>
    %c1_i32_17 = arith.constant 1 : i32
    %50 = vector.broadcast %c1_i32_17 : i32 to vector<512x1xi32>
    %51 = arith.cmpi sge, %41, %50 : vector<512x1xi32>
    %52 = arith.extui %51 : vector<512x1xi1> to vector<512x1xi32>
    %53 = arith.sitofp %52 : vector<512x1xi32> to vector<512x1xf32>
    %c14_i32 = arith.constant 14 : i32
    %54 = vector.broadcast %c14_i32 : i32 to vector<512x1xi32>
    %55 = arith.cmpi sle, %41, %54 : vector<512x1xi32>
    %56 = arith.extui %55 : vector<512x1xi1> to vector<512x1xi32>
    %57 = arith.sitofp %56 : vector<512x1xi32> to vector<512x1xf32>
    %c17_i32 = arith.constant 17 : i32
    %58 = tpu.dynamic_rotate %8 by %c17_i32 dim 0 : vector<512x32xf32>, i32 -> vector<512x32xf32>
    %59 = arith.mulf %45, %53 : vector<512x1xf32>
    %60 = vector.broadcast %59 : vector<512x1xf32> to vector<512x32xf32>
    %61 = arith.mulf %58, %60 : vector<512x32xf32>
    %62 = arith.truncf %61 : vector<512x32xf32> to vector<512x32xbf16>
    %c0_18 = arith.constant 0 : index
    %c0_19 = arith.constant 0 : index
    %63 = vector.load %arg9[%c0_18, %c0_19] : memref<512x288xbf16, #tpu.memory_space<vmem>>, vector<512x32xbf16>
    tpu.vector_store %arg9[%c0_18, %c0_19], %62 {strides = array<i32>} : memref<512x288xbf16, #tpu.memory_space<vmem>>, vector<512x32xbf16>,
    %c16_i32_20 = arith.constant 16 : i32
    %64 = tpu.dynamic_rotate %8 by %c16_i32_20 dim 0 : vector<512x32xf32>, i32 -> vector<512x32xf32>
    %65 = vector.broadcast %45 : vector<512x1xf32> to vector<512x32xf32>
    %66 = arith.mulf %64, %65 : vector<512x32xf32>
    %67 = arith.truncf %66 : vector<512x32xf32> to vector<512x32xbf16>
    %c0_21 = arith.constant 0 : index
    %c32 = arith.constant 32 : index
    %68 = vector.load %arg9[%c0_21, %c32] : memref<512x288xbf16, #tpu.memory_space<vmem>>, vector<512x32xbf16>
    tpu.vector_store %arg9[%c0_21, %c32], %67 {strides = array<i32>} : memref<512x288xbf16, #tpu.memory_space<vmem>>, vector<512x32xbf16>,
    %c15_i32 = arith.constant 15 : i32
    %69 = tpu.dynamic_rotate %8 by %c15_i32 dim 0 : vector<512x32xf32>, i32 -> vector<512x32xf32>
    %70 = arith.mulf %45, %57 : vector<512x1xf32>
    %71 = vector.broadcast %70 : vector<512x1xf32> to vector<512x32xf32>
    %72 = arith.mulf %69, %71 : vector<512x32xf32>
    %73 = arith.truncf %72 : vector<512x32xf32> to vector<512x32xbf16>
    %c0_22 = arith.constant 0 : index
    %c64 = arith.constant 64 : index
    %74 = vector.load %arg9[%c0_22, %c64] : memref<512x288xbf16, #tpu.memory_space<vmem>>, vector<512x32xbf16>
    tpu.vector_store %arg9[%c0_22, %c64], %73 {strides = array<i32>} : memref<512x288xbf16, #tpu.memory_space<vmem>>, vector<512x32xbf16>,
    %c1_i32_23 = arith.constant 1 : i32
    %75 = tpu.dynamic_rotate %8 by %c1_i32_23 dim 0 : vector<512x32xf32>, i32 -> vector<512x32xf32>
    %76 = vector.broadcast %53 : vector<512x1xf32> to vector<512x32xf32>
    %77 = arith.mulf %75, %76 : vector<512x32xf32>
    %78 = arith.truncf %77 : vector<512x32xf32> to vector<512x32xbf16>
    %c0_24 = arith.constant 0 : index
    %c96 = arith.constant 96 : index
    %79 = vector.load %arg9[%c0_24, %c96] : memref<512x288xbf16, #tpu.memory_space<vmem>>, vector<512x32xbf16>
    tpu.vector_store %arg9[%c0_24, %c96], %78 {strides = array<i32>} : memref<512x288xbf16, #tpu.memory_space<vmem>>, vector<512x32xbf16>,
    %80 = arith.truncf %8 : vector<512x32xf32> to vector<512x32xbf16>
    %c0_25 = arith.constant 0 : index
    %c128 = arith.constant 128 : index
    %81 = vector.load %arg9[%c0_25, %c128] : memref<512x288xbf16, #tpu.memory_space<vmem>>, vector<512x32xbf16>
    tpu.vector_store %arg9[%c0_25, %c128], %80 {strides = array<i32>} : memref<512x288xbf16, #tpu.memory_space<vmem>>, vector<512x32xbf16>,
    %c511_i32 = arith.constant 511 : i32
    %82 = tpu.dynamic_rotate %8 by %c511_i32 dim 0 : vector<512x32xf32>, i32 -> vector<512x32xf32>
    %83 = vector.broadcast %57 : vector<512x1xf32> to vector<512x32xf32>
    %84 = arith.mulf %82, %83 : vector<512x32xf32>
    %85 = arith.truncf %84 : vector<512x32xf32> to vector<512x32xbf16>
    %c0_26 = arith.constant 0 : index
    %c160 = arith.constant 160 : index
    %86 = vector.load %arg9[%c0_26, %c160] : memref<512x288xbf16, #tpu.memory_space<vmem>>, vector<512x32xbf16>
    tpu.vector_store %arg9[%c0_26, %c160], %85 {strides = array<i32>} : memref<512x288xbf16, #tpu.memory_space<vmem>>, vector<512x32xbf16>,
    %c497_i32 = arith.constant 497 : i32
    %87 = tpu.dynamic_rotate %8 by %c497_i32 dim 0 : vector<512x32xf32>, i32 -> vector<512x32xf32>
    %88 = arith.mulf %49, %53 : vector<512x1xf32>
    %89 = vector.broadcast %88 : vector<512x1xf32> to vector<512x32xf32>
    %90 = arith.mulf %87, %89 : vector<512x32xf32>
    %91 = arith.truncf %90 : vector<512x32xf32> to vector<512x32xbf16>
    %c0_27 = arith.constant 0 : index
    %c192 = arith.constant 192 : index
    %92 = vector.load %arg9[%c0_27, %c192] : memref<512x288xbf16, #tpu.memory_space<vmem>>, vector<512x32xbf16>
    tpu.vector_store %arg9[%c0_27, %c192], %91 {strides = array<i32>} : memref<512x288xbf16, #tpu.memory_space<vmem>>, vector<512x32xbf16>,
    %c496_i32 = arith.constant 496 : i32
    %93 = tpu.dynamic_rotate %8 by %c496_i32 dim 0 : vector<512x32xf32>, i32 -> vector<512x32xf32>
    %94 = vector.broadcast %49 : vector<512x1xf32> to vector<512x32xf32>
    %95 = arith.mulf %93, %94 : vector<512x32xf32>
    %96 = arith.truncf %95 : vector<512x32xf32> to vector<512x32xbf16>
    %c0_28 = arith.constant 0 : index
    %c224 = arith.constant 224 : index
    %97 = vector.load %arg9[%c0_28, %c224] : memref<512x288xbf16, #tpu.memory_space<vmem>>, vector<512x32xbf16>
    tpu.vector_store %arg9[%c0_28, %c224], %96 {strides = array<i32>} : memref<512x288xbf16, #tpu.memory_space<vmem>>, vector<512x32xbf16>,
    %c495_i32 = arith.constant 495 : i32
    %98 = tpu.dynamic_rotate %8 by %c495_i32 dim 0 : vector<512x32xf32>, i32 -> vector<512x32xf32>
    %99 = arith.mulf %49, %57 : vector<512x1xf32>
    %100 = vector.broadcast %99 : vector<512x1xf32> to vector<512x32xf32>
    %101 = arith.mulf %98, %100 : vector<512x32xf32>
    %102 = arith.truncf %101 : vector<512x32xf32> to vector<512x32xbf16>
    %c0_29 = arith.constant 0 : index
    %c256 = arith.constant 256 : index
    %103 = vector.load %arg9[%c0_29, %c256] : memref<512x288xbf16, #tpu.memory_space<vmem>>, vector<512x32xbf16>
    tpu.vector_store %arg9[%c0_29, %c256], %102 {strides = array<i32>} : memref<512x288xbf16, #tpu.memory_space<vmem>>, vector<512x32xbf16>,
    %c0_30 = arith.constant 0 : index
    %c0_31 = arith.constant 0 : index
    %104 = vector.load %arg9[%c0_30, %c0_31] : memref<512x288xbf16, #tpu.memory_space<vmem>>, vector<512x288xbf16>
    %c0_32 = arith.constant 0 : index
    %c0_33 = arith.constant 0 : index
    %105 = vector.load %arg4[%c0_32, %c0_33] : memref<288x32xbf16, #tpu.memory_space<vmem>>, vector<288x32xbf16>
    %cst_34 = arith.constant dense<0.000000e+00> : vector<512x32xf32>
    %106 = tpu.matmul %104, %105, %cst_34 {dimension_numbers = #tpu.dot_dimension_numbers<[1], [0], [0], [1], [0, 0, 1, 1], [], []>} : vector<512x288xbf16>, vector<288x32xbf16>, vector<512x32xf32> -> vector<512x32xf32>
    %c0_35 = arith.constant 0 : index
    %c0_36 = arith.constant 0 : index
    %107 = vector.load %arg5[%c0_35, %c0_36] : memref<1x32xf32, #tpu.memory_space<vmem>>, vector<1x32xf32>
    %108 = vector.broadcast %107 : vector<1x32xf32> to vector<512x32xf32>
    %109 = arith.addf %106, %108 : vector<512x32xf32>
    %cst_37 = arith.constant 0.000000e+00 : f32
    %110 = vector.broadcast %cst_37 : f32 to vector<512x32xf32>
    %111 = arith.maximumf %109, %110 : vector<512x32xf32>
    %112 = arith.truncf %111 : vector<512x32xf32> to vector<512x32xbf16>
    %c0_38 = arith.constant 0 : index
    %c0_39 = arith.constant 0 : index
    %113 = vector.load %arg6[%c0_38, %c0_39] : memref<32x128xbf16, #tpu.memory_space<vmem>>, vector<32x128xbf16>
    %cst_40 = arith.constant dense<0.000000e+00> : vector<512x128xf32>
    %114 = tpu.matmul %112, %113, %cst_40 {dimension_numbers = #tpu.dot_dimension_numbers<[1], [0], [0], [1], [0, 0, 1, 1], [], []>} : vector<512x32xbf16>, vector<32x128xbf16>, vector<512x128xf32> -> vector<512x128xf32>
    %c0_41 = arith.constant 0 : index
    %c0_42 = arith.constant 0 : index
    %115 = vector.load %arg7[%c0_41, %c0_42] : memref<1x128xf32, #tpu.memory_space<vmem>>, vector<1x128xf32>
    %116 = vector.broadcast %115 : vector<1x128xf32> to vector<512x128xf32>
    %117 = arith.addf %114, %116 : vector<512x128xf32>
    %118 = arith.extf %1 : vector<512x128xbf16> to vector<512x128xf32>
    %119 = arith.addf %117, %118 : vector<512x128xf32>
    %cst_43 = arith.constant 0.000000e+00 : f32
    %120 = vector.broadcast %cst_43 : f32 to vector<512x128xf32>
    %121 = arith.maximumf %119, %120 : vector<512x128xf32>
    %122 = vector.shape_cast %121 : vector<512x128xf32> to vector<2x16x16x128xf32>
    %123 = arith.truncf %122 : vector<2x16x16x128xf32> to vector<2x16x16x128xbf16>
    %c0_44 = arith.constant 0 : index
    %c0_45 = arith.constant 0 : index
    %c0_46 = arith.constant 0 : index
    %c0_47 = arith.constant 0 : index
    %124 = vector.load %arg8[%c0_44, %c0_45, %c0_46, %c0_47] : memref<2x16x16x128xbf16, #tpu.memory_space<vmem>>, vector<2x16x16x128xbf16>
    tpu.vector_store %arg8[%c0_44, %c0_45, %c0_46, %c0_47], %123 {strides = array<i32>} : memref<2x16x16x128xbf16, #tpu.memory_space<vmem>>, vector<2x16x16x128xbf16>,
    return
  }
  func.func @transform_0(%arg0: i32) -> (i32, i32, i32, i32) {
    %c0_i32 = arith.constant 0 : i32
    %c0_i32_0 = arith.constant 0 : i32
    %c0_i32_1 = arith.constant 0 : i32
    %c0_i32_2 = arith.constant 0 : i32
    return %arg0, %c0_i32, %c0_i32_0, %c0_i32_1 : i32, i32, i32, i32
  }
  func.func @transform_1(%arg0: i32) -> (i32, i32) {
    %c0_i32 = arith.constant 0 : i32
    %c0_i32_0 = arith.constant 0 : i32
    %c0_i32_1 = arith.constant 0 : i32
    return %c0_i32, %c0_i32_0 : i32, i32
  }
  func.func @transform_2(%arg0: i32) -> (i32, i32) {
    %c0_i32 = arith.constant 0 : i32
    %c0_i32_0 = arith.constant 0 : i32
    %c0_i32_1 = arith.constant 0 : i32
    return %c0_i32, %c0_i32_0 : i32, i32
  }
  func.func @transform_3(%arg0: i32) -> (i32, i32) {
    %c0_i32 = arith.constant 0 : i32
    %c0_i32_0 = arith.constant 0 : i32
    %c0_i32_1 = arith.constant 0 : i32
    return %c0_i32, %c0_i32_0 : i32, i32
  }
  func.func @transform_4(%arg0: i32) -> (i32, i32) {
    %c0_i32 = arith.constant 0 : i32
    %c0_i32_0 = arith.constant 0 : i32
    %c0_i32_1 = arith.constant 0 : i32
    return %c0_i32, %c0_i32_0 : i32, i32
  }
  func.func @transform_5(%arg0: i32) -> (i32, i32) {
    %c0_i32 = arith.constant 0 : i32
    %c0_i32_0 = arith.constant 0 : i32
    %c0_i32_1 = arith.constant 0 : i32
    return %c0_i32, %c0_i32_0 : i32, i32
  }
  func.func @transform_6(%arg0: i32) -> (i32, i32) {
    %c0_i32 = arith.constant 0 : i32
    %c0_i32_0 = arith.constant 0 : i32
    %c0_i32_1 = arith.constant 0 : i32
    return %c0_i32, %c0_i32_0 : i32, i32
  }
  func.func @transform_7(%arg0: i32) -> (i32, i32, i32, i32) {
    %c0_i32 = arith.constant 0 : i32
    %c0_i32_0 = arith.constant 0 : i32
    %c0_i32_1 = arith.constant 0 : i32
    %c0_i32_2 = arith.constant 0 : i32
    return %arg0, %c0_i32, %c0_i32_0, %c0_i32_1 : i32, i32, i32, i32
  }
}

</mosaic_0001>

<llo_original>
// kernel: tpu_custom_call.1
$region0: #{tpu_custom_call.1}
  #allocation0 [shape = 'u32[]', space=smem, size = 0x4, offset = 0x4, fixed_abs, tag = 'smem constant byte address 0x4 - core index']
  #allocation1 [shape = 'u32[72,128]{1,0:T(1,128)}', space=vmem, size = 0x9000, scoped, tag = 'internal scratch']
  #allocation2 [shape = 'bf16[512,288]{1,0:T(8,128)(2,1)}', space=vmem, size = 0x60000, scoped, tag = 'scratch operand']
  %s0 = inlined_call_operand.hbm [shape: bf16[2,16,16,128], index: 0, kind: input, shape index: {}]
  %s1 = inlined_call_operand.vmem [shape: bf16[128,32], index: 1, kind: input, shape index: {}]
  %s2 = inlined_call_operand.vmem [shape: f32[1,32], index: 2, kind: input, shape index: {}]
  %s3 = inlined_call_operand.vmem [shape: bf16[288,32], index: 3, kind: input, shape index: {}]
  %s4 = inlined_call_operand.vmem [shape: f32[1,32], index: 4, kind: input, shape index: {}]
  %s5 = inlined_call_operand.vmem [shape: bf16[32,128], index: 5, kind: input, shape index: {}]
  %s6 = inlined_call_operand.vmem [shape: f32[1,128], index: 6, kind: input, shape index: {}]
  %s7 = inlined_call_operand.hbm [shape: bf16[2,16,16,128], index: 7, kind: output, shape index: {}]
  %s8 = sld [smem:[#allocation0]]
  $region42: #{tpu_custom_call.1} parent=0
    _
  %s10 = ssub.s32 1, %s8
  %s11 = scalar_select 0, %s10, %s8
  $region1: #{tpu_custom_call.1} parent=0
    #allocation3 [shape = 'u8[131072]{0}', space=vmem, size = 0x20000, scoped, tag = 'input window, operand 0, single buffered']
    #allocation4 [shape = 's32[1]{0}', space=sflag, size = 0x4, scoped, tag = 'scoped memory for tpu_custom_call.1']
    #allocation5 [shape = 's32[1]{0}', space=sflag, size = 0x4, scoped, tag = 'scoped memory for tpu_custom_call.1']
    #allocation6 [shape = 'u8[131072]{0}', space=vmem, size = 0x20000, scoped, tag = 'output window, operand 0, single buffered']
    %12 = vsyncpa [#allocation4], 0
    %13 = vsyncpa [#allocation5], 0
    // Predicated region
    $region2: #{tpu_custom_call.1} parent=1 // pred_check
      _
    $region3: #{tpu_custom_call.1} parent=1 // pred_check_branch
      %15 = sbr.rel (0) target = $region5
    $region4: #{tpu_custom_call.1} parent=1 // pred_region
      %17 = vsyncadd [#allocation4], 0
      %s18 = sshll.u32 %s0, 4
      %s19 = int_to_ptr.hbm [resolvable:$true] %s18
      %s20 = sshll.u32 [#allocation3], 4
      %s21 = int_to_ptr.vmem [resolvable:$true] %s20
      %26 = dma.hbm_to_vmem [thread:$0]  %s19, 4096, %s21, [#allocation4], 64, 64, 4
    $region5: #{tpu_custom_call.1} parent=1 // pred_fallthru
      _
    // Predicated region
    $region6: #{tpu_custom_call.1} parent=1 // pred_check
      _
    $region7: #{tpu_custom_call.1} parent=1 // pred_check_branch
      %28 = sbr.rel (0) target = $region9
    $region8: #{tpu_custom_call.1} parent=1 // pred_region
      _
    $region9: #{tpu_custom_call.1} parent=1 // pred_fallthru
      _
    // Predicated region
    $region10: #{tpu_custom_call.1} parent=1 // pred_check
      _
    $region11: #{tpu_custom_call.1} parent=1 // pred_check_branch
      %30 = sbr.rel (0) target = $region13
    $region12: #{tpu_custom_call.1} parent=1 // pred_region
      _
    $region13: #{tpu_custom_call.1} parent=1 // pred_fallthru
      _
    // Predicated region
    $region14: #{tpu_custom_call.1} parent=1 // pred_check
      _
    $region15: #{tpu_custom_call.1} parent=1 // pred_check_branch
      %32 = sbr.rel (0) target = $region17
    $region16: #{tpu_custom_call.1} parent=1 // pred_region
      _
    $region17: #{tpu_custom_call.1} parent=1 // pred_fallthru
      _
    // Predicated region
    $region18: #{tpu_custom_call.1} parent=1 // pred_check
      _
    $region19: #{tpu_custom_call.1} parent=1 // pred_check_branch
      %34 = sbr.rel (0) target = $region21
    $region20: #{tpu_custom_call.1} parent=1 // pred_region
      _
    $region21: #{tpu_custom_call.1} parent=1 // pred_fallthru
      _
    // Predicated region
    $region22: #{tpu_custom_call.1} parent=1 // pred_check
      _
    $region23: #{tpu_custom_call.1} parent=1 // pred_check_branch
      %36 = sbr.rel (0) target = $region25
    $region24: #{tpu_custom_call.1} parent=1 // pred_region
      _
    $region25: #{tpu_custom_call.1} parent=1 // pred_fallthru
      _
    // Predicated region
    $region26: #{tpu_custom_call.1} parent=1 // pred_check
      _
    $region27: #{tpu_custom_call.1} parent=1 // pred_check_branch
      %38 = sbr.rel (0) target = $region29
    $region28: #{tpu_custom_call.1} parent=1 // pred_region
      _
    $region29: #{tpu_custom_call.1} parent=1 // pred_fallthru
      _
    // Predicated region
    $region30: #{tpu_custom_call.1} parent=1 // pred_check
      _
    $region31: #{tpu_custom_call.1} parent=1 // pred_check_branch
      %40 = sbr.rel (0) target = $region33
    $region32: #{tpu_custom_call.1} parent=1 // pred_region
      %42 = dma.done [#allocation4], 4096
    $region33: #{tpu_custom_call.1} parent=1 // pred_fallthru
      _
    %v44 = vld [vmem:[#allocation3] sm:$0xf]
    %v45 = vld [vmem:[#allocation3 + $0x4] sm:$0xf]
    %v46 = vld [vmem:[#allocation3 + $0x8] sm:$0xf]
    %v47 = vld [vmem:[#allocation3 + $0xc] sm:$0xf]
    %v48 = vld [vmem:[#allocation3 + $0x10] sm:$0xf]
    %v49 = vld [vmem:[#allocation3 + $0x14] sm:$0xf]
    %v50 = vld [vmem:[#allocation3 + $0x18] sm:$0xf]
    %v51 = vld [vmem:[#allocation3 + $0x1c] sm:$0xf]
    %v52 = vld [vmem:[#allocation3 + $0x20] sm:$0xf]
    %v53 = vld [vmem:[#allocation3 + $0x24] sm:$0xf]
    %v54 = vld [vmem:[#allocation3 + $0x28] sm:$0xf]
    %v55 = vld [vmem:[#allocation3 + $0x2c] sm:$0xf]
    %v56 = vld [vmem:[#allocation3 + $0x30] sm:$0xf]
    %v57 = vld [vmem:[#allocation3 + $0x34] sm:$0xf]
    %v58 = vld [vmem:[#allocation3 + $0x38] sm:$0xf]
    %v59 = vld [vmem:[#allocation3 + $0x3c] sm:$0xf]
    %v60 = vld [vmem:[#allocation3 + $0x40] sm:$0xf]
    %v61 = vld [vmem:[#allocation3 + $0x44] sm:$0xf]
    %v62 = vld [vmem:[#allocation3 + $0x48] sm:$0xf]
    %v63 = vld [vmem:[#allocation3 + $0x4c] sm:$0xf]
    %v64 = vld [vmem:[#allocation3 + $0x50] sm:$0xf]
    %v65 = vld [vmem:[#allocation3 + $0x54] sm:$0xf]
    %v66 = vld [vmem:[#allocation3 + $0x58] sm:$0xf]
    %v67 = vld [vmem:[#allocation3 + $0x5c] sm:$0xf]
    %v68 = vld [vmem:[#allocation3 + $0x60] sm:$0xf]
    %v69 = vld [vmem:[#allocation3 + $0x64] sm:$0xf]
    %v70 = vld [vmem:[#allocation3 + $0x68] sm:$0xf]
    %v71 = vld [vmem:[#allocation3 + $0x6c] sm:$0xf]
    %v72 = vld [vmem:[#allocation3 + $0x70] sm:$0xf]
    %v73 = vld [vmem:[#allocation3 + $0x74] sm:$0xf]
    %v74 = vld [vmem:[#allocation3 + $0x78] sm:$0xf]
    %v75 = vld [vmem:[#allocation3 + $0x7c] sm:$0xf]
    %v76 = vld [vmem:[#allocation3 + $0x80] sm:$0xf]
    %v77 = vld [vmem:[#allocation3 + $0x84] sm:$0xf]
    %v78 = vld [vmem:[#allocation3 + $0x88] sm:$0xf]
    %v79 = vld [vmem:[#allocation3 + $0x8c] sm:$0xf]
    %v80 = vld [vmem:[#allocation3 + $0x90] sm:$0xf]
    %v81 = vld [vmem:[#allocation3 + $0x94] sm:$0xf]
    %v82 = vld [vmem:[#allocation3 + $0x98] sm:$0xf]
    %v83 = vld [vmem:[#allocation3 + $0x9c] sm:$0xf]
    %v84 = vld [vmem:[#allocation3 + $0xa0] sm:$0xf]
    %v85 = vld [vmem:[#allocation3 + $0xa4] sm:$0xf]
    %v86 = vld [vmem:[#allocation3 + $0xa8] sm:$0xf]
    %v87 = vld [vmem:[#allocation3 + $0xac] sm:$0xf]
    %v88 = vld [vmem:[#allocation3 + $0xb0] sm:$0xf]
    %v89 = vld [vmem:[#allocation3 + $0xb4] sm:$0xf]
    %v90 = vld [vmem:[#allocation3 + $0xb8] sm:$0xf]
    %v91 = vld [vmem:[#allocation3 + $0xbc] sm:$0xf]
    %v92 = vld [vmem:[#allocation3 + $0xc0] sm:$0xf]
    %v93 = vld [vmem:[#allocation3 + $0xc4] sm:$0xf]
    %v94 = vld [vmem:[#allocation3 + $0xc8] sm:$0xf]
    %v95 = vld [vmem:[#allocation3 + $0xcc] sm:$0xf]
    %v96 = vld [vmem:[#allocation3 + $0xd0] sm:$0xf]
    %v97 = vld [vmem:[#allocation3 + $0xd4] sm:$0xf]
    %v98 = vld [vmem:[#allocation3 + $0xd8] sm:$0xf]
    %v99 = vld [vmem:[#allocation3 + $0xdc] sm:$0xf]
    %v100 = vld [vmem:[#allocation3 + $0xe0] sm:$0xf]
    %v101 = vld [vmem:[#allocation3 + $0xe4] sm:$0xf]
    %v102 = vld [vmem:[#allocation3 + $0xe8] sm:$0xf]
    %v103 = vld [vmem:[#allocation3 + $0xec] sm:$0xf]
    %v104 = vld [vmem:[#allocation3 + $0xf0] sm:$0xf]
    %v105 = vld [vmem:[#allocation3 + $0xf4] sm:$0xf]
    %v106 = vld [vmem:[#allocation3 + $0xf8] sm:$0xf]
    %v107 = vld [vmem:[#allocation3 + $0xfc] sm:$0xf]
    %v108 = vld [vmem:[%s1] sm:$0xf]
    %v109 = vld [vmem:[%s1 + $0x4] sm:$0xf]
    %v110 = vld [vmem:[%s1 + $0x8] sm:$0xf]
    %v111 = vld [vmem:[%s1 + $0xc] sm:$0xf]
    %v112 = vld [vmem:[%s1 + $0x10] sm:$0xf]
    %v113 = vld [vmem:[%s1 + $0x14] sm:$0xf]
    %v114 = vld [vmem:[%s1 + $0x18] sm:$0xf]
    %v115 = vld [vmem:[%s1 + $0x1c] sm:$0xf]
    %v116 = vld [vmem:[%s1 + $0x20] sm:$0xf]
    %v117 = vld [vmem:[%s1 + $0x24] sm:$0xf]
    %v118 = vld [vmem:[%s1 + $0x28] sm:$0xf]
    %v119 = vld [vmem:[%s1 + $0x2c] sm:$0xf]
    %v120 = vld [vmem:[%s1 + $0x30] sm:$0xf]
    %v121 = vld [vmem:[%s1 + $0x34] sm:$0xf]
    %v122 = vld [vmem:[%s1 + $0x38] sm:$0xf]
    %v123 = vld [vmem:[%s1 + $0x3c] sm:$0xf]
    %v124 = vld [vmem:[%s2] sm:$0x1]
    %v126 = vperm.slane %v124, 0
    %v192 = vunpack.c.l.b16 %v44
    %v193 = vunpack.c.l.b16 %v45
    %v194 = vunpack.c.l.b16 %v46
    %v195 = vunpack.c.l.b16 %v47
    %v196 = vunpack.c.l.b16 %v48
    %v197 = vunpack.c.l.b16 %v49
    %v198 = vunpack.c.l.b16 %v50
    %v199 = vunpack.c.l.b16 %v51
    %v200 = vunpack.c.l.b16 %v52
    %v201 = vunpack.c.l.b16 %v53
    %v202 = vunpack.c.l.b16 %v54
    %v203 = vunpack.c.l.b16 %v55
    %v204 = vunpack.c.l.b16 %v56
    %v205 = vunpack.c.l.b16 %v57
    %v206 = vunpack.c.l.b16 %v58
    %v207 = vunpack.c.l.b16 %v59
    %v208 = vunpack.c.l.b16 %v60
    %v209 = vunpack.c.l.b16 %v61
    %v210 = vunpack.c.l.b16 %v62
    %v211 = vunpack.c.l.b16 %v63
    %v212 = vunpack.c.l.b16 %v64
    %v213 = vunpack.c.l.b16 %v65
    %v214 = vunpack.c.l.b16 %v66
    %v215 = vunpack.c.l.b16 %v67
    %v216 = vunpack.c.l.b16 %v68
    %v217 = vunpack.c.l.b16 %v69
    %v218 = vunpack.c.l.b16 %v70
    %v219 = vunpack.c.l.b16 %v71
    %v220 = vunpack.c.l.b16 %v72
    %v221 = vunpack.c.l.b16 %v73
    %v222 = vunpack.c.l.b16 %v74
    %v223 = vunpack.c.l.b16 %v75
    %v224 = vunpack.c.l.b16 %v76
    %v225 = vunpack.c.l.b16 %v77
    %v226 = vunpack.c.l.b16 %v78
    %v227 = vunpack.c.l.b16 %v79
    %v228 = vunpack.c.l.b16 %v80
    %v229 = vunpack.c.l.b16 %v81
    %v230 = vunpack.c.l.b16 %v82
    %v231 = vunpack.c.l.b16 %v83
    %v232 = vunpack.c.l.b16 %v84
    %v233 = vunpack.c.l.b16 %v85
    %v234 = vunpack.c.l.b16 %v86
    %v235 = vunpack.c.l.b16 %v87
    %v236 = vunpack.c.l.b16 %v88
    %v237 = vunpack.c.l.b16 %v89
    %v238 = vunpack.c.l.b16 %v90
    %v239 = vunpack.c.l.b16 %v91
    %v240 = vunpack.c.l.b16 %v92
    %v241 = vunpack.c.l.b16 %v93
    %v242 = vunpack.c.l.b16 %v94
    %v243 = vunpack.c.l.b16 %v95
    %v244 = vunpack.c.l.b16 %v96
    %v245 = vunpack.c.l.b16 %v97
    %v246 = vunpack.c.l.b16 %v98
    %v247 = vunpack.c.l.b16 %v99
    %v248 = vunpack.c.l.b16 %v100
    %v249 = vunpack.c.l.b16 %v101
    %v250 = vunpack.c.l.b16 %v102
    %v251 = vunpack.c.l.b16 %v103
    %v252 = vunpack.c.l.b16 %v104
    %v253 = vunpack.c.l.b16 %v105
    %v254 = vunpack.c.l.b16 %v106
    %v255 = vunpack.c.l.b16 %v107
    %v256 = vpack.c.b16 %v193, %v192
    %v257 = vpack.c.b16 %v195, %v194
    %v258 = vpack.c.b16 %v197, %v196
    %v259 = vpack.c.b16 %v199, %v198
    %v260 = vpack.c.b16 %v201, %v200
    %v261 = vpack.c.b16 %v203, %v202
    %v262 = vpack.c.b16 %v205, %v204
    %v263 = vpack.c.b16 %v207, %v206
    %v264 = vpack.c.b16 %v209, %v208
    %v265 = vpack.c.b16 %v211, %v210
    %v266 = vpack.c.b16 %v213, %v212
    %v267 = vpack.c.b16 %v215, %v214
    %v268 = vpack.c.b16 %v217, %v216
    %v269 = vpack.c.b16 %v219, %v218
    %v270 = vpack.c.b16 %v221, %v220
    %v271 = vpack.c.b16 %v223, %v222
    %v272 = vpack.c.b16 %v225, %v224
    %v273 = vpack.c.b16 %v227, %v226
    %v274 = vpack.c.b16 %v229, %v228
    %v275 = vpack.c.b16 %v231, %v230
    %v276 = vpack.c.b16 %v233, %v232
    %v277 = vpack.c.b16 %v235, %v234
    %v278 = vpack.c.b16 %v237, %v236
    %v279 = vpack.c.b16 %v239, %v238
    %v280 = vpack.c.b16 %v241, %v240
    %v281 = vpack.c.b16 %v243, %v242
    %v282 = vpack.c.b16 %v245, %v244
    %v283 = vpack.c.b16 %v247, %v246
    %v284 = vpack.c.b16 %v249, %v248
    %v285 = vpack.c.b16 %v251, %v250
    %v286 = vpack.c.b16 %v253, %v252
    %v287 = vpack.c.b16 %v255, %v254
    %v336 = vunpack.c.l.b16 %v108
    %v337 = vunpack.c.l.b16 %v109
    %v338 = vunpack.c.l.b16 %v110
    %v339 = vunpack.c.l.b16 %v111
    %v340 = vunpack.c.l.b16 %v112
    %v341 = vunpack.c.l.b16 %v113
    %v342 = vunpack.c.l.b16 %v114
    %v343 = vunpack.c.l.b16 %v115
    %v344 = vunpack.c.l.b16 %v116
    %v345 = vunpack.c.l.b16 %v117
    %v346 = vunpack.c.l.b16 %v118
    %v347 = vunpack.c.l.b16 %v119
    %v348 = vunpack.c.l.b16 %v120
    %v349 = vunpack.c.l.b16 %v121
    %v350 = vunpack.c.l.b16 %v122
    %v351 = vunpack.c.l.b16 %v123
    %v352 = vpack.c.b16 %v337, %v336
    %v353 = vpack.c.b16 %v339, %v338
    %v354 = vpack.c.b16 %v341, %v340
    %v355 = vpack.c.b16 %v343, %v342
    %v356 = vpack.c.b16 %v345, %v344
    %v357 = vpack.c.b16 %v347, %v346
    %v358 = vpack.c.b16 %v349, %v348
    %v359 = vpack.c.b16 %v351, %v350
    %368 = vmatpush.bf16.msra.mxu0 %v359
    %369 = vmatpush.bf16.msra.mxu0 %v358
    %370 = vmatpush.bf16.msra.mxu0 %v357
    %371 = vmatpush.bf16.msra.mxu0 %v356
    %372 = vmatpush.bf16.msra.mxu0 %v355
    %373 = vmatpush.bf16.msra.mxu0 %v354
    %374 = vmatpush.bf16.msra.mxu0 %v353
    %375 = vmatpush.bf16.msra.mxu0 %v352
    %376 = vmatmul.bf16.gmra.mxu0 %v256
    %v377 = vpop.f32.mrf.mxu0
    %v378 = vadd.f32 %v126, %v377
    %v379 = vpop.f32.mrf.mxu0
    %v380 = vadd.f32 %v126, %v379
    %381 = vmatmul.bf16.gmra.mxu0 %v257
    %v382 = vpop.f32.mrf.mxu0
    %v383 = vadd.f32 %v126, %v382
    %v384 = vpop.f32.mrf.mxu0
    %v385 = vadd.f32 %v126, %v384
    %386 = vmatmul.bf16.gmra.mxu0 %v258
    %v387 = vpop.f32.mrf.mxu0
    %v388 = vadd.f32 %v126, %v387
    %v389 = vpop.f32.mrf.mxu0
    %v390 = vadd.f32 %v126, %v389
    %391 = vmatmul.bf16.gmra.mxu0 %v259
    %v392 = vpop.f32.mrf.mxu0
    %v393 = vadd.f32 %v126, %v392
    %v394 = vpop.f32.mrf.mxu0
    %v395 = vadd.f32 %v126, %v394
    %396 = vmatmul.bf16.gmra.mxu0 %v260
    %v397 = vpop.f32.mrf.mxu0
    %v398 = vadd.f32 %v126, %v397
    %v399 = vpop.f32.mrf.mxu0
    %v400 = vadd.f32 %v126, %v399
    %401 = vmatmul.bf16.gmra.mxu0 %v261
    %v402 = vpop.f32.mrf.mxu0
    %v403 = vadd.f32 %v126, %v402
    %v404 = vpop.f32.mrf.mxu0
    %v405 = vadd.f32 %v126, %v404
    %406 = vmatmul.bf16.gmra.mxu0 %v262
    %v407 = vpop.f32.mrf.mxu0
    %v408 = vadd.f32 %v126, %v407
    %v409 = vpop.f32.mrf.mxu0
    %v410 = vadd.f32 %v126, %v409
    %411 = vmatmul.bf16.gmra.mxu0 %v263
    %v412 = vpop.f32.mrf.mxu0
    %v413 = vadd.f32 %v126, %v412
    %v414 = vpop.f32.mrf.mxu0
    %v415 = vadd.f32 %v126, %v414
    %416 = vmatmul.bf16.gmra.mxu0 %v264
    %v417 = vpop.f32.mrf.mxu0
    %v418 = vadd.f32 %v126, %v417
    %v419 = vpop.f32.mrf.mxu0
    %v420 = vadd.f32 %v126, %v419
    %421 = vmatmul.bf16.gmra.mxu0 %v265
    %v422 = vpop.f32.mrf.mxu0
    %v423 = vadd.f32 %v126, %v422
    %v424 = vpop.f32.mrf.mxu0
    %v425 = vadd.f32 %v126, %v424
    %426 = vmatmul.bf16.gmra.mxu0 %v266
    %v427 = vpop.f32.mrf.mxu0
    %v428 = vadd.f32 %v126, %v427
    %v429 = vpop.f32.mrf.mxu0
    %v430 = vadd.f32 %v126, %v429
    %431 = vmatmul.bf16.gmra.mxu0 %v267
    %v432 = vpop.f32.mrf.mxu0
    %v433 = vadd.f32 %v126, %v432
    %v434 = vpop.f32.mrf.mxu0
    %v435 = vadd.f32 %v126, %v434
    %436 = vmatmul.bf16.gmra.mxu0 %v268
    %v437 = vpop.f32.mrf.mxu0
    %v438 = vadd.f32 %v126, %v437
    %v439 = vpop.f32.mrf.mxu0
    %v440 = vadd.f32 %v126, %v439
    %441 = vmatmul.bf16.gmra.mxu0 %v269
    %v442 = vpop.f32.mrf.mxu0
    %v443 = vadd.f32 %v126, %v442
    %v444 = vpop.f32.mrf.mxu0
    %v445 = vadd.f32 %v126, %v444
    %446 = vmatmul.bf16.gmra.mxu0 %v270
    %v447 = vpop.f32.mrf.mxu0
    %v448 = vadd.f32 %v126, %v447
    %v449 = vpop.f32.mrf.mxu0
    %v450 = vadd.f32 %v126, %v449
    %451 = vmatmul.bf16.gmra.mxu0 %v271
    %v452 = vpop.f32.mrf.mxu0
    %v453 = vadd.f32 %v126, %v452
    %v454 = vpop.f32.mrf.mxu0
    %v455 = vadd.f32 %v126, %v454
    %456 = vmatmul.bf16.gmra.mxu0 %v272
    %v457 = vpop.f32.mrf.mxu0
    %v458 = vadd.f32 %v126, %v457
    %v459 = vpop.f32.mrf.mxu0
    %v460 = vadd.f32 %v126, %v459
    %461 = vmatmul.bf16.gmra.mxu0 %v273
    %v462 = vpop.f32.mrf.mxu0
    %v463 = vadd.f32 %v126, %v462
    %v464 = vpop.f32.mrf.mxu0
    %v465 = vadd.f32 %v126, %v464
    %466 = vmatmul.bf16.gmra.mxu0 %v274
    %v467 = vpop.f32.mrf.mxu0
    %v468 = vadd.f32 %v126, %v467
    %v469 = vpop.f32.mrf.mxu0
    %v470 = vadd.f32 %v126, %v469
    %471 = vmatmul.bf16.gmra.mxu0 %v275
    %v472 = vpop.f32.mrf.mxu0
    %v473 = vadd.f32 %v126, %v472
    %v474 = vpop.f32.mrf.mxu0
    %v475 = vadd.f32 %v126, %v474
    %476 = vmatmul.bf16.gmra.mxu0 %v276
    %v477 = vpop.f32.mrf.mxu0
    %v478 = vadd.f32 %v126, %v477
    %v479 = vpop.f32.mrf.mxu0
    %v480 = vadd.f32 %v126, %v479
    %481 = vmatmul.bf16.gmra.mxu0 %v277
    %v482 = vpop.f32.mrf.mxu0
    %v483 = vadd.f32 %v126, %v482
    %v484 = vpop.f32.mrf.mxu0
    %v485 = vadd.f32 %v126, %v484
    %486 = vmatmul.bf16.gmra.mxu0 %v278
    %v487 = vpop.f32.mrf.mxu0
    %v488 = vadd.f32 %v126, %v487
    %v489 = vpop.f32.mrf.mxu0
    %v490 = vadd.f32 %v126, %v489
    %491 = vmatmul.bf16.gmra.mxu0 %v279
    %v492 = vpop.f32.mrf.mxu0
    %v493 = vadd.f32 %v126, %v492
    %v494 = vpop.f32.mrf.mxu0
    %v495 = vadd.f32 %v126, %v494
    %496 = vmatmul.bf16.gmra.mxu0 %v280
    %v497 = vpop.f32.mrf.mxu0
    %v498 = vadd.f32 %v126, %v497
    %v499 = vpop.f32.mrf.mxu0
    %v500 = vadd.f32 %v126, %v499
    %501 = vmatmul.bf16.gmra.mxu0 %v281
    %v502 = vpop.f32.mrf.mxu0
    %v503 = vadd.f32 %v126, %v502
    %v504 = vpop.f32.mrf.mxu0
    %v505 = vadd.f32 %v126, %v504
    %506 = vmatmul.bf16.gmra.mxu0 %v282
    %v507 = vpop.f32.mrf.mxu0
    %v508 = vadd.f32 %v126, %v507
    %v509 = vpop.f32.mrf.mxu0
    %v510 = vadd.f32 %v126, %v509
    %511 = vmatmul.bf16.gmra.mxu0 %v283
    %v512 = vpop.f32.mrf.mxu0
    %v513 = vadd.f32 %v126, %v512
    %v514 = vpop.f32.mrf.mxu0
    %v515 = vadd.f32 %v126, %v514
    %516 = vmatmul.bf16.gmra.mxu0 %v284
    %v517 = vpop.f32.mrf.mxu0
    %v518 = vadd.f32 %v126, %v517
    %v519 = vpop.f32.mrf.mxu0
    %v520 = vadd.f32 %v126, %v519
    %521 = vmatmul.bf16.gmra.mxu0 %v285
    %v522 = vpop.f32.mrf.mxu0
    %v523 = vadd.f32 %v126, %v522
    %v524 = vpop.f32.mrf.mxu0
    %v525 = vadd.f32 %v126, %v524
    %526 = vmatmul.bf16.gmra.mxu0 %v286
    %v527 = vpop.f32.mrf.mxu0
    %v528 = vadd.f32 %v126, %v527
    %v529 = vpop.f32.mrf.mxu0
    %v530 = vadd.f32 %v126, %v529
    %531 = vmatmul.bf16.gmra.mxu0 %v287
    %v532 = vpop.f32.mrf.mxu0
    %v533 = vadd.f32 %v126, %v532
    %v534 = vpop.f32.mrf.mxu0
    %v535 = vadd.f32 %v126, %v534
    %536 = vdwg.mxu0
    %v537 = vmax.f32 %v378, 0.0
    %v538 = vmax.f32 %v380, 0.0
    %v539 = vmax.f32 %v383, 0.0
    %v540 = vmax.f32 %v385, 0.0
    %v541 = vmax.f32 %v388, 0.0
    %v542 = vmax.f32 %v390, 0.0
    %v543 = vmax.f32 %v393, 0.0
    %v544 = vmax.f32 %v395, 0.0
    %v545 = vmax.f32 %v398, 0.0
    %v546 = vmax.f32 %v400, 0.0
    %v547 = vmax.f32 %v403, 0.0
    %v548 = vmax.f32 %v405, 0.0
    %v549 = vmax.f32 %v408, 0.0
    %v550 = vmax.f32 %v410, 0.0
    %v551 = vmax.f32 %v413, 0.0
    %v552 = vmax.f32 %v415, 0.0
    %v553 = vmax.f32 %v418, 0.0
    %v554 = vmax.f32 %v420, 0.0
    %v555 = vmax.f32 %v423, 0.0
    %v556 = vmax.f32 %v425, 0.0
    %v557 = vmax.f32 %v428, 0.0
    %v558 = vmax.f32 %v430, 0.0
    %v559 = vmax.f32 %v433, 0.0
    %v560 = vmax.f32 %v435, 0.0
    %v561 = vmax.f32 %v438, 0.0
    %v562 = vmax.f32 %v440, 0.0
    %v563 = vmax.f32 %v443, 0.0
    %v564 = vmax.f32 %v445, 0.0
    %v565 = vmax.f32 %v448, 0.0
    %v566 = vmax.f32 %v450, 0.0
    %v567 = vmax.f32 %v453, 0.0
    %v568 = vmax.f32 %v455, 0.0
    %v569 = vmax.f32 %v458, 0.0
    %v570 = vmax.f32 %v460, 0.0
    %v571 = vmax.f32 %v463, 0.0
    %v572 = vmax.f32 %v465, 0.0
    %v573 = vmax.f32 %v468, 0.0
    %v574 = vmax.f32 %v470, 0.0
    %v575 = vmax.f32 %v473, 0.0
    %v576 = vmax.f32 %v475, 0.0
    %v577 = vmax.f32 %v478, 0.0
    %v578 = vmax.f32 %v480, 0.0
    %v579 = vmax.f32 %v483, 0.0
    %v580 = vmax.f32 %v485, 0.0
    %v581 = vmax.f32 %v488, 0.0
    %v582 = vmax.f32 %v490, 0.0
    %v583 = vmax.f32 %v493, 0.0
    %v584 = vmax.f32 %v495, 0.0
    %v585 = vmax.f32 %v498, 0.0
    %v586 = vmax.f32 %v500, 0.0
    %v587 = vmax.f32 %v503, 0.0
    %v588 = vmax.f32 %v505, 0.0
    %v589 = vmax.f32 %v508, 0.0
    %v590 = vmax.f32 %v510, 0.0
    %v591 = vmax.f32 %v513, 0.0
    %v592 = vmax.f32 %v515, 0.0
    %v593 = vmax.f32 %v518, 0.0
    %v594 = vmax.f32 %v520, 0.0
    %v595 = vmax.f32 %v523, 0.0
    %v596 = vmax.f32 %v525, 0.0
    %v597 = vmax.f32 %v528, 0.0
    %v598 = vmax.f32 %v530, 0.0
    %v599 = vmax.f32 %v533, 0.0
    %v600 = vmax.f32 %v535, 0.0
    %v601 = vlaneseq
    %v602 = vshrl.u32 %v601, 7
    %v603 = vadd.s32 %v602, 8
    %v604 = vadd.s32 %v602, 16
    %v605 = vadd.s32 %v602, 24
    %v606 = vadd.s32 %v602, 32
    %v607 = vadd.s32 %v602, 40
    %v608 = vadd.s32 %v602, 48
    %v609 = vadd.s32 %v602, 56
    %v610 = vadd.s32 %v602, 64
    %v611 = vadd.s32 %v602, 72
    %v612 = vadd.s32 %v602, 80
    %v613 = vadd.s32 %v602, 88
    %v614 = vadd.s32 %v602, 96
    %v615 = vadd.s32 %v602, 104
    %v616 = vadd.s32 %v602, 112
    %v617 = vadd.s32 %v602, 120
    %v618 = vadd.s32 %v602, 128
    %v619 = vadd.s32 %v602, 136
    %v620 = vadd.s32 %v602, 144
    %v621 = vadd.s32 %v602, 152
    %v622 = vadd.s32 %v602, 160
    %v623 = vadd.s32 %v602, 168
    %v624 = vadd.s32 %v602, 176
    %v625 = vadd.s32 %v602, 184
    %v626 = vadd.s32 %v602, 192
    %v627 = vadd.s32 %v602, 200
    %v628 = vadd.s32 %v602, 208
    %v629 = vadd.s32 %v602, 216
    %v630 = vadd.s32 %v602, 224
    %v631 = vadd.s32 %v602, 232
    %v632 = vadd.s32 %v602, 240
    %v633 = vadd.s32 %v602, 248
    %v634 = vadd.s32 %v602, 256
    %v635 = vadd.s32 %v602, 264
    %v636 = vadd.s32 %v602, 272
    %v637 = vadd.s32 %v602, 280
    %v638 = vadd.s32 %v602, 288
    %v639 = vadd.s32 %v602, 296
    %v640 = vadd.s32 %v602, 304
    %v641 = vadd.s32 %v602, 312
    %v642 = vadd.s32 %v602, 320
    %v643 = vadd.s32 %v602, 328
    %v644 = vadd.s32 %v602, 336
    %v645 = vadd.s32 %v602, 344
    %v646 = vadd.s32 %v602, 352
    %v647 = vadd.s32 %v602, 360
    %v648 = vadd.s32 %v602, 368
    %v649 = vadd.s32 %v602, 376
    %v650 = vadd.s32 %v602, 384
    %v651 = vadd.s32 %v602, 392
    %v652 = vadd.s32 %v602, 400
    %v653 = vadd.s32 %v602, 408
    %v654 = vadd.s32 %v602, 416
    %v655 = vadd.s32 %v602, 424
    %v656 = vadd.s32 %v602, 432
    %v657 = vadd.s32 %v602, 440
    %v658 = vadd.s32 %v602, 448
    %v659 = vadd.s32 %v602, 456
    %v660 = vadd.s32 %v602, 464
    %v661 = vadd.s32 %v602, 472
    %v662 = vadd.s32 %v602, 480
    %v663 = vadd.s32 %v602, 488
    %v664 = vadd.s32 %v602, 496
    %v665 = vadd.s32 %v602, 504
    %vm666 = vcmp.lt.s32.totalorder %v602, 0
    %v667 = vsub.s32 0, %v602
    %v668 = vsel %vm666, %v667, %v602
    %v669 = vshrl.u32 %v668, 8
    %v670 = vand.u32 %v668, 255
    %v671 = vsub.s32 0, %v670
    %v672 = vsel %vm666, %v671, %v670
    %vm673 = vcmp.lt.s32.totalorder %v603, 0
    %v674 = vsub.s32 0, %v603
    %v675 = vsel %vm673, %v674, %v603
    %v676 = vshrl.u32 %v675, 8
    %v677 = vand.u32 %v675, 255
    %v678 = vsub.s32 0, %v677
    %v679 = vsel %vm673, %v678, %v677
    %vm680 = vcmp.lt.s32.totalorder %v604, 0
    %v681 = vsub.s32 0, %v604
    %v682 = vsel %vm680, %v681, %v604
    %v683 = vshrl.u32 %v682, 8
    %v684 = vand.u32 %v682, 255
    %v685 = vsub.s32 0, %v684
    %v686 = vsel %vm680, %v685, %v684
    %vm687 = vcmp.lt.s32.totalorder %v605, 0
    %v688 = vsub.s32 0, %v605
    %v689 = vsel %vm687, %v688, %v605
    %v690 = vshrl.u32 %v689, 8
    %v691 = vand.u32 %v689, 255
    %v692 = vsub.s32 0, %v691
    %v693 = vsel %vm687, %v692, %v691
    %vm694 = vcmp.lt.s32.totalorder %v606, 0
    %v695 = vsub.s32 0, %v606
    %v696 = vsel %vm694, %v695, %v606
    %v697 = vshrl.u32 %v696, 8
    %v698 = vand.u32 %v696, 255
    %v699 = vsub.s32 0, %v698
    %v700 = vsel %vm694, %v699, %v698
    %vm701 = vcmp.lt.s32.totalorder %v607, 0
    %v702 = vsub.s32 0, %v607
    %v703 = vsel %vm701, %v702, %v607
    %v704 = vshrl.u32 %v703, 8
    %v705 = vand.u32 %v703, 255
    %v706 = vsub.s32 0, %v705
    %v707 = vsel %vm701, %v706, %v705
    %vm708 = vcmp.lt.s32.totalorder %v608, 0
    %v709 = vsub.s32 0, %v608
    %v710 = vsel %vm708, %v709, %v608
    %v711 = vshrl.u32 %v710, 8
    %v712 = vand.u32 %v710, 255
    %v713 = vsub.s32 0, %v712
    %v714 = vsel %vm708, %v713, %v712
    %vm715 = vcmp.lt.s32.totalorder %v609, 0
    %v716 = vsub.s32 0, %v609
    %v717 = vsel %vm715, %v716, %v609
    %v718 = vshrl.u32 %v717, 8
    %v719 = vand.u32 %v717, 255
    %v720 = vsub.s32 0, %v719
    %v721 = vsel %vm715, %v720, %v719
    %vm722 = vcmp.lt.s32.totalorder %v610, 0
    %v723 = vsub.s32 0, %v610
    %v724 = vsel %vm722, %v723, %v610
    %v725 = vshrl.u32 %v724, 8
    %v726 = vand.u32 %v724, 255
    %v727 = vsub.s32 0, %v726
    %v728 = vsel %vm722, %v727, %v726
    %vm729 = vcmp.lt.s32.totalorder %v611, 0
    %v730 = vsub.s32 0, %v611
    %v731 = vsel %vm729, %v730, %v611
    %v732 = vshrl.u32 %v731, 8
    %v733 = vand.u32 %v731, 255
    %v734 = vsub.s32 0, %v733
    %v735 = vsel %vm729, %v734, %v733
    %vm736 = vcmp.lt.s32.totalorder %v612, 0
    %v737 = vsub.s32 0, %v612
    %v738 = vsel %vm736, %v737, %v612
    %v739 = vshrl.u32 %v738, 8
    %v740 = vand.u32 %v738, 255
    %v741 = vsub.s32 0, %v740
    %v742 = vsel %vm736, %v741, %v740
    %vm743 = vcmp.lt.s32.totalorder %v613, 0
    %v744 = vsub.s32 0, %v613
    %v745 = vsel %vm743, %v744, %v613
    %v746 = vshrl.u32 %v745, 8
    %v747 = vand.u32 %v745, 255
    %v748 = vsub.s32 0, %v747
    %v749 = vsel %vm743, %v748, %v747
    %vm750 = vcmp.lt.s32.totalorder %v614, 0
    %v751 = vsub.s32 0, %v614
    %v752 = vsel %vm750, %v751, %v614
    %v753 = vshrl.u32 %v752, 8
    %v754 = vand.u32 %v752, 255
    %v755 = vsub.s32 0, %v754
    %v756 = vsel %vm750, %v755, %v754
    %vm757 = vcmp.lt.s32.totalorder %v615, 0
    %v758 = vsub.s32 0, %v615
    %v759 = vsel %vm757, %v758, %v615
    %v760 = vshrl.u32 %v759, 8
    %v761 = vand.u32 %v759, 255
    %v762 = vsub.s32 0, %v761
    %v763 = vsel %vm757, %v762, %v761
    %vm764 = vcmp.lt.s32.totalorder %v616, 0
    %v765 = vsub.s32 0, %v616
    %v766 = vsel %vm764, %v765, %v616
    %v767 = vshrl.u32 %v766, 8
    %v768 = vand.u32 %v766, 255
    %v769 = vsub.s32 0, %v768
    %v770 = vsel %vm764, %v769, %v768
    %vm771 = vcmp.lt.s32.totalorder %v617, 0
    %v772 = vsub.s32 0, %v617
    %v773 = vsel %vm771, %v772, %v617
    %v774 = vshrl.u32 %v773, 8
    %v775 = vand.u32 %v773, 255
    %v776 = vsub.s32 0, %v775
    %v777 = vsel %vm771, %v776, %v775
    %vm778 = vcmp.lt.s32.totalorder %v618, 0
    %v779 = vsub.s32 0, %v618
    %v780 = vsel %vm778, %v779, %v618
    %v781 = vshrl.u32 %v780, 8
    %v782 = vand.u32 %v780, 255
    %v783 = vsub.s32 0, %v782
    %v784 = vsel %vm778, %v783, %v782
    %vm785 = vcmp.lt.s32.totalorder %v619, 0
    %v786 = vsub.s32 0, %v619
    %v787 = vsel %vm785, %v786, %v619
    %v788 = vshrl.u32 %v787, 8
    %v789 = vand.u32 %v787, 255
    %v790 = vsub.s32 0, %v789
    %v791 = vsel %vm785, %v790, %v789
    %vm792 = vcmp.lt.s32.totalorder %v620, 0
    %v793 = vsub.s32 0, %v620
    %v794 = vsel %vm792, %v793, %v620
    %v795 = vshrl.u32 %v794, 8
    %v796 = vand.u32 %v794, 255
    %v797 = vsub.s32 0, %v796
    %v798 = vsel %vm792, %v797, %v796
    %vm799 = vcmp.lt.s32.totalorder %v621, 0
    %v800 = vsub.s32 0, %v621
    %v801 = vsel %vm799, %v800, %v621
    %v802 = vshrl.u32 %v801, 8
    %v803 = vand.u32 %v801, 255
    %v804 = vsub.s32 0, %v803
    %v805 = vsel %vm799, %v804, %v803
    %vm806 = vcmp.lt.s32.totalorder %v622, 0
    %v807 = vsub.s32 0, %v622
    %v808 = vsel %vm806, %v807, %v622
    %v809 = vshrl.u32 %v808, 8
    %v810 = vand.u32 %v808, 255
    %v811 = vsub.s32 0, %v810
    %v812 = vsel %vm806, %v811, %v810
    %vm813 = vcmp.lt.s32.totalorder %v623, 0
    %v814 = vsub.s32 0, %v623
    %v815 = vsel %vm813, %v814, %v623
    %v816 = vshrl.u32 %v815, 8
    %v817 = vand.u32 %v815, 255
    %v818 = vsub.s32 0, %v817
    %v819 = vsel %vm813, %v818, %v817
    %vm820 = vcmp.lt.s32.totalorder %v624, 0
    %v821 = vsub.s32 0, %v624
    %v822 = vsel %vm820, %v821, %v624
    %v823 = vshrl.u32 %v822, 8
    %v824 = vand.u32 %v822, 255
    %v825 = vsub.s32 0, %v824
    %v826 = vsel %vm820, %v825, %v824
    %vm827 = vcmp.lt.s32.totalorder %v625, 0
    %v828 = vsub.s32 0, %v625
    %v829 = vsel %vm827, %v828, %v625
    %v830 = vshrl.u32 %v829, 8
    %v831 = vand.u32 %v829, 255
    %v832 = vsub.s32 0, %v831
    %v833 = vsel %vm827, %v832, %v831
    %vm834 = vcmp.lt.s32.totalorder %v626, 0
    %v835 = vsub.s32 0, %v626
    %v836 = vsel %vm834, %v835, %v626
    %v837 = vshrl.u32 %v836, 8
    %v838 = vand.u32 %v836, 255
    %v839 = vsub.s32 0, %v838
    %v840 = vsel %vm834, %v839, %v838
    %vm841 = vcmp.lt.s32.totalorder %v627, 0
    %v842 = vsub.s32 0, %v627
    %v843 = vsel %vm841, %v842, %v627
    %v844 = vshrl.u32 %v843, 8
    %v845 = vand.u32 %v843, 255
    %v846 = vsub.s32 0, %v845
    %v847 = vsel %vm841, %v846, %v845
    %vm848 = vcmp.lt.s32.totalorder %v628, 0
    %v849 = vsub.s32 0, %v628
    %v850 = vsel %vm848, %v849, %v628
    %v851 = vshrl.u32 %v850, 8
    %v852 = vand.u32 %v850, 255
    %v853 = vsub.s32 0, %v852
    %v854 = vsel %vm848, %v853, %v852
    %vm855 = vcmp.lt.s32.totalorder %v629, 0
    %v856 = vsub.s32 0, %v629
    %v857 = vsel %vm855, %v856, %v629
    %v858 = vshrl.u32 %v857, 8
    %v859 = vand.u32 %v857, 255
    %v860 = vsub.s32 0, %v859
    %v861 = vsel %vm855, %v860, %v859
    %vm862 = vcmp.lt.s32.totalorder %v630, 0
    %v863 = vsub.s32 0, %v630
    %v864 = vsel %vm862, %v863, %v630
    %v865 = vshrl.u32 %v864, 8
    %v866 = vand.u32 %v864, 255
    %v867 = vsub.s32 0, %v866
    %v868 = vsel %vm862, %v867, %v866
    %vm869 = vcmp.lt.s32.totalorder %v631, 0
    %v870 = vsub.s32 0, %v631
    %v871 = vsel %vm869, %v870, %v631
    %v872 = vshrl.u32 %v871, 8
    %v873 = vand.u32 %v871, 255
    %v874 = vsub.s32 0, %v873
    %v875 = vsel %vm869, %v874, %v873
    %vm876 = vcmp.lt.s32.totalorder %v632, 0
    %v877 = vsub.s32 0, %v632
    %v878 = vsel %vm876, %v877, %v632
    %v879 = vshrl.u32 %v878, 8
    %v880 = vand.u32 %v878, 255
    %v881 = vsub.s32 0, %v880
    %v882 = vsel %vm876, %v881, %v880
    %vm883 = vcmp.lt.s32.totalorder %v633, 0
    %v884 = vsub.s32 0, %v633
    %v885 = vsel %vm883, %v884, %v633
    %v886 = vshrl.u32 %v885, 8
    %v887 = vand.u32 %v885, 255
    %v888 = vsub.s32 0, %v887
    %v889 = vsel %vm883, %v888, %v887
    %vm890 = vcmp.lt.s32.totalorder %v634, 0
    %v891 = vsub.s32 0, %v634
    %v892 = vsel %vm890, %v891, %v634
    %v893 = vshrl.u32 %v892, 8
    %v894 = vand.u32 %v892, 255
    %v895 = vsub.s32 0, %v894
    %v896 = vsel %vm890, %v895, %v894
    %vm897 = vcmp.lt.s32.totalorder %v635, 0
    %v898 = vsub.s32 0, %v635
    %v899 = vsel %vm897, %v898, %v635
    %v900 = vshrl.u32 %v899, 8
    %v901 = vand.u32 %v899, 255
    %v902 = vsub.s32 0, %v901
    %v903 = vsel %vm897, %v902, %v901
    %vm904 = vcmp.lt.s32.totalorder %v636, 0
    %v905 = vsub.s32 0, %v636
    %v906 = vsel %vm904, %v905, %v636
    %v907 = vshrl.u32 %v906, 8
    %v908 = vand.u32 %v906, 255
    %v909 = vsub.s32 0, %v908
    %v910 = vsel %vm904, %v909, %v908
    %vm911 = vcmp.lt.s32.totalorder %v637, 0
    %v912 = vsub.s32 0, %v637
    %v913 = vsel %vm911, %v912, %v637
    %v914 = vshrl.u32 %v913, 8
    %v915 = vand.u32 %v913, 255
    %v916 = vsub.s32 0, %v915
    %v917 = vsel %vm911, %v916, %v915
    %vm918 = vcmp.lt.s32.totalorder %v638, 0
    %v919 = vsub.s32 0, %v638
    %v920 = vsel %vm918, %v919, %v638
    %v921 = vshrl.u32 %v920, 8
    %v922 = vand.u32 %v920, 255
    %v923 = vsub.s32 0, %v922
    %v924 = vsel %vm918, %v923, %v922
    %vm925 = vcmp.lt.s32.totalorder %v639, 0
    %v926 = vsub.s32 0, %v639
    %v927 = vsel %vm925, %v926, %v639
    %v928 = vshrl.u32 %v927, 8
    %v929 = vand.u32 %v927, 255
    %v930 = vsub.s32 0, %v929
    %v931 = vsel %vm925, %v930, %v929
    %vm932 = vcmp.lt.s32.totalorder %v640, 0
    %v933 = vsub.s32 0, %v640
    %v934 = vsel %vm932, %v933, %v640
    %v935 = vshrl.u32 %v934, 8
    %v936 = vand.u32 %v934, 255
    %v937 = vsub.s32 0, %v936
    %v938 = vsel %vm932, %v937, %v936
    %vm939 = vcmp.lt.s32.totalorder %v641, 0
    %v940 = vsub.s32 0, %v641
    %v941 = vsel %vm939, %v940, %v641
    %v942 = vshrl.u32 %v941, 8
    %v943 = vand.u32 %v941, 255
    %v944 = vsub.s32 0, %v943
    %v945 = vsel %vm939, %v944, %v943
    %vm946 = vcmp.lt.s32.totalorder %v642, 0
    %v947 = vsub.s32 0, %v642
    %v948 = vsel %vm946, %v947, %v642
    %v949 = vshrl.u32 %v948, 8
    %v950 = vand.u32 %v948, 255
    %v951 = vsub.s32 0, %v950
    %v952 = vsel %vm946, %v951, %v950
    %vm953 = vcmp.lt.s32.totalorder %v643, 0
    %v954 = vsub.s32 0, %v643
    %v955 = vsel %vm953, %v954, %v643
    %v956 = vshrl.u32 %v955, 8
    %v957 = vand.u32 %v955, 255
    %v958 = vsub.s32 0, %v957
    %v959 = vsel %vm953, %v958, %v957
    %vm960 = vcmp.lt.s32.totalorder %v644, 0
    %v961 = vsub.s32 0, %v644
    %v962 = vsel %vm960, %v961, %v644
    %v963 = vshrl.u32 %v962, 8
    %v964 = vand.u32 %v962, 255
    %v965 = vsub.s32 0, %v964
    %v966 = vsel %vm960, %v965, %v964
    %vm967 = vcmp.lt.s32.totalorder %v645, 0
    %v968 = vsub.s32 0, %v645
    %v969 = vsel %vm967, %v968, %v645
    %v970 = vshrl.u32 %v969, 8
    %v971 = vand.u32 %v969, 255
    %v972 = vsub.s32 0, %v971
    %v973 = vsel %vm967, %v972, %v971
    %vm974 = vcmp.lt.s32.totalorder %v646, 0
    %v975 = vsub.s32 0, %v646
    %v976 = vsel %vm974, %v975, %v646
    %v977 = vshrl.u32 %v976, 8
    %v978 = vand.u32 %v976, 255
    %v979 = vsub.s32 0, %v978
    %v980 = vsel %vm974, %v979, %v978
    %vm981 = vcmp.lt.s32.totalorder %v647, 0
    %v982 = vsub.s32 0, %v647
    %v983 = vsel %vm981, %v982, %v647
    %v984 = vshrl.u32 %v983, 8
    %v985 = vand.u32 %v983, 255
    %v986 = vsub.s32 0, %v985
    %v987 = vsel %vm981, %v986, %v985
    %vm988 = vcmp.lt.s32.totalorder %v648, 0
    %v989 = vsub.s32 0, %v648
    %v990 = vsel %vm988, %v989, %v648
    %v991 = vshrl.u32 %v990, 8
    %v992 = vand.u32 %v990, 255
    %v993 = vsub.s32 0, %v992
    %v994 = vsel %vm988, %v993, %v992
    %vm995 = vcmp.lt.s32.totalorder %v649, 0
    %v996 = vsub.s32 0, %v649
    %v997 = vsel %vm995, %v996, %v649
    %v998 = vshrl.u32 %v997, 8
    %v999 = vand.u32 %v997, 255
    %v1000 = vsub.s32 0, %v999
    %v1001 = vsel %vm995, %v1000, %v999
    %vm1002 = vcmp.lt.s32.totalorder %v650, 0
    %v1003 = vsub.s32 0, %v650
    %v1004 = vsel %vm1002, %v1003, %v650
    %v1005 = vshrl.u32 %v1004, 8
    %v1006 = vand.u32 %v1004, 255
    %v1007 = vsub.s32 0, %v1006
    %v1008 = vsel %vm1002, %v1007, %v1006
    %vm1009 = vcmp.lt.s32.totalorder %v651, 0
    %v1010 = vsub.s32 0, %v651
    %v1011 = vsel %vm1009, %v1010, %v651
    %v1012 = vshrl.u32 %v1011, 8
    %v1013 = vand.u32 %v1011, 255
    %v1014 = vsub.s32 0, %v1013
    %v1015 = vsel %vm1009, %v1014, %v1013
    %vm1016 = vcmp.lt.s32.totalorder %v652, 0
    %v1017 = vsub.s32 0, %v652
    %v1018 = vsel %vm1016, %v1017, %v652
    %v1019 = vshrl.u32 %v1018, 8
    %v1020 = vand.u32 %v1018, 255
    %v1021 = vsub.s32 0, %v1020
    %v1022 = vsel %vm1016, %v1021, %v1020
    %vm1023 = vcmp.lt.s32.totalorder %v653, 0
    %v1024 = vsub.s32 0, %v653
    %v1025 = vsel %vm1023, %v1024, %v653
    %v1026 = vshrl.u32 %v1025, 8
    %v1027 = vand.u32 %v1025, 255
    %v1028 = vsub.s32 0, %v1027
    %v1029 = vsel %vm1023, %v1028, %v1027
    %vm1030 = vcmp.lt.s32.totalorder %v654, 0
    %v1031 = vsub.s32 0, %v654
    %v1032 = vsel %vm1030, %v1031, %v654
    %v1033 = vshrl.u32 %v1032, 8
    %v1034 = vand.u32 %v1032, 255
    %v1035 = vsub.s32 0, %v1034
    %v1036 = vsel %vm1030, %v1035, %v1034
    %vm1037 = vcmp.lt.s32.totalorder %v655, 0
    %v1038 = vsub.s32 0, %v655
    %v1039 = vsel %vm1037, %v1038, %v655
    %v1040 = vshrl.u32 %v1039, 8
    %v1041 = vand.u32 %v1039, 255
    %v1042 = vsub.s32 0, %v1041
    %v1043 = vsel %vm1037, %v1042, %v1041
    %vm1044 = vcmp.lt.s32.totalorder %v656, 0
    %v1045 = vsub.s32 0, %v656
    %v1046 = vsel %vm1044, %v1045, %v656
    %v1047 = vshrl.u32 %v1046, 8
    %v1048 = vand.u32 %v1046, 255
    %v1049 = vsub.s32 0, %v1048
    %v1050 = vsel %vm1044, %v1049, %v1048
    %vm1051 = vcmp.lt.s32.totalorder %v657, 0
    %v1052 = vsub.s32 0, %v657
    %v1053 = vsel %vm1051, %v1052, %v657
    %v1054 = vshrl.u32 %v1053, 8
    %v1055 = vand.u32 %v1053, 255
    %v1056 = vsub.s32 0, %v1055
    %v1057 = vsel %vm1051, %v1056, %v1055
    %vm1058 = vcmp.lt.s32.totalorder %v658, 0
    %v1059 = vsub.s32 0, %v658
    %v1060 = vsel %vm1058, %v1059, %v658
    %v1061 = vshrl.u32 %v1060, 8
    %v1062 = vand.u32 %v1060, 255
    %v1063 = vsub.s32 0, %v1062
    %v1064 = vsel %vm1058, %v1063, %v1062
    %vm1065 = vcmp.lt.s32.totalorder %v659, 0
    %v1066 = vsub.s32 0, %v659
    %v1067 = vsel %vm1065, %v1066, %v659
    %v1068 = vshrl.u32 %v1067, 8
    %v1069 = vand.u32 %v1067, 255
    %v1070 = vsub.s32 0, %v1069
    %v1071 = vsel %vm1065, %v1070, %v1069
    %vm1072 = vcmp.lt.s32.totalorder %v660, 0
    %v1073 = vsub.s32 0, %v660
    %v1074 = vsel %vm1072, %v1073, %v660
    %v1075 = vshrl.u32 %v1074, 8
    %v1076 = vand.u32 %v1074, 255
    %v1077 = vsub.s32 0, %v1076
    %v1078 = vsel %vm1072, %v1077, %v1076
    %vm1079 = vcmp.lt.s32.totalorder %v661, 0
    %v1080 = vsub.s32 0, %v661
    %v1081 = vsel %vm1079, %v1080, %v661
    %v1082 = vshrl.u32 %v1081, 8
    %v1083 = vand.u32 %v1081, 255
    %v1084 = vsub.s32 0, %v1083
    %v1085 = vsel %vm1079, %v1084, %v1083
    %vm1086 = vcmp.lt.s32.totalorder %v662, 0
    %v1087 = vsub.s32 0, %v662
    %v1088 = vsel %vm1086, %v1087, %v662
    %v1089 = vshrl.u32 %v1088, 8
    %v1090 = vand.u32 %v1088, 255
    %v1091 = vsub.s32 0, %v1090
    %v1092 = vsel %vm1086, %v1091, %v1090
    %vm1093 = vcmp.lt.s32.totalorder %v663, 0
    %v1094 = vsub.s32 0, %v663
    %v1095 = vsel %vm1093, %v1094, %v663
    %v1096 = vshrl.u32 %v1095, 8
    %v1097 = vand.u32 %v1095, 255
    %v1098 = vsub.s32 0, %v1097
    %v1099 = vsel %vm1093, %v1098, %v1097
    %vm1100 = vcmp.lt.s32.totalorder %v664, 0
    %v1101 = vsub.s32 0, %v664
    %v1102 = vsel %vm1100, %v1101, %v664
    %v1103 = vshrl.u32 %v1102, 8
    %v1104 = vand.u32 %v1102, 255
    %v1105 = vsub.s32 0, %v1104
    %v1106 = vsel %vm1100, %v1105, %v1104
    %vm1107 = vcmp.lt.s32.totalorder %v665, 0
    %v1108 = vsub.s32 0, %v665
    %v1109 = vsel %vm1107, %v1108, %v665
    %v1110 = vshrl.u32 %v1109, 8
    %v1111 = vand.u32 %v1109, 255
    %v1112 = vsub.s32 0, %v1111
    %v1113 = vsel %vm1107, %v1112, %v1111
    %vm1114 = vcmp.ne.s32.totalorder %v672, 0
    %vm1115 = vcmp.ne.s32.totalorder %v679, 0
    %vm1116 = vcmp.ne.s32.totalorder %v686, 0
    %vm1117 = vcmp.ne.s32.totalorder %v693, 0
    %vm1118 = vcmp.ne.s32.totalorder %v700, 0
    %vm1119 = vcmp.ne.s32.totalorder %v707, 0
    %vm1120 = vcmp.ne.s32.totalorder %v714, 0
    %vm1121 = vcmp.ne.s32.totalorder %v721, 0
    %vm1122 = vcmp.ne.s32.totalorder %v728, 0
    %vm1123 = vcmp.ne.s32.totalorder %v735, 0
    %vm1124 = vcmp.ne.s32.totalorder %v742, 0
    %vm1125 = vcmp.ne.s32.totalorder %v749, 0
    %vm1126 = vcmp.ne.s32.totalorder %v756, 0
    %vm1127 = vcmp.ne.s32.totalorder %v763, 0
    %vm1128 = vcmp.ne.s32.totalorder %v770, 0
    %vm1129 = vcmp.ne.s32.totalorder %v777, 0
    %vm1130 = vcmp.ne.s32.totalorder %v784, 0
    %vm1131 = vcmp.ne.s32.totalorder %v791, 0
    %vm1132 = vcmp.ne.s32.totalorder %v798, 0
    %vm1133 = vcmp.ne.s32.totalorder %v805, 0
    %vm1134 = vcmp.ne.s32.totalorder %v812, 0
    %vm1135 = vcmp.ne.s32.totalorder %v819, 0
    %vm1136 = vcmp.ne.s32.totalorder %v826, 0
    %vm1137 = vcmp.ne.s32.totalorder %v833, 0
    %vm1138 = vcmp.ne.s32.totalorder %v840, 0
    %vm1139 = vcmp.ne.s32.totalorder %v847, 0
    %vm1140 = vcmp.ne.s32.totalorder %v854, 0
    %vm1141 = vcmp.ne.s32.totalorder %v861, 0
    %vm1142 = vcmp.ne.s32.totalorder %v868, 0
    %vm1143 = vcmp.ne.s32.totalorder %v875, 0
    %vm1144 = vcmp.ne.s32.totalorder %v882, 0
    %vm1145 = vcmp.ne.s32.totalorder %v889, 0
    %vm1146 = vcmp.ne.s32.totalorder %v896, 0
    %vm1147 = vcmp.ne.s32.totalorder %v903, 0
    %vm1148 = vcmp.ne.s32.totalorder %v910, 0
    %vm1149 = vcmp.ne.s32.totalorder %v917, 0
    %vm1150 = vcmp.ne.s32.totalorder %v924, 0
    %vm1151 = vcmp.ne.s32.totalorder %v931, 0
    %vm1152 = vcmp.ne.s32.totalorder %v938, 0
    %vm1153 = vcmp.ne.s32.totalorder %v945, 0
    %vm1154 = vcmp.ne.s32.totalorder %v952, 0
    %vm1155 = vcmp.ne.s32.totalorder %v959, 0
    %vm1156 = vcmp.ne.s32.totalorder %v966, 0
    %vm1157 = vcmp.ne.s32.totalorder %v973, 0
    %vm1158 = vcmp.ne.s32.totalorder %v980, 0
    %vm1159 = vcmp.ne.s32.totalorder %v987, 0
    %vm1160 = vcmp.ne.s32.totalorder %v994, 0
    %vm1161 = vcmp.ne.s32.totalorder %v1001, 0
    %vm1162 = vcmp.ne.s32.totalorder %v1008, 0
    %vm1163 = vcmp.ne.s32.totalorder %v1015, 0
    %vm1164 = vcmp.ne.s32.totalorder %v1022, 0
    %vm1165 = vcmp.ne.s32.totalorder %v1029, 0
    %vm1166 = vcmp.ne.s32.totalorder %v1036, 0
    %vm1167 = vcmp.ne.s32.totalorder %v1043, 0
    %vm1168 = vcmp.ne.s32.totalorder %v1050, 0
    %vm1169 = vcmp.ne.s32.totalorder %v1057, 0
    %vm1170 = vcmp.ne.s32.totalorder %v1064, 0
    %vm1171 = vcmp.ne.s32.totalorder %v1071, 0
    %vm1172 = vcmp.ne.s32.totalorder %v1078, 0
    %vm1173 = vcmp.ne.s32.totalorder %v1085, 0
    %vm1174 = vcmp.ne.s32.totalorder %v1092, 0
    %vm1175 = vcmp.ne.s32.totalorder %v1099, 0
    %vm1176 = vcmp.ne.s32.totalorder %v1106, 0
    %vm1177 = vcmp.ne.s32.totalorder %v1113, 0
    %vm1178 = vcmp.lt.s32.totalorder %v672, 0
    %vm1179 = vcmp.lt.s32.totalorder %v679, 0
    %vm1180 = vcmp.lt.s32.totalorder %v686, 0
    %vm1181 = vcmp.lt.s32.totalorder %v693, 0
    %vm1182 = vcmp.lt.s32.totalorder %v700, 0
    %vm1183 = vcmp.lt.s32.totalorder %v707, 0
    %vm1184 = vcmp.lt.s32.totalorder %v714, 0
    %vm1185 = vcmp.lt.s32.totalorder %v721, 0
    %vm1186 = vcmp.lt.s32.totalorder %v728, 0
    %vm1187 = vcmp.lt.s32.totalorder %v735, 0
    %vm1188 = vcmp.lt.s32.totalorder %v742, 0
    %vm1189 = vcmp.lt.s32.totalorder %v749, 0
    %vm1190 = vcmp.lt.s32.totalorder %v756, 0
    %vm1191 = vcmp.lt.s32.totalorder %v763, 0
    %vm1192 = vcmp.lt.s32.totalorder %v770, 0
    %vm1193 = vcmp.lt.s32.totalorder %v777, 0
    %vm1194 = vcmp.lt.s32.totalorder %v784, 0
    %vm1195 = vcmp.lt.s32.totalorder %v791, 0
    %vm1196 = vcmp.lt.s32.totalorder %v798, 0
    %vm1197 = vcmp.lt.s32.totalorder %v805, 0
    %vm1198 = vcmp.lt.s32.totalorder %v812, 0
    %vm1199 = vcmp.lt.s32.totalorder %v819, 0
    %vm1200 = vcmp.lt.s32.totalorder %v826, 0
    %vm1201 = vcmp.lt.s32.totalorder %v833, 0
    %vm1202 = vcmp.lt.s32.totalorder %v840, 0
    %vm1203 = vcmp.lt.s32.totalorder %v847, 0
    %vm1204 = vcmp.lt.s32.totalorder %v854, 0
    %vm1205 = vcmp.lt.s32.totalorder %v861, 0
    %vm1206 = vcmp.lt.s32.totalorder %v868, 0
    %vm1207 = vcmp.lt.s32.totalorder %v875, 0
    %vm1208 = vcmp.lt.s32.totalorder %v882, 0
    %vm1209 = vcmp.lt.s32.totalorder %v889, 0
    %vm1210 = vcmp.lt.s32.totalorder %v896, 0
    %vm1211 = vcmp.lt.s32.totalorder %v903, 0
    %vm1212 = vcmp.lt.s32.totalorder %v910, 0
    %vm1213 = vcmp.lt.s32.totalorder %v917, 0
    %vm1214 = vcmp.lt.s32.totalorder %v924, 0
    %vm1215 = vcmp.lt.s32.totalorder %v931, 0
    %vm1216 = vcmp.lt.s32.totalorder %v938, 0
    %vm1217 = vcmp.lt.s32.totalorder %v945, 0
    %vm1218 = vcmp.lt.s32.totalorder %v952, 0
    %vm1219 = vcmp.lt.s32.totalorder %v959, 0
    %vm1220 = vcmp.lt.s32.totalorder %v966, 0
    %vm1221 = vcmp.lt.s32.totalorder %v973, 0
    %vm1222 = vcmp.lt.s32.totalorder %v980, 0
    %vm1223 = vcmp.lt.s32.totalorder %v987, 0
    %vm1224 = vcmp.lt.s32.totalorder %v994, 0
    %vm1225 = vcmp.lt.s32.totalorder %v1001, 0
    %vm1226 = vcmp.lt.s32.totalorder %v1008, 0
    %vm1227 = vcmp.lt.s32.totalorder %v1015, 0
    %vm1228 = vcmp.lt.s32.totalorder %v1022, 0
    %vm1229 = vcmp.lt.s32.totalorder %v1029, 0
    %vm1230 = vcmp.lt.s32.totalorder %v1036, 0
    %vm1231 = vcmp.lt.s32.totalorder %v1043, 0
    %vm1232 = vcmp.lt.s32.totalorder %v1050, 0
    %vm1233 = vcmp.lt.s32.totalorder %v1057, 0
    %vm1234 = vcmp.lt.s32.totalorder %v1064, 0
    %vm1235 = vcmp.lt.s32.totalorder %v1071, 0
    %vm1236 = vcmp.lt.s32.totalorder %v1078, 0
    %vm1237 = vcmp.lt.s32.totalorder %v1085, 0
    %vm1238 = vcmp.lt.s32.totalorder %v1092, 0
    %vm1239 = vcmp.lt.s32.totalorder %v1099, 0
    %vm1240 = vcmp.lt.s32.totalorder %v1106, 0
    %vm1241 = vcmp.lt.s32.totalorder %v1113, 0
    %vm1242 = vmand %vm1178, %vm1114
    %vm1243 = vmand %vm1179, %vm1115
    %vm1244 = vmand %vm1180, %vm1116
    %vm1245 = vmand %vm1181, %vm1117
    %vm1246 = vmand %vm1182, %vm1118
    %vm1247 = vmand %vm1183, %vm1119
    %vm1248 = vmand %vm1184, %vm1120
    %vm1249 = vmand %vm1185, %vm1121
    %vm1250 = vmand %vm1186, %vm1122
    %vm1251 = vmand %vm1187, %vm1123
    %vm1252 = vmand %vm1188, %vm1124
    %vm1253 = vmand %vm1189, %vm1125
    %vm1254 = vmand %vm1190, %vm1126
    %vm1255 = vmand %vm1191, %vm1127
    %vm1256 = vmand %vm1192, %vm1128
    %vm1257 = vmand %vm1193, %vm1129
    %vm1258 = vmand %vm1194, %vm1130
    %vm1259 = vmand %vm1195, %vm1131
    %vm1260 = vmand %vm1196, %vm1132
    %vm1261 = vmand %vm1197, %vm1133
    %vm1262 = vmand %vm1198, %vm1134
    %vm1263 = vmand %vm1199, %vm1135
    %vm1264 = vmand %vm1200, %vm1136
    %vm1265 = vmand %vm1201, %vm1137
    %vm1266 = vmand %vm1202, %vm1138
    %vm1267 = vmand %vm1203, %vm1139
    %vm1268 = vmand %vm1204, %vm1140
    %vm1269 = vmand %vm1205, %vm1141
    %vm1270 = vmand %vm1206, %vm1142
    %vm1271 = vmand %vm1207, %vm1143
    %vm1272 = vmand %vm1208, %vm1144
    %vm1273 = vmand %vm1209, %vm1145
    %vm1274 = vmand %vm1210, %vm1146
    %vm1275 = vmand %vm1211, %vm1147
    %vm1276 = vmand %vm1212, %vm1148
    %vm1277 = vmand %vm1213, %vm1149
    %vm1278 = vmand %vm1214, %vm1150
    %vm1279 = vmand %vm1215, %vm1151
    %vm1280 = vmand %vm1216, %vm1152
    %vm1281 = vmand %vm1217, %vm1153
    %vm1282 = vmand %vm1218, %vm1154
    %vm1283 = vmand %vm1219, %vm1155
    %vm1284 = vmand %vm1220, %vm1156
    %vm1285 = vmand %vm1221, %vm1157
    %vm1286 = vmand %vm1222, %vm1158
    %vm1287 = vmand %vm1223, %vm1159
    %vm1288 = vmand %vm1224, %vm1160
    %vm1289 = vmand %vm1225, %vm1161
    %vm1290 = vmand %vm1226, %vm1162
    %vm1291 = vmand %vm1227, %vm1163
    %vm1292 = vmand %vm1228, %vm1164
    %vm1293 = vmand %vm1229, %vm1165
    %vm1294 = vmand %vm1230, %vm1166
    %vm1295 = vmand %vm1231, %vm1167
    %vm1296 = vmand %vm1232, %vm1168
    %vm1297 = vmand %vm1233, %vm1169
    %vm1298 = vmand %vm1234, %vm1170
    %vm1299 = vmand %vm1235, %vm1171
    %vm1300 = vmand %vm1236, %vm1172
    %vm1301 = vmand %vm1237, %vm1173
    %vm1302 = vmand %vm1238, %vm1174
    %vm1303 = vmand %vm1239, %vm1175
    %vm1304 = vmand %vm1240, %vm1176
    %vm1305 = vmand %vm1241, %vm1177
    %v1306 = vadd.s32 %v672, 256
    %v1307 = vadd.s32 %v679, 256
    %v1308 = vadd.s32 %v686, 256
    %v1309 = vadd.s32 %v693, 256
    %v1310 = vadd.s32 %v700, 256
    %v1311 = vadd.s32 %v707, 256
    %v1312 = vadd.s32 %v714, 256
    %v1313 = vadd.s32 %v721, 256
    %v1314 = vadd.s32 %v728, 256
    %v1315 = vadd.s32 %v735, 256
    %v1316 = vadd.s32 %v742, 256
    %v1317 = vadd.s32 %v749, 256
    %v1318 = vadd.s32 %v756, 256
    %v1319 = vadd.s32 %v763, 256
    %v1320 = vadd.s32 %v770, 256
    %v1321 = vadd.s32 %v777, 256
    %v1322 = vadd.s32 %v784, 256
    %v1323 = vadd.s32 %v791, 256
    %v1324 = vadd.s32 %v798, 256
    %v1325 = vadd.s32 %v805, 256
    %v1326 = vadd.s32 %v812, 256
    %v1327 = vadd.s32 %v819, 256
    %v1328 = vadd.s32 %v826, 256
    %v1329 = vadd.s32 %v833, 256
    %v1330 = vadd.s32 %v840, 256
    %v1331 = vadd.s32 %v847, 256
    %v1332 = vadd.s32 %v854, 256
    %v1333 = vadd.s32 %v861, 256
    %v1334 = vadd.s32 %v868, 256
    %v1335 = vadd.s32 %v875, 256
    %v1336 = vadd.s32 %v882, 256
    %v1337 = vadd.s32 %v889, 256
    %v1338 = vadd.s32 %v896, 256
    %v1339 = vadd.s32 %v903, 256
    %v1340 = vadd.s32 %v910, 256
    %v1341 = vadd.s32 %v917, 256
    %v1342 = vadd.s32 %v924, 256
    %v1343 = vadd.s32 %v931, 256
    %v1344 = vadd.s32 %v938, 256
    %v1345 = vadd.s32 %v945, 256
    %v1346 = vadd.s32 %v952, 256
    %v1347 = vadd.s32 %v959, 256
    %v1348 = vadd.s32 %v966, 256
    %v1349 = vadd.s32 %v973, 256
    %v1350 = vadd.s32 %v980, 256
    %v1351 = vadd.s32 %v987, 256
    %v1352 = vadd.s32 %v994, 256
    %v1353 = vadd.s32 %v1001, 256
    %v1354 = vadd.s32 %v1008, 256
    %v1355 = vadd.s32 %v1015, 256
    %v1356 = vadd.s32 %v1022, 256
    %v1357 = vadd.s32 %v1029, 256
    %v1358 = vadd.s32 %v1036, 256
    %v1359 = vadd.s32 %v1043, 256
    %v1360 = vadd.s32 %v1050, 256
    %v1361 = vadd.s32 %v1057, 256
    %v1362 = vadd.s32 %v1064, 256
    %v1363 = vadd.s32 %v1071, 256
    %v1364 = vadd.s32 %v1078, 256
    %v1365 = vadd.s32 %v1085, 256
    %v1366 = vadd.s32 %v1092, 256
    %v1367 = vadd.s32 %v1099, 256
    %v1368 = vadd.s32 %v1106, 256
    %v1369 = vadd.s32 %v1113, 256
    %v1370 = vsel %vm1242, %v1306, %v672
    %v1371 = vsel %vm1243, %v1307, %v679
    %v1372 = vsel %vm1244, %v1308, %v686
    %v1373 = vsel %vm1245, %v1309, %v693
    %v1374 = vsel %vm1246, %v1310, %v700
    %v1375 = vsel %vm1247, %v1311, %v707
    %v1376 = vsel %vm1248, %v1312, %v714
    %v1377 = vsel %vm1249, %v1313, %v721
    %v1378 = vsel %vm1250, %v1314, %v728
    %v1379 = vsel %vm1251, %v1315, %v735
    %v1380 = vsel %vm1252, %v1316, %v742
    %v1381 = vsel %vm1253, %v1317, %v749
    %v1382 = vsel %vm1254, %v1318, %v756
    %v1383 = vsel %vm1255, %v1319, %v763
    %v1384 = vsel %vm1256, %v1320, %v770
    %v1385 = vsel %vm1257, %v1321, %v777
    %v1386 = vsel %vm1258, %v1322, %v784
    %v1387 = vsel %vm1259, %v1323, %v791
    %v1388 = vsel %vm1260, %v1324, %v798
    %v1389 = vsel %vm1261, %v1325, %v805
    %v1390 = vsel %vm1262, %v1326, %v812
    %v1391 = vsel %vm1263, %v1327, %v819
    %v1392 = vsel %vm1264, %v1328, %v826
    %v1393 = vsel %vm1265, %v1329, %v833
    %v1394 = vsel %vm1266, %v1330, %v840
    %v1395 = vsel %vm1267, %v1331, %v847
    %v1396 = vsel %vm1268, %v1332, %v854
    %v1397 = vsel %vm1269, %v1333, %v861
    %v1398 = vsel %vm1270, %v1334, %v868
    %v1399 = vsel %vm1271, %v1335, %v875
    %v1400 = vsel %vm1272, %v1336, %v882
    %v1401 = vsel %vm1273, %v1337, %v889
    %v1402 = vsel %vm1274, %v1338, %v896
    %v1403 = vsel %vm1275, %v1339, %v903
    %v1404 = vsel %vm1276, %v1340, %v910
    %v1405 = vsel %vm1277, %v1341, %v917
    %v1406 = vsel %vm1278, %v1342, %v924
    %v1407 = vsel %vm1279, %v1343, %v931
    %v1408 = vsel %vm1280, %v1344, %v938
    %v1409 = vsel %vm1281, %v1345, %v945
    %v1410 = vsel %vm1282, %v1346, %v952
    %v1411 = vsel %vm1283, %v1347, %v959
    %v1412 = vsel %vm1284, %v1348, %v966
    %v1413 = vsel %vm1285, %v1349, %v973
    %v1414 = vsel %vm1286, %v1350, %v980
    %v1415 = vsel %vm1287, %v1351, %v987
    %v1416 = vsel %vm1288, %v1352, %v994
    %v1417 = vsel %vm1289, %v1353, %v1001
    %v1418 = vsel %vm1290, %v1354, %v1008
    %v1419 = vsel %vm1291, %v1355, %v1015
    %v1420 = vsel %vm1292, %v1356, %v1022
    %v1421 = vsel %vm1293, %v1357, %v1029
    %v1422 = vsel %vm1294, %v1358, %v1036
    %v1423 = vsel %vm1295, %v1359, %v1043
    %v1424 = vsel %vm1296, %v1360, %v1050
    %v1425 = vsel %vm1297, %v1361, %v1057
    %v1426 = vsel %vm1298, %v1362, %v1064
    %v1427 = vsel %vm1299, %v1363, %v1071
    %v1428 = vsel %vm1300, %v1364, %v1078
    %v1429 = vsel %vm1301, %v1365, %v1085
    %v1430 = vsel %vm1302, %v1366, %v1092
    %v1431 = vsel %vm1303, %v1367, %v1099
    %v1432 = vsel %vm1304, %v1368, %v1106
    %v1433 = vsel %vm1305, %v1369, %v1113
    %vm1434 = vcmp.lt.s32.totalorder %v602, 0
    %v1435 = vsub.s32 0, %v602
    %v1436 = vsel %vm1434, %v1435, %v602
    %v1437 = vshrl.u32 %v1436, 4
    %v1438 = vand.u32 %v1436, 15
    %v1439 = vsub.s32 0, %v1438
    %v1440 = vsel %vm1434, %v1439, %v1438
    %vm1441 = vcmp.lt.s32.totalorder %v603, 0
    %v1442 = vsub.s32 0, %v603
    %v1443 = vsel %vm1441, %v1442, %v603
    %v1444 = vshrl.u32 %v1443, 4
    %v1445 = vand.u32 %v1443, 15
    %v1446 = vsub.s32 0, %v1445
    %v1447 = vsel %vm1441, %v1446, %v1445
    %vm1448 = vcmp.lt.s32.totalorder %v604, 0
    %v1449 = vsub.s32 0, %v604
    %v1450 = vsel %vm1448, %v1449, %v604
    %v1451 = vshrl.u32 %v1450, 4
    %v1452 = vand.u32 %v1450, 15
    %v1453 = vsub.s32 0, %v1452
    %v1454 = vsel %vm1448, %v1453, %v1452
    %vm1455 = vcmp.lt.s32.totalorder %v605, 0
    %v1456 = vsub.s32 0, %v605
    %v1457 = vsel %vm1455, %v1456, %v605
    %v1458 = vshrl.u32 %v1457, 4
    %v1459 = vand.u32 %v1457, 15
    %v1460 = vsub.s32 0, %v1459
    %v1461 = vsel %vm1455, %v1460, %v1459
    %vm1462 = vcmp.lt.s32.totalorder %v606, 0
    %v1463 = vsub.s32 0, %v606
    %v1464 = vsel %vm1462, %v1463, %v606
    %v1465 = vshrl.u32 %v1464, 4
    %v1466 = vand.u32 %v1464, 15
    %v1467 = vsub.s32 0, %v1466
    %v1468 = vsel %vm1462, %v1467, %v1466
    %vm1469 = vcmp.lt.s32.totalorder %v607, 0
    %v1470 = vsub.s32 0, %v607
    %v1471 = vsel %vm1469, %v1470, %v607
    %v1472 = vshrl.u32 %v1471, 4
    %v1473 = vand.u32 %v1471, 15
    %v1474 = vsub.s32 0, %v1473
    %v1475 = vsel %vm1469, %v1474, %v1473
    %vm1476 = vcmp.lt.s32.totalorder %v608, 0
    %v1477 = vsub.s32 0, %v608
    %v1478 = vsel %vm1476, %v1477, %v608
    %v1479 = vshrl.u32 %v1478, 4
    %v1480 = vand.u32 %v1478, 15
    %v1481 = vsub.s32 0, %v1480
    %v1482 = vsel %vm1476, %v1481, %v1480
    %vm1483 = vcmp.lt.s32.totalorder %v609, 0
    %v1484 = vsub.s32 0, %v609
    %v1485 = vsel %vm1483, %v1484, %v609
    %v1486 = vshrl.u32 %v1485, 4
    %v1487 = vand.u32 %v1485, 15
    %v1488 = vsub.s32 0, %v1487
    %v1489 = vsel %vm1483, %v1488, %v1487
    %vm1490 = vcmp.lt.s32.totalorder %v610, 0
    %v1491 = vsub.s32 0, %v610
    %v1492 = vsel %vm1490, %v1491, %v610
    %v1493 = vshrl.u32 %v1492, 4
    %v1494 = vand.u32 %v1492, 15
    %v1495 = vsub.s32 0, %v1494
    %v1496 = vsel %vm1490, %v1495, %v1494
    %vm1497 = vcmp.lt.s32.totalorder %v611, 0
    %v1498 = vsub.s32 0, %v611
    %v1499 = vsel %vm1497, %v1498, %v611
    %v1500 = vshrl.u32 %v1499, 4
    %v1501 = vand.u32 %v1499, 15
    %v1502 = vsub.s32 0, %v1501
    %v1503 = vsel %vm1497, %v1502, %v1501
    %vm1504 = vcmp.lt.s32.totalorder %v612, 0
    %v1505 = vsub.s32 0, %v612
    %v1506 = vsel %vm1504, %v1505, %v612
    %v1507 = vshrl.u32 %v1506, 4
    %v1508 = vand.u32 %v1506, 15
    %v1509 = vsub.s32 0, %v1508
    %v1510 = vsel %vm1504, %v1509, %v1508
    %vm1511 = vcmp.lt.s32.totalorder %v613, 0
    %v1512 = vsub.s32 0, %v613
    %v1513 = vsel %vm1511, %v1512, %v613
    %v1514 = vshrl.u32 %v1513, 4
    %v1515 = vand.u32 %v1513, 15
    %v1516 = vsub.s32 0, %v1515
    %v1517 = vsel %vm1511, %v1516, %v1515
    %vm1518 = vcmp.lt.s32.totalorder %v614, 0
    %v1519 = vsub.s32 0, %v614
    %v1520 = vsel %vm1518, %v1519, %v614
    %v1521 = vshrl.u32 %v1520, 4
    %v1522 = vand.u32 %v1520, 15
    %v1523 = vsub.s32 0, %v1522
    %v1524 = vsel %vm1518, %v1523, %v1522
    %vm1525 = vcmp.lt.s32.totalorder %v615, 0
    %v1526 = vsub.s32 0, %v615
    %v1527 = vsel %vm1525, %v1526, %v615
    %v1528 = vshrl.u32 %v1527, 4
    %v1529 = vand.u32 %v1527, 15
    %v1530 = vsub.s32 0, %v1529
    %v1531 = vsel %vm1525, %v1530, %v1529
    %vm1532 = vcmp.lt.s32.totalorder %v616, 0
    %v1533 = vsub.s32 0, %v616
    %v1534 = vsel %vm1532, %v1533, %v616
    %v1535 = vshrl.u32 %v1534, 4
    %v1536 = vand.u32 %v1534, 15
    %v1537 = vsub.s32 0, %v1536
    %v1538 = vsel %vm1532, %v1537, %v1536
    %vm1539 = vcmp.lt.s32.totalorder %v617, 0
    %v1540 = vsub.s32 0, %v617
    %v1541 = vsel %vm1539, %v1540, %v617
    %v1542 = vshrl.u32 %v1541, 4
    %v1543 = vand.u32 %v1541, 15
    %v1544 = vsub.s32 0, %v1543
    %v1545 = vsel %vm1539, %v1544, %v1543
    %vm1546 = vcmp.lt.s32.totalorder %v618, 0
    %v1547 = vsub.s32 0, %v618
    %v1548 = vsel %vm1546, %v1547, %v618
    %v1549 = vshrl.u32 %v1548, 4
    %v1550 = vand.u32 %v1548, 15
    %v1551 = vsub.s32 0, %v1550
    %v1552 = vsel %vm1546, %v1551, %v1550
    %vm1553 = vcmp.lt.s32.totalorder %v619, 0
    %v1554 = vsub.s32 0, %v619
    %v1555 = vsel %vm1553, %v1554, %v619
    %v1556 = vshrl.u32 %v1555, 4
    %v1557 = vand.u32 %v1555, 15
    %v1558 = vsub.s32 0, %v1557
    %v1559 = vsel %vm1553, %v1558, %v1557
    %vm1560 = vcmp.lt.s32.totalorder %v620, 0
    %v1561 = vsub.s32 0, %v620
    %v1562 = vsel %vm1560, %v1561, %v620
    %v1563 = vshrl.u32 %v1562, 4
    %v1564 = vand.u32 %v1562, 15
    %v1565 = vsub.s32 0, %v1564
    %v1566 = vsel %vm1560, %v1565, %v1564
    %vm1567 = vcmp.lt.s32.totalorder %v621, 0
    %v1568 = vsub.s32 0, %v621
    %v1569 = vsel %vm1567, %v1568, %v621
    %v1570 = vshrl.u32 %v1569, 4
    %v1571 = vand.u32 %v1569, 15
    %v1572 = vsub.s32 0, %v1571
    %v1573 = vsel %vm1567, %v1572, %v1571
    %vm1574 = vcmp.lt.s32.totalorder %v622, 0
    %v1575 = vsub.s32 0, %v622
    %v1576 = vsel %vm1574, %v1575, %v622
    %v1577 = vshrl.u32 %v1576, 4
    %v1578 = vand.u32 %v1576, 15
    %v1579 = vsub.s32 0, %v1578
    %v1580 = vsel %vm1574, %v1579, %v1578
    %vm1581 = vcmp.lt.s32.totalorder %v623, 0
    %v1582 = vsub.s32 0, %v623
    %v1583 = vsel %vm1581, %v1582, %v623
    %v1584 = vshrl.u32 %v1583, 4
    %v1585 = vand.u32 %v1583, 15
    %v1586 = vsub.s32 0, %v1585
    %v1587 = vsel %vm1581, %v1586, %v1585
    %vm1588 = vcmp.lt.s32.totalorder %v624, 0
    %v1589 = vsub.s32 0, %v624
    %v1590 = vsel %vm1588, %v1589, %v624
    %v1591 = vshrl.u32 %v1590, 4
    %v1592 = vand.u32 %v1590, 15
    %v1593 = vsub.s32 0, %v1592
    %v1594 = vsel %vm1588, %v1593, %v1592
    %vm1595 = vcmp.lt.s32.totalorder %v625, 0
    %v1596 = vsub.s32 0, %v625
    %v1597 = vsel %vm1595, %v1596, %v625
    %v1598 = vshrl.u32 %v1597, 4
    %v1599 = vand.u32 %v1597, 15
    %v1600 = vsub.s32 0, %v1599
    %v1601 = vsel %vm1595, %v1600, %v1599
    %vm1602 = vcmp.lt.s32.totalorder %v626, 0
    %v1603 = vsub.s32 0, %v626
    %v1604 = vsel %vm1602, %v1603, %v626
    %v1605 = vshrl.u32 %v1604, 4
    %v1606 = vand.u32 %v1604, 15
    %v1607 = vsub.s32 0, %v1606
    %v1608 = vsel %vm1602, %v1607, %v1606
    %vm1609 = vcmp.lt.s32.totalorder %v627, 0
    %v1610 = vsub.s32 0, %v627
    %v1611 = vsel %vm1609, %v1610, %v627
    %v1612 = vshrl.u32 %v1611, 4
    %v1613 = vand.u32 %v1611, 15
    %v1614 = vsub.s32 0, %v1613
    %v1615 = vsel %vm1609, %v1614, %v1613
    %vm1616 = vcmp.lt.s32.totalorder %v628, 0
    %v1617 = vsub.s32 0, %v628
    %v1618 = vsel %vm1616, %v1617, %v628
    %v1619 = vshrl.u32 %v1618, 4
    %v1620 = vand.u32 %v1618, 15
    %v1621 = vsub.s32 0, %v1620
    %v1622 = vsel %vm1616, %v1621, %v1620
    %vm1623 = vcmp.lt.s32.totalorder %v629, 0
    %v1624 = vsub.s32 0, %v629
    %v1625 = vsel %vm1623, %v1624, %v629
    %v1626 = vshrl.u32 %v1625, 4
    %v1627 = vand.u32 %v1625, 15
    %v1628 = vsub.s32 0, %v1627
    %v1629 = vsel %vm1623, %v1628, %v1627
    %vm1630 = vcmp.lt.s32.totalorder %v630, 0
    %v1631 = vsub.s32 0, %v630
    %v1632 = vsel %vm1630, %v1631, %v630
    %v1633 = vshrl.u32 %v1632, 4
    %v1634 = vand.u32 %v1632, 15
    %v1635 = vsub.s32 0, %v1634
    %v1636 = vsel %vm1630, %v1635, %v1634
    %vm1637 = vcmp.lt.s32.totalorder %v631, 0
    %v1638 = vsub.s32 0, %v631
    %v1639 = vsel %vm1637, %v1638, %v631
    %v1640 = vshrl.u32 %v1639, 4
    %v1641 = vand.u32 %v1639, 15
    %v1642 = vsub.s32 0, %v1641
    %v1643 = vsel %vm1637, %v1642, %v1641
    %vm1644 = vcmp.lt.s32.totalorder %v632, 0
    %v1645 = vsub.s32 0, %v632
    %v1646 = vsel %vm1644, %v1645, %v632
    %v1647 = vshrl.u32 %v1646, 4
    %v1648 = vand.u32 %v1646, 15
    %v1649 = vsub.s32 0, %v1648
    %v1650 = vsel %vm1644, %v1649, %v1648
    %vm1651 = vcmp.lt.s32.totalorder %v633, 0
    %v1652 = vsub.s32 0, %v633
    %v1653 = vsel %vm1651, %v1652, %v633
    %v1654 = vshrl.u32 %v1653, 4
    %v1655 = vand.u32 %v1653, 15
    %v1656 = vsub.s32 0, %v1655
    %v1657 = vsel %vm1651, %v1656, %v1655
    %vm1658 = vcmp.lt.s32.totalorder %v634, 0
    %v1659 = vsub.s32 0, %v634
    %v1660 = vsel %vm1658, %v1659, %v634
    %v1661 = vshrl.u32 %v1660, 4
    %v1662 = vand.u32 %v1660, 15
    %v1663 = vsub.s32 0, %v1662
    %v1664 = vsel %vm1658, %v1663, %v1662
    %vm1665 = vcmp.lt.s32.totalorder %v635, 0
    %v1666 = vsub.s32 0, %v635
    %v1667 = vsel %vm1665, %v1666, %v635
    %v1668 = vshrl.u32 %v1667, 4
    %v1669 = vand.u32 %v1667, 15
    %v1670 = vsub.s32 0, %v1669
    %v1671 = vsel %vm1665, %v1670, %v1669
    %vm1672 = vcmp.lt.s32.totalorder %v636, 0
    %v1673 = vsub.s32 0, %v636
    %v1674 = vsel %vm1672, %v1673, %v636
    %v1675 = vshrl.u32 %v1674, 4
    %v1676 = vand.u32 %v1674, 15
    %v1677 = vsub.s32 0, %v1676
    %v1678 = vsel %vm1672, %v1677, %v1676
    %vm1679 = vcmp.lt.s32.totalorder %v637, 0
    %v1680 = vsub.s32 0, %v637
    %v1681 = vsel %vm1679, %v1680, %v637
    %v1682 = vshrl.u32 %v1681, 4
    %v1683 = vand.u32 %v1681, 15
    %v1684 = vsub.s32 0, %v1683
    %v1685 = vsel %vm1679, %v1684, %v1683
    %vm1686 = vcmp.lt.s32.totalorder %v638, 0
    %v1687 = vsub.s32 0, %v638
    %v1688 = vsel %vm1686, %v1687, %v638
    %v1689 = vshrl.u32 %v1688, 4
    %v1690 = vand.u32 %v1688, 15
    %v1691 = vsub.s32 0, %v1690
    %v1692 = vsel %vm1686, %v1691, %v1690
    %vm1693 = vcmp.lt.s32.totalorder %v639, 0
    %v1694 = vsub.s32 0, %v639
    %v1695 = vsel %vm1693, %v1694, %v639
    %v1696 = vshrl.u32 %v1695, 4
    %v1697 = vand.u32 %v1695, 15
    %v1698 = vsub.s32 0, %v1697
    %v1699 = vsel %vm1693, %v1698, %v1697
    %vm1700 = vcmp.lt.s32.totalorder %v640, 0
    %v1701 = vsub.s32 0, %v640
    %v1702 = vsel %vm1700, %v1701, %v640
    %v1703 = vshrl.u32 %v1702, 4
    %v1704 = vand.u32 %v1702, 15
    %v1705 = vsub.s32 0, %v1704
    %v1706 = vsel %vm1700, %v1705, %v1704
    %vm1707 = vcmp.lt.s32.totalorder %v641, 0
    %v1708 = vsub.s32 0, %v641
    %v1709 = vsel %vm1707, %v1708, %v641
    %v1710 = vshrl.u32 %v1709, 4
    %v1711 = vand.u32 %v1709, 15
    %v1712 = vsub.s32 0, %v1711
    %v1713 = vsel %vm1707, %v1712, %v1711
    %vm1714 = vcmp.lt.s32.totalorder %v642, 0
    %v1715 = vsub.s32 0, %v642
    %v1716 = vsel %vm1714, %v1715, %v642
    %v1717 = vshrl.u32 %v1716, 4
    %v1718 = vand.u32 %v1716, 15
    %v1719 = vsub.s32 0, %v1718
    %v1720 = vsel %vm1714, %v1719, %v1718
    %vm1721 = vcmp.lt.s32.totalorder %v643, 0
    %v1722 = vsub.s32 0, %v643
    %v1723 = vsel %vm1721, %v1722, %v643
    %v1724 = vshrl.u32 %v1723, 4
    %v1725 = vand.u32 %v1723, 15
    %v1726 = vsub.s32 0, %v1725
    %v1727 = vsel %vm1721, %v1726, %v1725
    %vm1728 = vcmp.lt.s32.totalorder %v644, 0
    %v1729 = vsub.s32 0, %v644
    %v1730 = vsel %vm1728, %v1729, %v644
    %v1731 = vshrl.u32 %v1730, 4
    %v1732 = vand.u32 %v1730, 15
    %v1733 = vsub.s32 0, %v1732
    %v1734 = vsel %vm1728, %v1733, %v1732
    %vm1735 = vcmp.lt.s32.totalorder %v645, 0
    %v1736 = vsub.s32 0, %v645
    %v1737 = vsel %vm1735, %v1736, %v645
    %v1738 = vshrl.u32 %v1737, 4
    %v1739 = vand.u32 %v1737, 15
    %v1740 = vsub.s32 0, %v1739
    %v1741 = vsel %vm1735, %v1740, %v1739
    %vm1742 = vcmp.lt.s32.totalorder %v646, 0
    %v1743 = vsub.s32 0, %v646
    %v1744 = vsel %vm1742, %v1743, %v646
    %v1745 = vshrl.u32 %v1744, 4
    %v1746 = vand.u32 %v1744, 15
    %v1747 = vsub.s32 0, %v1746
    %v1748 = vsel %vm1742, %v1747, %v1746
    %vm1749 = vcmp.lt.s32.totalorder %v647, 0
    %v1750 = vsub.s32 0, %v647
    %v1751 = vsel %vm1749, %v1750, %v647
    %v1752 = vshrl.u32 %v1751, 4
    %v1753 = vand.u32 %v1751, 15
    %v1754 = vsub.s32 0, %v1753
    %v1755 = vsel %vm1749, %v1754, %v1753
    %vm1756 = vcmp.lt.s32.totalorder %v648, 0
    %v1757 = vsub.s32 0, %v648
    %v1758 = vsel %vm1756, %v1757, %v648
    %v1759 = vshrl.u32 %v1758, 4
    %v1760 = vand.u32 %v1758, 15
    %v1761 = vsub.s32 0, %v1760
    %v1762 = vsel %vm1756, %v1761, %v1760
    %vm1763 = vcmp.lt.s32.totalorder %v649, 0
    %v1764 = vsub.s32 0, %v649
    %v1765 = vsel %vm1763, %v1764, %v649
    %v1766 = vshrl.u32 %v1765, 4
    %v1767 = vand.u32 %v1765, 15
    %v1768 = vsub.s32 0, %v1767
    %v1769 = vsel %vm1763, %v1768, %v1767
    %vm1770 = vcmp.lt.s32.totalorder %v650, 0
    %v1771 = vsub.s32 0, %v650
    %v1772 = vsel %vm1770, %v1771, %v650
    %v1773 = vshrl.u32 %v1772, 4
    %v1774 = vand.u32 %v1772, 15
    %v1775 = vsub.s32 0, %v1774
    %v1776 = vsel %vm1770, %v1775, %v1774
    %vm1777 = vcmp.lt.s32.totalorder %v651, 0
    %v1778 = vsub.s32 0, %v651
    %v1779 = vsel %vm1777, %v1778, %v651
    %v1780 = vshrl.u32 %v1779, 4
    %v1781 = vand.u32 %v1779, 15
    %v1782 = vsub.s32 0, %v1781
    %v1783 = vsel %vm1777, %v1782, %v1781
    %vm1784 = vcmp.lt.s32.totalorder %v652, 0
    %v1785 = vsub.s32 0, %v652
    %v1786 = vsel %vm1784, %v1785, %v652
    %v1787 = vshrl.u32 %v1786, 4
    %v1788 = vand.u32 %v1786, 15
    %v1789 = vsub.s32 0, %v1788
    %v1790 = vsel %vm1784, %v1789, %v1788
    %vm1791 = vcmp.lt.s32.totalorder %v653, 0
    %v1792 = vsub.s32 0, %v653
    %v1793 = vsel %vm1791, %v1792, %v653
    %v1794 = vshrl.u32 %v1793, 4
    %v1795 = vand.u32 %v1793, 15
    %v1796 = vsub.s32 0, %v1795
    %v1797 = vsel %vm1791, %v1796, %v1795
    %vm1798 = vcmp.lt.s32.totalorder %v654, 0
    %v1799 = vsub.s32 0, %v654
    %v1800 = vsel %vm1798, %v1799, %v654
    %v1801 = vshrl.u32 %v1800, 4
    %v1802 = vand.u32 %v1800, 15
    %v1803 = vsub.s32 0, %v1802
    %v1804 = vsel %vm1798, %v1803, %v1802
    %vm1805 = vcmp.lt.s32.totalorder %v655, 0
    %v1806 = vsub.s32 0, %v655
    %v1807 = vsel %vm1805, %v1806, %v655
    %v1808 = vshrl.u32 %v1807, 4
    %v1809 = vand.u32 %v1807, 15
    %v1810 = vsub.s32 0, %v1809
    %v1811 = vsel %vm1805, %v1810, %v1809
    %vm1812 = vcmp.lt.s32.totalorder %v656, 0
    %v1813 = vsub.s32 0, %v656
    %v1814 = vsel %vm1812, %v1813, %v656
    %v1815 = vshrl.u32 %v1814, 4
    %v1816 = vand.u32 %v1814, 15
    %v1817 = vsub.s32 0, %v1816
    %v1818 = vsel %vm1812, %v1817, %v1816
    %vm1819 = vcmp.lt.s32.totalorder %v657, 0
    %v1820 = vsub.s32 0, %v657
    %v1821 = vsel %vm1819, %v1820, %v657
    %v1822 = vshrl.u32 %v1821, 4
    %v1823 = vand.u32 %v1821, 15
    %v1824 = vsub.s32 0, %v1823
    %v1825 = vsel %vm1819, %v1824, %v1823
    %vm1826 = vcmp.lt.s32.totalorder %v658, 0
    %v1827 = vsub.s32 0, %v658
    %v1828 = vsel %vm1826, %v1827, %v658
    %v1829 = vshrl.u32 %v1828, 4
    %v1830 = vand.u32 %v1828, 15
    %v1831 = vsub.s32 0, %v1830
    %v1832 = vsel %vm1826, %v1831, %v1830
    %vm1833 = vcmp.lt.s32.totalorder %v659, 0
    %v1834 = vsub.s32 0, %v659
    %v1835 = vsel %vm1833, %v1834, %v659
    %v1836 = vshrl.u32 %v1835, 4
    %v1837 = vand.u32 %v1835, 15
    %v1838 = vsub.s32 0, %v1837
    %v1839 = vsel %vm1833, %v1838, %v1837
    %vm1840 = vcmp.lt.s32.totalorder %v660, 0
    %v1841 = vsub.s32 0, %v660
    %v1842 = vsel %vm1840, %v1841, %v660
    %v1843 = vshrl.u32 %v1842, 4
    %v1844 = vand.u32 %v1842, 15
    %v1845 = vsub.s32 0, %v1844
    %v1846 = vsel %vm1840, %v1845, %v1844
    %vm1847 = vcmp.lt.s32.totalorder %v661, 0
    %v1848 = vsub.s32 0, %v661
    %v1849 = vsel %vm1847, %v1848, %v661
    %v1850 = vshrl.u32 %v1849, 4
    %v1851 = vand.u32 %v1849, 15
    %v1852 = vsub.s32 0, %v1851
    %v1853 = vsel %vm1847, %v1852, %v1851
    %vm1854 = vcmp.lt.s32.totalorder %v662, 0
    %v1855 = vsub.s32 0, %v662
    %v1856 = vsel %vm1854, %v1855, %v662
    %v1857 = vshrl.u32 %v1856, 4
    %v1858 = vand.u32 %v1856, 15
    %v1859 = vsub.s32 0, %v1858
    %v1860 = vsel %vm1854, %v1859, %v1858
    %vm1861 = vcmp.lt.s32.totalorder %v663, 0
    %v1862 = vsub.s32 0, %v663
    %v1863 = vsel %vm1861, %v1862, %v663
    %v1864 = vshrl.u32 %v1863, 4
    %v1865 = vand.u32 %v1863, 15
    %v1866 = vsub.s32 0, %v1865
    %v1867 = vsel %vm1861, %v1866, %v1865
    %vm1868 = vcmp.lt.s32.totalorder %v664, 0
    %v1869 = vsub.s32 0, %v664
    %v1870 = vsel %vm1868, %v1869, %v664
    %v1871 = vshrl.u32 %v1870, 4
    %v1872 = vand.u32 %v1870, 15
    %v1873 = vsub.s32 0, %v1872
    %v1874 = vsel %vm1868, %v1873, %v1872
    %vm1875 = vcmp.lt.s32.totalorder %v665, 0
    %v1876 = vsub.s32 0, %v665
    %v1877 = vsel %vm1875, %v1876, %v665
    %v1878 = vshrl.u32 %v1877, 4
    %v1879 = vand.u32 %v1877, 15
    %v1880 = vsub.s32 0, %v1879
    %v1881 = vsel %vm1875, %v1880, %v1879
    %vm1882 = vcmp.ne.s32.totalorder %v1440, 0
    %vm1883 = vcmp.ne.s32.totalorder %v1447, 0
    %vm1884 = vcmp.ne.s32.totalorder %v1454, 0
    %vm1885 = vcmp.ne.s32.totalorder %v1461, 0
    %vm1886 = vcmp.ne.s32.totalorder %v1468, 0
    %vm1887 = vcmp.ne.s32.totalorder %v1475, 0
    %vm1888 = vcmp.ne.s32.totalorder %v1482, 0
    %vm1889 = vcmp.ne.s32.totalorder %v1489, 0
    %vm1890 = vcmp.ne.s32.totalorder %v1496, 0
    %vm1891 = vcmp.ne.s32.totalorder %v1503, 0
    %vm1892 = vcmp.ne.s32.totalorder %v1510, 0
    %vm1893 = vcmp.ne.s32.totalorder %v1517, 0
    %vm1894 = vcmp.ne.s32.totalorder %v1524, 0
    %vm1895 = vcmp.ne.s32.totalorder %v1531, 0
    %vm1896 = vcmp.ne.s32.totalorder %v1538, 0
    %vm1897 = vcmp.ne.s32.totalorder %v1545, 0
    %vm1898 = vcmp.ne.s32.totalorder %v1552, 0
    %vm1899 = vcmp.ne.s32.totalorder %v1559, 0
    %vm1900 = vcmp.ne.s32.totalorder %v1566, 0
    %vm1901 = vcmp.ne.s32.totalorder %v1573, 0
    %vm1902 = vcmp.ne.s32.totalorder %v1580, 0
    %vm1903 = vcmp.ne.s32.totalorder %v1587, 0
    %vm1904 = vcmp.ne.s32.totalorder %v1594, 0
    %vm1905 = vcmp.ne.s32.totalorder %v1601, 0
    %vm1906 = vcmp.ne.s32.totalorder %v1608, 0
    %vm1907 = vcmp.ne.s32.totalorder %v1615, 0
    %vm1908 = vcmp.ne.s32.totalorder %v1622, 0
    %vm1909 = vcmp.ne.s32.totalorder %v1629, 0
    %vm1910 = vcmp.ne.s32.totalorder %v1636, 0
    %vm1911 = vcmp.ne.s32.totalorder %v1643, 0
    %vm1912 = vcmp.ne.s32.totalorder %v1650, 0
    %vm1913 = vcmp.ne.s32.totalorder %v1657, 0
    %vm1914 = vcmp.ne.s32.totalorder %v1664, 0
    %vm1915 = vcmp.ne.s32.totalorder %v1671, 0
    %vm1916 = vcmp.ne.s32.totalorder %v1678, 0
    %vm1917 = vcmp.ne.s32.totalorder %v1685, 0
    %vm1918 = vcmp.ne.s32.totalorder %v1692, 0
    %vm1919 = vcmp.ne.s32.totalorder %v1699, 0
    %vm1920 = vcmp.ne.s32.totalorder %v1706, 0
    %vm1921 = vcmp.ne.s32.totalorder %v1713, 0
    %vm1922 = vcmp.ne.s32.totalorder %v1720, 0
    %vm1923 = vcmp.ne.s32.totalorder %v1727, 0
    %vm1924 = vcmp.ne.s32.totalorder %v1734, 0
    %vm1925 = vcmp.ne.s32.totalorder %v1741, 0
    %vm1926 = vcmp.ne.s32.totalorder %v1748, 0
    %vm1927 = vcmp.ne.s32.totalorder %v1755, 0
    %vm1928 = vcmp.ne.s32.totalorder %v1762, 0
    %vm1929 = vcmp.ne.s32.totalorder %v1769, 0
    %vm1930 = vcmp.ne.s32.totalorder %v1776, 0
    %vm1931 = vcmp.ne.s32.totalorder %v1783, 0
    %vm1932 = vcmp.ne.s32.totalorder %v1790, 0
    %vm1933 = vcmp.ne.s32.totalorder %v1797, 0
    %vm1934 = vcmp.ne.s32.totalorder %v1804, 0
    %vm1935 = vcmp.ne.s32.totalorder %v1811, 0
    %vm1936 = vcmp.ne.s32.totalorder %v1818, 0
    %vm1937 = vcmp.ne.s32.totalorder %v1825, 0
    %vm1938 = vcmp.ne.s32.totalorder %v1832, 0
    %vm1939 = vcmp.ne.s32.totalorder %v1839, 0
    %vm1940 = vcmp.ne.s32.totalorder %v1846, 0
    %vm1941 = vcmp.ne.s32.totalorder %v1853, 0
    %vm1942 = vcmp.ne.s32.totalorder %v1860, 0
    %vm1943 = vcmp.ne.s32.totalorder %v1867, 0
    %vm1944 = vcmp.ne.s32.totalorder %v1874, 0
    %vm1945 = vcmp.ne.s32.totalorder %v1881, 0
    %vm1946 = vcmp.lt.s32.totalorder %v1440, 0
    %vm1947 = vcmp.lt.s32.totalorder %v1447, 0
    %vm1948 = vcmp.lt.s32.totalorder %v1454, 0
    %vm1949 = vcmp.lt.s32.totalorder %v1461, 0
    %vm1950 = vcmp.lt.s32.totalorder %v1468, 0
    %vm1951 = vcmp.lt.s32.totalorder %v1475, 0
    %vm1952 = vcmp.lt.s32.totalorder %v1482, 0
    %vm1953 = vcmp.lt.s32.totalorder %v1489, 0
    %vm1954 = vcmp.lt.s32.totalorder %v1496, 0
    %vm1955 = vcmp.lt.s32.totalorder %v1503, 0
    %vm1956 = vcmp.lt.s32.totalorder %v1510, 0
    %vm1957 = vcmp.lt.s32.totalorder %v1517, 0
    %vm1958 = vcmp.lt.s32.totalorder %v1524, 0
    %vm1959 = vcmp.lt.s32.totalorder %v1531, 0
    %vm1960 = vcmp.lt.s32.totalorder %v1538, 0
    %vm1961 = vcmp.lt.s32.totalorder %v1545, 0
    %vm1962 = vcmp.lt.s32.totalorder %v1552, 0
    %vm1963 = vcmp.lt.s32.totalorder %v1559, 0
    %vm1964 = vcmp.lt.s32.totalorder %v1566, 0
    %vm1965 = vcmp.lt.s32.totalorder %v1573, 0
    %vm1966 = vcmp.lt.s32.totalorder %v1580, 0
    %vm1967 = vcmp.lt.s32.totalorder %v1587, 0
    %vm1968 = vcmp.lt.s32.totalorder %v1594, 0
    %vm1969 = vcmp.lt.s32.totalorder %v1601, 0
    %vm1970 = vcmp.lt.s32.totalorder %v1608, 0
    %vm1971 = vcmp.lt.s32.totalorder %v1615, 0
    %vm1972 = vcmp.lt.s32.totalorder %v1622, 0
    %vm1973 = vcmp.lt.s32.totalorder %v1629, 0
    %vm1974 = vcmp.lt.s32.totalorder %v1636, 0
    %vm1975 = vcmp.lt.s32.totalorder %v1643, 0
    %vm1976 = vcmp.lt.s32.totalorder %v1650, 0
    %vm1977 = vcmp.lt.s32.totalorder %v1657, 0
    %vm1978 = vcmp.lt.s32.totalorder %v1664, 0
    %vm1979 = vcmp.lt.s32.totalorder %v1671, 0
    %vm1980 = vcmp.lt.s32.totalorder %v1678, 0
    %vm1981 = vcmp.lt.s32.totalorder %v1685, 0
    %vm1982 = vcmp.lt.s32.totalorder %v1692, 0
    %vm1983 = vcmp.lt.s32.totalorder %v1699, 0
    %vm1984 = vcmp.lt.s32.totalorder %v1706, 0
    %vm1985 = vcmp.lt.s32.totalorder %v1713, 0
    %vm1986 = vcmp.lt.s32.totalorder %v1720, 0
    %vm1987 = vcmp.lt.s32.totalorder %v1727, 0
    %vm1988 = vcmp.lt.s32.totalorder %v1734, 0
    %vm1989 = vcmp.lt.s32.totalorder %v1741, 0
    %vm1990 = vcmp.lt.s32.totalorder %v1748, 0
    %vm1991 = vcmp.lt.s32.totalorder %v1755, 0
    %vm1992 = vcmp.lt.s32.totalorder %v1762, 0
    %vm1993 = vcmp.lt.s32.totalorder %v1769, 0
    %vm1994 = vcmp.lt.s32.totalorder %v1776, 0
    %vm1995 = vcmp.lt.s32.totalorder %v1783, 0
    %vm1996 = vcmp.lt.s32.totalorder %v1790, 0
    %vm1997 = vcmp.lt.s32.totalorder %v1797, 0
    %vm1998 = vcmp.lt.s32.totalorder %v1804, 0
    %vm1999 = vcmp.lt.s32.totalorder %v1811, 0
    %vm2000 = vcmp.lt.s32.totalorder %v1818, 0
    %vm2001 = vcmp.lt.s32.totalorder %v1825, 0
    %vm2002 = vcmp.lt.s32.totalorder %v1832, 0
    %vm2003 = vcmp.lt.s32.totalorder %v1839, 0
    %vm2004 = vcmp.lt.s32.totalorder %v1846, 0
    %vm2005 = vcmp.lt.s32.totalorder %v1853, 0
    %vm2006 = vcmp.lt.s32.totalorder %v1860, 0
    %vm2007 = vcmp.lt.s32.totalorder %v1867, 0
    %vm2008 = vcmp.lt.s32.totalorder %v1874, 0
    %vm2009 = vcmp.lt.s32.totalorder %v1881, 0
    %vm2010 = vmand %vm1946, %vm1882
    %vm2011 = vmand %vm1947, %vm1883
    %vm2012 = vmand %vm1948, %vm1884
    %vm2013 = vmand %vm1949, %vm1885
    %vm2014 = vmand %vm1950, %vm1886
    %vm2015 = vmand %vm1951, %vm1887
    %vm2016 = vmand %vm1952, %vm1888
    %vm2017 = vmand %vm1953, %vm1889
    %vm2018 = vmand %vm1954, %vm1890
    %vm2019 = vmand %vm1955, %vm1891
    %vm2020 = vmand %vm1956, %vm1892
    %vm2021 = vmand %vm1957, %vm1893
    %vm2022 = vmand %vm1958, %vm1894
    %vm2023 = vmand %vm1959, %vm1895
    %vm2024 = vmand %vm1960, %vm1896
    %vm2025 = vmand %vm1961, %vm1897
    %vm2026 = vmand %vm1962, %vm1898
    %vm2027 = vmand %vm1963, %vm1899
    %vm2028 = vmand %vm1964, %vm1900
    %vm2029 = vmand %vm1965, %vm1901
    %vm2030 = vmand %vm1966, %vm1902
    %vm2031 = vmand %vm1967, %vm1903
    %vm2032 = vmand %vm1968, %vm1904
    %vm2033 = vmand %vm1969, %vm1905
    %vm2034 = vmand %vm1970, %vm1906
    %vm2035 = vmand %vm1971, %vm1907
    %vm2036 = vmand %vm1972, %vm1908
    %vm2037 = vmand %vm1973, %vm1909
    %vm2038 = vmand %vm1974, %vm1910
    %vm2039 = vmand %vm1975, %vm1911
    %vm2040 = vmand %vm1976, %vm1912
    %vm2041 = vmand %vm1977, %vm1913
    %vm2042 = vmand %vm1978, %vm1914
    %vm2043 = vmand %vm1979, %vm1915
    %vm2044 = vmand %vm1980, %vm1916
    %vm2045 = vmand %vm1981, %vm1917
    %vm2046 = vmand %vm1982, %vm1918
    %vm2047 = vmand %vm1983, %vm1919
    %vm2048 = vmand %vm1984, %vm1920
    %vm2049 = vmand %vm1985, %vm1921
    %vm2050 = vmand %vm1986, %vm1922
    %vm2051 = vmand %vm1987, %vm1923
    %vm2052 = vmand %vm1988, %vm1924
    %vm2053 = vmand %vm1989, %vm1925
    %vm2054 = vmand %vm1990, %vm1926
    %vm2055 = vmand %vm1991, %vm1927
    %vm2056 = vmand %vm1992, %vm1928
    %vm2057 = vmand %vm1993, %vm1929
    %vm2058 = vmand %vm1994, %vm1930
    %vm2059 = vmand %vm1995, %vm1931
    %vm2060 = vmand %vm1996, %vm1932
    %vm2061 = vmand %vm1997, %vm1933
    %vm2062 = vmand %vm1998, %vm1934
    %vm2063 = vmand %vm1999, %vm1935
    %vm2064 = vmand %vm2000, %vm1936
    %vm2065 = vmand %vm2001, %vm1937
    %vm2066 = vmand %vm2002, %vm1938
    %vm2067 = vmand %vm2003, %vm1939
    %vm2068 = vmand %vm2004, %vm1940
    %vm2069 = vmand %vm2005, %vm1941
    %vm2070 = vmand %vm2006, %vm1942
    %vm2071 = vmand %vm2007, %vm1943
    %vm2072 = vmand %vm2008, %vm1944
    %vm2073 = vmand %vm2009, %vm1945
    %v2074 = vadd.s32 %v1440, 16
    %v2075 = vadd.s32 %v1447, 16
    %v2076 = vadd.s32 %v1454, 16
    %v2077 = vadd.s32 %v1461, 16
    %v2078 = vadd.s32 %v1468, 16
    %v2079 = vadd.s32 %v1475, 16
    %v2080 = vadd.s32 %v1482, 16
    %v2081 = vadd.s32 %v1489, 16
    %v2082 = vadd.s32 %v1496, 16
    %v2083 = vadd.s32 %v1503, 16
    %v2084 = vadd.s32 %v1510, 16
    %v2085 = vadd.s32 %v1517, 16
    %v2086 = vadd.s32 %v1524, 16
    %v2087 = vadd.s32 %v1531, 16
    %v2088 = vadd.s32 %v1538, 16
    %v2089 = vadd.s32 %v1545, 16
    %v2090 = vadd.s32 %v1552, 16
    %v2091 = vadd.s32 %v1559, 16
    %v2092 = vadd.s32 %v1566, 16
    %v2093 = vadd.s32 %v1573, 16
    %v2094 = vadd.s32 %v1580, 16
    %v2095 = vadd.s32 %v1587, 16
    %v2096 = vadd.s32 %v1594, 16
    %v2097 = vadd.s32 %v1601, 16
    %v2098 = vadd.s32 %v1608, 16
    %v2099 = vadd.s32 %v1615, 16
    %v2100 = vadd.s32 %v1622, 16
    %v2101 = vadd.s32 %v1629, 16
    %v2102 = vadd.s32 %v1636, 16
    %v2103 = vadd.s32 %v1643, 16
    %v2104 = vadd.s32 %v1650, 16
    %v2105 = vadd.s32 %v1657, 16
    %v2106 = vadd.s32 %v1664, 16
    %v2107 = vadd.s32 %v1671, 16
    %v2108 = vadd.s32 %v1678, 16
    %v2109 = vadd.s32 %v1685, 16
    %v2110 = vadd.s32 %v1692, 16
    %v2111 = vadd.s32 %v1699, 16
    %v2112 = vadd.s32 %v1706, 16
    %v2113 = vadd.s32 %v1713, 16
    %v2114 = vadd.s32 %v1720, 16
    %v2115 = vadd.s32 %v1727, 16
    %v2116 = vadd.s32 %v1734, 16
    %v2117 = vadd.s32 %v1741, 16
    %v2118 = vadd.s32 %v1748, 16
    %v2119 = vadd.s32 %v1755, 16
    %v2120 = vadd.s32 %v1762, 16
    %v2121 = vadd.s32 %v1769, 16
    %v2122 = vadd.s32 %v1776, 16
    %v2123 = vadd.s32 %v1783, 16
    %v2124 = vadd.s32 %v1790, 16
    %v2125 = vadd.s32 %v1797, 16
    %v2126 = vadd.s32 %v1804, 16
    %v2127 = vadd.s32 %v1811, 16
    %v2128 = vadd.s32 %v1818, 16
    %v2129 = vadd.s32 %v1825, 16
    %v2130 = vadd.s32 %v1832, 16
    %v2131 = vadd.s32 %v1839, 16
    %v2132 = vadd.s32 %v1846, 16
    %v2133 = vadd.s32 %v1853, 16
    %v2134 = vadd.s32 %v1860, 16
    %v2135 = vadd.s32 %v1867, 16
    %v2136 = vadd.s32 %v1874, 16
    %v2137 = vadd.s32 %v1881, 16
    %v2138 = vsel %vm2010, %v2074, %v1440
    %v2139 = vsel %vm2011, %v2075, %v1447
    %v2140 = vsel %vm2012, %v2076, %v1454
    %v2141 = vsel %vm2013, %v2077, %v1461
    %v2142 = vsel %vm2014, %v2078, %v1468
    %v2143 = vsel %vm2015, %v2079, %v1475
    %v2144 = vsel %vm2016, %v2080, %v1482
    %v2145 = vsel %vm2017, %v2081, %v1489
    %v2146 = vsel %vm2018, %v2082, %v1496
    %v2147 = vsel %vm2019, %v2083, %v1503
    %v2148 = vsel %vm2020, %v2084, %v1510
    %v2149 = vsel %vm2021, %v2085, %v1517
    %v2150 = vsel %vm2022, %v2086, %v1524
    %v2151 = vsel %vm2023, %v2087, %v1531
    %v2152 = vsel %vm2024, %v2088, %v1538
    %v2153 = vsel %vm2025, %v2089, %v1545
    %v2154 = vsel %vm2026, %v2090, %v1552
    %v2155 = vsel %vm2027, %v2091, %v1559
    %v2156 = vsel %vm2028, %v2092, %v1566
    %v2157 = vsel %vm2029, %v2093, %v1573
    %v2158 = vsel %vm2030, %v2094, %v1580
    %v2159 = vsel %vm2031, %v2095, %v1587
    %v2160 = vsel %vm2032, %v2096, %v1594
    %v2161 = vsel %vm2033, %v2097, %v1601
    %v2162 = vsel %vm2034, %v2098, %v1608
    %v2163 = vsel %vm2035, %v2099, %v1615
    %v2164 = vsel %vm2036, %v2100, %v1622
    %v2165 = vsel %vm2037, %v2101, %v1629
    %v2166 = vsel %vm2038, %v2102, %v1636
    %v2167 = vsel %vm2039, %v2103, %v1643
    %v2168 = vsel %vm2040, %v2104, %v1650
    %v2169 = vsel %vm2041, %v2105, %v1657
    %v2170 = vsel %vm2042, %v2106, %v1664
    %v2171 = vsel %vm2043, %v2107, %v1671
    %v2172 = vsel %vm2044, %v2108, %v1678
    %v2173 = vsel %vm2045, %v2109, %v1685
    %v2174 = vsel %vm2046, %v2110, %v1692
    %v2175 = vsel %vm2047, %v2111, %v1699
    %v2176 = vsel %vm2048, %v2112, %v1706
    %v2177 = vsel %vm2049, %v2113, %v1713
    %v2178 = vsel %vm2050, %v2114, %v1720
    %v2179 = vsel %vm2051, %v2115, %v1727
    %v2180 = vsel %vm2052, %v2116, %v1734
    %v2181 = vsel %vm2053, %v2117, %v1741
    %v2182 = vsel %vm2054, %v2118, %v1748
    %v2183 = vsel %vm2055, %v2119, %v1755
    %v2184 = vsel %vm2056, %v2120, %v1762
    %v2185 = vsel %vm2057, %v2121, %v1769
    %v2186 = vsel %vm2058, %v2122, %v1776
    %v2187 = vsel %vm2059, %v2123, %v1783
    %v2188 = vsel %vm2060, %v2124, %v1790
    %v2189 = vsel %vm2061, %v2125, %v1797
    %v2190 = vsel %vm2062, %v2126, %v1804
    %v2191 = vsel %vm2063, %v2127, %v1811
    %v2192 = vsel %vm2064, %v2128, %v1818
    %v2193 = vsel %vm2065, %v2129, %v1825
    %v2194 = vsel %vm2066, %v2130, %v1832
    %v2195 = vsel %vm2067, %v2131, %v1839
    %v2196 = vsel %vm2068, %v2132, %v1846
    %v2197 = vsel %vm2069, %v2133, %v1853
    %v2198 = vsel %vm2070, %v2134, %v1860
    %v2199 = vsel %vm2071, %v2135, %v1867
    %v2200 = vsel %vm2072, %v2136, %v1874
    %v2201 = vsel %vm2073, %v2137, %v1881
    %vm2202 = vcmp.ge.s32.totalorder %v1370, 16
    %vm2203 = vcmp.ge.s32.totalorder %v1371, 16
    %vm2204 = vcmp.ge.s32.totalorder %v1372, 16
    %vm2205 = vcmp.ge.s32.totalorder %v1373, 16
    %vm2206 = vcmp.ge.s32.totalorder %v1374, 16
    %vm2207 = vcmp.ge.s32.totalorder %v1375, 16
    %vm2208 = vcmp.ge.s32.totalorder %v1376, 16
    %vm2209 = vcmp.ge.s32.totalorder %v1377, 16
    %vm2210 = vcmp.ge.s32.totalorder %v1378, 16
    %vm2211 = vcmp.ge.s32.totalorder %v1379, 16
    %vm2212 = vcmp.ge.s32.totalorder %v1380, 16
    %vm2213 = vcmp.ge.s32.totalorder %v1381, 16
    %vm2214 = vcmp.ge.s32.totalorder %v1382, 16
    %vm2215 = vcmp.ge.s32.totalorder %v1383, 16
    %vm2216 = vcmp.ge.s32.totalorder %v1384, 16
    %vm2217 = vcmp.ge.s32.totalorder %v1385, 16
    %vm2218 = vcmp.ge.s32.totalorder %v1386, 16
    %vm2219 = vcmp.ge.s32.totalorder %v1387, 16
    %vm2220 = vcmp.ge.s32.totalorder %v1388, 16
    %vm2221 = vcmp.ge.s32.totalorder %v1389, 16
    %vm2222 = vcmp.ge.s32.totalorder %v1390, 16
    %vm2223 = vcmp.ge.s32.totalorder %v1391, 16
    %vm2224 = vcmp.ge.s32.totalorder %v1392, 16
    %vm2225 = vcmp.ge.s32.totalorder %v1393, 16
    %vm2226 = vcmp.ge.s32.totalorder %v1394, 16
    %vm2227 = vcmp.ge.s32.totalorder %v1395, 16
    %vm2228 = vcmp.ge.s32.totalorder %v1396, 16
    %vm2229 = vcmp.ge.s32.totalorder %v1397, 16
    %vm2230 = vcmp.ge.s32.totalorder %v1398, 16
    %vm2231 = vcmp.ge.s32.totalorder %v1399, 16
    %vm2232 = vcmp.ge.s32.totalorder %v1400, 16
    %vm2233 = vcmp.ge.s32.totalorder %v1401, 16
    %vm2234 = vcmp.ge.s32.totalorder %v1402, 16
    %vm2235 = vcmp.ge.s32.totalorder %v1403, 16
    %vm2236 = vcmp.ge.s32.totalorder %v1404, 16
    %vm2237 = vcmp.ge.s32.totalorder %v1405, 16
    %vm2238 = vcmp.ge.s32.totalorder %v1406, 16
    %vm2239 = vcmp.ge.s32.totalorder %v1407, 16
    %vm2240 = vcmp.ge.s32.totalorder %v1408, 16
    %vm2241 = vcmp.ge.s32.totalorder %v1409, 16
    %vm2242 = vcmp.ge.s32.totalorder %v1410, 16
    %vm2243 = vcmp.ge.s32.totalorder %v1411, 16
    %vm2244 = vcmp.ge.s32.totalorder %v1412, 16
    %vm2245 = vcmp.ge.s32.totalorder %v1413, 16
    %vm2246 = vcmp.ge.s32.totalorder %v1414, 16
    %vm2247 = vcmp.ge.s32.totalorder %v1415, 16
    %vm2248 = vcmp.ge.s32.totalorder %v1416, 16
    %vm2249 = vcmp.ge.s32.totalorder %v1417, 16
    %vm2250 = vcmp.ge.s32.totalorder %v1418, 16
    %vm2251 = vcmp.ge.s32.totalorder %v1419, 16
    %vm2252 = vcmp.ge.s32.totalorder %v1420, 16
    %vm2253 = vcmp.ge.s32.totalorder %v1421, 16
    %vm2254 = vcmp.ge.s32.totalorder %v1422, 16
    %vm2255 = vcmp.ge.s32.totalorder %v1423, 16
    %vm2256 = vcmp.ge.s32.totalorder %v1424, 16
    %vm2257 = vcmp.ge.s32.totalorder %v1425, 16
    %vm2258 = vcmp.ge.s32.totalorder %v1426, 16
    %vm2259 = vcmp.ge.s32.totalorder %v1427, 16
    %vm2260 = vcmp.ge.s32.totalorder %v1428, 16
    %vm2261 = vcmp.ge.s32.totalorder %v1429, 16
    %vm2262 = vcmp.ge.s32.totalorder %v1430, 16
    %vm2263 = vcmp.ge.s32.totalorder %v1431, 16
    %vm2264 = vcmp.ge.s32.totalorder %v1432, 16
    %vm2265 = vcmp.ge.s32.totalorder %v1433, 16
    %v2266 = vsel %vm2202, 1, 0
    %v2267 = vsel %vm2203, 1, 0
    %v2268 = vsel %vm2204, 1, 0
    %v2269 = vsel %vm2205, 1, 0
    %v2270 = vsel %vm2206, 1, 0
    %v2271 = vsel %vm2207, 1, 0
    %v2272 = vsel %vm2208, 1, 0
    %v2273 = vsel %vm2209, 1, 0
    %v2274 = vsel %vm2210, 1, 0
    %v2275 = vsel %vm2211, 1, 0
    %v2276 = vsel %vm2212, 1, 0
    %v2277 = vsel %vm2213, 1, 0
    %v2278 = vsel %vm2214, 1, 0
    %v2279 = vsel %vm2215, 1, 0
    %v2280 = vsel %vm2216, 1, 0
    %v2281 = vsel %vm2217, 1, 0
    %v2282 = vsel %vm2218, 1, 0
    %v2283 = vsel %vm2219, 1, 0
    %v2284 = vsel %vm2220, 1, 0
    %v2285 = vsel %vm2221, 1, 0
    %v2286 = vsel %vm2222, 1, 0
    %v2287 = vsel %vm2223, 1, 0
    %v2288 = vsel %vm2224, 1, 0
    %v2289 = vsel %vm2225, 1, 0
    %v2290 = vsel %vm2226, 1, 0
    %v2291 = vsel %vm2227, 1, 0
    %v2292 = vsel %vm2228, 1, 0
    %v2293 = vsel %vm2229, 1, 0
    %v2294 = vsel %vm2230, 1, 0
    %v2295 = vsel %vm2231, 1, 0
    %v2296 = vsel %vm2232, 1, 0
    %v2297 = vsel %vm2233, 1, 0
    %v2298 = vsel %vm2234, 1, 0
    %v2299 = vsel %vm2235, 1, 0
    %v2300 = vsel %vm2236, 1, 0
    %v2301 = vsel %vm2237, 1, 0
    %v2302 = vsel %vm2238, 1, 0
    %v2303 = vsel %vm2239, 1, 0
    %v2304 = vsel %vm2240, 1, 0
    %v2305 = vsel %vm2241, 1, 0
    %v2306 = vsel %vm2242, 1, 0
    %v2307 = vsel %vm2243, 1, 0
    %v2308 = vsel %vm2244, 1, 0
    %v2309 = vsel %vm2245, 1, 0
    %v2310 = vsel %vm2246, 1, 0
    %v2311 = vsel %vm2247, 1, 0
    %v2312 = vsel %vm2248, 1, 0
    %v2313 = vsel %vm2249, 1, 0
    %v2314 = vsel %vm2250, 1, 0
    %v2315 = vsel %vm2251, 1, 0
    %v2316 = vsel %vm2252, 1, 0
    %v2317 = vsel %vm2253, 1, 0
    %v2318 = vsel %vm2254, 1, 0
    %v2319 = vsel %vm2255, 1, 0
    %v2320 = vsel %vm2256, 1, 0
    %v2321 = vsel %vm2257, 1, 0
    %v2322 = vsel %vm2258, 1, 0
    %v2323 = vsel %vm2259, 1, 0
    %v2324 = vsel %vm2260, 1, 0
    %v2325 = vsel %vm2261, 1, 0
    %v2326 = vsel %vm2262, 1, 0
    %v2327 = vsel %vm2263, 1, 0
    %v2328 = vsel %vm2264, 1, 0
    %v2329 = vsel %vm2265, 1, 0
    %v2330 = vcvt.s32.f32 %v2266
    %v2331 = vcvt.s32.f32 %v2267
    %v2332 = vcvt.s32.f32 %v2268
    %v2333 = vcvt.s32.f32 %v2269
    %v2334 = vcvt.s32.f32 %v2270
    %v2335 = vcvt.s32.f32 %v2271
    %v2336 = vcvt.s32.f32 %v2272
    %v2337 = vcvt.s32.f32 %v2273
    %v2338 = vcvt.s32.f32 %v2274
    %v2339 = vcvt.s32.f32 %v2275
    %v2340 = vcvt.s32.f32 %v2276
    %v2341 = vcvt.s32.f32 %v2277
    %v2342 = vcvt.s32.f32 %v2278
    %v2343 = vcvt.s32.f32 %v2279
    %v2344 = vcvt.s32.f32 %v2280
    %v2345 = vcvt.s32.f32 %v2281
    %v2346 = vcvt.s32.f32 %v2282
    %v2347 = vcvt.s32.f32 %v2283
    %v2348 = vcvt.s32.f32 %v2284
    %v2349 = vcvt.s32.f32 %v2285
    %v2350 = vcvt.s32.f32 %v2286
    %v2351 = vcvt.s32.f32 %v2287
    %v2352 = vcvt.s32.f32 %v2288
    %v2353 = vcvt.s32.f32 %v2289
    %v2354 = vcvt.s32.f32 %v2290
    %v2355 = vcvt.s32.f32 %v2291
    %v2356 = vcvt.s32.f32 %v2292
    %v2357 = vcvt.s32.f32 %v2293
    %v2358 = vcvt.s32.f32 %v2294
    %v2359 = vcvt.s32.f32 %v2295
    %v2360 = vcvt.s32.f32 %v2296
    %v2361 = vcvt.s32.f32 %v2297
    %v2362 = vcvt.s32.f32 %v2298
    %v2363 = vcvt.s32.f32 %v2299
    %v2364 = vcvt.s32.f32 %v2300
    %v2365 = vcvt.s32.f32 %v2301
    %v2366 = vcvt.s32.f32 %v2302
    %v2367 = vcvt.s32.f32 %v2303
    %v2368 = vcvt.s32.f32 %v2304
    %v2369 = vcvt.s32.f32 %v2305
    %v2370 = vcvt.s32.f32 %v2306
    %v2371 = vcvt.s32.f32 %v2307
    %v2372 = vcvt.s32.f32 %v2308
    %v2373 = vcvt.s32.f32 %v2309
    %v2374 = vcvt.s32.f32 %v2310
    %v2375 = vcvt.s32.f32 %v2311
    %v2376 = vcvt.s32.f32 %v2312
    %v2377 = vcvt.s32.f32 %v2313
    %v2378 = vcvt.s32.f32 %v2314
    %v2379 = vcvt.s32.f32 %v2315
    %v2380 = vcvt.s32.f32 %v2316
    %v2381 = vcvt.s32.f32 %v2317
    %v2382 = vcvt.s32.f32 %v2318
    %v2383 = vcvt.s32.f32 %v2319
    %v2384 = vcvt.s32.f32 %v2320
    %v2385 = vcvt.s32.f32 %v2321
    %v2386 = vcvt.s32.f32 %v2322
    %v2387 = vcvt.s32.f32 %v2323
    %v2388 = vcvt.s32.f32 %v2324
    %v2389 = vcvt.s32.f32 %v2325
    %v2390 = vcvt.s32.f32 %v2326
    %v2391 = vcvt.s32.f32 %v2327
    %v2392 = vcvt.s32.f32 %v2328
    %v2393 = vcvt.s32.f32 %v2329
    %vm2394 = vcmp.lt.s32.totalorder %v1370, 240
    %vm2395 = vcmp.lt.s32.totalorder %v1371, 240
    %vm2396 = vcmp.lt.s32.totalorder %v1372, 240
    %vm2397 = vcmp.lt.s32.totalorder %v1373, 240
    %vm2398 = vcmp.lt.s32.totalorder %v1374, 240
    %vm2399 = vcmp.lt.s32.totalorder %v1375, 240
    %vm2400 = vcmp.lt.s32.totalorder %v1376, 240
    %vm2401 = vcmp.lt.s32.totalorder %v1377, 240
    %vm2402 = vcmp.lt.s32.totalorder %v1378, 240
    %vm2403 = vcmp.lt.s32.totalorder %v1379, 240
    %vm2404 = vcmp.lt.s32.totalorder %v1380, 240
    %vm2405 = vcmp.lt.s32.totalorder %v1381, 240
    %vm2406 = vcmp.lt.s32.totalorder %v1382, 240
    %vm2407 = vcmp.lt.s32.totalorder %v1383, 240
    %vm2408 = vcmp.lt.s32.totalorder %v1384, 240
    %vm2409 = vcmp.lt.s32.totalorder %v1385, 240
    %vm2410 = vcmp.lt.s32.totalorder %v1386, 240
    %vm2411 = vcmp.lt.s32.totalorder %v1387, 240
    %vm2412 = vcmp.lt.s32.totalorder %v1388, 240
    %vm2413 = vcmp.lt.s32.totalorder %v1389, 240
    %vm2414 = vcmp.lt.s32.totalorder %v1390, 240
    %vm2415 = vcmp.lt.s32.totalorder %v1391, 240
    %vm2416 = vcmp.lt.s32.totalorder %v1392, 240
    %vm2417 = vcmp.lt.s32.totalorder %v1393, 240
    %vm2418 = vcmp.lt.s32.totalorder %v1394, 240
    %vm2419 = vcmp.lt.s32.totalorder %v1395, 240
    %vm2420 = vcmp.lt.s32.totalorder %v1396, 240
    %vm2421 = vcmp.lt.s32.totalorder %v1397, 240
    %vm2422 = vcmp.lt.s32.totalorder %v1398, 240
    %vm2423 = vcmp.lt.s32.totalorder %v1399, 240
    %vm2424 = vcmp.lt.s32.totalorder %v1400, 240
    %vm2425 = vcmp.lt.s32.totalorder %v1401, 240
    %vm2426 = vcmp.lt.s32.totalorder %v1402, 240
    %vm2427 = vcmp.lt.s32.totalorder %v1403, 240
    %vm2428 = vcmp.lt.s32.totalorder %v1404, 240
    %vm2429 = vcmp.lt.s32.totalorder %v1405, 240
    %vm2430 = vcmp.lt.s32.totalorder %v1406, 240
    %vm2431 = vcmp.lt.s32.totalorder %v1407, 240
    %vm2432 = vcmp.lt.s32.totalorder %v1408, 240
    %vm2433 = vcmp.lt.s32.totalorder %v1409, 240
    %vm2434 = vcmp.lt.s32.totalorder %v1410, 240
    %vm2435 = vcmp.lt.s32.totalorder %v1411, 240
    %vm2436 = vcmp.lt.s32.totalorder %v1412, 240
    %vm2437 = vcmp.lt.s32.totalorder %v1413, 240
    %vm2438 = vcmp.lt.s32.totalorder %v1414, 240
    %vm2439 = vcmp.lt.s32.totalorder %v1415, 240
    %vm2440 = vcmp.lt.s32.totalorder %v1416, 240
    %vm2441 = vcmp.lt.s32.totalorder %v1417, 240
    %vm2442 = vcmp.lt.s32.totalorder %v1418, 240
    %vm2443 = vcmp.lt.s32.totalorder %v1419, 240
    %vm2444 = vcmp.lt.s32.totalorder %v1420, 240
    %vm2445 = vcmp.lt.s32.totalorder %v1421, 240
    %vm2446 = vcmp.lt.s32.totalorder %v1422, 240
    %vm2447 = vcmp.lt.s32.totalorder %v1423, 240
    %vm2448 = vcmp.lt.s32.totalorder %v1424, 240
    %vm2449 = vcmp.lt.s32.totalorder %v1425, 240
    %vm2450 = vcmp.lt.s32.totalorder %v1426, 240
    %vm2451 = vcmp.lt.s32.totalorder %v1427, 240
    %vm2452 = vcmp.lt.s32.totalorder %v1428, 240
    %vm2453 = vcmp.lt.s32.totalorder %v1429, 240
    %vm2454 = vcmp.lt.s32.totalorder %v1430, 240
    %vm2455 = vcmp.lt.s32.totalorder %v1431, 240
    %vm2456 = vcmp.lt.s32.totalorder %v1432, 240
    %vm2457 = vcmp.lt.s32.totalorder %v1433, 240
    %v2458 = vsel %vm2394, 1, 0
    %v2459 = vsel %vm2395, 1, 0
    %v2460 = vsel %vm2396, 1, 0
    %v2461 = vsel %vm2397, 1, 0
    %v2462 = vsel %vm2398, 1, 0
    %v2463 = vsel %vm2399, 1, 0
    %v2464 = vsel %vm2400, 1, 0
    %v2465 = vsel %vm2401, 1, 0
    %v2466 = vsel %vm2402, 1, 0
    %v2467 = vsel %vm2403, 1, 0
    %v2468 = vsel %vm2404, 1, 0
    %v2469 = vsel %vm2405, 1, 0
    %v2470 = vsel %vm2406, 1, 0
    %v2471 = vsel %vm2407, 1, 0
    %v2472 = vsel %vm2408, 1, 0
    %v2473 = vsel %vm2409, 1, 0
    %v2474 = vsel %vm2410, 1, 0
    %v2475 = vsel %vm2411, 1, 0
    %v2476 = vsel %vm2412, 1, 0
    %v2477 = vsel %vm2413, 1, 0
    %v2478 = vsel %vm2414, 1, 0
    %v2479 = vsel %vm2415, 1, 0
    %v2480 = vsel %vm2416, 1, 0
    %v2481 = vsel %vm2417, 1, 0
    %v2482 = vsel %vm2418, 1, 0
    %v2483 = vsel %vm2419, 1, 0
    %v2484 = vsel %vm2420, 1, 0
    %v2485 = vsel %vm2421, 1, 0
    %v2486 = vsel %vm2422, 1, 0
    %v2487 = vsel %vm2423, 1, 0
    %v2488 = vsel %vm2424, 1, 0
    %v2489 = vsel %vm2425, 1, 0
    %v2490 = vsel %vm2426, 1, 0
    %v2491 = vsel %vm2427, 1, 0
    %v2492 = vsel %vm2428, 1, 0
    %v2493 = vsel %vm2429, 1, 0
    %v2494 = vsel %vm2430, 1, 0
    %v2495 = vsel %vm2431, 1, 0
    %v2496 = vsel %vm2432, 1, 0
    %v2497 = vsel %vm2433, 1, 0
    %v2498 = vsel %vm2434, 1, 0
    %v2499 = vsel %vm2435, 1, 0
    %v2500 = vsel %vm2436, 1, 0
    %v2501 = vsel %vm2437, 1, 0
    %v2502 = vsel %vm2438, 1, 0
    %v2503 = vsel %vm2439, 1, 0
    %v2504 = vsel %vm2440, 1, 0
    %v2505 = vsel %vm2441, 1, 0
    %v2506 = vsel %vm2442, 1, 0
    %v2507 = vsel %vm2443, 1, 0
    %v2508 = vsel %vm2444, 1, 0
    %v2509 = vsel %vm2445, 1, 0
    %v2510 = vsel %vm2446, 1, 0
    %v2511 = vsel %vm2447, 1, 0
    %v2512 = vsel %vm2448, 1, 0
    %v2513 = vsel %vm2449, 1, 0
    %v2514 = vsel %vm2450, 1, 0
    %v2515 = vsel %vm2451, 1, 0
    %v2516 = vsel %vm2452, 1, 0
    %v2517 = vsel %vm2453, 1, 0
    %v2518 = vsel %vm2454, 1, 0
    %v2519 = vsel %vm2455, 1, 0
    %v2520 = vsel %vm2456, 1, 0
    %v2521 = vsel %vm2457, 1, 0
    %v2522 = vcvt.s32.f32 %v2458
    %v2523 = vcvt.s32.f32 %v2459
    %v2524 = vcvt.s32.f32 %v2460
    %v2525 = vcvt.s32.f32 %v2461
    %v2526 = vcvt.s32.f32 %v2462
    %v2527 = vcvt.s32.f32 %v2463
    %v2528 = vcvt.s32.f32 %v2464
    %v2529 = vcvt.s32.f32 %v2465
    %v2530 = vcvt.s32.f32 %v2466
    %v2531 = vcvt.s32.f32 %v2467
    %v2532 = vcvt.s32.f32 %v2468
    %v2533 = vcvt.s32.f32 %v2469
    %v2534 = vcvt.s32.f32 %v2470
    %v2535 = vcvt.s32.f32 %v2471
    %v2536 = vcvt.s32.f32 %v2472
    %v2537 = vcvt.s32.f32 %v2473
    %v2538 = vcvt.s32.f32 %v2474
    %v2539 = vcvt.s32.f32 %v2475
    %v2540 = vcvt.s32.f32 %v2476
    %v2541 = vcvt.s32.f32 %v2477
    %v2542 = vcvt.s32.f32 %v2478
    %v2543 = vcvt.s32.f32 %v2479
    %v2544 = vcvt.s32.f32 %v2480
    %v2545 = vcvt.s32.f32 %v2481
    %v2546 = vcvt.s32.f32 %v2482
    %v2547 = vcvt.s32.f32 %v2483
    %v2548 = vcvt.s32.f32 %v2484
    %v2549 = vcvt.s32.f32 %v2485
    %v2550 = vcvt.s32.f32 %v2486
    %v2551 = vcvt.s32.f32 %v2487
    %v2552 = vcvt.s32.f32 %v2488
    %v2553 = vcvt.s32.f32 %v2489
    %v2554 = vcvt.s32.f32 %v2490
    %v2555 = vcvt.s32.f32 %v2491
    %v2556 = vcvt.s32.f32 %v2492
    %v2557 = vcvt.s32.f32 %v2493
    %v2558 = vcvt.s32.f32 %v2494
    %v2559 = vcvt.s32.f32 %v2495
    %v2560 = vcvt.s32.f32 %v2496
    %v2561 = vcvt.s32.f32 %v2497
    %v2562 = vcvt.s32.f32 %v2498
    %v2563 = vcvt.s32.f32 %v2499
    %v2564 = vcvt.s32.f32 %v2500
    %v2565 = vcvt.s32.f32 %v2501
    %v2566 = vcvt.s32.f32 %v2502
    %v2567 = vcvt.s32.f32 %v2503
    %v2568 = vcvt.s32.f32 %v2504
    %v2569 = vcvt.s32.f32 %v2505
    %v2570 = vcvt.s32.f32 %v2506
    %v2571 = vcvt.s32.f32 %v2507
    %v2572 = vcvt.s32.f32 %v2508
    %v2573 = vcvt.s32.f32 %v2509
    %v2574 = vcvt.s32.f32 %v2510
    %v2575 = vcvt.s32.f32 %v2511
    %v2576 = vcvt.s32.f32 %v2512
    %v2577 = vcvt.s32.f32 %v2513
    %v2578 = vcvt.s32.f32 %v2514
    %v2579 = vcvt.s32.f32 %v2515
    %v2580 = vcvt.s32.f32 %v2516
    %v2581 = vcvt.s32.f32 %v2517
    %v2582 = vcvt.s32.f32 %v2518
    %v2583 = vcvt.s32.f32 %v2519
    %v2584 = vcvt.s32.f32 %v2520
    %v2585 = vcvt.s32.f32 %v2521
    %vm2586 = vcmp.ge.s32.totalorder %v2138, 1
    %vm2587 = vcmp.ge.s32.totalorder %v2139, 1
    %vm2588 = vcmp.ge.s32.totalorder %v2140, 1
    %vm2589 = vcmp.ge.s32.totalorder %v2141, 1
    %vm2590 = vcmp.ge.s32.totalorder %v2142, 1
    %vm2591 = vcmp.ge.s32.totalorder %v2143, 1
    %vm2592 = vcmp.ge.s32.totalorder %v2144, 1
    %vm2593 = vcmp.ge.s32.totalorder %v2145, 1
    %vm2594 = vcmp.ge.s32.totalorder %v2146, 1
    %vm2595 = vcmp.ge.s32.totalorder %v2147, 1
    %vm2596 = vcmp.ge.s32.totalorder %v2148, 1
    %vm2597 = vcmp.ge.s32.totalorder %v2149, 1
    %vm2598 = vcmp.ge.s32.totalorder %v2150, 1
    %vm2599 = vcmp.ge.s32.totalorder %v2151, 1
    %vm2600 = vcmp.ge.s32.totalorder %v2152, 1
    %vm2601 = vcmp.ge.s32.totalorder %v2153, 1
    %vm2602 = vcmp.ge.s32.totalorder %v2154, 1
    %vm2603 = vcmp.ge.s32.totalorder %v2155, 1
    %vm2604 = vcmp.ge.s32.totalorder %v2156, 1
    %vm2605 = vcmp.ge.s32.totalorder %v2157, 1
    %vm2606 = vcmp.ge.s32.totalorder %v2158, 1
    %vm2607 = vcmp.ge.s32.totalorder %v2159, 1
    %vm2608 = vcmp.ge.s32.totalorder %v2160, 1
    %vm2609 = vcmp.ge.s32.totalorder %v2161, 1
    %vm2610 = vcmp.ge.s32.totalorder %v2162, 1
    %vm2611 = vcmp.ge.s32.totalorder %v2163, 1
    %vm2612 = vcmp.ge.s32.totalorder %v2164, 1
    %vm2613 = vcmp.ge.s32.totalorder %v2165, 1
    %vm2614 = vcmp.ge.s32.totalorder %v2166, 1
    %vm2615 = vcmp.ge.s32.totalorder %v2167, 1
    %vm2616 = vcmp.ge.s32.totalorder %v2168, 1
    %vm2617 = vcmp.ge.s32.totalorder %v2169, 1
    %vm2618 = vcmp.ge.s32.totalorder %v2170, 1
    %vm2619 = vcmp.ge.s32.totalorder %v2171, 1
    %vm2620 = vcmp.ge.s32.totalorder %v2172, 1
    %vm2621 = vcmp.ge.s32.totalorder %v2173, 1
    %vm2622 = vcmp.ge.s32.totalorder %v2174, 1
    %vm2623 = vcmp.ge.s32.totalorder %v2175, 1
    %vm2624 = vcmp.ge.s32.totalorder %v2176, 1
    %vm2625 = vcmp.ge.s32.totalorder %v2177, 1
    %vm2626 = vcmp.ge.s32.totalorder %v2178, 1
    %vm2627 = vcmp.ge.s32.totalorder %v2179, 1
    %vm2628 = vcmp.ge.s32.totalorder %v2180, 1
    %vm2629 = vcmp.ge.s32.totalorder %v2181, 1
    %vm2630 = vcmp.ge.s32.totalorder %v2182, 1
    %vm2631 = vcmp.ge.s32.totalorder %v2183, 1
    %vm2632 = vcmp.ge.s32.totalorder %v2184, 1
    %vm2633 = vcmp.ge.s32.totalorder %v2185, 1
    %vm2634 = vcmp.ge.s32.totalorder %v2186, 1
    %vm2635 = vcmp.ge.s32.totalorder %v2187, 1
    %vm2636 = vcmp.ge.s32.totalorder %v2188, 1
    %vm2637 = vcmp.ge.s32.totalorder %v2189, 1
    %vm2638 = vcmp.ge.s32.totalorder %v2190, 1
    %vm2639 = vcmp.ge.s32.totalorder %v2191, 1
    %vm2640 = vcmp.ge.s32.totalorder %v2192, 1
    %vm2641 = vcmp.ge.s32.totalorder %v2193, 1
    %vm2642 = vcmp.ge.s32.totalorder %v2194, 1
    %vm2643 = vcmp.ge.s32.totalorder %v2195, 1
    %vm2644 = vcmp.ge.s32.totalorder %v2196, 1
    %vm2645 = vcmp.ge.s32.totalorder %v2197, 1
    %vm2646 = vcmp.ge.s32.totalorder %v2198, 1
    %vm2647 = vcmp.ge.s32.totalorder %v2199, 1
    %vm2648 = vcmp.ge.s32.totalorder %v2200, 1
    %vm2649 = vcmp.ge.s32.totalorder %v2201, 1
    %v2650 = vsel %vm2586, 1, 0
    %v2651 = vsel %vm2587, 1, 0
    %v2652 = vsel %vm2588, 1, 0
    %v2653 = vsel %vm2589, 1, 0
    %v2654 = vsel %vm2590, 1, 0
    %v2655 = vsel %vm2591, 1, 0
    %v2656 = vsel %vm2592, 1, 0
    %v2657 = vsel %vm2593, 1, 0
    %v2658 = vsel %vm2594, 1, 0
    %v2659 = vsel %vm2595, 1, 0
    %v2660 = vsel %vm2596, 1, 0
    %v2661 = vsel %vm2597, 1, 0
    %v2662 = vsel %vm2598, 1, 0
    %v2663 = vsel %vm2599, 1, 0
    %v2664 = vsel %vm2600, 1, 0
    %v2665 = vsel %vm2601, 1, 0
    %v2666 = vsel %vm2602, 1, 0
    %v2667 = vsel %vm2603, 1, 0
    %v2668 = vsel %vm2604, 1, 0
    %v2669 = vsel %vm2605, 1, 0
    %v2670 = vsel %vm2606, 1, 0
    %v2671 = vsel %vm2607, 1, 0
    %v2672 = vsel %vm2608, 1, 0
    %v2673 = vsel %vm2609, 1, 0
    %v2674 = vsel %vm2610, 1, 0
    %v2675 = vsel %vm2611, 1, 0
    %v2676 = vsel %vm2612, 1, 0
    %v2677 = vsel %vm2613, 1, 0
    %v2678 = vsel %vm2614, 1, 0
    %v2679 = vsel %vm2615, 1, 0
    %v2680 = vsel %vm2616, 1, 0
    %v2681 = vsel %vm2617, 1, 0
    %v2682 = vsel %vm2618, 1, 0
    %v2683 = vsel %vm2619, 1, 0
    %v2684 = vsel %vm2620, 1, 0
    %v2685 = vsel %vm2621, 1, 0
    %v2686 = vsel %vm2622, 1, 0
    %v2687 = vsel %vm2623, 1, 0
    %v2688 = vsel %vm2624, 1, 0
    %v2689 = vsel %vm2625, 1, 0
    %v2690 = vsel %vm2626, 1, 0
    %v2691 = vsel %vm2627, 1, 0
    %v2692 = vsel %vm2628, 1, 0
    %v2693 = vsel %vm2629, 1, 0
    %v2694 = vsel %vm2630, 1, 0
    %v2695 = vsel %vm2631, 1, 0
    %v2696 = vsel %vm2632, 1, 0
    %v2697 = vsel %vm2633, 1, 0
    %v2698 = vsel %vm2634, 1, 0
    %v2699 = vsel %vm2635, 1, 0
    %v2700 = vsel %vm2636, 1, 0
    %v2701 = vsel %vm2637, 1, 0
    %v2702 = vsel %vm2638, 1, 0
    %v2703 = vsel %vm2639, 1, 0
    %v2704 = vsel %vm2640, 1, 0
    %v2705 = vsel %vm2641, 1, 0
    %v2706 = vsel %vm2642, 1, 0
    %v2707 = vsel %vm2643, 1, 0
    %v2708 = vsel %vm2644, 1, 0
    %v2709 = vsel %vm2645, 1, 0
    %v2710 = vsel %vm2646, 1, 0
    %v2711 = vsel %vm2647, 1, 0
    %v2712 = vsel %vm2648, 1, 0
    %v2713 = vsel %vm2649, 1, 0
    %v2714 = vcvt.s32.f32 %v2650
    %v2715 = vcvt.s32.f32 %v2651
    %v2716 = vcvt.s32.f32 %v2652
    %v2717 = vcvt.s32.f32 %v2653
    %v2718 = vcvt.s32.f32 %v2654
    %v2719 = vcvt.s32.f32 %v2655
    %v2720 = vcvt.s32.f32 %v2656
    %v2721 = vcvt.s32.f32 %v2657
    %v2722 = vcvt.s32.f32 %v2658
    %v2723 = vcvt.s32.f32 %v2659
    %v2724 = vcvt.s32.f32 %v2660
    %v2725 = vcvt.s32.f32 %v2661
    %v2726 = vcvt.s32.f32 %v2662
    %v2727 = vcvt.s32.f32 %v2663
    %v2728 = vcvt.s32.f32 %v2664
    %v2729 = vcvt.s32.f32 %v2665
    %v2730 = vcvt.s32.f32 %v2666
    %v2731 = vcvt.s32.f32 %v2667
    %v2732 = vcvt.s32.f32 %v2668
    %v2733 = vcvt.s32.f32 %v2669
    %v2734 = vcvt.s32.f32 %v2670
    %v2735 = vcvt.s32.f32 %v2671
    %v2736 = vcvt.s32.f32 %v2672
    %v2737 = vcvt.s32.f32 %v2673
    %v2738 = vcvt.s32.f32 %v2674
    %v2739 = vcvt.s32.f32 %v2675
    %v2740 = vcvt.s32.f32 %v2676
    %v2741 = vcvt.s32.f32 %v2677
    %v2742 = vcvt.s32.f32 %v2678
    %v2743 = vcvt.s32.f32 %v2679
    %v2744 = vcvt.s32.f32 %v2680
    %v2745 = vcvt.s32.f32 %v2681
    %v2746 = vcvt.s32.f32 %v2682
    %v2747 = vcvt.s32.f32 %v2683
    %v2748 = vcvt.s32.f32 %v2684
    %v2749 = vcvt.s32.f32 %v2685
    %v2750 = vcvt.s32.f32 %v2686
    %v2751 = vcvt.s32.f32 %v2687
    %v2752 = vcvt.s32.f32 %v2688
    %v2753 = vcvt.s32.f32 %v2689
    %v2754 = vcvt.s32.f32 %v2690
    %v2755 = vcvt.s32.f32 %v2691
    %v2756 = vcvt.s32.f32 %v2692
    %v2757 = vcvt.s32.f32 %v2693
    %v2758 = vcvt.s32.f32 %v2694
    %v2759 = vcvt.s32.f32 %v2695
    %v2760 = vcvt.s32.f32 %v2696
    %v2761 = vcvt.s32.f32 %v2697
    %v2762 = vcvt.s32.f32 %v2698
    %v2763 = vcvt.s32.f32 %v2699
    %v2764 = vcvt.s32.f32 %v2700
    %v2765 = vcvt.s32.f32 %v2701
    %v2766 = vcvt.s32.f32 %v2702
    %v2767 = vcvt.s32.f32 %v2703
    %v2768 = vcvt.s32.f32 %v2704
    %v2769 = vcvt.s32.f32 %v2705
    %v2770 = vcvt.s32.f32 %v2706
    %v2771 = vcvt.s32.f32 %v2707
    %v2772 = vcvt.s32.f32 %v2708
    %v2773 = vcvt.s32.f32 %v2709
    %v2774 = vcvt.s32.f32 %v2710
    %v2775 = vcvt.s32.f32 %v2711
    %v2776 = vcvt.s32.f32 %v2712
    %v2777 = vcvt.s32.f32 %v2713
    %vm2778 = vcmp.le.s32.totalorder %v2138, 14
    %vm2779 = vcmp.le.s32.totalorder %v2139, 14
    %vm2780 = vcmp.le.s32.totalorder %v2140, 14
    %vm2781 = vcmp.le.s32.totalorder %v2141, 14
    %vm2782 = vcmp.le.s32.totalorder %v2142, 14
    %vm2783 = vcmp.le.s32.totalorder %v2143, 14
    %vm2784 = vcmp.le.s32.totalorder %v2144, 14
    %vm2785 = vcmp.le.s32.totalorder %v2145, 14
    %vm2786 = vcmp.le.s32.totalorder %v2146, 14
    %vm2787 = vcmp.le.s32.totalorder %v2147, 14
    %vm2788 = vcmp.le.s32.totalorder %v2148, 14
    %vm2789 = vcmp.le.s32.totalorder %v2149, 14
    %vm2790 = vcmp.le.s32.totalorder %v2150, 14
    %vm2791 = vcmp.le.s32.totalorder %v2151, 14
    %vm2792 = vcmp.le.s32.totalorder %v2152, 14
    %vm2793 = vcmp.le.s32.totalorder %v2153, 14
    %vm2794 = vcmp.le.s32.totalorder %v2154, 14
    %vm2795 = vcmp.le.s32.totalorder %v2155, 14
    %vm2796 = vcmp.le.s32.totalorder %v2156, 14
    %vm2797 = vcmp.le.s32.totalorder %v2157, 14
    %vm2798 = vcmp.le.s32.totalorder %v2158, 14
    %vm2799 = vcmp.le.s32.totalorder %v2159, 14
    %vm2800 = vcmp.le.s32.totalorder %v2160, 14
    %vm2801 = vcmp.le.s32.totalorder %v2161, 14
    %vm2802 = vcmp.le.s32.totalorder %v2162, 14
    %vm2803 = vcmp.le.s32.totalorder %v2163, 14
    %vm2804 = vcmp.le.s32.totalorder %v2164, 14
    %vm2805 = vcmp.le.s32.totalorder %v2165, 14
    %vm2806 = vcmp.le.s32.totalorder %v2166, 14
    %vm2807 = vcmp.le.s32.totalorder %v2167, 14
    %vm2808 = vcmp.le.s32.totalorder %v2168, 14
    %vm2809 = vcmp.le.s32.totalorder %v2169, 14
    %vm2810 = vcmp.le.s32.totalorder %v2170, 14
    %vm2811 = vcmp.le.s32.totalorder %v2171, 14
    %vm2812 = vcmp.le.s32.totalorder %v2172, 14
    %vm2813 = vcmp.le.s32.totalorder %v2173, 14
    %vm2814 = vcmp.le.s32.totalorder %v2174, 14
    %vm2815 = vcmp.le.s32.totalorder %v2175, 14
    %vm2816 = vcmp.le.s32.totalorder %v2176, 14
    %vm2817 = vcmp.le.s32.totalorder %v2177, 14
    %vm2818 = vcmp.le.s32.totalorder %v2178, 14
    %vm2819 = vcmp.le.s32.totalorder %v2179, 14
    %vm2820 = vcmp.le.s32.totalorder %v2180, 14
    %vm2821 = vcmp.le.s32.totalorder %v2181, 14
    %vm2822 = vcmp.le.s32.totalorder %v2182, 14
    %vm2823 = vcmp.le.s32.totalorder %v2183, 14
    %vm2824 = vcmp.le.s32.totalorder %v2184, 14
    %vm2825 = vcmp.le.s32.totalorder %v2185, 14
    %vm2826 = vcmp.le.s32.totalorder %v2186, 14
    %vm2827 = vcmp.le.s32.totalorder %v2187, 14
    %vm2828 = vcmp.le.s32.totalorder %v2188, 14
    %vm2829 = vcmp.le.s32.totalorder %v2189, 14
    %vm2830 = vcmp.le.s32.totalorder %v2190, 14
    %vm2831 = vcmp.le.s32.totalorder %v2191, 14
    %vm2832 = vcmp.le.s32.totalorder %v2192, 14
    %vm2833 = vcmp.le.s32.totalorder %v2193, 14
    %vm2834 = vcmp.le.s32.totalorder %v2194, 14
    %vm2835 = vcmp.le.s32.totalorder %v2195, 14
    %vm2836 = vcmp.le.s32.totalorder %v2196, 14
    %vm2837 = vcmp.le.s32.totalorder %v2197, 14
    %vm2838 = vcmp.le.s32.totalorder %v2198, 14
    %vm2839 = vcmp.le.s32.totalorder %v2199, 14
    %vm2840 = vcmp.le.s32.totalorder %v2200, 14
    %vm2841 = vcmp.le.s32.totalorder %v2201, 14
    %v2842 = vsel %vm2778, 1, 0
    %v2843 = vsel %vm2779, 1, 0
    %v2844 = vsel %vm2780, 1, 0
    %v2845 = vsel %vm2781, 1, 0
    %v2846 = vsel %vm2782, 1, 0
    %v2847 = vsel %vm2783, 1, 0
    %v2848 = vsel %vm2784, 1, 0
    %v2849 = vsel %vm2785, 1, 0
    %v2850 = vsel %vm2786, 1, 0
    %v2851 = vsel %vm2787, 1, 0
    %v2852 = vsel %vm2788, 1, 0
    %v2853 = vsel %vm2789, 1, 0
    %v2854 = vsel %vm2790, 1, 0
    %v2855 = vsel %vm2791, 1, 0
    %v2856 = vsel %vm2792, 1, 0
    %v2857 = vsel %vm2793, 1, 0
    %v2858 = vsel %vm2794, 1, 0
    %v2859 = vsel %vm2795, 1, 0
    %v2860 = vsel %vm2796, 1, 0
    %v2861 = vsel %vm2797, 1, 0
    %v2862 = vsel %vm2798, 1, 0
    %v2863 = vsel %vm2799, 1, 0
    %v2864 = vsel %vm2800, 1, 0
    %v2865 = vsel %vm2801, 1, 0
    %v2866 = vsel %vm2802, 1, 0
    %v2867 = vsel %vm2803, 1, 0
    %v2868 = vsel %vm2804, 1, 0
    %v2869 = vsel %vm2805, 1, 0
    %v2870 = vsel %vm2806, 1, 0
    %v2871 = vsel %vm2807, 1, 0
    %v2872 = vsel %vm2808, 1, 0
    %v2873 = vsel %vm2809, 1, 0
    %v2874 = vsel %vm2810, 1, 0
    %v2875 = vsel %vm2811, 1, 0
    %v2876 = vsel %vm2812, 1, 0
    %v2877 = vsel %vm2813, 1, 0
    %v2878 = vsel %vm2814, 1, 0
    %v2879 = vsel %vm2815, 1, 0
    %v2880 = vsel %vm2816, 1, 0
    %v2881 = vsel %vm2817, 1, 0
    %v2882 = vsel %vm2818, 1, 0
    %v2883 = vsel %vm2819, 1, 0
    %v2884 = vsel %vm2820, 1, 0
    %v2885 = vsel %vm2821, 1, 0
    %v2886 = vsel %vm2822, 1, 0
    %v2887 = vsel %vm2823, 1, 0
    %v2888 = vsel %vm2824, 1, 0
    %v2889 = vsel %vm2825, 1, 0
    %v2890 = vsel %vm2826, 1, 0
    %v2891 = vsel %vm2827, 1, 0
    %v2892 = vsel %vm2828, 1, 0
    %v2893 = vsel %vm2829, 1, 0
    %v2894 = vsel %vm2830, 1, 0
    %v2895 = vsel %vm2831, 1, 0
    %v2896 = vsel %vm2832, 1, 0
    %v2897 = vsel %vm2833, 1, 0
    %v2898 = vsel %vm2834, 1, 0
    %v2899 = vsel %vm2835, 1, 0
    %v2900 = vsel %vm2836, 1, 0
    %v2901 = vsel %vm2837, 1, 0
    %v2902 = vsel %vm2838, 1, 0
    %v2903 = vsel %vm2839, 1, 0
    %v2904 = vsel %vm2840, 1, 0
    %v2905 = vsel %vm2841, 1, 0
    %v2906 = vcvt.s32.f32 %v2842
    %v2907 = vcvt.s32.f32 %v2843
    %v2908 = vcvt.s32.f32 %v2844
    %v2909 = vcvt.s32.f32 %v2845
    %v2910 = vcvt.s32.f32 %v2846
    %v2911 = vcvt.s32.f32 %v2847
    %v2912 = vcvt.s32.f32 %v2848
    %v2913 = vcvt.s32.f32 %v2849
    %v2914 = vcvt.s32.f32 %v2850
    %v2915 = vcvt.s32.f32 %v2851
    %v2916 = vcvt.s32.f32 %v2852
    %v2917 = vcvt.s32.f32 %v2853
    %v2918 = vcvt.s32.f32 %v2854
    %v2919 = vcvt.s32.f32 %v2855
    %v2920 = vcvt.s32.f32 %v2856
    %v2921 = vcvt.s32.f32 %v2857
    %v2922 = vcvt.s32.f32 %v2858
    %v2923 = vcvt.s32.f32 %v2859
    %v2924 = vcvt.s32.f32 %v2860
    %v2925 = vcvt.s32.f32 %v2861
    %v2926 = vcvt.s32.f32 %v2862
    %v2927 = vcvt.s32.f32 %v2863
    %v2928 = vcvt.s32.f32 %v2864
    %v2929 = vcvt.s32.f32 %v2865
    %v2930 = vcvt.s32.f32 %v2866
    %v2931 = vcvt.s32.f32 %v2867
    %v2932 = vcvt.s32.f32 %v2868
    %v2933 = vcvt.s32.f32 %v2869
    %v2934 = vcvt.s32.f32 %v2870
    %v2935 = vcvt.s32.f32 %v2871
    %v2936 = vcvt.s32.f32 %v2872
    %v2937 = vcvt.s32.f32 %v2873
    %v2938 = vcvt.s32.f32 %v2874
    %v2939 = vcvt.s32.f32 %v2875
    %v2940 = vcvt.s32.f32 %v2876
    %v2941 = vcvt.s32.f32 %v2877
    %v2942 = vcvt.s32.f32 %v2878
    %v2943 = vcvt.s32.f32 %v2879
    %v2944 = vcvt.s32.f32 %v2880
    %v2945 = vcvt.s32.f32 %v2881
    %v2946 = vcvt.s32.f32 %v2882
    %v2947 = vcvt.s32.f32 %v2883
    %v2948 = vcvt.s32.f32 %v2884
    %v2949 = vcvt.s32.f32 %v2885
    %v2950 = vcvt.s32.f32 %v2886
    %v2951 = vcvt.s32.f32 %v2887
    %v2952 = vcvt.s32.f32 %v2888
    %v2953 = vcvt.s32.f32 %v2889
    %v2954 = vcvt.s32.f32 %v2890
    %v2955 = vcvt.s32.f32 %v2891
    %v2956 = vcvt.s32.f32 %v2892
    %v2957 = vcvt.s32.f32 %v2893
    %v2958 = vcvt.s32.f32 %v2894
    %v2959 = vcvt.s32.f32 %v2895
    %v2960 = vcvt.s32.f32 %v2896
    %v2961 = vcvt.s32.f32 %v2897
    %v2962 = vcvt.s32.f32 %v2898
    %v2963 = vcvt.s32.f32 %v2899
    %v2964 = vcvt.s32.f32 %v2900
    %v2965 = vcvt.s32.f32 %v2901
    %v2966 = vcvt.s32.f32 %v2902
    %v2967 = vcvt.s32.f32 %v2903
    %v2968 = vcvt.s32.f32 %v2904
    %v2969 = vcvt.s32.f32 %v2905
    %v2970 = vrot.slane %v537, 7
    %v2971 = vrot.slane %v538, 7
    %v2972 = vrot.slane %v539, 7
    %v2973 = vrot.slane %v540, 7
    %v2974 = vrot.slane %v541, 7
    %v2975 = vrot.slane %v542, 7
    %v2976 = vrot.slane %v543, 7
    %v2977 = vrot.slane %v544, 7
    %v2978 = vrot.slane %v545, 7
    %v2979 = vrot.slane %v546, 7
    %v2980 = vrot.slane %v547, 7
    %v2981 = vrot.slane %v548, 7
    %v2982 = vrot.slane %v549, 7
    %v2983 = vrot.slane %v550, 7
    %v2984 = vrot.slane %v551, 7
    %v2985 = vrot.slane %v552, 7
    %v2986 = vrot.slane %v553, 7
    %v2987 = vrot.slane %v554, 7
    %v2988 = vrot.slane %v555, 7
    %v2989 = vrot.slane %v556, 7
    %v2990 = vrot.slane %v557, 7
    %v2991 = vrot.slane %v558, 7
    %v2992 = vrot.slane %v559, 7
    %v2993 = vrot.slane %v560, 7
    %v2994 = vrot.slane %v561, 7
    %v2995 = vrot.slane %v562, 7
    %v2996 = vrot.slane %v563, 7
    %v2997 = vrot.slane %v564, 7
    %v2998 = vrot.slane %v565, 7
    %v2999 = vrot.slane %v566, 7
    %v3000 = vrot.slane %v567, 7
    %v3001 = vrot.slane %v568, 7
    %v3002 = vrot.slane %v569, 7
    %v3003 = vrot.slane %v570, 7
    %v3004 = vrot.slane %v571, 7
    %v3005 = vrot.slane %v572, 7
    %v3006 = vrot.slane %v573, 7
    %v3007 = vrot.slane %v574, 7
    %v3008 = vrot.slane %v575, 7
    %v3009 = vrot.slane %v576, 7
    %v3010 = vrot.slane %v577, 7
    %v3011 = vrot.slane %v578, 7
    %v3012 = vrot.slane %v579, 7
    %v3013 = vrot.slane %v580, 7
    %v3014 = vrot.slane %v581, 7
    %v3015 = vrot.slane %v582, 7
    %v3016 = vrot.slane %v583, 7
    %v3017 = vrot.slane %v584, 7
    %v3018 = vrot.slane %v585, 7
    %v3019 = vrot.slane %v586, 7
    %v3020 = vrot.slane %v587, 7
    %v3021 = vrot.slane %v588, 7
    %v3022 = vrot.slane %v589, 7
    %v3023 = vrot.slane %v590, 7
    %v3024 = vrot.slane %v591, 7
    %v3025 = vrot.slane %v592, 7
    %v3026 = vrot.slane %v593, 7
    %v3027 = vrot.slane %v594, 7
    %v3028 = vrot.slane %v595, 7
    %v3029 = vrot.slane %v596, 7
    %v3030 = vrot.slane %v597, 7
    %v3031 = vrot.slane %v598, 7
    %v3032 = vrot.slane %v599, 7
    %v3033 = vrot.slane %v600, 7
    %vm3034 = vcmp.lt.s32.totalorder %v602, 1
    %v3035 = vsel %vm3034, %v3032, %v3033
    %v3036 = vsel %vm3034, %v3031, %v3032
    %v3037 = vsel %vm3034, %v3030, %v3031
    %v3038 = vsel %vm3034, %v3029, %v3030
    %v3039 = vsel %vm3034, %v3028, %v3029
    %v3040 = vsel %vm3034, %v3027, %v3028
    %v3041 = vsel %vm3034, %v3026, %v3027
    %v3042 = vsel %vm3034, %v3025, %v3026
    %v3043 = vsel %vm3034, %v3024, %v3025
    %v3044 = vsel %vm3034, %v3023, %v3024
    %v3045 = vsel %vm3034, %v3022, %v3023
    %v3046 = vsel %vm3034, %v3021, %v3022
    %v3047 = vsel %vm3034, %v3020, %v3021
    %v3048 = vsel %vm3034, %v3019, %v3020
    %v3049 = vsel %vm3034, %v3018, %v3019
    %v3050 = vsel %vm3034, %v3017, %v3018
    %v3051 = vsel %vm3034, %v3016, %v3017
    %v3052 = vsel %vm3034, %v3015, %v3016
    %v3053 = vsel %vm3034, %v3014, %v3015
    %v3054 = vsel %vm3034, %v3013, %v3014
    %v3055 = vsel %vm3034, %v3012, %v3013
    %v3056 = vsel %vm3034, %v3011, %v3012
    %v3057 = vsel %vm3034, %v3010, %v3011
    %v3058 = vsel %vm3034, %v3009, %v3010
    %v3059 = vsel %vm3034, %v3008, %v3009
    %v3060 = vsel %vm3034, %v3007, %v3008
    %v3061 = vsel %vm3034, %v3006, %v3007
    %v3062 = vsel %vm3034, %v3005, %v3006
    %v3063 = vsel %vm3034, %v3004, %v3005
    %v3064 = vsel %vm3034, %v3003, %v3004
    %v3065 = vsel %vm3034, %v3002, %v3003
    %v3066 = vsel %vm3034, %v3001, %v3002
    %v3067 = vsel %vm3034, %v3000, %v3001
    %v3068 = vsel %vm3034, %v2999, %v3000
    %v3069 = vsel %vm3034, %v2998, %v2999
    %v3070 = vsel %vm3034, %v2997, %v2998
    %v3071 = vsel %vm3034, %v2996, %v2997
    %v3072 = vsel %vm3034, %v2995, %v2996
    %v3073 = vsel %vm3034, %v2994, %v2995
    %v3074 = vsel %vm3034, %v2993, %v2994
    %v3075 = vsel %vm3034, %v2992, %v2993
    %v3076 = vsel %vm3034, %v2991, %v2992
    %v3077 = vsel %vm3034, %v2990, %v2991
    %v3078 = vsel %vm3034, %v2989, %v2990
    %v3079 = vsel %vm3034, %v2988, %v2989
    %v3080 = vsel %vm3034, %v2987, %v2988
    %v3081 = vsel %vm3034, %v2986, %v2987
    %v3082 = vsel %vm3034, %v2985, %v2986
    %v3083 = vsel %vm3034, %v2984, %v2985
    %v3084 = vsel %vm3034, %v2983, %v2984
    %v3085 = vsel %vm3034, %v2982, %v2983
    %v3086 = vsel %vm3034, %v2981, %v2982
    %v3087 = vsel %vm3034, %v2980, %v2981
    %v3088 = vsel %vm3034, %v2979, %v2980
    %v3089 = vsel %vm3034, %v2978, %v2979
    %v3090 = vsel %vm3034, %v2977, %v2978
    %v3091 = vsel %vm3034, %v2976, %v2977
    %v3092 = vsel %vm3034, %v2975, %v2976
    %v3093 = vsel %vm3034, %v2974, %v2975
    %v3094 = vsel %vm3034, %v2973, %v2974
    %v3095 = vsel %vm3034, %v2972, %v2973
    %v3096 = vsel %vm3034, %v2971, %v2972
    %v3097 = vsel %vm3034, %v2970, %v2971
    %v3098 = vsel %vm3034, %v3033, %v2970
    %v3099 = vmul.f32 %v2330, %v2714
    %v3100 = vmul.f32 %v2331, %v2715
    %v3101 = vmul.f32 %v2332, %v2716
    %v3102 = vmul.f32 %v2333, %v2717
    %v3103 = vmul.f32 %v2334, %v2718
    %v3104 = vmul.f32 %v2335, %v2719
    %v3105 = vmul.f32 %v2336, %v2720
    %v3106 = vmul.f32 %v2337, %v2721
    %v3107 = vmul.f32 %v2338, %v2722
    %v3108 = vmul.f32 %v2339, %v2723
    %v3109 = vmul.f32 %v2340, %v2724
    %v3110 = vmul.f32 %v2341, %v2725
    %v3111 = vmul.f32 %v2342, %v2726
    %v3112 = vmul.f32 %v2343, %v2727
    %v3113 = vmul.f32 %v2344, %v2728
    %v3114 = vmul.f32 %v2345, %v2729
    %v3115 = vmul.f32 %v2346, %v2730
    %v3116 = vmul.f32 %v2347, %v2731
    %v3117 = vmul.f32 %v2348, %v2732
    %v3118 = vmul.f32 %v2349, %v2733
    %v3119 = vmul.f32 %v2350, %v2734
    %v3120 = vmul.f32 %v2351, %v2735
    %v3121 = vmul.f32 %v2352, %v2736
    %v3122 = vmul.f32 %v2353, %v2737
    %v3123 = vmul.f32 %v2354, %v2738
    %v3124 = vmul.f32 %v2355, %v2739
    %v3125 = vmul.f32 %v2356, %v2740
    %v3126 = vmul.f32 %v2357, %v2741
    %v3127 = vmul.f32 %v2358, %v2742
    %v3128 = vmul.f32 %v2359, %v2743
    %v3129 = vmul.f32 %v2360, %v2744
    %v3130 = vmul.f32 %v2361, %v2745
    %v3131 = vmul.f32 %v2362, %v2746
    %v3132 = vmul.f32 %v2363, %v2747
    %v3133 = vmul.f32 %v2364, %v2748
    %v3134 = vmul.f32 %v2365, %v2749
    %v3135 = vmul.f32 %v2366, %v2750
    %v3136 = vmul.f32 %v2367, %v2751
    %v3137 = vmul.f32 %v2368, %v2752
    %v3138 = vmul.f32 %v2369, %v2753
    %v3139 = vmul.f32 %v2370, %v2754
    %v3140 = vmul.f32 %v2371, %v2755
    %v3141 = vmul.f32 %v2372, %v2756
    %v3142 = vmul.f32 %v2373, %v2757
    %v3143 = vmul.f32 %v2374, %v2758
    %v3144 = vmul.f32 %v2375, %v2759
    %v3145 = vmul.f32 %v2376, %v2760
    %v3146 = vmul.f32 %v2377, %v2761
    %v3147 = vmul.f32 %v2378, %v2762
    %v3148 = vmul.f32 %v2379, %v2763
    %v3149 = vmul.f32 %v2380, %v2764
    %v3150 = vmul.f32 %v2381, %v2765
    %v3151 = vmul.f32 %v2382, %v2766
    %v3152 = vmul.f32 %v2383, %v2767
    %v3153 = vmul.f32 %v2384, %v2768
    %v3154 = vmul.f32 %v2385, %v2769
    %v3155 = vmul.f32 %v2386, %v2770
    %v3156 = vmul.f32 %v2387, %v2771
    %v3157 = vmul.f32 %v2388, %v2772
    %v3158 = vmul.f32 %v2389, %v2773
    %v3159 = vmul.f32 %v2390, %v2774
    %v3160 = vmul.f32 %v2391, %v2775
    %v3161 = vmul.f32 %v2392, %v2776
    %v3162 = vmul.f32 %v2393, %v2777
    %v3163 = vmul.f32 %v3036, %v3099
    %v3164 = vmul.f32 %v3035, %v3100
    %v3165 = vmul.f32 %v3098, %v3101
    %v3166 = vmul.f32 %v3097, %v3102
    %v3167 = vmul.f32 %v3096, %v3103
    %v3168 = vmul.f32 %v3095, %v3104
    %v3169 = vmul.f32 %v3094, %v3105
    %v3170 = vmul.f32 %v3093, %v3106
    %v3171 = vmul.f32 %v3092, %v3107
    %v3172 = vmul.f32 %v3091, %v3108
    %v3173 = vmul.f32 %v3090, %v3109
    %v3174 = vmul.f32 %v3089, %v3110
    %v3175 = vmul.f32 %v3088, %v3111
    %v3176 = vmul.f32 %v3087, %v3112
    %v3177 = vmul.f32 %v3086, %v3113
    %v3178 = vmul.f32 %v3085, %v3114
    %v3179 = vmul.f32 %v3084, %v3115
    %v3180 = vmul.f32 %v3083, %v3116
    %v3181 = vmul.f32 %v3082, %v3117
    %v3182 = vmul.f32 %v3081, %v3118
    %v3183 = vmul.f32 %v3080, %v3119
    %v3184 = vmul.f32 %v3079, %v3120
    %v3185 = vmul.f32 %v3078, %v3121
    %v3186 = vmul.f32 %v3077, %v3122
    %v3187 = vmul.f32 %v3076, %v3123
    %v3188 = vmul.f32 %v3075, %v3124
    %v3189 = vmul.f32 %v3074, %v3125
    %v3190 = vmul.f32 %v3073, %v3126
    %v3191 = vmul.f32 %v3072, %v3127
    %v3192 = vmul.f32 %v3071, %v3128
    %v3193 = vmul.f32 %v3070, %v3129
    %v3194 = vmul.f32 %v3069, %v3130
    %v3195 = vmul.f32 %v3068, %v3131
    %v3196 = vmul.f32 %v3067, %v3132
    %v3197 = vmul.f32 %v3066, %v3133
    %v3198 = vmul.f32 %v3065, %v3134
    %v3199 = vmul.f32 %v3064, %v3135
    %v3200 = vmul.f32 %v3063, %v3136
    %v3201 = vmul.f32 %v3062, %v3137
    %v3202 = vmul.f32 %v3061, %v3138
    %v3203 = vmul.f32 %v3060, %v3139
    %v3204 = vmul.f32 %v3059, %v3140
    %v3205 = vmul.f32 %v3058, %v3141
    %v3206 = vmul.f32 %v3057, %v3142
    %v3207 = vmul.f32 %v3056, %v3143
    %v3208 = vmul.f32 %v3055, %v3144
    %v3209 = vmul.f32 %v3054, %v3145
    %v3210 = vmul.f32 %v3053, %v3146
    %v3211 = vmul.f32 %v3052, %v3147
    %v3212 = vmul.f32 %v3051, %v3148
    %v3213 = vmul.f32 %v3050, %v3149
    %v3214 = vmul.f32 %v3049, %v3150
    %v3215 = vmul.f32 %v3048, %v3151
    %v3216 = vmul.f32 %v3047, %v3152
    %v3217 = vmul.f32 %v3046, %v3153
    %v3218 = vmul.f32 %v3045, %v3154
    %v3219 = vmul.f32 %v3044, %v3155
    %v3220 = vmul.f32 %v3043, %v3156
    %v3221 = vmul.f32 %v3042, %v3157
    %v3222 = vmul.f32 %v3041, %v3158
    %v3223 = vmul.f32 %v3040, %v3159
    %v3224 = vmul.f32 %v3039, %v3160
    %v3225 = vmul.f32 %v3038, %v3161
    %v3226 = vmul.f32 %v3037, %v3162
    %v3227 = vpack.c.bf16 %v3163, %v3163
    %v3228 = vpack.c.bf16 %v3164, %v3164
    %v3229 = vpack.c.bf16 %v3165, %v3165
    %v3230 = vpack.c.bf16 %v3166, %v3166
    %v3231 = vpack.c.bf16 %v3167, %v3167
    %v3232 = vpack.c.bf16 %v3168, %v3168
    %v3233 = vpack.c.bf16 %v3169, %v3169
    %v3234 = vpack.c.bf16 %v3170, %v3170
    %v3235 = vpack.c.bf16 %v3171, %v3171
    %v3236 = vpack.c.bf16 %v3172, %v3172
    %v3237 = vpack.c.bf16 %v3173, %v3173
    %v3238 = vpack.c.bf16 %v3174, %v3174
    %v3239 = vpack.c.bf16 %v3175, %v3175
    %v3240 = vpack.c.bf16 %v3176, %v3176
    %v3241 = vpack.c.bf16 %v3177, %v3177
    %v3242 = vpack.c.bf16 %v3178, %v3178
    %v3243 = vpack.c.bf16 %v3179, %v3179
    %v3244 = vpack.c.bf16 %v3180, %v3180
    %v3245 = vpack.c.bf16 %v3181, %v3181
    %v3246 = vpack.c.bf16 %v3182, %v3182
    %v3247 = vpack.c.bf16 %v3183, %v3183
    %v3248 = vpack.c.bf16 %v3184, %v3184
    %v3249 = vpack.c.bf16 %v3185, %v3185
    %v3250 = vpack.c.bf16 %v3186, %v3186
    %v3251 = vpack.c.bf16 %v3187, %v3187
    %v3252 = vpack.c.bf16 %v3188, %v3188
    %v3253 = vpack.c.bf16 %v3189, %v3189
    %v3254 = vpack.c.bf16 %v3190, %v3190
    %v3255 = vpack.c.bf16 %v3191, %v3191
    %v3256 = vpack.c.bf16 %v3192, %v3192
    %v3257 = vpack.c.bf16 %v3193, %v3193
    %v3258 = vpack.c.bf16 %v3194, %v3194
    %v3259 = vpack.c.bf16 %v3195, %v3195
    %v3260 = vpack.c.bf16 %v3196, %v3196
    %v3261 = vpack.c.bf16 %v3197, %v3197
    %v3262 = vpack.c.bf16 %v3198, %v3198
    %v3263 = vpack.c.bf16 %v3199, %v3199
    %v3264 = vpack.c.bf16 %v3200, %v3200
    %v3265 = vpack.c.bf16 %v3201, %v3201
    %v3266 = vpack.c.bf16 %v3202, %v3202
    %v3267 = vpack.c.bf16 %v3203, %v3203
    %v3268 = vpack.c.bf16 %v3204, %v3204
    %v3269 = vpack.c.bf16 %v3205, %v3205
    %v3270 = vpack.c.bf16 %v3206, %v3206
    %v3271 = vpack.c.bf16 %v3207, %v3207
    %v3272 = vpack.c.bf16 %v3208, %v3208
    %v3273 = vpack.c.bf16 %v3209, %v3209
    %v3274 = vpack.c.bf16 %v3210, %v3210
    %v3275 = vpack.c.bf16 %v3211, %v3211
    %v3276 = vpack.c.bf16 %v3212, %v3212
    %v3277 = vpack.c.bf16 %v3213, %v3213
    %v3278 = vpack.c.bf16 %v3214, %v3214
    %v3279 = vpack.c.bf16 %v3215, %v3215
    %v3280 = vpack.c.bf16 %v3216, %v3216
    %v3281 = vpack.c.bf16 %v3217, %v3217
    %v3282 = vpack.c.bf16 %v3218, %v3218
    %v3283 = vpack.c.bf16 %v3219, %v3219
    %v3284 = vpack.c.bf16 %v3220, %v3220
    %v3285 = vpack.c.bf16 %v3221, %v3221
    %v3286 = vpack.c.bf16 %v3222, %v3222
    %v3287 = vpack.c.bf16 %v3223, %v3223
    %v3288 = vpack.c.bf16 %v3224, %v3224
    %v3289 = vpack.c.bf16 %v3225, %v3225
    %v3290 = vpack.c.bf16 %v3226, %v3226
    %vm3291 = vcmask 257024
    %3292 = vst.msk [vmem:[#allocation2] sm:$0xf] %vm3291, %v3227
    %3293 = vst.msk [vmem:[#allocation2 + $0xc] sm:$0xf] %vm3291, %v3228
    %3294 = vst.msk [vmem:[#allocation2 + $0x18] sm:$0xf] %vm3291, %v3229
    %3295 = vst.msk [vmem:[#allocation2 + $0x24] sm:$0xf] %vm3291, %v3230
    %3296 = vst.msk [vmem:[#allocation2 + $0x30] sm:$0xf] %vm3291, %v3231
    %3297 = vst.msk [vmem:[#allocation2 + $0x3c] sm:$0xf] %vm3291, %v3232
    %3298 = vst.msk [vmem:[#allocation2 + $0x48] sm:$0xf] %vm3291, %v3233
    %3299 = vst.msk [vmem:[#allocation2 + $0x54] sm:$0xf] %vm3291, %v3234
    %3300 = vst.msk [vmem:[#allocation2 + $0x60] sm:$0xf] %vm3291, %v3235
    %3301 = vst.msk [vmem:[#allocation2 + $0x6c] sm:$0xf] %vm3291, %v3236
    %3302 = vst.msk [vmem:[#allocation2 + $0x78] sm:$0xf] %vm3291, %v3237
    %3303 = vst.msk [vmem:[#allocation2 + $0x84] sm:$0xf] %vm3291, %v3238
    %3304 = vst.msk [vmem:[#allocation2 + $0x90] sm:$0xf] %vm3291, %v3239
    %3305 = vst.msk [vmem:[#allocation2 + $0x9c] sm:$0xf] %vm3291, %v3240
    %3306 = vst.msk [vmem:[#allocation2 + $0xa8] sm:$0xf] %vm3291, %v3241
    %3307 = vst.msk [vmem:[#allocation2 + $0xb4] sm:$0xf] %vm3291, %v3242
    %3308 = vst.msk [vmem:[#allocation2 + $0xc0] sm:$0xf] %vm3291, %v3243
    %3309 = vst.msk [vmem:[#allocation2 + $0xcc] sm:$0xf] %vm3291, %v3244
    %3310 = vst.msk [vmem:[#allocation2 + $0xd8] sm:$0xf] %vm3291, %v3245
    %3311 = vst.msk [vmem:[#allocation2 + $0xe4] sm:$0xf] %vm3291, %v3246
    %3312 = vst.msk [vmem:[#allocation2 + $0xf0] sm:$0xf] %vm3291, %v3247
    %3313 = vst.msk [vmem:[#allocation2 + $0xfc] sm:$0xf] %vm3291, %v3248
    %3314 = vst.msk [vmem:[#allocation2 + $0x108] sm:$0xf] %vm3291, %v3249
    %3315 = vst.msk [vmem:[#allocation2 + $0x114] sm:$0xf] %vm3291, %v3250
    %3316 = vst.msk [vmem:[#allocation2 + $0x120] sm:$0xf] %vm3291, %v3251
    %3317 = vst.msk [vmem:[#allocation2 + $0x12c] sm:$0xf] %vm3291, %v3252
    %3318 = vst.msk [vmem:[#allocation2 + $0x138] sm:$0xf] %vm3291, %v3253
    %3319 = vst.msk [vmem:[#allocation2 + $0x144] sm:$0xf] %vm3291, %v3254
    %3320 = vst.msk [vmem:[#allocation2 + $0x150] sm:$0xf] %vm3291, %v3255
    %3321 = vst.msk [vmem:[#allocation2 + $0x15c] sm:$0xf] %vm3291, %v3256
    %3322 = vst.msk [vmem:[#allocation2 + $0x168] sm:$0xf] %vm3291, %v3257
    %3323 = vst.msk [vmem:[#allocation2 + $0x174] sm:$0xf] %vm3291, %v3258
    %3324 = vst.msk [vmem:[#allocation2 + $0x180] sm:$0xf] %vm3291, %v3259
    %3325 = vst.msk [vmem:[#allocation2 + $0x18c] sm:$0xf] %vm3291, %v3260
    %3326 = vst.msk [vmem:[#allocation2 + $0x198] sm:$0xf] %vm3291, %v3261
    %3327 = vst.msk [vmem:[#allocation2 + $0x1a4] sm:$0xf] %vm3291, %v3262
    %3328 = vst.msk [vmem:[#allocation2 + $0x1b0] sm:$0xf] %vm3291, %v3263
    %3329 = vst.msk [vmem:[#allocation2 + $0x1bc] sm:$0xf] %vm3291, %v3264
    %3330 = vst.msk [vmem:[#allocation2 + $0x1c8] sm:$0xf] %vm3291, %v3265
    %3331 = vst.msk [vmem:[#allocation2 + $0x1d4] sm:$0xf] %vm3291, %v3266
    %3332 = vst.msk [vmem:[#allocation2 + $0x1e0] sm:$0xf] %vm3291, %v3267
    %3333 = vst.msk [vmem:[#allocation2 + $0x1ec] sm:$0xf] %vm3291, %v3268
    %3334 = vst.msk [vmem:[#allocation2 + $0x1f8] sm:$0xf] %vm3291, %v3269
    %3335 = vst.msk [vmem:[#allocation2 + $0x204] sm:$0xf] %vm3291, %v3270
    %3336 = vst.msk [vmem:[#allocation2 + $0x210] sm:$0xf] %vm3291, %v3271
    %3337 = vst.msk [vmem:[#allocation2 + $0x21c] sm:$0xf] %vm3291, %v3272
    %3338 = vst.msk [vmem:[#allocation2 + $0x228] sm:$0xf] %vm3291, %v3273
    %3339 = vst.msk [vmem:[#allocation2 + $0x234] sm:$0xf] %vm3291, %v3274
    %3340 = vst.msk [vmem:[#allocation2 + $0x240] sm:$0xf] %vm3291, %v3275
    %3341 = vst.msk [vmem:[#allocation2 + $0x24c] sm:$0xf] %vm3291, %v3276
    %3342 = vst.msk [vmem:[#allocation2 + $0x258] sm:$0xf] %vm3291, %v3277
    %3343 = vst.msk [vmem:[#allocation2 + $0x264] sm:$0xf] %vm3291, %v3278
    %3344 = vst.msk [vmem:[#allocation2 + $0x270] sm:$0xf] %vm3291, %v3279
    %3345 = vst.msk [vmem:[#allocation2 + $0x27c] sm:$0xf] %vm3291, %v3280
    %3346 = vst.msk [vmem:[#allocation2 + $0x288] sm:$0xf] %vm3291, %v3281
    %3347 = vst.msk [vmem:[#allocation2 + $0x294] sm:$0xf] %vm3291, %v3282
    %3348 = vst.msk [vmem:[#allocation2 + $0x2a0] sm:$0xf] %vm3291, %v3283
    %3349 = vst.msk [vmem:[#allocation2 + $0x2ac] sm:$0xf] %vm3291, %v3284
    %3350 = vst.msk [vmem:[#allocation2 + $0x2b8] sm:$0xf] %vm3291, %v3285
    %3351 = vst.msk [vmem:[#allocation2 + $0x2c4] sm:$0xf] %vm3291, %v3286
    %3352 = vst.msk [vmem:[#allocation2 + $0x2d0] sm:$0xf] %vm3291, %v3287
    %3353 = vst.msk [vmem:[#allocation2 + $0x2dc] sm:$0xf] %vm3291, %v3288
    %3354 = vst.msk [vmem:[#allocation2 + $0x2e8] sm:$0xf] %vm3291, %v3289
    %3355 = vst.msk [vmem:[#allocation2 + $0x2f4] sm:$0xf] %vm3291, %v3290
    %v3356 = vmul.f32 %v599, %v2330
    %v3357 = vmul.f32 %v600, %v2331
    %v3358 = vmul.f32 %v537, %v2332
    %v3359 = vmul.f32 %v538, %v2333
    %v3360 = vmul.f32 %v539, %v2334
    %v3361 = vmul.f32 %v540, %v2335
    %v3362 = vmul.f32 %v541, %v2336
    %v3363 = vmul.f32 %v542, %v2337
    %v3364 = vmul.f32 %v543, %v2338
    %v3365 = vmul.f32 %v544, %v2339
    %v3366 = vmul.f32 %v545, %v2340
    %v3367 = vmul.f32 %v546, %v2341
    %v3368 = vmul.f32 %v547, %v2342
    %v3369 = vmul.f32 %v548, %v2343
    %v3370 = vmul.f32 %v549, %v2344
    %v3371 = vmul.f32 %v550, %v2345
    %v3372 = vmul.f32 %v551, %v2346
    %v3373 = vmul.f32 %v552, %v2347
    %v3374 = vmul.f32 %v553, %v2348
    %v3375 = vmul.f32 %v554, %v2349
    %v3376 = vmul.f32 %v555, %v2350
    %v3377 = vmul.f32 %v556, %v2351
    %v3378 = vmul.f32 %v557, %v2352
    %v3379 = vmul.f32 %v558, %v2353
    %v3380 = vmul.f32 %v559, %v2354
    %v3381 = vmul.f32 %v560, %v2355
    %v3382 = vmul.f32 %v561, %v2356
    %v3383 = vmul.f32 %v562, %v2357
    %v3384 = vmul.f32 %v563, %v2358
    %v3385 = vmul.f32 %v564, %v2359
    %v3386 = vmul.f32 %v565, %v2360
    %v3387 = vmul.f32 %v566, %v2361
    %v3388 = vmul.f32 %v567, %v2362
    %v3389 = vmul.f32 %v568, %v2363
    %v3390 = vmul.f32 %v569, %v2364
    %v3391 = vmul.f32 %v570, %v2365
    %v3392 = vmul.f32 %v571, %v2366
    %v3393 = vmul.f32 %v572, %v2367
    %v3394 = vmul.f32 %v573, %v2368
    %v3395 = vmul.f32 %v574, %v2369
    %v3396 = vmul.f32 %v575, %v2370
    %v3397 = vmul.f32 %v576, %v2371
    %v3398 = vmul.f32 %v577, %v2372
    %v3399 = vmul.f32 %v578, %v2373
    %v3400 = vmul.f32 %v579, %v2374
    %v3401 = vmul.f32 %v580, %v2375
    %v3402 = vmul.f32 %v581, %v2376
    %v3403 = vmul.f32 %v582, %v2377
    %v3404 = vmul.f32 %v583, %v2378
    %v3405 = vmul.f32 %v584, %v2379
    %v3406 = vmul.f32 %v585, %v2380
    %v3407 = vmul.f32 %v586, %v2381
    %v3408 = vmul.f32 %v587, %v2382
    %v3409 = vmul.f32 %v588, %v2383
    %v3410 = vmul.f32 %v589, %v2384
    %v3411 = vmul.f32 %v590, %v2385
    %v3412 = vmul.f32 %v591, %v2386
    %v3413 = vmul.f32 %v592, %v2387
    %v3414 = vmul.f32 %v593, %v2388
    %v3415 = vmul.f32 %v594, %v2389
    %v3416 = vmul.f32 %v595, %v2390
    %v3417 = vmul.f32 %v596, %v2391
    %v3418 = vmul.f32 %v597, %v2392
    %v3419 = vmul.f32 %v598, %v2393
    %v3420 = vpack.c.bf16 %v3356, %v3356
    %v3421 = vpack.c.bf16 %v3357, %v3357
    %v3422 = vpack.c.bf16 %v3358, %v3358
    %v3423 = vpack.c.bf16 %v3359, %v3359
    %v3424 = vpack.c.bf16 %v3360, %v3360
    %v3425 = vpack.c.bf16 %v3361, %v3361
    %v3426 = vpack.c.bf16 %v3362, %v3362
    %v3427 = vpack.c.bf16 %v3363, %v3363
    %v3428 = vpack.c.bf16 %v3364, %v3364
    %v3429 = vpack.c.bf16 %v3365, %v3365
    %v3430 = vpack.c.bf16 %v3366, %v3366
    %v3431 = vpack.c.bf16 %v3367, %v3367
    %v3432 = vpack.c.bf16 %v3368, %v3368
    %v3433 = vpack.c.bf16 %v3369, %v3369
    %v3434 = vpack.c.bf16 %v3370, %v3370
    %v3435 = vpack.c.bf16 %v3371, %v3371
    %v3436 = vpack.c.bf16 %v3372, %v3372
    %v3437 = vpack.c.bf16 %v3373, %v3373
    %v3438 = vpack.c.bf16 %v3374, %v3374
    %v3439 = vpack.c.bf16 %v3375, %v3375
    %v3440 = vpack.c.bf16 %v3376, %v3376
    %v3441 = vpack.c.bf16 %v3377, %v3377
    %v3442 = vpack.c.bf16 %v3378, %v3378
    %v3443 = vpack.c.bf16 %v3379, %v3379
    %v3444 = vpack.c.bf16 %v3380, %v3380
    %v3445 = vpack.c.bf16 %v3381, %v3381
    %v3446 = vpack.c.bf16 %v3382, %v3382
    %v3447 = vpack.c.bf16 %v3383, %v3383
    %v3448 = vpack.c.bf16 %v3384, %v3384
    %v3449 = vpack.c.bf16 %v3385, %v3385
    %v3450 = vpack.c.bf16 %v3386, %v3386
    %v3451 = vpack.c.bf16 %v3387, %v3387
    %v3452 = vpack.c.bf16 %v3388, %v3388
    %v3453 = vpack.c.bf16 %v3389, %v3389
    %v3454 = vpack.c.bf16 %v3390, %v3390
    %v3455 = vpack.c.bf16 %v3391, %v3391
    %v3456 = vpack.c.bf16 %v3392, %v3392
    %v3457 = vpack.c.bf16 %v3393, %v3393
    %v3458 = vpack.c.bf16 %v3394, %v3394
    %v3459 = vpack.c.bf16 %v3395, %v3395
    %v3460 = vpack.c.bf16 %v3396, %v3396
    %v3461 = vpack.c.bf16 %v3397, %v3397
    %v3462 = vpack.c.bf16 %v3398, %v3398
    %v3463 = vpack.c.bf16 %v3399, %v3399
    %v3464 = vpack.c.bf16 %v3400, %v3400
    %v3465 = vpack.c.bf16 %v3401, %v3401
    %v3466 = vpack.c.bf16 %v3402, %v3402
    %v3467 = vpack.c.bf16 %v3403, %v3403
    %v3468 = vpack.c.bf16 %v3404, %v3404
    %v3469 = vpack.c.bf16 %v3405, %v3405
    %v3470 = vpack.c.bf16 %v3406, %v3406
    %v3471 = vpack.c.bf16 %v3407, %v3407
    %v3472 = vpack.c.bf16 %v3408, %v3408
    %v3473 = vpack.c.bf16 %v3409, %v3409
    %v3474 = vpack.c.bf16 %v3410, %v3410
    %v3475 = vpack.c.bf16 %v3411, %v3411
    %v3476 = vpack.c.bf16 %v3412, %v3412
    %v3477 = vpack.c.bf16 %v3413, %v3413
    %v3478 = vpack.c.bf16 %v3414, %v3414
    %v3479 = vpack.c.bf16 %v3415, %v3415
    %v3480 = vpack.c.bf16 %v3416, %v3416
    %v3481 = vpack.c.bf16 %v3417, %v3417
    %v3482 = vpack.c.bf16 %v3418, %v3418
    %v3483 = vpack.c.bf16 %v3419, %v3419
    %3548 = vrot.lane.b32.xlu0 %v3420, 32
    %v3549 = vpop.permute.xlu0 %3548
    %3550 = vrot.lane.b32.xlu0 %v3421, 32
    %v3551 = vpop.permute.xlu0 %3550
    %3552 = vrot.lane.b32.xlu0 %v3422, 32
    %v3553 = vpop.permute.xlu0 %3552
    %3554 = vrot.lane.b32.xlu0 %v3423, 32
    %v3555 = vpop.permute.xlu0 %3554
    %3556 = vrot.lane.b32.xlu0 %v3424, 32
    %v3557 = vpop.permute.xlu0 %3556
    %3558 = vrot.lane.b32.xlu0 %v3425, 32
    %v3559 = vpop.permute.xlu0 %3558
    %3560 = vrot.lane.b32.xlu0 %v3426, 32
    %v3561 = vpop.permute.xlu0 %3560
    %3562 = vrot.lane.b32.xlu0 %v3427, 32
    %v3563 = vpop.permute.xlu0 %3562
    %3564 = vrot.lane.b32.xlu0 %v3428, 32
    %v3565 = vpop.permute.xlu0 %3564
    %3566 = vrot.lane.b32.xlu0 %v3429, 32
    %v3567 = vpop.permute.xlu0 %3566
    %3568 = vrot.lane.b32.xlu0 %v3430, 32
    %v3569 = vpop.permute.xlu0 %3568
    %3570 = vrot.lane.b32.xlu0 %v3431, 32
    %v3571 = vpop.permute.xlu0 %3570
    %3572 = vrot.lane.b32.xlu0 %v3432, 32
    %v3573 = vpop.permute.xlu0 %3572
    %3574 = vrot.lane.b32.xlu0 %v3433, 32
    %v3575 = vpop.permute.xlu0 %3574
    %3576 = vrot.lane.b32.xlu0 %v3434, 32
    %v3577 = vpop.permute.xlu0 %3576
    %3578 = vrot.lane.b32.xlu0 %v3435, 32
    %v3579 = vpop.permute.xlu0 %3578
    %3580 = vrot.lane.b32.xlu0 %v3436, 32
    %v3581 = vpop.permute.xlu0 %3580
    %3582 = vrot.lane.b32.xlu0 %v3437, 32
    %v3583 = vpop.permute.xlu0 %3582
    %3584 = vrot.lane.b32.xlu0 %v3438, 32
    %v3585 = vpop.permute.xlu0 %3584
    %3586 = vrot.lane.b32.xlu0 %v3439, 32
    %v3587 = vpop.permute.xlu0 %3586
    %3588 = vrot.lane.b32.xlu0 %v3440, 32
    %v3589 = vpop.permute.xlu0 %3588
    %3590 = vrot.lane.b32.xlu0 %v3441, 32
    %v3591 = vpop.permute.xlu0 %3590
    %3592 = vrot.lane.b32.xlu0 %v3442, 32
    %v3593 = vpop.permute.xlu0 %3592
    %3594 = vrot.lane.b32.xlu0 %v3443, 32
    %v3595 = vpop.permute.xlu0 %3594
    %3596 = vrot.lane.b32.xlu0 %v3444, 32
    %v3597 = vpop.permute.xlu0 %3596
    %3598 = vrot.lane.b32.xlu0 %v3445, 32
    %v3599 = vpop.permute.xlu0 %3598
    %3600 = vrot.lane.b32.xlu0 %v3446, 32
    %v3601 = vpop.permute.xlu0 %3600
    %3602 = vrot.lane.b32.xlu0 %v3447, 32
    %v3603 = vpop.permute.xlu0 %3602
    %3604 = vrot.lane.b32.xlu0 %v3448, 32
    %v3605 = vpop.permute.xlu0 %3604
    %3606 = vrot.lane.b32.xlu0 %v3449, 32
    %v3607 = vpop.permute.xlu0 %3606
    %3608 = vrot.lane.b32.xlu0 %v3450, 32
    %v3609 = vpop.permute.xlu0 %3608
    %3610 = vrot.lane.b32.xlu0 %v3451, 32
    %v3611 = vpop.permute.xlu0 %3610
    %3612 = vrot.lane.b32.xlu0 %v3452, 32
    %v3613 = vpop.permute.xlu0 %3612
    %3614 = vrot.lane.b32.xlu0 %v3453, 32
    %v3615 = vpop.permute.xlu0 %3614
    %3616 = vrot.lane.b32.xlu0 %v3454, 32
    %v3617 = vpop.permute.xlu0 %3616
    %3618 = vrot.lane.b32.xlu0 %v3455, 32
    %v3619 = vpop.permute.xlu0 %3618
    %3620 = vrot.lane.b32.xlu0 %v3456, 32
    %v3621 = vpop.permute.xlu0 %3620
    %3622 = vrot.lane.b32.xlu0 %v3457, 32
    %v3623 = vpop.permute.xlu0 %3622
    %3624 = vrot.lane.b32.xlu0 %v3458, 32
    %v3625 = vpop.permute.xlu0 %3624
    %3626 = vrot.lane.b32.xlu0 %v3459, 32
    %v3627 = vpop.permute.xlu0 %3626
    %3628 = vrot.lane.b32.xlu0 %v3460, 32
    %v3629 = vpop.permute.xlu0 %3628
    %3630 = vrot.lane.b32.xlu0 %v3461, 32
    %v3631 = vpop.permute.xlu0 %3630
    %3632 = vrot.lane.b32.xlu0 %v3462, 32
    %v3633 = vpop.permute.xlu0 %3632
    %3634 = vrot.lane.b32.xlu0 %v3463, 32
    %v3635 = vpop.permute.xlu0 %3634
    %3636 = vrot.lane.b32.xlu0 %v3464, 32
    %v3637 = vpop.permute.xlu0 %3636
    %3638 = vrot.lane.b32.xlu0 %v3465, 32
    %v3639 = vpop.permute.xlu0 %3638
    %3640 = vrot.lane.b32.xlu0 %v3466, 32
    %v3641 = vpop.permute.xlu0 %3640
    %3642 = vrot.lane.b32.xlu0 %v3467, 32
    %v3643 = vpop.permute.xlu0 %3642
    %3644 = vrot.lane.b32.xlu0 %v3468, 32
    %v3645 = vpop.permute.xlu0 %3644
    %3646 = vrot.lane.b32.xlu0 %v3469, 32
    %v3647 = vpop.permute.xlu0 %3646
    %3648 = vrot.lane.b32.xlu0 %v3470, 32
    %v3649 = vpop.permute.xlu0 %3648
    %3650 = vrot.lane.b32.xlu0 %v3471, 32
    %v3651 = vpop.permute.xlu0 %3650
    %3652 = vrot.lane.b32.xlu0 %v3472, 32
    %v3653 = vpop.permute.xlu0 %3652
    %3654 = vrot.lane.b32.xlu0 %v3473, 32
    %v3655 = vpop.permute.xlu0 %3654
    %3656 = vrot.lane.b32.xlu0 %v3474, 32
    %v3657 = vpop.permute.xlu0 %3656
    %3658 = vrot.lane.b32.xlu0 %v3475, 32
    %v3659 = vpop.permute.xlu0 %3658
    %3660 = vrot.lane.b32.xlu0 %v3476, 32
    %v3661 = vpop.permute.xlu0 %3660
    %3662 = vrot.lane.b32.xlu0 %v3477, 32
    %v3663 = vpop.permute.xlu0 %3662
    %3664 = vrot.lane.b32.xlu0 %v3478, 32
    %v3665 = vpop.permute.xlu0 %3664
    %3666 = vrot.lane.b32.xlu0 %v3479, 32
    %v3667 = vpop.permute.xlu0 %3666
    %3668 = vrot.lane.b32.xlu0 %v3480, 32
    %v3669 = vpop.permute.xlu0 %3668
    %3670 = vrot.lane.b32.xlu0 %v3481, 32
    %v3671 = vpop.permute.xlu0 %3670
    %3672 = vrot.lane.b32.xlu0 %v3482, 32
    %v3673 = vpop.permute.xlu0 %3672
    %3674 = vrot.lane.b32.xlu0 %v3483, 32
    %v3675 = vpop.permute.xlu0 %3674
    %vm3740 = vcmask 519424
    %3741 = vst.msk [vmem:[#allocation2] sm:$0xf] %vm3740, %v3549
    %3742 = vst.msk [vmem:[#allocation2 + $0xc] sm:$0xf] %vm3740, %v3551
    %3743 = vst.msk [vmem:[#allocation2 + $0x18] sm:$0xf] %vm3740, %v3553
    %3744 = vst.msk [vmem:[#allocation2 + $0x24] sm:$0xf] %vm3740, %v3555
    %3745 = vst.msk [vmem:[#allocation2 + $0x30] sm:$0xf] %vm3740, %v3557
    %3746 = vst.msk [vmem:[#allocation2 + $0x3c] sm:$0xf] %vm3740, %v3559
    %3747 = vst.msk [vmem:[#allocation2 + $0x48] sm:$0xf] %vm3740, %v3561
    %3748 = vst.msk [vmem:[#allocation2 + $0x54] sm:$0xf] %vm3740, %v3563
    %3749 = vst.msk [vmem:[#allocation2 + $0x60] sm:$0xf] %vm3740, %v3565
    %3750 = vst.msk [vmem:[#allocation2 + $0x6c] sm:$0xf] %vm3740, %v3567
    %3751 = vst.msk [vmem:[#allocation2 + $0x78] sm:$0xf] %vm3740, %v3569
    %3752 = vst.msk [vmem:[#allocation2 + $0x84] sm:$0xf] %vm3740, %v3571
    %3753 = vst.msk [vmem:[#allocation2 + $0x90] sm:$0xf] %vm3740, %v3573
    %3754 = vst.msk [vmem:[#allocation2 + $0x9c] sm:$0xf] %vm3740, %v3575
    %3755 = vst.msk [vmem:[#allocation2 + $0xa8] sm:$0xf] %vm3740, %v3577
    %3756 = vst.msk [vmem:[#allocation2 + $0xb4] sm:$0xf] %vm3740, %v3579
    %3757 = vst.msk [vmem:[#allocation2 + $0xc0] sm:$0xf] %vm3740, %v3581
    %3758 = vst.msk [vmem:[#allocation2 + $0xcc] sm:$0xf] %vm3740, %v3583
    %3759 = vst.msk [vmem:[#allocation2 + $0xd8] sm:$0xf] %vm3740, %v3585
    %3760 = vst.msk [vmem:[#allocation2 + $0xe4] sm:$0xf] %vm3740, %v3587
    %3761 = vst.msk [vmem:[#allocation2 + $0xf0] sm:$0xf] %vm3740, %v3589
    %3762 = vst.msk [vmem:[#allocation2 + $0xfc] sm:$0xf] %vm3740, %v3591
    %3763 = vst.msk [vmem:[#allocation2 + $0x108] sm:$0xf] %vm3740, %v3593
    %3764 = vst.msk [vmem:[#allocation2 + $0x114] sm:$0xf] %vm3740, %v3595
    %3765 = vst.msk [vmem:[#allocation2 + $0x120] sm:$0xf] %vm3740, %v3597
    %3766 = vst.msk [vmem:[#allocation2 + $0x12c] sm:$0xf] %vm3740, %v3599
    %3767 = vst.msk [vmem:[#allocation2 + $0x138] sm:$0xf] %vm3740, %v3601
    %3768 = vst.msk [vmem:[#allocation2 + $0x144] sm:$0xf] %vm3740, %v3603
    %3769 = vst.msk [vmem:[#allocation2 + $0x150] sm:$0xf] %vm3740, %v3605
    %3770 = vst.msk [vmem:[#allocation2 + $0x15c] sm:$0xf] %vm3740, %v3607
    %3771 = vst.msk [vmem:[#allocation2 + $0x168] sm:$0xf] %vm3740, %v3609
    %3772 = vst.msk [vmem:[#allocation2 + $0x174] sm:$0xf] %vm3740, %v3611
    %3773 = vst.msk [vmem:[#allocation2 + $0x180] sm:$0xf] %vm3740, %v3613
    %3774 = vst.msk [vmem:[#allocation2 + $0x18c] sm:$0xf] %vm3740, %v3615
    %3775 = vst.msk [vmem:[#allocation2 + $0x198] sm:$0xf] %vm3740, %v3617
    %3776 = vst.msk [vmem:[#allocation2 + $0x1a4] sm:$0xf] %vm3740, %v3619
    %3777 = vst.msk [vmem:[#allocation2 + $0x1b0] sm:$0xf] %vm3740, %v3621
    %3778 = vst.msk [vmem:[#allocation2 + $0x1bc] sm:$0xf] %vm3740, %v3623
    %3779 = vst.msk [vmem:[#allocation2 + $0x1c8] sm:$0xf] %vm3740, %v3625
    %3780 = vst.msk [vmem:[#allocation2 + $0x1d4] sm:$0xf] %vm3740, %v3627
    %3781 = vst.msk [vmem:[#allocation2 + $0x1e0] sm:$0xf] %vm3740, %v3629
    %3782 = vst.msk [vmem:[#allocation2 + $0x1ec] sm:$0xf] %vm3740, %v3631
    %3783 = vst.msk [vmem:[#allocation2 + $0x1f8] sm:$0xf] %vm3740, %v3633
    %3784 = vst.msk [vmem:[#allocation2 + $0x204] sm:$0xf] %vm3740, %v3635
    %3785 = vst.msk [vmem:[#allocation2 + $0x210] sm:$0xf] %vm3740, %v3637
    %3786 = vst.msk [vmem:[#allocation2 + $0x21c] sm:$0xf] %vm3740, %v3639
    %3787 = vst.msk [vmem:[#allocation2 + $0x228] sm:$0xf] %vm3740, %v3641
    %3788 = vst.msk [vmem:[#allocation2 + $0x234] sm:$0xf] %vm3740, %v3643
    %3789 = vst.msk [vmem:[#allocation2 + $0x240] sm:$0xf] %vm3740, %v3645
    %3790 = vst.msk [vmem:[#allocation2 + $0x24c] sm:$0xf] %vm3740, %v3647
    %3791 = vst.msk [vmem:[#allocation2 + $0x258] sm:$0xf] %vm3740, %v3649
    %3792 = vst.msk [vmem:[#allocation2 + $0x264] sm:$0xf] %vm3740, %v3651
    %3793 = vst.msk [vmem:[#allocation2 + $0x270] sm:$0xf] %vm3740, %v3653
    %3794 = vst.msk [vmem:[#allocation2 + $0x27c] sm:$0xf] %vm3740, %v3655
    %3795 = vst.msk [vmem:[#allocation2 + $0x288] sm:$0xf] %vm3740, %v3657
    %3796 = vst.msk [vmem:[#allocation2 + $0x294] sm:$0xf] %vm3740, %v3659
    %3797 = vst.msk [vmem:[#allocation2 + $0x2a0] sm:$0xf] %vm3740, %v3661
    %3798 = vst.msk [vmem:[#allocation2 + $0x2ac] sm:$0xf] %vm3740, %v3663
    %3799 = vst.msk [vmem:[#allocation2 + $0x2b8] sm:$0xf] %vm3740, %v3665
    %3800 = vst.msk [vmem:[#allocation2 + $0x2c4] sm:$0xf] %vm3740, %v3667
    %3801 = vst.msk [vmem:[#allocation2 + $0x2d0] sm:$0xf] %vm3740, %v3669
    %3802 = vst.msk [vmem:[#allocation2 + $0x2dc] sm:$0xf] %vm3740, %v3671
    %3803 = vst.msk [vmem:[#allocation2 + $0x2e8] sm:$0xf] %vm3740, %v3673
    %3804 = vst.msk [vmem:[#allocation2 + $0x2f4] sm:$0xf] %vm3740, %v3675
    %v3805 = vrot.slane %v537, 1
    %v3806 = vrot.slane %v538, 1
    %v3807 = vrot.slane %v539, 1
    %v3808 = vrot.slane %v540, 1
    %v3809 = vrot.slane %v541, 1
    %v3810 = vrot.slane %v542, 1
    %v3811 = vrot.slane %v543, 1
    %v3812 = vrot.slane %v544, 1
    %v3813 = vrot.slane %v545, 1
    %v3814 = vrot.slane %v546, 1
    %v3815 = vrot.slane %v547, 1
    %v3816 = vrot.slane %v548, 1
    %v3817 = vrot.slane %v549, 1
    %v3818 = vrot.slane %v550, 1
    %v3819 = vrot.slane %v551, 1
    %v3820 = vrot.slane %v552, 1
    %v3821 = vrot.slane %v553, 1
    %v3822 = vrot.slane %v554, 1
    %v3823 = vrot.slane %v555, 1
    %v3824 = vrot.slane %v556, 1
    %v3825 = vrot.slane %v557, 1
    %v3826 = vrot.slane %v558, 1
    %v3827 = vrot.slane %v559, 1
    %v3828 = vrot.slane %v560, 1
    %v3829 = vrot.slane %v561, 1
    %v3830 = vrot.slane %v562, 1
    %v3831 = vrot.slane %v563, 1
    %v3832 = vrot.slane %v564, 1
    %v3833 = vrot.slane %v565, 1
    %v3834 = vrot.slane %v566, 1
    %v3835 = vrot.slane %v567, 1
    %v3836 = vrot.slane %v568, 1
    %v3837 = vrot.slane %v569, 1
    %v3838 = vrot.slane %v570, 1
    %v3839 = vrot.slane %v571, 1
    %v3840 = vrot.slane %v572, 1
    %v3841 = vrot.slane %v573, 1
    %v3842 = vrot.slane %v574, 1
    %v3843 = vrot.slane %v575, 1
    %v3844 = vrot.slane %v576, 1
    %v3845 = vrot.slane %v577, 1
    %v3846 = vrot.slane %v578, 1
    %v3847 = vrot.slane %v579, 1
    %v3848 = vrot.slane %v580, 1
    %v3849 = vrot.slane %v581, 1
    %v3850 = vrot.slane %v582, 1
    %v3851 = vrot.slane %v583, 1
    %v3852 = vrot.slane %v584, 1
    %v3853 = vrot.slane %v585, 1
    %v3854 = vrot.slane %v586, 1
    %v3855 = vrot.slane %v587, 1
    %v3856 = vrot.slane %v588, 1
    %v3857 = vrot.slane %v589, 1
    %v3858 = vrot.slane %v590, 1
    %v3859 = vrot.slane %v591, 1
    %v3860 = vrot.slane %v592, 1
    %v3861 = vrot.slane %v593, 1
    %v3862 = vrot.slane %v594, 1
    %v3863 = vrot.slane %v595, 1
    %v3864 = vrot.slane %v596, 1
    %v3865 = vrot.slane %v597, 1
    %v3866 = vrot.slane %v598, 1
    %v3867 = vrot.slane %v599, 1
    %v3868 = vrot.slane %v600, 1
    %vm3869 = vcmp.lt.s32.totalorder %v602, 7
    %v3870 = vsel %vm3869, %v3867, %v3868
    %v3871 = vsel %vm3869, %v3866, %v3867
    %v3872 = vsel %vm3869, %v3865, %v3866
    %v3873 = vsel %vm3869, %v3864, %v3865
    %v3874 = vsel %vm3869, %v3863, %v3864
    %v3875 = vsel %vm3869, %v3862, %v3863
    %v3876 = vsel %vm3869, %v3861, %v3862
    %v3877 = vsel %vm3869, %v3860, %v3861
    %v3878 = vsel %vm3869, %v3859, %v3860
    %v3879 = vsel %vm3869, %v3858, %v3859
    %v3880 = vsel %vm3869, %v3857, %v3858
    %v3881 = vsel %vm3869, %v3856, %v3857
    %v3882 = vsel %vm3869, %v3855, %v3856
    %v3883 = vsel %vm3869, %v3854, %v3855
    %v3884 = vsel %vm3869, %v3853, %v3854
    %v3885 = vsel %vm3869, %v3852, %v3853
    %v3886 = vsel %vm3869, %v3851, %v3852
    %v3887 = vsel %vm3869, %v3850, %v3851
    %v3888 = vsel %vm3869, %v3849, %v3850
    %v3889 = vsel %vm3869, %v3848, %v3849
    %v3890 = vsel %vm3869, %v3847, %v3848
    %v3891 = vsel %vm3869, %v3846, %v3847
    %v3892 = vsel %vm3869, %v3845, %v3846
    %v3893 = vsel %vm3869, %v3844, %v3845
    %v3894 = vsel %vm3869, %v3843, %v3844
    %v3895 = vsel %vm3869, %v3842, %v3843
    %v3896 = vsel %vm3869, %v3841, %v3842
    %v3897 = vsel %vm3869, %v3840, %v3841
    %v3898 = vsel %vm3869, %v3839, %v3840
    %v3899 = vsel %vm3869, %v3838, %v3839
    %v3900 = vsel %vm3869, %v3837, %v3838
    %v3901 = vsel %vm3869, %v3836, %v3837
    %v3902 = vsel %vm3869, %v3835, %v3836
    %v3903 = vsel %vm3869, %v3834, %v3835
    %v3904 = vsel %vm3869, %v3833, %v3834
    %v3905 = vsel %vm3869, %v3832, %v3833
    %v3906 = vsel %vm3869, %v3831, %v3832
    %v3907 = vsel %vm3869, %v3830, %v3831
    %v3908 = vsel %vm3869, %v3829, %v3830
    %v3909 = vsel %vm3869, %v3828, %v3829
    %v3910 = vsel %vm3869, %v3827, %v3828
    %v3911 = vsel %vm3869, %v3826, %v3827
    %v3912 = vsel %vm3869, %v3825, %v3826
    %v3913 = vsel %vm3869, %v3824, %v3825
    %v3914 = vsel %vm3869, %v3823, %v3824
    %v3915 = vsel %vm3869, %v3822, %v3823
    %v3916 = vsel %vm3869, %v3821, %v3822
    %v3917 = vsel %vm3869, %v3820, %v3821
    %v3918 = vsel %vm3869, %v3819, %v3820
    %v3919 = vsel %vm3869, %v3818, %v3819
    %v3920 = vsel %vm3869, %v3817, %v3818
    %v3921 = vsel %vm3869, %v3816, %v3817
    %v3922 = vsel %vm3869, %v3815, %v3816
    %v3923 = vsel %vm3869, %v3814, %v3815
    %v3924 = vsel %vm3869, %v3813, %v3814
    %v3925 = vsel %vm3869, %v3812, %v3813
    %v3926 = vsel %vm3869, %v3811, %v3812
    %v3927 = vsel %vm3869, %v3810, %v3811
    %v3928 = vsel %vm3869, %v3809, %v3810
    %v3929 = vsel %vm3869, %v3808, %v3809
    %v3930 = vsel %vm3869, %v3807, %v3808
    %v3931 = vsel %vm3869, %v3806, %v3807
    %v3932 = vsel %vm3869, %v3805, %v3806
    %v3933 = vsel %vm3869, %v3868, %v3805
    %v3934 = vmul.f32 %v2330, %v2906
    %v3935 = vmul.f32 %v2331, %v2907
    %v3936 = vmul.f32 %v2332, %v2908
    %v3937 = vmul.f32 %v2333, %v2909
    %v3938 = vmul.f32 %v2334, %v2910
    %v3939 = vmul.f32 %v2335, %v2911
    %v3940 = vmul.f32 %v2336, %v2912
    %v3941 = vmul.f32 %v2337, %v2913
    %v3942 = vmul.f32 %v2338, %v2914
    %v3943 = vmul.f32 %v2339, %v2915
    %v3944 = vmul.f32 %v2340, %v2916
    %v3945 = vmul.f32 %v2341, %v2917
    %v3946 = vmul.f32 %v2342, %v2918
    %v3947 = vmul.f32 %v2343, %v2919
    %v3948 = vmul.f32 %v2344, %v2920
    %v3949 = vmul.f32 %v2345, %v2921
    %v3950 = vmul.f32 %v2346, %v2922
    %v3951 = vmul.f32 %v2347, %v2923
    %v3952 = vmul.f32 %v2348, %v2924
    %v3953 = vmul.f32 %v2349, %v2925
    %v3954 = vmul.f32 %v2350, %v2926
    %v3955 = vmul.f32 %v2351, %v2927
    %v3956 = vmul.f32 %v2352, %v2928
    %v3957 = vmul.f32 %v2353, %v2929
    %v3958 = vmul.f32 %v2354, %v2930
    %v3959 = vmul.f32 %v2355, %v2931
    %v3960 = vmul.f32 %v2356, %v2932
    %v3961 = vmul.f32 %v2357, %v2933
    %v3962 = vmul.f32 %v2358, %v2934
    %v3963 = vmul.f32 %v2359, %v2935
    %v3964 = vmul.f32 %v2360, %v2936
    %v3965 = vmul.f32 %v2361, %v2937
    %v3966 = vmul.f32 %v2362, %v2938
    %v3967 = vmul.f32 %v2363, %v2939
    %v3968 = vmul.f32 %v2364, %v2940
    %v3969 = vmul.f32 %v2365, %v2941
    %v3970 = vmul.f32 %v2366, %v2942
    %v3971 = vmul.f32 %v2367, %v2943
    %v3972 = vmul.f32 %v2368, %v2944
    %v3973 = vmul.f32 %v2369, %v2945
    %v3974 = vmul.f32 %v2370, %v2946
    %v3975 = vmul.f32 %v2371, %v2947
    %v3976 = vmul.f32 %v2372, %v2948
    %v3977 = vmul.f32 %v2373, %v2949
    %v3978 = vmul.f32 %v2374, %v2950
    %v3979 = vmul.f32 %v2375, %v2951
    %v3980 = vmul.f32 %v2376, %v2952
    %v3981 = vmul.f32 %v2377, %v2953
    %v3982 = vmul.f32 %v2378, %v2954
    %v3983 = vmul.f32 %v2379, %v2955
    %v3984 = vmul.f32 %v2380, %v2956
    %v3985 = vmul.f32 %v2381, %v2957
    %v3986 = vmul.f32 %v2382, %v2958
    %v3987 = vmul.f32 %v2383, %v2959
    %v3988 = vmul.f32 %v2384, %v2960
    %v3989 = vmul.f32 %v2385, %v2961
    %v3990 = vmul.f32 %v2386, %v2962
    %v3991 = vmul.f32 %v2387, %v2963
    %v3992 = vmul.f32 %v2388, %v2964
    %v3993 = vmul.f32 %v2389, %v2965
    %v3994 = vmul.f32 %v2390, %v2966
    %v3995 = vmul.f32 %v2391, %v2967
    %v3996 = vmul.f32 %v2392, %v2968
    %v3997 = vmul.f32 %v2393, %v2969
    %v3998 = vmul.f32 %v3870, %v3934
    %v3999 = vmul.f32 %v3933, %v3935
    %v4000 = vmul.f32 %v3932, %v3936
    %v4001 = vmul.f32 %v3931, %v3937
    %v4002 = vmul.f32 %v3930, %v3938
    %v4003 = vmul.f32 %v3929, %v3939
    %v4004 = vmul.f32 %v3928, %v3940
    %v4005 = vmul.f32 %v3927, %v3941
    %v4006 = vmul.f32 %v3926, %v3942
    %v4007 = vmul.f32 %v3925, %v3943
    %v4008 = vmul.f32 %v3924, %v3944
    %v4009 = vmul.f32 %v3923, %v3945
    %v4010 = vmul.f32 %v3922, %v3946
    %v4011 = vmul.f32 %v3921, %v3947
    %v4012 = vmul.f32 %v3920, %v3948
    %v4013 = vmul.f32 %v3919, %v3949
    %v4014 = vmul.f32 %v3918, %v3950
    %v4015 = vmul.f32 %v3917, %v3951
    %v4016 = vmul.f32 %v3916, %v3952
    %v4017 = vmul.f32 %v3915, %v3953
    %v4018 = vmul.f32 %v3914, %v3954
    %v4019 = vmul.f32 %v3913, %v3955
    %v4020 = vmul.f32 %v3912, %v3956
    %v4021 = vmul.f32 %v3911, %v3957
    %v4022 = vmul.f32 %v3910, %v3958
    %v4023 = vmul.f32 %v3909, %v3959
    %v4024 = vmul.f32 %v3908, %v3960
    %v4025 = vmul.f32 %v3907, %v3961
    %v4026 = vmul.f32 %v3906, %v3962
    %v4027 = vmul.f32 %v3905, %v3963
    %v4028 = vmul.f32 %v3904, %v3964
    %v4029 = vmul.f32 %v3903, %v3965
    %v4030 = vmul.f32 %v3902, %v3966
    %v4031 = vmul.f32 %v3901, %v3967
    %v4032 = vmul.f32 %v3900, %v3968
    %v4033 = vmul.f32 %v3899, %v3969
    %v4034 = vmul.f32 %v3898, %v3970
    %v4035 = vmul.f32 %v3897, %v3971
    %v4036 = vmul.f32 %v3896, %v3972
    %v4037 = vmul.f32 %v3895, %v3973
    %v4038 = vmul.f32 %v3894, %v3974
    %v4039 = vmul.f32 %v3893, %v3975
    %v4040 = vmul.f32 %v3892, %v3976
    %v4041 = vmul.f32 %v3891, %v3977
    %v4042 = vmul.f32 %v3890, %v3978
    %v4043 = vmul.f32 %v3889, %v3979
    %v4044 = vmul.f32 %v3888, %v3980
    %v4045 = vmul.f32 %v3887, %v3981
    %v4046 = vmul.f32 %v3886, %v3982
    %v4047 = vmul.f32 %v3885, %v3983
    %v4048 = vmul.f32 %v3884, %v3984
    %v4049 = vmul.f32 %v3883, %v3985
    %v4050 = vmul.f32 %v3882, %v3986
    %v4051 = vmul.f32 %v3881, %v3987
    %v4052 = vmul.f32 %v3880, %v3988
    %v4053 = vmul.f32 %v3879, %v3989
    %v4054 = vmul.f32 %v3878, %v3990
    %v4055 = vmul.f32 %v3877, %v3991
    %v4056 = vmul.f32 %v3876, %v3992
    %v4057 = vmul.f32 %v3875, %v3993
    %v4058 = vmul.f32 %v3874, %v3994
    %v4059 = vmul.f32 %v3873, %v3995
    %v4060 = vmul.f32 %v3872, %v3996
    %v4061 = vmul.f32 %v3871, %v3997
    %v4062 = vpack.c.bf16 %v3998, %v3998
    %v4063 = vpack.c.bf16 %v3999, %v3999
    %v4064 = vpack.c.bf16 %v4000, %v4000
    %v4065 = vpack.c.bf16 %v4001, %v4001
    %v4066 = vpack.c.bf16 %v4002, %v4002
    %v4067 = vpack.c.bf16 %v4003, %v4003
    %v4068 = vpack.c.bf16 %v4004, %v4004
    %v4069 = vpack.c.bf16 %v4005, %v4005
    %v4070 = vpack.c.bf16 %v4006, %v4006
    %v4071 = vpack.c.bf16 %v4007, %v4007
    %v4072 = vpack.c.bf16 %v4008, %v4008
    %v4073 = vpack.c.bf16 %v4009, %v4009
    %v4074 = vpack.c.bf16 %v4010, %v4010
    %v4075 = vpack.c.bf16 %v4011, %v4011
    %v4076 = vpack.c.bf16 %v4012, %v4012
    %v4077 = vpack.c.bf16 %v4013, %v4013
    %v4078 = vpack.c.bf16 %v4014, %v4014
    %v4079 = vpack.c.bf16 %v4015, %v4015
    %v4080 = vpack.c.bf16 %v4016, %v4016
    %v4081 = vpack.c.bf16 %v4017, %v4017
    %v4082 = vpack.c.bf16 %v4018, %v4018
    %v4083 = vpack.c.bf16 %v4019, %v4019
    %v4084 = vpack.c.bf16 %v4020, %v4020
    %v4085 = vpack.c.bf16 %v4021, %v4021
    %v4086 = vpack.c.bf16 %v4022, %v4022
    %v4087 = vpack.c.bf16 %v4023, %v4023
    %v4088 = vpack.c.bf16 %v4024, %v4024
    %v4089 = vpack.c.bf16 %v4025, %v4025
    %v4090 = vpack.c.bf16 %v4026, %v4026
    %v4091 = vpack.c.bf16 %v4027, %v4027
    %v4092 = vpack.c.bf16 %v4028, %v4028
    %v4093 = vpack.c.bf16 %v4029, %v4029
    %v4094 = vpack.c.bf16 %v4030, %v4030
    %v4095 = vpack.c.bf16 %v4031, %v4031
    %v4096 = vpack.c.bf16 %v4032, %v4032
    %v4097 = vpack.c.bf16 %v4033, %v4033
    %v4098 = vpack.c.bf16 %v4034, %v4034
    %v4099 = vpack.c.bf16 %v4035, %v4035
    %v4100 = vpack.c.bf16 %v4036, %v4036
    %v4101 = vpack.c.bf16 %v4037, %v4037
    %v4102 = vpack.c.bf16 %v4038, %v4038
    %v4103 = vpack.c.bf16 %v4039, %v4039
    %v4104 = vpack.c.bf16 %v4040, %v4040
    %v4105 = vpack.c.bf16 %v4041, %v4041
    %v4106 = vpack.c.bf16 %v4042, %v4042
    %v4107 = vpack.c.bf16 %v4043, %v4043
    %v4108 = vpack.c.bf16 %v4044, %v4044
    %v4109 = vpack.c.bf16 %v4045, %v4045
    %v4110 = vpack.c.bf16 %v4046, %v4046
    %v4111 = vpack.c.bf16 %v4047, %v4047
    %v4112 = vpack.c.bf16 %v4048, %v4048
    %v4113 = vpack.c.bf16 %v4049, %v4049
    %v4114 = vpack.c.bf16 %v4050, %v4050
    %v4115 = vpack.c.bf16 %v4051, %v4051
    %v4116 = vpack.c.bf16 %v4052, %v4052
    %v4117 = vpack.c.bf16 %v4053, %v4053
    %v4118 = vpack.c.bf16 %v4054, %v4054
    %v4119 = vpack.c.bf16 %v4055, %v4055
    %v4120 = vpack.c.bf16 %v4056, %v4056
    %v4121 = vpack.c.bf16 %v4057, %v4057
    %v4122 = vpack.c.bf16 %v4058, %v4058
    %v4123 = vpack.c.bf16 %v4059, %v4059
    %v4124 = vpack.c.bf16 %v4060, %v4060
    %v4125 = vpack.c.bf16 %v4061, %v4061
    %4190 = vrot.lane.b32.xlu0 %v4062, 64
    %v4191 = vpop.permute.xlu0 %4190
    %4192 = vrot.lane.b32.xlu0 %v4063, 64
    %v4193 = vpop.permute.xlu0 %4192
    %4194 = vrot.lane.b32.xlu0 %v4064, 64
    %v4195 = vpop.permute.xlu0 %4194
    %4196 = vrot.lane.b32.xlu0 %v4065, 64
    %v4197 = vpop.permute.xlu0 %4196
    %4198 = vrot.lane.b32.xlu0 %v4066, 64
    %v4199 = vpop.permute.xlu0 %4198
    %4200 = vrot.lane.b32.xlu0 %v4067, 64
    %v4201 = vpop.permute.xlu0 %4200
    %4202 = vrot.lane.b32.xlu0 %v4068, 64
    %v4203 = vpop.permute.xlu0 %4202
    %4204 = vrot.lane.b32.xlu0 %v4069, 64
    %v4205 = vpop.permute.xlu0 %4204
    %4206 = vrot.lane.b32.xlu0 %v4070, 64
    %v4207 = vpop.permute.xlu0 %4206
    %4208 = vrot.lane.b32.xlu0 %v4071, 64
    %v4209 = vpop.permute.xlu0 %4208
    %4210 = vrot.lane.b32.xlu0 %v4072, 64
    %v4211 = vpop.permute.xlu0 %4210
    %4212 = vrot.lane.b32.xlu0 %v4073, 64
    %v4213 = vpop.permute.xlu0 %4212
    %4214 = vrot.lane.b32.xlu0 %v4074, 64
    %v4215 = vpop.permute.xlu0 %4214
    %4216 = vrot.lane.b32.xlu0 %v4075, 64
    %v4217 = vpop.permute.xlu0 %4216
    %4218 = vrot.lane.b32.xlu0 %v4076, 64
    %v4219 = vpop.permute.xlu0 %4218
    %4220 = vrot.lane.b32.xlu0 %v4077, 64
    %v4221 = vpop.permute.xlu0 %4220
    %4222 = vrot.lane.b32.xlu0 %v4078, 64
    %v4223 = vpop.permute.xlu0 %4222
    %4224 = vrot.lane.b32.xlu0 %v4079, 64
    %v4225 = vpop.permute.xlu0 %4224
    %4226 = vrot.lane.b32.xlu0 %v4080, 64
    %v4227 = vpop.permute.xlu0 %4226
    %4228 = vrot.lane.b32.xlu0 %v4081, 64
    %v4229 = vpop.permute.xlu0 %4228
    %4230 = vrot.lane.b32.xlu0 %v4082, 64
    %v4231 = vpop.permute.xlu0 %4230
    %4232 = vrot.lane.b32.xlu0 %v4083, 64
    %v4233 = vpop.permute.xlu0 %4232
    %4234 = vrot.lane.b32.xlu0 %v4084, 64
    %v4235 = vpop.permute.xlu0 %4234
    %4236 = vrot.lane.b32.xlu0 %v4085, 64
    %v4237 = vpop.permute.xlu0 %4236
    %4238 = vrot.lane.b32.xlu0 %v4086, 64
    %v4239 = vpop.permute.xlu0 %4238
    %4240 = vrot.lane.b32.xlu0 %v4087, 64
    %v4241 = vpop.permute.xlu0 %4240
    %4242 = vrot.lane.b32.xlu0 %v4088, 64
    %v4243 = vpop.permute.xlu0 %4242
    %4244 = vrot.lane.b32.xlu0 %v4089, 64
    %v4245 = vpop.permute.xlu0 %4244
    %4246 = vrot.lane.b32.xlu0 %v4090, 64
    %v4247 = vpop.permute.xlu0 %4246
    %4248 = vrot.lane.b32.xlu0 %v4091, 64
    %v4249 = vpop.permute.xlu0 %4248
    %4250 = vrot.lane.b32.xlu0 %v4092, 64
    %v4251 = vpop.permute.xlu0 %4250
    %4252 = vrot.lane.b32.xlu0 %v4093, 64
    %v4253 = vpop.permute.xlu0 %4252
    %4254 = vrot.lane.b32.xlu0 %v4094, 64
    %v4255 = vpop.permute.xlu0 %4254
    %4256 = vrot.lane.b32.xlu0 %v4095, 64
    %v4257 = vpop.permute.xlu0 %4256
    %4258 = vrot.lane.b32.xlu0 %v4096, 64
    %v4259 = vpop.permute.xlu0 %4258
    %4260 = vrot.lane.b32.xlu0 %v4097, 64
    %v4261 = vpop.permute.xlu0 %4260
    %4262 = vrot.lane.b32.xlu0 %v4098, 64
    %v4263 = vpop.permute.xlu0 %4262
    %4264 = vrot.lane.b32.xlu0 %v4099, 64
    %v4265 = vpop.permute.xlu0 %4264
    %4266 = vrot.lane.b32.xlu0 %v4100, 64
    %v4267 = vpop.permute.xlu0 %4266
    %4268 = vrot.lane.b32.xlu0 %v4101, 64
    %v4269 = vpop.permute.xlu0 %4268
    %4270 = vrot.lane.b32.xlu0 %v4102, 64
    %v4271 = vpop.permute.xlu0 %4270
    %4272 = vrot.lane.b32.xlu0 %v4103, 64
    %v4273 = vpop.permute.xlu0 %4272
    %4274 = vrot.lane.b32.xlu0 %v4104, 64
    %v4275 = vpop.permute.xlu0 %4274
    %4276 = vrot.lane.b32.xlu0 %v4105, 64
    %v4277 = vpop.permute.xlu0 %4276
    %4278 = vrot.lane.b32.xlu0 %v4106, 64
    %v4279 = vpop.permute.xlu0 %4278
    %4280 = vrot.lane.b32.xlu0 %v4107, 64
    %v4281 = vpop.permute.xlu0 %4280
    %4282 = vrot.lane.b32.xlu0 %v4108, 64
    %v4283 = vpop.permute.xlu0 %4282
    %4284 = vrot.lane.b32.xlu0 %v4109, 64
    %v4285 = vpop.permute.xlu0 %4284
    %4286 = vrot.lane.b32.xlu0 %v4110, 64
    %v4287 = vpop.permute.xlu0 %4286
    %4288 = vrot.lane.b32.xlu0 %v4111, 64
    %v4289 = vpop.permute.xlu0 %4288
    %4290 = vrot.lane.b32.xlu0 %v4112, 64
    %v4291 = vpop.permute.xlu0 %4290
    %4292 = vrot.lane.b32.xlu0 %v4113, 64
    %v4293 = vpop.permute.xlu0 %4292
    %4294 = vrot.lane.b32.xlu0 %v4114, 64
    %v4295 = vpop.permute.xlu0 %4294
    %4296 = vrot.lane.b32.xlu0 %v4115, 64
    %v4297 = vpop.permute.xlu0 %4296
    %4298 = vrot.lane.b32.xlu0 %v4116, 64
    %v4299 = vpop.permute.xlu0 %4298
    %4300 = vrot.lane.b32.xlu0 %v4117, 64
    %v4301 = vpop.permute.xlu0 %4300
    %4302 = vrot.lane.b32.xlu0 %v4118, 64
    %v4303 = vpop.permute.xlu0 %4302
    %4304 = vrot.lane.b32.xlu0 %v4119, 64
    %v4305 = vpop.permute.xlu0 %4304
    %4306 = vrot.lane.b32.xlu0 %v4120, 64
    %v4307 = vpop.permute.xlu0 %4306
    %4308 = vrot.lane.b32.xlu0 %v4121, 64
    %v4309 = vpop.permute.xlu0 %4308
    %4310 = vrot.lane.b32.xlu0 %v4122, 64
    %v4311 = vpop.permute.xlu0 %4310
    %4312 = vrot.lane.b32.xlu0 %v4123, 64
    %v4313 = vpop.permute.xlu0 %4312
    %4314 = vrot.lane.b32.xlu0 %v4124, 64
    %v4315 = vpop.permute.xlu0 %4314
    %4316 = vrot.lane.b32.xlu0 %v4125, 64
    %v4317 = vpop.permute.xlu0 %4316
    %vm4382 = vcmask 781824
    %4383 = vst.msk [vmem:[#allocation2] sm:$0xf] %vm4382, %v4191
    %4384 = vst.msk [vmem:[#allocation2 + $0xc] sm:$0xf] %vm4382, %v4193
    %4385 = vst.msk [vmem:[#allocation2 + $0x18] sm:$0xf] %vm4382, %v4195
    %4386 = vst.msk [vmem:[#allocation2 + $0x24] sm:$0xf] %vm4382, %v4197
    %4387 = vst.msk [vmem:[#allocation2 + $0x30] sm:$0xf] %vm4382, %v4199
    %4388 = vst.msk [vmem:[#allocation2 + $0x3c] sm:$0xf] %vm4382, %v4201
    %4389 = vst.msk [vmem:[#allocation2 + $0x48] sm:$0xf] %vm4382, %v4203
    %4390 = vst.msk [vmem:[#allocation2 + $0x54] sm:$0xf] %vm4382, %v4205
    %4391 = vst.msk [vmem:[#allocation2 + $0x60] sm:$0xf] %vm4382, %v4207
    %4392 = vst.msk [vmem:[#allocation2 + $0x6c] sm:$0xf] %vm4382, %v4209
    %4393 = vst.msk [vmem:[#allocation2 + $0x78] sm:$0xf] %vm4382, %v4211
    %4394 = vst.msk [vmem:[#allocation2 + $0x84] sm:$0xf] %vm4382, %v4213
    %4395 = vst.msk [vmem:[#allocation2 + $0x90] sm:$0xf] %vm4382, %v4215
    %4396 = vst.msk [vmem:[#allocation2 + $0x9c] sm:$0xf] %vm4382, %v4217
    %4397 = vst.msk [vmem:[#allocation2 + $0xa8] sm:$0xf] %vm4382, %v4219
    %4398 = vst.msk [vmem:[#allocation2 + $0xb4] sm:$0xf] %vm4382, %v4221
    %4399 = vst.msk [vmem:[#allocation2 + $0xc0] sm:$0xf] %vm4382, %v4223
    %4400 = vst.msk [vmem:[#allocation2 + $0xcc] sm:$0xf] %vm4382, %v4225
    %4401 = vst.msk [vmem:[#allocation2 + $0xd8] sm:$0xf] %vm4382, %v4227
    %4402 = vst.msk [vmem:[#allocation2 + $0xe4] sm:$0xf] %vm4382, %v4229
    %4403 = vst.msk [vmem:[#allocation2 + $0xf0] sm:$0xf] %vm4382, %v4231
    %4404 = vst.msk [vmem:[#allocation2 + $0xfc] sm:$0xf] %vm4382, %v4233
    %4405 = vst.msk [vmem:[#allocation2 + $0x108] sm:$0xf] %vm4382, %v4235
    %4406 = vst.msk [vmem:[#allocation2 + $0x114] sm:$0xf] %vm4382, %v4237
    %4407 = vst.msk [vmem:[#allocation2 + $0x120] sm:$0xf] %vm4382, %v4239
    %4408 = vst.msk [vmem:[#allocation2 + $0x12c] sm:$0xf] %vm4382, %v4241
    %4409 = vst.msk [vmem:[#allocation2 + $0x138] sm:$0xf] %vm4382, %v4243
    %4410 = vst.msk [vmem:[#allocation2 + $0x144] sm:$0xf] %vm4382, %v4245
    %4411 = vst.msk [vmem:[#allocation2 + $0x150] sm:$0xf] %vm4382, %v4247
    %4412 = vst.msk [vmem:[#allocation2 + $0x15c] sm:$0xf] %vm4382, %v4249
    %4413 = vst.msk [vmem:[#allocation2 + $0x168] sm:$0xf] %vm4382, %v4251
    %4414 = vst.msk [vmem:[#allocation2 + $0x174] sm:$0xf] %vm4382, %v4253
    %4415 = vst.msk [vmem:[#allocation2 + $0x180] sm:$0xf] %vm4382, %v4255
    %4416 = vst.msk [vmem:[#allocation2 + $0x18c] sm:$0xf] %vm4382, %v4257
    %4417 = vst.msk [vmem:[#allocation2 + $0x198] sm:$0xf] %vm4382, %v4259
    %4418 = vst.msk [vmem:[#allocation2 + $0x1a4] sm:$0xf] %vm4382, %v4261
    %4419 = vst.msk [vmem:[#allocation2 + $0x1b0] sm:$0xf] %vm4382, %v4263
    %4420 = vst.msk [vmem:[#allocation2 + $0x1bc] sm:$0xf] %vm4382, %v4265
    %4421 = vst.msk [vmem:[#allocation2 + $0x1c8] sm:$0xf] %vm4382, %v4267
    %4422 = vst.msk [vmem:[#allocation2 + $0x1d4] sm:$0xf] %vm4382, %v4269
    %4423 = vst.msk [vmem:[#allocation2 + $0x1e0] sm:$0xf] %vm4382, %v4271
    %4424 = vst.msk [vmem:[#allocation2 + $0x1ec] sm:$0xf] %vm4382, %v4273
    %4425 = vst.msk [vmem:[#allocation2 + $0x1f8] sm:$0xf] %vm4382, %v4275
    %4426 = vst.msk [vmem:[#allocation2 + $0x204] sm:$0xf] %vm4382, %v4277
    %4427 = vst.msk [vmem:[#allocation2 + $0x210] sm:$0xf] %vm4382, %v4279
    %4428 = vst.msk [vmem:[#allocation2 + $0x21c] sm:$0xf] %vm4382, %v4281
    %4429 = vst.msk [vmem:[#allocation2 + $0x228] sm:$0xf] %vm4382, %v4283
    %4430 = vst.msk [vmem:[#allocation2 + $0x234] sm:$0xf] %vm4382, %v4285
    %4431 = vst.msk [vmem:[#allocation2 + $0x240] sm:$0xf] %vm4382, %v4287
    %4432 = vst.msk [vmem:[#allocation2 + $0x24c] sm:$0xf] %vm4382, %v4289
    %4433 = vst.msk [vmem:[#allocation2 + $0x258] sm:$0xf] %vm4382, %v4291
    %4434 = vst.msk [vmem:[#allocation2 + $0x264] sm:$0xf] %vm4382, %v4293
    %4435 = vst.msk [vmem:[#allocation2 + $0x270] sm:$0xf] %vm4382, %v4295
    %4436 = vst.msk [vmem:[#allocation2 + $0x27c] sm:$0xf] %vm4382, %v4297
    %4437 = vst.msk [vmem:[#allocation2 + $0x288] sm:$0xf] %vm4382, %v4299
    %4438 = vst.msk [vmem:[#allocation2 + $0x294] sm:$0xf] %vm4382, %v4301
    %4439 = vst.msk [vmem:[#allocation2 + $0x2a0] sm:$0xf] %vm4382, %v4303
    %4440 = vst.msk [vmem:[#allocation2 + $0x2ac] sm:$0xf] %vm4382, %v4305
    %4441 = vst.msk [vmem:[#allocation2 + $0x2b8] sm:$0xf] %vm4382, %v4307
    %4442 = vst.msk [vmem:[#allocation2 + $0x2c4] sm:$0xf] %vm4382, %v4309
    %4443 = vst.msk [vmem:[#allocation2 + $0x2d0] sm:$0xf] %vm4382, %v4311
    %4444 = vst.msk [vmem:[#allocation2 + $0x2dc] sm:$0xf] %vm4382, %v4313
    %4445 = vst.msk [vmem:[#allocation2 + $0x2e8] sm:$0xf] %vm4382, %v4315
    %4446 = vst.msk [vmem:[#allocation2 + $0x2f4] sm:$0xf] %vm4382, %v4317
    %v4447 = vmul.f32 %v3098, %v2714
    %v4448 = vmul.f32 %v3097, %v2715
    %v4449 = vmul.f32 %v3096, %v2716
    %v4450 = vmul.f32 %v3095, %v2717
    %v4451 = vmul.f32 %v3094, %v2718
    %v4452 = vmul.f32 %v3093, %v2719
    %v4453 = vmul.f32 %v3092, %v2720
    %v4454 = vmul.f32 %v3091, %v2721
    %v4455 = vmul.f32 %v3090, %v2722
    %v4456 = vmul.f32 %v3089, %v2723
    %v4457 = vmul.f32 %v3088, %v2724
    %v4458 = vmul.f32 %v3087, %v2725
    %v4459 = vmul.f32 %v3086, %v2726
    %v4460 = vmul.f32 %v3085, %v2727
    %v4461 = vmul.f32 %v3084, %v2728
    %v4462 = vmul.f32 %v3083, %v2729
    %v4463 = vmul.f32 %v3082, %v2730
    %v4464 = vmul.f32 %v3081, %v2731
    %v4465 = vmul.f32 %v3080, %v2732
    %v4466 = vmul.f32 %v3079, %v2733
    %v4467 = vmul.f32 %v3078, %v2734
    %v4468 = vmul.f32 %v3077, %v2735
    %v4469 = vmul.f32 %v3076, %v2736
    %v4470 = vmul.f32 %v3075, %v2737
    %v4471 = vmul.f32 %v3074, %v2738
    %v4472 = vmul.f32 %v3073, %v2739
    %v4473 = vmul.f32 %v3072, %v2740
    %v4474 = vmul.f32 %v3071, %v2741
    %v4475 = vmul.f32 %v3070, %v2742
    %v4476 = vmul.f32 %v3069, %v2743
    %v4477 = vmul.f32 %v3068, %v2744
    %v4478 = vmul.f32 %v3067, %v2745
    %v4479 = vmul.f32 %v3066, %v2746
    %v4480 = vmul.f32 %v3065, %v2747
    %v4481 = vmul.f32 %v3064, %v2748
    %v4482 = vmul.f32 %v3063, %v2749
    %v4483 = vmul.f32 %v3062, %v2750
    %v4484 = vmul.f32 %v3061, %v2751
    %v4485 = vmul.f32 %v3060, %v2752
    %v4486 = vmul.f32 %v3059, %v2753
    %v4487 = vmul.f32 %v3058, %v2754
    %v4488 = vmul.f32 %v3057, %v2755
    %v4489 = vmul.f32 %v3056, %v2756
    %v4490 = vmul.f32 %v3055, %v2757
    %v4491 = vmul.f32 %v3054, %v2758
    %v4492 = vmul.f32 %v3053, %v2759
    %v4493 = vmul.f32 %v3052, %v2760
    %v4494 = vmul.f32 %v3051, %v2761
    %v4495 = vmul.f32 %v3050, %v2762
    %v4496 = vmul.f32 %v3049, %v2763
    %v4497 = vmul.f32 %v3048, %v2764
    %v4498 = vmul.f32 %v3047, %v2765
    %v4499 = vmul.f32 %v3046, %v2766
    %v4500 = vmul.f32 %v3045, %v2767
    %v4501 = vmul.f32 %v3044, %v2768
    %v4502 = vmul.f32 %v3043, %v2769
    %v4503 = vmul.f32 %v3042, %v2770
    %v4504 = vmul.f32 %v3041, %v2771
    %v4505 = vmul.f32 %v3040, %v2772
    %v4506 = vmul.f32 %v3039, %v2773
    %v4507 = vmul.f32 %v3038, %v2774
    %v4508 = vmul.f32 %v3037, %v2775
    %v4509 = vmul.f32 %v3036, %v2776
    %v4510 = vmul.f32 %v3035, %v2777
    %v4511 = vpack.c.bf16 %v4447, %v4447
    %v4512 = vpack.c.bf16 %v4448, %v4448
    %v4513 = vpack.c.bf16 %v4449, %v4449
    %v4514 = vpack.c.bf16 %v4450, %v4450
    %v4515 = vpack.c.bf16 %v4451, %v4451
    %v4516 = vpack.c.bf16 %v4452, %v4452
    %v4517 = vpack.c.bf16 %v4453, %v4453
    %v4518 = vpack.c.bf16 %v4454, %v4454
    %v4519 = vpack.c.bf16 %v4455, %v4455
    %v4520 = vpack.c.bf16 %v4456, %v4456
    %v4521 = vpack.c.bf16 %v4457, %v4457
    %v4522 = vpack.c.bf16 %v4458, %v4458
    %v4523 = vpack.c.bf16 %v4459, %v4459
    %v4524 = vpack.c.bf16 %v4460, %v4460
    %v4525 = vpack.c.bf16 %v4461, %v4461
    %v4526 = vpack.c.bf16 %v4462, %v4462
    %v4527 = vpack.c.bf16 %v4463, %v4463
    %v4528 = vpack.c.bf16 %v4464, %v4464
    %v4529 = vpack.c.bf16 %v4465, %v4465
    %v4530 = vpack.c.bf16 %v4466, %v4466
    %v4531 = vpack.c.bf16 %v4467, %v4467
    %v4532 = vpack.c.bf16 %v4468, %v4468
    %v4533 = vpack.c.bf16 %v4469, %v4469
    %v4534 = vpack.c.bf16 %v4470, %v4470
    %v4535 = vpack.c.bf16 %v4471, %v4471
    %v4536 = vpack.c.bf16 %v4472, %v4472
    %v4537 = vpack.c.bf16 %v4473, %v4473
    %v4538 = vpack.c.bf16 %v4474, %v4474
    %v4539 = vpack.c.bf16 %v4475, %v4475
    %v4540 = vpack.c.bf16 %v4476, %v4476
    %v4541 = vpack.c.bf16 %v4477, %v4477
    %v4542 = vpack.c.bf16 %v4478, %v4478
    %v4543 = vpack.c.bf16 %v4479, %v4479
    %v4544 = vpack.c.bf16 %v4480, %v4480
    %v4545 = vpack.c.bf16 %v4481, %v4481
    %v4546 = vpack.c.bf16 %v4482, %v4482
    %v4547 = vpack.c.bf16 %v4483, %v4483
    %v4548 = vpack.c.bf16 %v4484, %v4484
    %v4549 = vpack.c.bf16 %v4485, %v4485
    %v4550 = vpack.c.bf16 %v4486, %v4486
    %v4551 = vpack.c.bf16 %v4487, %v4487
    %v4552 = vpack.c.bf16 %v4488, %v4488
    %v4553 = vpack.c.bf16 %v4489, %v4489
    %v4554 = vpack.c.bf16 %v4490, %v4490
    %v4555 = vpack.c.bf16 %v4491, %v4491
    %v4556 = vpack.c.bf16 %v4492, %v4492
    %v4557 = vpack.c.bf16 %v4493, %v4493
    %v4558 = vpack.c.bf16 %v4494, %v4494
    %v4559 = vpack.c.bf16 %v4495, %v4495
    %v4560 = vpack.c.bf16 %v4496, %v4496
    %v4561 = vpack.c.bf16 %v4497, %v4497
    %v4562 = vpack.c.bf16 %v4498, %v4498
    %v4563 = vpack.c.bf16 %v4499, %v4499
    %v4564 = vpack.c.bf16 %v4500, %v4500
    %v4565 = vpack.c.bf16 %v4501, %v4501
    %v4566 = vpack.c.bf16 %v4502, %v4502
    %v4567 = vpack.c.bf16 %v4503, %v4503
    %v4568 = vpack.c.bf16 %v4504, %v4504
    %v4569 = vpack.c.bf16 %v4505, %v4505
    %v4570 = vpack.c.bf16 %v4506, %v4506
    %v4571 = vpack.c.bf16 %v4507, %v4507
    %v4572 = vpack.c.bf16 %v4508, %v4508
    %v4573 = vpack.c.bf16 %v4509, %v4509
    %v4574 = vpack.c.bf16 %v4510, %v4510
    %4639 = vrot.lane.b32.xlu0 %v4511, 96
    %v4640 = vpop.permute.xlu0 %4639
    %4641 = vrot.lane.b32.xlu0 %v4512, 96
    %v4642 = vpop.permute.xlu0 %4641
    %4643 = vrot.lane.b32.xlu0 %v4513, 96
    %v4644 = vpop.permute.xlu0 %4643
    %4645 = vrot.lane.b32.xlu0 %v4514, 96
    %v4646 = vpop.permute.xlu0 %4645
    %4647 = vrot.lane.b32.xlu0 %v4515, 96
    %v4648 = vpop.permute.xlu0 %4647
    %4649 = vrot.lane.b32.xlu0 %v4516, 96
    %v4650 = vpop.permute.xlu0 %4649
    %4651 = vrot.lane.b32.xlu0 %v4517, 96
    %v4652 = vpop.permute.xlu0 %4651
    %4653 = vrot.lane.b32.xlu0 %v4518, 96
    %v4654 = vpop.permute.xlu0 %4653
    %4655 = vrot.lane.b32.xlu0 %v4519, 96
    %v4656 = vpop.permute.xlu0 %4655
    %4657 = vrot.lane.b32.xlu0 %v4520, 96
    %v4658 = vpop.permute.xlu0 %4657
    %4659 = vrot.lane.b32.xlu0 %v4521, 96
    %v4660 = vpop.permute.xlu0 %4659
    %4661 = vrot.lane.b32.xlu0 %v4522, 96
    %v4662 = vpop.permute.xlu0 %4661
    %4663 = vrot.lane.b32.xlu0 %v4523, 96
    %v4664 = vpop.permute.xlu0 %4663
    %4665 = vrot.lane.b32.xlu0 %v4524, 96
    %v4666 = vpop.permute.xlu0 %4665
    %4667 = vrot.lane.b32.xlu0 %v4525, 96
    %v4668 = vpop.permute.xlu0 %4667
    %4669 = vrot.lane.b32.xlu0 %v4526, 96
    %v4670 = vpop.permute.xlu0 %4669
    %4671 = vrot.lane.b32.xlu0 %v4527, 96
    %v4672 = vpop.permute.xlu0 %4671
    %4673 = vrot.lane.b32.xlu0 %v4528, 96
    %v4674 = vpop.permute.xlu0 %4673
    %4675 = vrot.lane.b32.xlu0 %v4529, 96
    %v4676 = vpop.permute.xlu0 %4675
    %4677 = vrot.lane.b32.xlu0 %v4530, 96
    %v4678 = vpop.permute.xlu0 %4677
    %4679 = vrot.lane.b32.xlu0 %v4531, 96
    %v4680 = vpop.permute.xlu0 %4679
    %4681 = vrot.lane.b32.xlu0 %v4532, 96
    %v4682 = vpop.permute.xlu0 %4681
    %4683 = vrot.lane.b32.xlu0 %v4533, 96
    %v4684 = vpop.permute.xlu0 %4683
    %4685 = vrot.lane.b32.xlu0 %v4534, 96
    %v4686 = vpop.permute.xlu0 %4685
    %4687 = vrot.lane.b32.xlu0 %v4535, 96
    %v4688 = vpop.permute.xlu0 %4687
    %4689 = vrot.lane.b32.xlu0 %v4536, 96
    %v4690 = vpop.permute.xlu0 %4689
    %4691 = vrot.lane.b32.xlu0 %v4537, 96
    %v4692 = vpop.permute.xlu0 %4691
    %4693 = vrot.lane.b32.xlu0 %v4538, 96
    %v4694 = vpop.permute.xlu0 %4693
    %4695 = vrot.lane.b32.xlu0 %v4539, 96
    %v4696 = vpop.permute.xlu0 %4695
    %4697 = vrot.lane.b32.xlu0 %v4540, 96
    %v4698 = vpop.permute.xlu0 %4697
    %4699 = vrot.lane.b32.xlu0 %v4541, 96
    %v4700 = vpop.permute.xlu0 %4699
    %4701 = vrot.lane.b32.xlu0 %v4542, 96
    %v4702 = vpop.permute.xlu0 %4701
    %4703 = vrot.lane.b32.xlu0 %v4543, 96
    %v4704 = vpop.permute.xlu0 %4703
    %4705 = vrot.lane.b32.xlu0 %v4544, 96
    %v4706 = vpop.permute.xlu0 %4705
    %4707 = vrot.lane.b32.xlu0 %v4545, 96
    %v4708 = vpop.permute.xlu0 %4707
    %4709 = vrot.lane.b32.xlu0 %v4546, 96
    %v4710 = vpop.permute.xlu0 %4709
    %4711 = vrot.lane.b32.xlu0 %v4547, 96
    %v4712 = vpop.permute.xlu0 %4711
    %4713 = vrot.lane.b32.xlu0 %v4548, 96
    %v4714 = vpop.permute.xlu0 %4713
    %4715 = vrot.lane.b32.xlu0 %v4549, 96
    %v4716 = vpop.permute.xlu0 %4715
    %4717 = vrot.lane.b32.xlu0 %v4550, 96
    %v4718 = vpop.permute.xlu0 %4717
    %4719 = vrot.lane.b32.xlu0 %v4551, 96
    %v4720 = vpop.permute.xlu0 %4719
    %4721 = vrot.lane.b32.xlu0 %v4552, 96
    %v4722 = vpop.permute.xlu0 %4721
    %4723 = vrot.lane.b32.xlu0 %v4553, 96
    %v4724 = vpop.permute.xlu0 %4723
    %4725 = vrot.lane.b32.xlu0 %v4554, 96
    %v4726 = vpop.permute.xlu0 %4725
    %4727 = vrot.lane.b32.xlu0 %v4555, 96
    %v4728 = vpop.permute.xlu0 %4727
    %4729 = vrot.lane.b32.xlu0 %v4556, 96
    %v4730 = vpop.permute.xlu0 %4729
    %4731 = vrot.lane.b32.xlu0 %v4557, 96
    %v4732 = vpop.permute.xlu0 %4731
    %4733 = vrot.lane.b32.xlu0 %v4558, 96
    %v4734 = vpop.permute.xlu0 %4733
    %4735 = vrot.lane.b32.xlu0 %v4559, 96
    %v4736 = vpop.permute.xlu0 %4735
    %4737 = vrot.lane.b32.xlu0 %v4560, 96
    %v4738 = vpop.permute.xlu0 %4737
    %4739 = vrot.lane.b32.xlu0 %v4561, 96
    %v4740 = vpop.permute.xlu0 %4739
    %4741 = vrot.lane.b32.xlu0 %v4562, 96
    %v4742 = vpop.permute.xlu0 %4741
    %4743 = vrot.lane.b32.xlu0 %v4563, 96
    %v4744 = vpop.permute.xlu0 %4743
    %4745 = vrot.lane.b32.xlu0 %v4564, 96
    %v4746 = vpop.permute.xlu0 %4745
    %4747 = vrot.lane.b32.xlu0 %v4565, 96
    %v4748 = vpop.permute.xlu0 %4747
    %4749 = vrot.lane.b32.xlu0 %v4566, 96
    %v4750 = vpop.permute.xlu0 %4749
    %4751 = vrot.lane.b32.xlu0 %v4567, 96
    %v4752 = vpop.permute.xlu0 %4751
    %4753 = vrot.lane.b32.xlu0 %v4568, 96
    %v4754 = vpop.permute.xlu0 %4753
    %4755 = vrot.lane.b32.xlu0 %v4569, 96
    %v4756 = vpop.permute.xlu0 %4755
    %4757 = vrot.lane.b32.xlu0 %v4570, 96
    %v4758 = vpop.permute.xlu0 %4757
    %4759 = vrot.lane.b32.xlu0 %v4571, 96
    %v4760 = vpop.permute.xlu0 %4759
    %4761 = vrot.lane.b32.xlu0 %v4572, 96
    %v4762 = vpop.permute.xlu0 %4761
    %4763 = vrot.lane.b32.xlu0 %v4573, 96
    %v4764 = vpop.permute.xlu0 %4763
    %4765 = vrot.lane.b32.xlu0 %v4574, 96
    %v4766 = vpop.permute.xlu0 %4765
    %vm4831 = vcmask 1044224
    %4832 = vst.msk [vmem:[#allocation2] sm:$0xf] %vm4831, %v4640
    %4833 = vst.msk [vmem:[#allocation2 + $0xc] sm:$0xf] %vm4831, %v4642
    %4834 = vst.msk [vmem:[#allocation2 + $0x18] sm:$0xf] %vm4831, %v4644
    %4835 = vst.msk [vmem:[#allocation2 + $0x24] sm:$0xf] %vm4831, %v4646
    %4836 = vst.msk [vmem:[#allocation2 + $0x30] sm:$0xf] %vm4831, %v4648
    %4837 = vst.msk [vmem:[#allocation2 + $0x3c] sm:$0xf] %vm4831, %v4650
    %4838 = vst.msk [vmem:[#allocation2 + $0x48] sm:$0xf] %vm4831, %v4652
    %4839 = vst.msk [vmem:[#allocation2 + $0x54] sm:$0xf] %vm4831, %v4654
    %4840 = vst.msk [vmem:[#allocation2 + $0x60] sm:$0xf] %vm4831, %v4656
    %4841 = vst.msk [vmem:[#allocation2 + $0x6c] sm:$0xf] %vm4831, %v4658
    %4842 = vst.msk [vmem:[#allocation2 + $0x78] sm:$0xf] %vm4831, %v4660
    %4843 = vst.msk [vmem:[#allocation2 + $0x84] sm:$0xf] %vm4831, %v4662
    %4844 = vst.msk [vmem:[#allocation2 + $0x90] sm:$0xf] %vm4831, %v4664
    %4845 = vst.msk [vmem:[#allocation2 + $0x9c] sm:$0xf] %vm4831, %v4666
    %4846 = vst.msk [vmem:[#allocation2 + $0xa8] sm:$0xf] %vm4831, %v4668
    %4847 = vst.msk [vmem:[#allocation2 + $0xb4] sm:$0xf] %vm4831, %v4670
    %4848 = vst.msk [vmem:[#allocation2 + $0xc0] sm:$0xf] %vm4831, %v4672
    %4849 = vst.msk [vmem:[#allocation2 + $0xcc] sm:$0xf] %vm4831, %v4674
    %4850 = vst.msk [vmem:[#allocation2 + $0xd8] sm:$0xf] %vm4831, %v4676
    %4851 = vst.msk [vmem:[#allocation2 + $0xe4] sm:$0xf] %vm4831, %v4678
    %4852 = vst.msk [vmem:[#allocation2 + $0xf0] sm:$0xf] %vm4831, %v4680
    %4853 = vst.msk [vmem:[#allocation2 + $0xfc] sm:$0xf] %vm4831, %v4682
    %4854 = vst.msk [vmem:[#allocation2 + $0x108] sm:$0xf] %vm4831, %v4684
    %4855 = vst.msk [vmem:[#allocation2 + $0x114] sm:$0xf] %vm4831, %v4686
    %4856 = vst.msk [vmem:[#allocation2 + $0x120] sm:$0xf] %vm4831, %v4688
    %4857 = vst.msk [vmem:[#allocation2 + $0x12c] sm:$0xf] %vm4831, %v4690
    %4858 = vst.msk [vmem:[#allocation2 + $0x138] sm:$0xf] %vm4831, %v4692
    %4859 = vst.msk [vmem:[#allocation2 + $0x144] sm:$0xf] %vm4831, %v4694
    %4860 = vst.msk [vmem:[#allocation2 + $0x150] sm:$0xf] %vm4831, %v4696
    %4861 = vst.msk [vmem:[#allocation2 + $0x15c] sm:$0xf] %vm4831, %v4698
    %4862 = vst.msk [vmem:[#allocation2 + $0x168] sm:$0xf] %vm4831, %v4700
    %4863 = vst.msk [vmem:[#allocation2 + $0x174] sm:$0xf] %vm4831, %v4702
    %4864 = vst.msk [vmem:[#allocation2 + $0x180] sm:$0xf] %vm4831, %v4704
    %4865 = vst.msk [vmem:[#allocation2 + $0x18c] sm:$0xf] %vm4831, %v4706
    %4866 = vst.msk [vmem:[#allocation2 + $0x198] sm:$0xf] %vm4831, %v4708
    %4867 = vst.msk [vmem:[#allocation2 + $0x1a4] sm:$0xf] %vm4831, %v4710
    %4868 = vst.msk [vmem:[#allocation2 + $0x1b0] sm:$0xf] %vm4831, %v4712
    %4869 = vst.msk [vmem:[#allocation2 + $0x1bc] sm:$0xf] %vm4831, %v4714
    %4870 = vst.msk [vmem:[#allocation2 + $0x1c8] sm:$0xf] %vm4831, %v4716
    %4871 = vst.msk [vmem:[#allocation2 + $0x1d4] sm:$0xf] %vm4831, %v4718
    %4872 = vst.msk [vmem:[#allocation2 + $0x1e0] sm:$0xf] %vm4831, %v4720
    %4873 = vst.msk [vmem:[#allocation2 + $0x1ec] sm:$0xf] %vm4831, %v4722
    %4874 = vst.msk [vmem:[#allocation2 + $0x1f8] sm:$0xf] %vm4831, %v4724
    %4875 = vst.msk [vmem:[#allocation2 + $0x204] sm:$0xf] %vm4831, %v4726
    %4876 = vst.msk [vmem:[#allocation2 + $0x210] sm:$0xf] %vm4831, %v4728
    %4877 = vst.msk [vmem:[#allocation2 + $0x21c] sm:$0xf] %vm4831, %v4730
    %4878 = vst.msk [vmem:[#allocation2 + $0x228] sm:$0xf] %vm4831, %v4732
    %4879 = vst.msk [vmem:[#allocation2 + $0x234] sm:$0xf] %vm4831, %v4734
    %4880 = vst.msk [vmem:[#allocation2 + $0x240] sm:$0xf] %vm4831, %v4736
    %4881 = vst.msk [vmem:[#allocation2 + $0x24c] sm:$0xf] %vm4831, %v4738
    %4882 = vst.msk [vmem:[#allocation2 + $0x258] sm:$0xf] %vm4831, %v4740
    %4883 = vst.msk [vmem:[#allocation2 + $0x264] sm:$0xf] %vm4831, %v4742
    %4884 = vst.msk [vmem:[#allocation2 + $0x270] sm:$0xf] %vm4831, %v4744
    %4885 = vst.msk [vmem:[#allocation2 + $0x27c] sm:$0xf] %vm4831, %v4746
    %4886 = vst.msk [vmem:[#allocation2 + $0x288] sm:$0xf] %vm4831, %v4748
    %4887 = vst.msk [vmem:[#allocation2 + $0x294] sm:$0xf] %vm4831, %v4750
    %4888 = vst.msk [vmem:[#allocation2 + $0x2a0] sm:$0xf] %vm4831, %v4752
    %4889 = vst.msk [vmem:[#allocation2 + $0x2ac] sm:$0xf] %vm4831, %v4754
    %4890 = vst.msk [vmem:[#allocation2 + $0x2b8] sm:$0xf] %vm4831, %v4756
    %4891 = vst.msk [vmem:[#allocation2 + $0x2c4] sm:$0xf] %vm4831, %v4758
    %4892 = vst.msk [vmem:[#allocation2 + $0x2d0] sm:$0xf] %vm4831, %v4760
    %4893 = vst.msk [vmem:[#allocation2 + $0x2dc] sm:$0xf] %vm4831, %v4762
    %4894 = vst.msk [vmem:[#allocation2 + $0x2e8] sm:$0xf] %vm4831, %v4764
    %4895 = vst.msk [vmem:[#allocation2 + $0x2f4] sm:$0xf] %vm4831, %v4766
    %v4896 = vpack.c.bf16 %v537, %v537
    %v4897 = vpack.c.bf16 %v538, %v538
    %v4898 = vpack.c.bf16 %v539, %v539
    %v4899 = vpack.c.bf16 %v540, %v540
    %v4900 = vpack.c.bf16 %v541, %v541
    %v4901 = vpack.c.bf16 %v542, %v542
    %v4902 = vpack.c.bf16 %v543, %v543
    %v4903 = vpack.c.bf16 %v544, %v544
    %v4904 = vpack.c.bf16 %v545, %v545
    %v4905 = vpack.c.bf16 %v546, %v546
    %v4906 = vpack.c.bf16 %v547, %v547
    %v4907 = vpack.c.bf16 %v548, %v548
    %v4908 = vpack.c.bf16 %v549, %v549
    %v4909 = vpack.c.bf16 %v550, %v550
    %v4910 = vpack.c.bf16 %v551, %v551
    %v4911 = vpack.c.bf16 %v552, %v552
    %v4912 = vpack.c.bf16 %v553, %v553
    %v4913 = vpack.c.bf16 %v554, %v554
    %v4914 = vpack.c.bf16 %v555, %v555
    %v4915 = vpack.c.bf16 %v556, %v556
    %v4916 = vpack.c.bf16 %v557, %v557
    %v4917 = vpack.c.bf16 %v558, %v558
    %v4918 = vpack.c.bf16 %v559, %v559
    %v4919 = vpack.c.bf16 %v560, %v560
    %v4920 = vpack.c.bf16 %v561, %v561
    %v4921 = vpack.c.bf16 %v562, %v562
    %v4922 = vpack.c.bf16 %v563, %v563
    %v4923 = vpack.c.bf16 %v564, %v564
    %v4924 = vpack.c.bf16 %v565, %v565
    %v4925 = vpack.c.bf16 %v566, %v566
    %v4926 = vpack.c.bf16 %v567, %v567
    %v4927 = vpack.c.bf16 %v568, %v568
    %v4928 = vpack.c.bf16 %v569, %v569
    %v4929 = vpack.c.bf16 %v570, %v570
    %v4930 = vpack.c.bf16 %v571, %v571
    %v4931 = vpack.c.bf16 %v572, %v572
    %v4932 = vpack.c.bf16 %v573, %v573
    %v4933 = vpack.c.bf16 %v574, %v574
    %v4934 = vpack.c.bf16 %v575, %v575
    %v4935 = vpack.c.bf16 %v576, %v576
    %v4936 = vpack.c.bf16 %v577, %v577
    %v4937 = vpack.c.bf16 %v578, %v578
    %v4938 = vpack.c.bf16 %v579, %v579
    %v4939 = vpack.c.bf16 %v580, %v580
    %v4940 = vpack.c.bf16 %v581, %v581
    %v4941 = vpack.c.bf16 %v582, %v582
    %v4942 = vpack.c.bf16 %v583, %v583
    %v4943 = vpack.c.bf16 %v584, %v584
    %v4944 = vpack.c.bf16 %v585, %v585
    %v4945 = vpack.c.bf16 %v586, %v586
    %v4946 = vpack.c.bf16 %v587, %v587
    %v4947 = vpack.c.bf16 %v588, %v588
    %v4948 = vpack.c.bf16 %v589, %v589
    %v4949 = vpack.c.bf16 %v590, %v590
    %v4950 = vpack.c.bf16 %v591, %v591
    %v4951 = vpack.c.bf16 %v592, %v592
    %v4952 = vpack.c.bf16 %v593, %v593
    %v4953 = vpack.c.bf16 %v594, %v594
    %v4954 = vpack.c.bf16 %v595, %v595
    %v4955 = vpack.c.bf16 %v596, %v596
    %v4956 = vpack.c.bf16 %v597, %v597
    %v4957 = vpack.c.bf16 %v598, %v598
    %v4958 = vpack.c.bf16 %v599, %v599
    %v4959 = vpack.c.bf16 %v600, %v600
    %4960 = vst.msk [vmem:[#allocation2 + $0x4] sm:$0xf] %vm3291, %v4896
    %4961 = vst.msk [vmem:[#allocation2 + $0x10] sm:$0xf] %vm3291, %v4897
    %4962 = vst.msk [vmem:[#allocation2 + $0x1c] sm:$0xf] %vm3291, %v4898
    %4963 = vst.msk [vmem:[#allocation2 + $0x28] sm:$0xf] %vm3291, %v4899
    %4964 = vst.msk [vmem:[#allocation2 + $0x34] sm:$0xf] %vm3291, %v4900
    %4965 = vst.msk [vmem:[#allocation2 + $0x40] sm:$0xf] %vm3291, %v4901
    %4966 = vst.msk [vmem:[#allocation2 + $0x4c] sm:$0xf] %vm3291, %v4902
    %4967 = vst.msk [vmem:[#allocation2 + $0x58] sm:$0xf] %vm3291, %v4903
    %4968 = vst.msk [vmem:[#allocation2 + $0x64] sm:$0xf] %vm3291, %v4904
    %4969 = vst.msk [vmem:[#allocation2 + $0x70] sm:$0xf] %vm3291, %v4905
    %4970 = vst.msk [vmem:[#allocation2 + $0x7c] sm:$0xf] %vm3291, %v4906
    %4971 = vst.msk [vmem:[#allocation2 + $0x88] sm:$0xf] %vm3291, %v4907
    %4972 = vst.msk [vmem:[#allocation2 + $0x94] sm:$0xf] %vm3291, %v4908
    %4973 = vst.msk [vmem:[#allocation2 + $0xa0] sm:$0xf] %vm3291, %v4909
    %4974 = vst.msk [vmem:[#allocation2 + $0xac] sm:$0xf] %vm3291, %v4910
    %4975 = vst.msk [vmem:[#allocation2 + $0xb8] sm:$0xf] %vm3291, %v4911
    %4976 = vst.msk [vmem:[#allocation2 + $0xc4] sm:$0xf] %vm3291, %v4912
    %4977 = vst.msk [vmem:[#allocation2 + $0xd0] sm:$0xf] %vm3291, %v4913
    %4978 = vst.msk [vmem:[#allocation2 + $0xdc] sm:$0xf] %vm3291, %v4914
    %4979 = vst.msk [vmem:[#allocation2 + $0xe8] sm:$0xf] %vm3291, %v4915
    %4980 = vst.msk [vmem:[#allocation2 + $0xf4] sm:$0xf] %vm3291, %v4916
    %4981 = vst.msk [vmem:[#allocation2 + $0x100] sm:$0xf] %vm3291, %v4917
    %4982 = vst.msk [vmem:[#allocation2 + $0x10c] sm:$0xf] %vm3291, %v4918
    %4983 = vst.msk [vmem:[#allocation2 + $0x118] sm:$0xf] %vm3291, %v4919
    %4984 = vst.msk [vmem:[#allocation2 + $0x124] sm:$0xf] %vm3291, %v4920
    %4985 = vst.msk [vmem:[#allocation2 + $0x130] sm:$0xf] %vm3291, %v4921
    %4986 = vst.msk [vmem:[#allocation2 + $0x13c] sm:$0xf] %vm3291, %v4922
    %4987 = vst.msk [vmem:[#allocation2 + $0x148] sm:$0xf] %vm3291, %v4923
    %4988 = vst.msk [vmem:[#allocation2 + $0x154] sm:$0xf] %vm3291, %v4924
    %4989 = vst.msk [vmem:[#allocation2 + $0x160] sm:$0xf] %vm3291, %v4925
    %4990 = vst.msk [vmem:[#allocation2 + $0x16c] sm:$0xf] %vm3291, %v4926
    %4991 = vst.msk [vmem:[#allocation2 + $0x178] sm:$0xf] %vm3291, %v4927
    %4992 = vst.msk [vmem:[#allocation2 + $0x184] sm:$0xf] %vm3291, %v4928
    %4993 = vst.msk [vmem:[#allocation2 + $0x190] sm:$0xf] %vm3291, %v4929
    %4994 = vst.msk [vmem:[#allocation2 + $0x19c] sm:$0xf] %vm3291, %v4930
    %4995 = vst.msk [vmem:[#allocation2 + $0x1a8] sm:$0xf] %vm3291, %v4931
    %4996 = vst.msk [vmem:[#allocation2 + $0x1b4] sm:$0xf] %vm3291, %v4932
    %4997 = vst.msk [vmem:[#allocation2 + $0x1c0] sm:$0xf] %vm3291, %v4933
    %4998 = vst.msk [vmem:[#allocation2 + $0x1cc] sm:$0xf] %vm3291, %v4934
    %4999 = vst.msk [vmem:[#allocation2 + $0x1d8] sm:$0xf] %vm3291, %v4935
    %5000 = vst.msk [vmem:[#allocation2 + $0x1e4] sm:$0xf] %vm3291, %v4936
    %5001 = vst.msk [vmem:[#allocation2 + $0x1f0] sm:$0xf] %vm3291, %v4937
    %5002 = vst.msk [vmem:[#allocation2 + $0x1fc] sm:$0xf] %vm3291, %v4938
    %5003 = vst.msk [vmem:[#allocation2 + $0x208] sm:$0xf] %vm3291, %v4939
    %5004 = vst.msk [vmem:[#allocation2 + $0x214] sm:$0xf] %vm3291, %v4940
    %5005 = vst.msk [vmem:[#allocation2 + $0x220] sm:$0xf] %vm3291, %v4941
    %5006 = vst.msk [vmem:[#allocation2 + $0x22c] sm:$0xf] %vm3291, %v4942
    %5007 = vst.msk [vmem:[#allocation2 + $0x238] sm:$0xf] %vm3291, %v4943
    %5008 = vst.msk [vmem:[#allocation2 + $0x244] sm:$0xf] %vm3291, %v4944
    %5009 = vst.msk [vmem:[#allocation2 + $0x250] sm:$0xf] %vm3291, %v4945
    %5010 = vst.msk [vmem:[#allocation2 + $0x25c] sm:$0xf] %vm3291, %v4946
    %5011 = vst.msk [vmem:[#allocation2 + $0x268] sm:$0xf] %vm3291, %v4947
    %5012 = vst.msk [vmem:[#allocation2 + $0x274] sm:$0xf] %vm3291, %v4948
    %5013 = vst.msk [vmem:[#allocation2 + $0x280] sm:$0xf] %vm3291, %v4949
    %5014 = vst.msk [vmem:[#allocation2 + $0x28c] sm:$0xf] %vm3291, %v4950
    %5015 = vst.msk [vmem:[#allocation2 + $0x298] sm:$0xf] %vm3291, %v4951
    %5016 = vst.msk [vmem:[#allocation2 + $0x2a4] sm:$0xf] %vm3291, %v4952
    %5017 = vst.msk [vmem:[#allocation2 + $0x2b0] sm:$0xf] %vm3291, %v4953
    %5018 = vst.msk [vmem:[#allocation2 + $0x2bc] sm:$0xf] %vm3291, %v4954
    %5019 = vst.msk [vmem:[#allocation2 + $0x2c8] sm:$0xf] %vm3291, %v4955
    %5020 = vst.msk [vmem:[#allocation2 + $0x2d4] sm:$0xf] %vm3291, %v4956
    %5021 = vst.msk [vmem:[#allocation2 + $0x2e0] sm:$0xf] %vm3291, %v4957
    %5022 = vst.msk [vmem:[#allocation2 + $0x2ec] sm:$0xf] %vm3291, %v4958
    %5023 = vst.msk [vmem:[#allocation2 + $0x2f8] sm:$0xf] %vm3291, %v4959
    %v5024 = vmul.f32 %v3932, %v2906
    %v5025 = vmul.f32 %v3931, %v2907
    %v5026 = vmul.f32 %v3930, %v2908
    %v5027 = vmul.f32 %v3929, %v2909
    %v5028 = vmul.f32 %v3928, %v2910
    %v5029 = vmul.f32 %v3927, %v2911
    %v5030 = vmul.f32 %v3926, %v2912
    %v5031 = vmul.f32 %v3925, %v2913
    %v5032 = vmul.f32 %v3924, %v2914
    %v5033 = vmul.f32 %v3923, %v2915
    %v5034 = vmul.f32 %v3922, %v2916
    %v5035 = vmul.f32 %v3921, %v2917
    %v5036 = vmul.f32 %v3920, %v2918
    %v5037 = vmul.f32 %v3919, %v2919
    %v5038 = vmul.f32 %v3918, %v2920
    %v5039 = vmul.f32 %v3917, %v2921
    %v5040 = vmul.f32 %v3916, %v2922
    %v5041 = vmul.f32 %v3915, %v2923
    %v5042 = vmul.f32 %v3914, %v2924
    %v5043 = vmul.f32 %v3913, %v2925
    %v5044 = vmul.f32 %v3912, %v2926
    %v5045 = vmul.f32 %v3911, %v2927
    %v5046 = vmul.f32 %v3910, %v2928
    %v5047 = vmul.f32 %v3909, %v2929
    %v5048 = vmul.f32 %v3908, %v2930
    %v5049 = vmul.f32 %v3907, %v2931
    %v5050 = vmul.f32 %v3906, %v2932
    %v5051 = vmul.f32 %v3905, %v2933
    %v5052 = vmul.f32 %v3904, %v2934
    %v5053 = vmul.f32 %v3903, %v2935
    %v5054 = vmul.f32 %v3902, %v2936
    %v5055 = vmul.f32 %v3901, %v2937
    %v5056 = vmul.f32 %v3900, %v2938
    %v5057 = vmul.f32 %v3899, %v2939
    %v5058 = vmul.f32 %v3898, %v2940
    %v5059 = vmul.f32 %v3897, %v2941
    %v5060 = vmul.f32 %v3896, %v2942
    %v5061 = vmul.f32 %v3895, %v2943
    %v5062 = vmul.f32 %v3894, %v2944
    %v5063 = vmul.f32 %v3893, %v2945
    %v5064 = vmul.f32 %v3892, %v2946
    %v5065 = vmul.f32 %v3891, %v2947
    %v5066 = vmul.f32 %v3890, %v2948
    %v5067 = vmul.f32 %v3889, %v2949
    %v5068 = vmul.f32 %v3888, %v2950
    %v5069 = vmul.f32 %v3887, %v2951
    %v5070 = vmul.f32 %v3886, %v2952
    %v5071 = vmul.f32 %v3885, %v2953
    %v5072 = vmul.f32 %v3884, %v2954
    %v5073 = vmul.f32 %v3883, %v2955
    %v5074 = vmul.f32 %v3882, %v2956
    %v5075 = vmul.f32 %v3881, %v2957
    %v5076 = vmul.f32 %v3880, %v2958
    %v5077 = vmul.f32 %v3879, %v2959
    %v5078 = vmul.f32 %v3878, %v2960
    %v5079 = vmul.f32 %v3877, %v2961
    %v5080 = vmul.f32 %v3876, %v2962
    %v5081 = vmul.f32 %v3875, %v2963
    %v5082 = vmul.f32 %v3874, %v2964
    %v5083 = vmul.f32 %v3873, %v2965
    %v5084 = vmul.f32 %v3872, %v2966
    %v5085 = vmul.f32 %v3871, %v2967
    %v5086 = vmul.f32 %v3870, %v2968
    %v5087 = vmul.f32 %v3933, %v2969
    %v5088 = vpack.c.bf16 %v5024, %v5024
    %v5089 = vpack.c.bf16 %v5025, %v5025
    %v5090 = vpack.c.bf16 %v5026, %v5026
    %v5091 = vpack.c.bf16 %v5027, %v5027
    %v5092 = vpack.c.bf16 %v5028, %v5028
    %v5093 = vpack.c.bf16 %v5029, %v5029
    %v5094 = vpack.c.bf16 %v5030, %v5030
    %v5095 = vpack.c.bf16 %v5031, %v5031
    %v5096 = vpack.c.bf16 %v5032, %v5032
    %v5097 = vpack.c.bf16 %v5033, %v5033
    %v5098 = vpack.c.bf16 %v5034, %v5034
    %v5099 = vpack.c.bf16 %v5035, %v5035
    %v5100 = vpack.c.bf16 %v5036, %v5036
    %v5101 = vpack.c.bf16 %v5037, %v5037
    %v5102 = vpack.c.bf16 %v5038, %v5038
    %v5103 = vpack.c.bf16 %v5039, %v5039
    %v5104 = vpack.c.bf16 %v5040, %v5040
    %v5105 = vpack.c.bf16 %v5041, %v5041
    %v5106 = vpack.c.bf16 %v5042, %v5042
    %v5107 = vpack.c.bf16 %v5043, %v5043
    %v5108 = vpack.c.bf16 %v5044, %v5044
    %v5109 = vpack.c.bf16 %v5045, %v5045
    %v5110 = vpack.c.bf16 %v5046, %v5046
    %v5111 = vpack.c.bf16 %v5047, %v5047
    %v5112 = vpack.c.bf16 %v5048, %v5048
    %v5113 = vpack.c.bf16 %v5049, %v5049
    %v5114 = vpack.c.bf16 %v5050, %v5050
    %v5115 = vpack.c.bf16 %v5051, %v5051
    %v5116 = vpack.c.bf16 %v5052, %v5052
    %v5117 = vpack.c.bf16 %v5053, %v5053
    %v5118 = vpack.c.bf16 %v5054, %v5054
    %v5119 = vpack.c.bf16 %v5055, %v5055
    %v5120 = vpack.c.bf16 %v5056, %v5056
    %v5121 = vpack.c.bf16 %v5057, %v5057
    %v5122 = vpack.c.bf16 %v5058, %v5058
    %v5123 = vpack.c.bf16 %v5059, %v5059
    %v5124 = vpack.c.bf16 %v5060, %v5060
    %v5125 = vpack.c.bf16 %v5061, %v5061
    %v5126 = vpack.c.bf16 %v5062, %v5062
    %v5127 = vpack.c.bf16 %v5063, %v5063
    %v5128 = vpack.c.bf16 %v5064, %v5064
    %v5129 = vpack.c.bf16 %v5065, %v5065
    %v5130 = vpack.c.bf16 %v5066, %v5066
    %v5131 = vpack.c.bf16 %v5067, %v5067
    %v5132 = vpack.c.bf16 %v5068, %v5068
    %v5133 = vpack.c.bf16 %v5069, %v5069
    %v5134 = vpack.c.bf16 %v5070, %v5070
    %v5135 = vpack.c.bf16 %v5071, %v5071
    %v5136 = vpack.c.bf16 %v5072, %v5072
    %v5137 = vpack.c.bf16 %v5073, %v5073
    %v5138 = vpack.c.bf16 %v5074, %v5074
    %v5139 = vpack.c.bf16 %v5075, %v5075
    %v5140 = vpack.c.bf16 %v5076, %v5076
    %v5141 = vpack.c.bf16 %v5077, %v5077
    %v5142 = vpack.c.bf16 %v5078, %v5078
    %v5143 = vpack.c.bf16 %v5079, %v5079
    %v5144 = vpack.c.bf16 %v5080, %v5080
    %v5145 = vpack.c.bf16 %v5081, %v5081
    %v5146 = vpack.c.bf16 %v5082, %v5082
    %v5147 = vpack.c.bf16 %v5083, %v5083
    %v5148 = vpack.c.bf16 %v5084, %v5084
    %v5149 = vpack.c.bf16 %v5085, %v5085
    %v5150 = vpack.c.bf16 %v5086, %v5086
    %v5151 = vpack.c.bf16 %v5087, %v5087
    %5216 = vrot.lane.b32.xlu0 %v5088, 32
    %v5217 = vpop.permute.xlu0 %5216
    %5218 = vrot.lane.b32.xlu0 %v5089, 32
    %v5219 = vpop.permute.xlu0 %5218
    %5220 = vrot.lane.b32.xlu0 %v5090, 32
    %v5221 = vpop.permute.xlu0 %5220
    %5222 = vrot.lane.b32.xlu0 %v5091, 32
    %v5223 = vpop.permute.xlu0 %5222
    %5224 = vrot.lane.b32.xlu0 %v5092, 32
    %v5225 = vpop.permute.xlu0 %5224
    %5226 = vrot.lane.b32.xlu0 %v5093, 32
    %v5227 = vpop.permute.xlu0 %5226
    %5228 = vrot.lane.b32.xlu0 %v5094, 32
    %v5229 = vpop.permute.xlu0 %5228
    %5230 = vrot.lane.b32.xlu0 %v5095, 32
    %v5231 = vpop.permute.xlu0 %5230
    %5232 = vrot.lane.b32.xlu0 %v5096, 32
    %v5233 = vpop.permute.xlu0 %5232
    %5234 = vrot.lane.b32.xlu0 %v5097, 32
    %v5235 = vpop.permute.xlu0 %5234
    %5236 = vrot.lane.b32.xlu0 %v5098, 32
    %v5237 = vpop.permute.xlu0 %5236
    %5238 = vrot.lane.b32.xlu0 %v5099, 32
    %v5239 = vpop.permute.xlu0 %5238
    %5240 = vrot.lane.b32.xlu0 %v5100, 32
    %v5241 = vpop.permute.xlu0 %5240
    %5242 = vrot.lane.b32.xlu0 %v5101, 32
    %v5243 = vpop.permute.xlu0 %5242
    %5244 = vrot.lane.b32.xlu0 %v5102, 32
    %v5245 = vpop.permute.xlu0 %5244
    %5246 = vrot.lane.b32.xlu0 %v5103, 32
    %v5247 = vpop.permute.xlu0 %5246
    %5248 = vrot.lane.b32.xlu0 %v5104, 32
    %v5249 = vpop.permute.xlu0 %5248
    %5250 = vrot.lane.b32.xlu0 %v5105, 32
    %v5251 = vpop.permute.xlu0 %5250
    %5252 = vrot.lane.b32.xlu0 %v5106, 32
    %v5253 = vpop.permute.xlu0 %5252
    %5254 = vrot.lane.b32.xlu0 %v5107, 32
    %v5255 = vpop.permute.xlu0 %5254
    %5256 = vrot.lane.b32.xlu0 %v5108, 32
    %v5257 = vpop.permute.xlu0 %5256
    %5258 = vrot.lane.b32.xlu0 %v5109, 32
    %v5259 = vpop.permute.xlu0 %5258
    %5260 = vrot.lane.b32.xlu0 %v5110, 32
    %v5261 = vpop.permute.xlu0 %5260
    %5262 = vrot.lane.b32.xlu0 %v5111, 32
    %v5263 = vpop.permute.xlu0 %5262
    %5264 = vrot.lane.b32.xlu0 %v5112, 32
    %v5265 = vpop.permute.xlu0 %5264
    %5266 = vrot.lane.b32.xlu0 %v5113, 32
    %v5267 = vpop.permute.xlu0 %5266
    %5268 = vrot.lane.b32.xlu0 %v5114, 32
    %v5269 = vpop.permute.xlu0 %5268
    %5270 = vrot.lane.b32.xlu0 %v5115, 32
    %v5271 = vpop.permute.xlu0 %5270
    %5272 = vrot.lane.b32.xlu0 %v5116, 32
    %v5273 = vpop.permute.xlu0 %5272
    %5274 = vrot.lane.b32.xlu0 %v5117, 32
    %v5275 = vpop.permute.xlu0 %5274
    %5276 = vrot.lane.b32.xlu0 %v5118, 32
    %v5277 = vpop.permute.xlu0 %5276
    %5278 = vrot.lane.b32.xlu0 %v5119, 32
    %v5279 = vpop.permute.xlu0 %5278
    %5280 = vrot.lane.b32.xlu0 %v5120, 32
    %v5281 = vpop.permute.xlu0 %5280
    %5282 = vrot.lane.b32.xlu0 %v5121, 32
    %v5283 = vpop.permute.xlu0 %5282
    %5284 = vrot.lane.b32.xlu0 %v5122, 32
    %v5285 = vpop.permute.xlu0 %5284
    %5286 = vrot.lane.b32.xlu0 %v5123, 32
    %v5287 = vpop.permute.xlu0 %5286
    %5288 = vrot.lane.b32.xlu0 %v5124, 32
    %v5289 = vpop.permute.xlu0 %5288
    %5290 = vrot.lane.b32.xlu0 %v5125, 32
    %v5291 = vpop.permute.xlu0 %5290
    %5292 = vrot.lane.b32.xlu0 %v5126, 32
    %v5293 = vpop.permute.xlu0 %5292
    %5294 = vrot.lane.b32.xlu0 %v5127, 32
    %v5295 = vpop.permute.xlu0 %5294
    %5296 = vrot.lane.b32.xlu0 %v5128, 32
    %v5297 = vpop.permute.xlu0 %5296
    %5298 = vrot.lane.b32.xlu0 %v5129, 32
    %v5299 = vpop.permute.xlu0 %5298
    %5300 = vrot.lane.b32.xlu0 %v5130, 32
    %v5301 = vpop.permute.xlu0 %5300
    %5302 = vrot.lane.b32.xlu0 %v5131, 32
    %v5303 = vpop.permute.xlu0 %5302
    %5304 = vrot.lane.b32.xlu0 %v5132, 32
    %v5305 = vpop.permute.xlu0 %5304
    %5306 = vrot.lane.b32.xlu0 %v5133, 32
    %v5307 = vpop.permute.xlu0 %5306
    %5308 = vrot.lane.b32.xlu0 %v5134, 32
    %v5309 = vpop.permute.xlu0 %5308
    %5310 = vrot.lane.b32.xlu0 %v5135, 32
    %v5311 = vpop.permute.xlu0 %5310
    %5312 = vrot.lane.b32.xlu0 %v5136, 32
    %v5313 = vpop.permute.xlu0 %5312
    %5314 = vrot.lane.b32.xlu0 %v5137, 32
    %v5315 = vpop.permute.xlu0 %5314
    %5316 = vrot.lane.b32.xlu0 %v5138, 32
    %v5317 = vpop.permute.xlu0 %5316
    %5318 = vrot.lane.b32.xlu0 %v5139, 32
    %v5319 = vpop.permute.xlu0 %5318
    %5320 = vrot.lane.b32.xlu0 %v5140, 32
    %v5321 = vpop.permute.xlu0 %5320
    %5322 = vrot.lane.b32.xlu0 %v5141, 32
    %v5323 = vpop.permute.xlu0 %5322
    %5324 = vrot.lane.b32.xlu0 %v5142, 32
    %v5325 = vpop.permute.xlu0 %5324
    %5326 = vrot.lane.b32.xlu0 %v5143, 32
    %v5327 = vpop.permute.xlu0 %5326
    %5328 = vrot.lane.b32.xlu0 %v5144, 32
    %v5329 = vpop.permute.xlu0 %5328
    %5330 = vrot.lane.b32.xlu0 %v5145, 32
    %v5331 = vpop.permute.xlu0 %5330
    %5332 = vrot.lane.b32.xlu0 %v5146, 32
    %v5333 = vpop.permute.xlu0 %5332
    %5334 = vrot.lane.b32.xlu0 %v5147, 32
    %v5335 = vpop.permute.xlu0 %5334
    %5336 = vrot.lane.b32.xlu0 %v5148, 32
    %v5337 = vpop.permute.xlu0 %5336
    %5338 = vrot.lane.b32.xlu0 %v5149, 32
    %v5339 = vpop.permute.xlu0 %5338
    %5340 = vrot.lane.b32.xlu0 %v5150, 32
    %v5341 = vpop.permute.xlu0 %5340
    %5342 = vrot.lane.b32.xlu0 %v5151, 32
    %v5343 = vpop.permute.xlu0 %5342
    %5408 = vst.msk [vmem:[#allocation2 + $0x4] sm:$0xf] %vm3740, %v5217
    %5409 = vst.msk [vmem:[#allocation2 + $0x10] sm:$0xf] %vm3740, %v5219
    %5410 = vst.msk [vmem:[#allocation2 + $0x1c] sm:$0xf] %vm3740, %v5221
    %5411 = vst.msk [vmem:[#allocation2 + $0x28] sm:$0xf] %vm3740, %v5223
    %5412 = vst.msk [vmem:[#allocation2 + $0x34] sm:$0xf] %vm3740, %v5225
    %5413 = vst.msk [vmem:[#allocation2 + $0x40] sm:$0xf] %vm3740, %v5227
    %5414 = vst.msk [vmem:[#allocation2 + $0x4c] sm:$0xf] %vm3740, %v5229
    %5415 = vst.msk [vmem:[#allocation2 + $0x58] sm:$0xf] %vm3740, %v5231
    %5416 = vst.msk [vmem:[#allocation2 + $0x64] sm:$0xf] %vm3740, %v5233
    %5417 = vst.msk [vmem:[#allocation2 + $0x70] sm:$0xf] %vm3740, %v5235
    %5418 = vst.msk [vmem:[#allocation2 + $0x7c] sm:$0xf] %vm3740, %v5237
    %5419 = vst.msk [vmem:[#allocation2 + $0x88] sm:$0xf] %vm3740, %v5239
    %5420 = vst.msk [vmem:[#allocation2 + $0x94] sm:$0xf] %vm3740, %v5241
    %5421 = vst.msk [vmem:[#allocation2 + $0xa0] sm:$0xf] %vm3740, %v5243
    %5422 = vst.msk [vmem:[#allocation2 + $0xac] sm:$0xf] %vm3740, %v5245
    %5423 = vst.msk [vmem:[#allocation2 + $0xb8] sm:$0xf] %vm3740, %v5247
    %5424 = vst.msk [vmem:[#allocation2 + $0xc4] sm:$0xf] %vm3740, %v5249
    %5425 = vst.msk [vmem:[#allocation2 + $0xd0] sm:$0xf] %vm3740, %v5251
    %5426 = vst.msk [vmem:[#allocation2 + $0xdc] sm:$0xf] %vm3740, %v5253
    %5427 = vst.msk [vmem:[#allocation2 + $0xe8] sm:$0xf] %vm3740, %v5255
    %5428 = vst.msk [vmem:[#allocation2 + $0xf4] sm:$0xf] %vm3740, %v5257
    %5429 = vst.msk [vmem:[#allocation2 + $0x100] sm:$0xf] %vm3740, %v5259
    %5430 = vst.msk [vmem:[#allocation2 + $0x10c] sm:$0xf] %vm3740, %v5261
    %5431 = vst.msk [vmem:[#allocation2 + $0x118] sm:$0xf] %vm3740, %v5263
    %5432 = vst.msk [vmem:[#allocation2 + $0x124] sm:$0xf] %vm3740, %v5265
    %5433 = vst.msk [vmem:[#allocation2 + $0x130] sm:$0xf] %vm3740, %v5267
    %5434 = vst.msk [vmem:[#allocation2 + $0x13c] sm:$0xf] %vm3740, %v5269
    %5435 = vst.msk [vmem:[#allocation2 + $0x148] sm:$0xf] %vm3740, %v5271
    %5436 = vst.msk [vmem:[#allocation2 + $0x154] sm:$0xf] %vm3740, %v5273
    %5437 = vst.msk [vmem:[#allocation2 + $0x160] sm:$0xf] %vm3740, %v5275
    %5438 = vst.msk [vmem:[#allocation2 + $0x16c] sm:$0xf] %vm3740, %v5277
    %5439 = vst.msk [vmem:[#allocation2 + $0x178] sm:$0xf] %vm3740, %v5279
    %5440 = vst.msk [vmem:[#allocation2 + $0x184] sm:$0xf] %vm3740, %v5281
    %5441 = vst.msk [vmem:[#allocation2 + $0x190] sm:$0xf] %vm3740, %v5283
    %5442 = vst.msk [vmem:[#allocation2 + $0x19c] sm:$0xf] %vm3740, %v5285
    %5443 = vst.msk [vmem:[#allocation2 + $0x1a8] sm:$0xf] %vm3740, %v5287
    %5444 = vst.msk [vmem:[#allocation2 + $0x1b4] sm:$0xf] %vm3740, %v5289
    %5445 = vst.msk [vmem:[#allocation2 + $0x1c0] sm:$0xf] %vm3740, %v5291
    %5446 = vst.msk [vmem:[#allocation2 + $0x1cc] sm:$0xf] %vm3740, %v5293
    %5447 = vst.msk [vmem:[#allocation2 + $0x1d8] sm:$0xf] %vm3740, %v5295
    %5448 = vst.msk [vmem:[#allocation2 + $0x1e4] sm:$0xf] %vm3740, %v5297
    %5449 = vst.msk [vmem:[#allocation2 + $0x1f0] sm:$0xf] %vm3740, %v5299
    %5450 = vst.msk [vmem:[#allocation2 + $0x1fc] sm:$0xf] %vm3740, %v5301
    %5451 = vst.msk [vmem:[#allocation2 + $0x208] sm:$0xf] %vm3740, %v5303
    %5452 = vst.msk [vmem:[#allocation2 + $0x214] sm:$0xf] %vm3740, %v5305
    %5453 = vst.msk [vmem:[#allocation2 + $0x220] sm:$0xf] %vm3740, %v5307
    %5454 = vst.msk [vmem:[#allocation2 + $0x22c] sm:$0xf] %vm3740, %v5309
    %5455 = vst.msk [vmem:[#allocation2 + $0x238] sm:$0xf] %vm3740, %v5311
    %5456 = vst.msk [vmem:[#allocation2 + $0x244] sm:$0xf] %vm3740, %v5313
    %5457 = vst.msk [vmem:[#allocation2 + $0x250] sm:$0xf] %vm3740, %v5315
    %5458 = vst.msk [vmem:[#allocation2 + $0x25c] sm:$0xf] %vm3740, %v5317
    %5459 = vst.msk [vmem:[#allocation2 + $0x268] sm:$0xf] %vm3740, %v5319
    %5460 = vst.msk [vmem:[#allocation2 + $0x274] sm:$0xf] %vm3740, %v5321
    %5461 = vst.msk [vmem:[#allocation2 + $0x280] sm:$0xf] %vm3740, %v5323
    %5462 = vst.msk [vmem:[#allocation2 + $0x28c] sm:$0xf] %vm3740, %v5325
    %5463 = vst.msk [vmem:[#allocation2 + $0x298] sm:$0xf] %vm3740, %v5327
    %5464 = vst.msk [vmem:[#allocation2 + $0x2a4] sm:$0xf] %vm3740, %v5329
    %5465 = vst.msk [vmem:[#allocation2 + $0x2b0] sm:$0xf] %vm3740, %v5331
    %5466 = vst.msk [vmem:[#allocation2 + $0x2bc] sm:$0xf] %vm3740, %v5333
    %5467 = vst.msk [vmem:[#allocation2 + $0x2c8] sm:$0xf] %vm3740, %v5335
    %5468 = vst.msk [vmem:[#allocation2 + $0x2d4] sm:$0xf] %vm3740, %v5337
    %5469 = vst.msk [vmem:[#allocation2 + $0x2e0] sm:$0xf] %vm3740, %v5339
    %5470 = vst.msk [vmem:[#allocation2 + $0x2ec] sm:$0xf] %vm3740, %v5341
    %5471 = vst.msk [vmem:[#allocation2 + $0x2f8] sm:$0xf] %vm3740, %v5343
    %v5472 = vmul.f32 %v2522, %v2714
    %v5473 = vmul.f32 %v2523, %v2715
    %v5474 = vmul.f32 %v2524, %v2716
    %v5475 = vmul.f32 %v2525, %v2717
    %v5476 = vmul.f32 %v2526, %v2718
    %v5477 = vmul.f32 %v2527, %v2719
    %v5478 = vmul.f32 %v2528, %v2720
    %v5479 = vmul.f32 %v2529, %v2721
    %v5480 = vmul.f32 %v2530, %v2722
    %v5481 = vmul.f32 %v2531, %v2723
    %v5482 = vmul.f32 %v2532, %v2724
    %v5483 = vmul.f32 %v2533, %v2725
    %v5484 = vmul.f32 %v2534, %v2726
    %v5485 = vmul.f32 %v2535, %v2727
    %v5486 = vmul.f32 %v2536, %v2728
    %v5487 = vmul.f32 %v2537, %v2729
    %v5488 = vmul.f32 %v2538, %v2730
    %v5489 = vmul.f32 %v2539, %v2731
    %v5490 = vmul.f32 %v2540, %v2732
    %v5491 = vmul.f32 %v2541, %v2733
    %v5492 = vmul.f32 %v2542, %v2734
    %v5493 = vmul.f32 %v2543, %v2735
    %v5494 = vmul.f32 %v2544, %v2736
    %v5495 = vmul.f32 %v2545, %v2737
    %v5496 = vmul.f32 %v2546, %v2738
    %v5497 = vmul.f32 %v2547, %v2739
    %v5498 = vmul.f32 %v2548, %v2740
    %v5499 = vmul.f32 %v2549, %v2741
    %v5500 = vmul.f32 %v2550, %v2742
    %v5501 = vmul.f32 %v2551, %v2743
    %v5502 = vmul.f32 %v2552, %v2744
    %v5503 = vmul.f32 %v2553, %v2745
    %v5504 = vmul.f32 %v2554, %v2746
    %v5505 = vmul.f32 %v2555, %v2747
    %v5506 = vmul.f32 %v2556, %v2748
    %v5507 = vmul.f32 %v2557, %v2749
    %v5508 = vmul.f32 %v2558, %v2750
    %v5509 = vmul.f32 %v2559, %v2751
    %v5510 = vmul.f32 %v2560, %v2752
    %v5511 = vmul.f32 %v2561, %v2753
    %v5512 = vmul.f32 %v2562, %v2754
    %v5513 = vmul.f32 %v2563, %v2755
    %v5514 = vmul.f32 %v2564, %v2756
    %v5515 = vmul.f32 %v2565, %v2757
    %v5516 = vmul.f32 %v2566, %v2758
    %v5517 = vmul.f32 %v2567, %v2759
    %v5518 = vmul.f32 %v2568, %v2760
    %v5519 = vmul.f32 %v2569, %v2761
    %v5520 = vmul.f32 %v2570, %v2762
    %v5521 = vmul.f32 %v2571, %v2763
    %v5522 = vmul.f32 %v2572, %v2764
    %v5523 = vmul.f32 %v2573, %v2765
    %v5524 = vmul.f32 %v2574, %v2766
    %v5525 = vmul.f32 %v2575, %v2767
    %v5526 = vmul.f32 %v2576, %v2768
    %v5527 = vmul.f32 %v2577, %v2769
    %v5528 = vmul.f32 %v2578, %v2770
    %v5529 = vmul.f32 %v2579, %v2771
    %v5530 = vmul.f32 %v2580, %v2772
    %v5531 = vmul.f32 %v2581, %v2773
    %v5532 = vmul.f32 %v2582, %v2774
    %v5533 = vmul.f32 %v2583, %v2775
    %v5534 = vmul.f32 %v2584, %v2776
    %v5535 = vmul.f32 %v2585, %v2777
    %v5536 = vmul.f32 %v3096, %v5472
    %v5537 = vmul.f32 %v3095, %v5473
    %v5538 = vmul.f32 %v3094, %v5474
    %v5539 = vmul.f32 %v3093, %v5475
    %v5540 = vmul.f32 %v3092, %v5476
    %v5541 = vmul.f32 %v3091, %v5477
    %v5542 = vmul.f32 %v3090, %v5478
    %v5543 = vmul.f32 %v3089, %v5479
    %v5544 = vmul.f32 %v3088, %v5480
    %v5545 = vmul.f32 %v3087, %v5481
    %v5546 = vmul.f32 %v3086, %v5482
    %v5547 = vmul.f32 %v3085, %v5483
    %v5548 = vmul.f32 %v3084, %v5484
    %v5549 = vmul.f32 %v3083, %v5485
    %v5550 = vmul.f32 %v3082, %v5486
    %v5551 = vmul.f32 %v3081, %v5487
    %v5552 = vmul.f32 %v3080, %v5488
    %v5553 = vmul.f32 %v3079, %v5489
    %v5554 = vmul.f32 %v3078, %v5490
    %v5555 = vmul.f32 %v3077, %v5491
    %v5556 = vmul.f32 %v3076, %v5492
    %v5557 = vmul.f32 %v3075, %v5493
    %v5558 = vmul.f32 %v3074, %v5494
    %v5559 = vmul.f32 %v3073, %v5495
    %v5560 = vmul.f32 %v3072, %v5496
    %v5561 = vmul.f32 %v3071, %v5497
    %v5562 = vmul.f32 %v3070, %v5498
    %v5563 = vmul.f32 %v3069, %v5499
    %v5564 = vmul.f32 %v3068, %v5500
    %v5565 = vmul.f32 %v3067, %v5501
    %v5566 = vmul.f32 %v3066, %v5502
    %v5567 = vmul.f32 %v3065, %v5503
    %v5568 = vmul.f32 %v3064, %v5504
    %v5569 = vmul.f32 %v3063, %v5505
    %v5570 = vmul.f32 %v3062, %v5506
    %v5571 = vmul.f32 %v3061, %v5507
    %v5572 = vmul.f32 %v3060, %v5508
    %v5573 = vmul.f32 %v3059, %v5509
    %v5574 = vmul.f32 %v3058, %v5510
    %v5575 = vmul.f32 %v3057, %v5511
    %v5576 = vmul.f32 %v3056, %v5512
    %v5577 = vmul.f32 %v3055, %v5513
    %v5578 = vmul.f32 %v3054, %v5514
    %v5579 = vmul.f32 %v3053, %v5515
    %v5580 = vmul.f32 %v3052, %v5516
    %v5581 = vmul.f32 %v3051, %v5517
    %v5582 = vmul.f32 %v3050, %v5518
    %v5583 = vmul.f32 %v3049, %v5519
    %v5584 = vmul.f32 %v3048, %v5520
    %v5585 = vmul.f32 %v3047, %v5521
    %v5586 = vmul.f32 %v3046, %v5522
    %v5587 = vmul.f32 %v3045, %v5523
    %v5588 = vmul.f32 %v3044, %v5524
    %v5589 = vmul.f32 %v3043, %v5525
    %v5590 = vmul.f32 %v3042, %v5526
    %v5591 = vmul.f32 %v3041, %v5527
    %v5592 = vmul.f32 %v3040, %v5528
    %v5593 = vmul.f32 %v3039, %v5529
    %v5594 = vmul.f32 %v3038, %v5530
    %v5595 = vmul.f32 %v3037, %v5531
    %v5596 = vmul.f32 %v3036, %v5532
    %v5597 = vmul.f32 %v3035, %v5533
    %v5598 = vmul.f32 %v3098, %v5534
    %v5599 = vmul.f32 %v3097, %v5535
    %v5600 = vpack.c.bf16 %v5536, %v5536
    %v5601 = vpack.c.bf16 %v5537, %v5537
    %v5602 = vpack.c.bf16 %v5538, %v5538
    %v5603 = vpack.c.bf16 %v5539, %v5539
    %v5604 = vpack.c.bf16 %v5540, %v5540
    %v5605 = vpack.c.bf16 %v5541, %v5541
    %v5606 = vpack.c.bf16 %v5542, %v5542
    %v5607 = vpack.c.bf16 %v5543, %v5543
    %v5608 = vpack.c.bf16 %v5544, %v5544
    %v5609 = vpack.c.bf16 %v5545, %v5545
    %v5610 = vpack.c.bf16 %v5546, %v5546
    %v5611 = vpack.c.bf16 %v5547, %v5547
    %v5612 = vpack.c.bf16 %v5548, %v5548
    %v5613 = vpack.c.bf16 %v5549, %v5549
    %v5614 = vpack.c.bf16 %v5550, %v5550
    %v5615 = vpack.c.bf16 %v5551, %v5551
    %v5616 = vpack.c.bf16 %v5552, %v5552
    %v5617 = vpack.c.bf16 %v5553, %v5553
    %v5618 = vpack.c.bf16 %v5554, %v5554
    %v5619 = vpack.c.bf16 %v5555, %v5555
    %v5620 = vpack.c.bf16 %v5556, %v5556
    %v5621 = vpack.c.bf16 %v5557, %v5557
    %v5622 = vpack.c.bf16 %v5558, %v5558
    %v5623 = vpack.c.bf16 %v5559, %v5559
    %v5624 = vpack.c.bf16 %v5560, %v5560
    %v5625 = vpack.c.bf16 %v5561, %v5561
    %v5626 = vpack.c.bf16 %v5562, %v5562
    %v5627 = vpack.c.bf16 %v5563, %v5563
    %v5628 = vpack.c.bf16 %v5564, %v5564
    %v5629 = vpack.c.bf16 %v5565, %v5565
    %v5630 = vpack.c.bf16 %v5566, %v5566
    %v5631 = vpack.c.bf16 %v5567, %v5567
    %v5632 = vpack.c.bf16 %v5568, %v5568
    %v5633 = vpack.c.bf16 %v5569, %v5569
    %v5634 = vpack.c.bf16 %v5570, %v5570
    %v5635 = vpack.c.bf16 %v5571, %v5571
    %v5636 = vpack.c.bf16 %v5572, %v5572
    %v5637 = vpack.c.bf16 %v5573, %v5573
    %v5638 = vpack.c.bf16 %v5574, %v5574
    %v5639 = vpack.c.bf16 %v5575, %v5575
    %v5640 = vpack.c.bf16 %v5576, %v5576
    %v5641 = vpack.c.bf16 %v5577, %v5577
    %v5642 = vpack.c.bf16 %v5578, %v5578
    %v5643 = vpack.c.bf16 %v5579, %v5579
    %v5644 = vpack.c.bf16 %v5580, %v5580
    %v5645 = vpack.c.bf16 %v5581, %v5581
    %v5646 = vpack.c.bf16 %v5582, %v5582
    %v5647 = vpack.c.bf16 %v5583, %v5583
    %v5648 = vpack.c.bf16 %v5584, %v5584
    %v5649 = vpack.c.bf16 %v5585, %v5585
    %v5650 = vpack.c.bf16 %v5586, %v5586
    %v5651 = vpack.c.bf16 %v5587, %v5587
    %v5652 = vpack.c.bf16 %v5588, %v5588
    %v5653 = vpack.c.bf16 %v5589, %v5589
    %v5654 = vpack.c.bf16 %v5590, %v5590
    %v5655 = vpack.c.bf16 %v5591, %v5591
    %v5656 = vpack.c.bf16 %v5592, %v5592
    %v5657 = vpack.c.bf16 %v5593, %v5593
    %v5658 = vpack.c.bf16 %v5594, %v5594
    %v5659 = vpack.c.bf16 %v5595, %v5595
    %v5660 = vpack.c.bf16 %v5596, %v5596
    %v5661 = vpack.c.bf16 %v5597, %v5597
    %v5662 = vpack.c.bf16 %v5598, %v5598
    %v5663 = vpack.c.bf16 %v5599, %v5599
    %5728 = vrot.lane.b32.xlu0 %v5600, 64
    %v5729 = vpop.permute.xlu0 %5728
    %5730 = vrot.lane.b32.xlu0 %v5601, 64
    %v5731 = vpop.permute.xlu0 %5730
    %5732 = vrot.lane.b32.xlu0 %v5602, 64
    %v5733 = vpop.permute.xlu0 %5732
    %5734 = vrot.lane.b32.xlu0 %v5603, 64
    %v5735 = vpop.permute.xlu0 %5734
    %5736 = vrot.lane.b32.xlu0 %v5604, 64
    %v5737 = vpop.permute.xlu0 %5736
    %5738 = vrot.lane.b32.xlu0 %v5605, 64
    %v5739 = vpop.permute.xlu0 %5738
    %5740 = vrot.lane.b32.xlu0 %v5606, 64
    %v5741 = vpop.permute.xlu0 %5740
    %5742 = vrot.lane.b32.xlu0 %v5607, 64
    %v5743 = vpop.permute.xlu0 %5742
    %5744 = vrot.lane.b32.xlu0 %v5608, 64
    %v5745 = vpop.permute.xlu0 %5744
    %5746 = vrot.lane.b32.xlu0 %v5609, 64
    %v5747 = vpop.permute.xlu0 %5746
    %5748 = vrot.lane.b32.xlu0 %v5610, 64
    %v5749 = vpop.permute.xlu0 %5748
    %5750 = vrot.lane.b32.xlu0 %v5611, 64
    %v5751 = vpop.permute.xlu0 %5750
    %5752 = vrot.lane.b32.xlu0 %v5612, 64
    %v5753 = vpop.permute.xlu0 %5752
    %5754 = vrot.lane.b32.xlu0 %v5613, 64
    %v5755 = vpop.permute.xlu0 %5754
    %5756 = vrot.lane.b32.xlu0 %v5614, 64
    %v5757 = vpop.permute.xlu0 %5756
    %5758 = vrot.lane.b32.xlu0 %v5615, 64
    %v5759 = vpop.permute.xlu0 %5758
    %5760 = vrot.lane.b32.xlu0 %v5616, 64
    %v5761 = vpop.permute.xlu0 %5760
    %5762 = vrot.lane.b32.xlu0 %v5617, 64
    %v5763 = vpop.permute.xlu0 %5762
    %5764 = vrot.lane.b32.xlu0 %v5618, 64
    %v5765 = vpop.permute.xlu0 %5764
    %5766 = vrot.lane.b32.xlu0 %v5619, 64
    %v5767 = vpop.permute.xlu0 %5766
    %5768 = vrot.lane.b32.xlu0 %v5620, 64
    %v5769 = vpop.permute.xlu0 %5768
    %5770 = vrot.lane.b32.xlu0 %v5621, 64
    %v5771 = vpop.permute.xlu0 %5770
    %5772 = vrot.lane.b32.xlu0 %v5622, 64
    %v5773 = vpop.permute.xlu0 %5772
    %5774 = vrot.lane.b32.xlu0 %v5623, 64
    %v5775 = vpop.permute.xlu0 %5774
    %5776 = vrot.lane.b32.xlu0 %v5624, 64
    %v5777 = vpop.permute.xlu0 %5776
    %5778 = vrot.lane.b32.xlu0 %v5625, 64
    %v5779 = vpop.permute.xlu0 %5778
    %5780 = vrot.lane.b32.xlu0 %v5626, 64
    %v5781 = vpop.permute.xlu0 %5780
    %5782 = vrot.lane.b32.xlu0 %v5627, 64
    %v5783 = vpop.permute.xlu0 %5782
    %5784 = vrot.lane.b32.xlu0 %v5628, 64
    %v5785 = vpop.permute.xlu0 %5784
    %5786 = vrot.lane.b32.xlu0 %v5629, 64
    %v5787 = vpop.permute.xlu0 %5786
    %5788 = vrot.lane.b32.xlu0 %v5630, 64
    %v5789 = vpop.permute.xlu0 %5788
    %5790 = vrot.lane.b32.xlu0 %v5631, 64
    %v5791 = vpop.permute.xlu0 %5790
    %5792 = vrot.lane.b32.xlu0 %v5632, 64
    %v5793 = vpop.permute.xlu0 %5792
    %5794 = vrot.lane.b32.xlu0 %v5633, 64
    %v5795 = vpop.permute.xlu0 %5794
    %5796 = vrot.lane.b32.xlu0 %v5634, 64
    %v5797 = vpop.permute.xlu0 %5796
    %5798 = vrot.lane.b32.xlu0 %v5635, 64
    %v5799 = vpop.permute.xlu0 %5798
    %5800 = vrot.lane.b32.xlu0 %v5636, 64
    %v5801 = vpop.permute.xlu0 %5800
    %5802 = vrot.lane.b32.xlu0 %v5637, 64
    %v5803 = vpop.permute.xlu0 %5802
    %5804 = vrot.lane.b32.xlu0 %v5638, 64
    %v5805 = vpop.permute.xlu0 %5804
    %5806 = vrot.lane.b32.xlu0 %v5639, 64
    %v5807 = vpop.permute.xlu0 %5806
    %5808 = vrot.lane.b32.xlu0 %v5640, 64
    %v5809 = vpop.permute.xlu0 %5808
    %5810 = vrot.lane.b32.xlu0 %v5641, 64
    %v5811 = vpop.permute.xlu0 %5810
    %5812 = vrot.lane.b32.xlu0 %v5642, 64
    %v5813 = vpop.permute.xlu0 %5812
    %5814 = vrot.lane.b32.xlu0 %v5643, 64
    %v5815 = vpop.permute.xlu0 %5814
    %5816 = vrot.lane.b32.xlu0 %v5644, 64
    %v5817 = vpop.permute.xlu0 %5816
    %5818 = vrot.lane.b32.xlu0 %v5645, 64
    %v5819 = vpop.permute.xlu0 %5818
    %5820 = vrot.lane.b32.xlu0 %v5646, 64
    %v5821 = vpop.permute.xlu0 %5820
    %5822 = vrot.lane.b32.xlu0 %v5647, 64
    %v5823 = vpop.permute.xlu0 %5822
    %5824 = vrot.lane.b32.xlu0 %v5648, 64
    %v5825 = vpop.permute.xlu0 %5824
    %5826 = vrot.lane.b32.xlu0 %v5649, 64
    %v5827 = vpop.permute.xlu0 %5826
    %5828 = vrot.lane.b32.xlu0 %v5650, 64
    %v5829 = vpop.permute.xlu0 %5828
    %5830 = vrot.lane.b32.xlu0 %v5651, 64
    %v5831 = vpop.permute.xlu0 %5830
    %5832 = vrot.lane.b32.xlu0 %v5652, 64
    %v5833 = vpop.permute.xlu0 %5832
    %5834 = vrot.lane.b32.xlu0 %v5653, 64
    %v5835 = vpop.permute.xlu0 %5834
    %5836 = vrot.lane.b32.xlu0 %v5654, 64
    %v5837 = vpop.permute.xlu0 %5836
    %5838 = vrot.lane.b32.xlu0 %v5655, 64
    %v5839 = vpop.permute.xlu0 %5838
    %5840 = vrot.lane.b32.xlu0 %v5656, 64
    %v5841 = vpop.permute.xlu0 %5840
    %5842 = vrot.lane.b32.xlu0 %v5657, 64
    %v5843 = vpop.permute.xlu0 %5842
    %5844 = vrot.lane.b32.xlu0 %v5658, 64
    %v5845 = vpop.permute.xlu0 %5844
    %5846 = vrot.lane.b32.xlu0 %v5659, 64
    %v5847 = vpop.permute.xlu0 %5846
    %5848 = vrot.lane.b32.xlu0 %v5660, 64
    %v5849 = vpop.permute.xlu0 %5848
    %5850 = vrot.lane.b32.xlu0 %v5661, 64
    %v5851 = vpop.permute.xlu0 %5850
    %5852 = vrot.lane.b32.xlu0 %v5662, 64
    %v5853 = vpop.permute.xlu0 %5852
    %5854 = vrot.lane.b32.xlu0 %v5663, 64
    %v5855 = vpop.permute.xlu0 %5854
    %5920 = vst.msk [vmem:[#allocation2 + $0x4] sm:$0xf] %vm4382, %v5729
    %5921 = vst.msk [vmem:[#allocation2 + $0x10] sm:$0xf] %vm4382, %v5731
    %5922 = vst.msk [vmem:[#allocation2 + $0x1c] sm:$0xf] %vm4382, %v5733
    %5923 = vst.msk [vmem:[#allocation2 + $0x28] sm:$0xf] %vm4382, %v5735
    %5924 = vst.msk [vmem:[#allocation2 + $0x34] sm:$0xf] %vm4382, %v5737
    %5925 = vst.msk [vmem:[#allocation2 + $0x40] sm:$0xf] %vm4382, %v5739
    %5926 = vst.msk [vmem:[#allocation2 + $0x4c] sm:$0xf] %vm4382, %v5741
    %5927 = vst.msk [vmem:[#allocation2 + $0x58] sm:$0xf] %vm4382, %v5743
    %5928 = vst.msk [vmem:[#allocation2 + $0x64] sm:$0xf] %vm4382, %v5745
    %5929 = vst.msk [vmem:[#allocation2 + $0x70] sm:$0xf] %vm4382, %v5747
    %5930 = vst.msk [vmem:[#allocation2 + $0x7c] sm:$0xf] %vm4382, %v5749
    %5931 = vst.msk [vmem:[#allocation2 + $0x88] sm:$0xf] %vm4382, %v5751
    %5932 = vst.msk [vmem:[#allocation2 + $0x94] sm:$0xf] %vm4382, %v5753
    %5933 = vst.msk [vmem:[#allocation2 + $0xa0] sm:$0xf] %vm4382, %v5755
    %5934 = vst.msk [vmem:[#allocation2 + $0xac] sm:$0xf] %vm4382, %v5757
    %5935 = vst.msk [vmem:[#allocation2 + $0xb8] sm:$0xf] %vm4382, %v5759
    %5936 = vst.msk [vmem:[#allocation2 + $0xc4] sm:$0xf] %vm4382, %v5761
    %5937 = vst.msk [vmem:[#allocation2 + $0xd0] sm:$0xf] %vm4382, %v5763
    %5938 = vst.msk [vmem:[#allocation2 + $0xdc] sm:$0xf] %vm4382, %v5765
    %5939 = vst.msk [vmem:[#allocation2 + $0xe8] sm:$0xf] %vm4382, %v5767
    %5940 = vst.msk [vmem:[#allocation2 + $0xf4] sm:$0xf] %vm4382, %v5769
    %5941 = vst.msk [vmem:[#allocation2 + $0x100] sm:$0xf] %vm4382, %v5771
    %5942 = vst.msk [vmem:[#allocation2 + $0x10c] sm:$0xf] %vm4382, %v5773
    %5943 = vst.msk [vmem:[#allocation2 + $0x118] sm:$0xf] %vm4382, %v5775
    %5944 = vst.msk [vmem:[#allocation2 + $0x124] sm:$0xf] %vm4382, %v5777
    %5945 = vst.msk [vmem:[#allocation2 + $0x130] sm:$0xf] %vm4382, %v5779
    %5946 = vst.msk [vmem:[#allocation2 + $0x13c] sm:$0xf] %vm4382, %v5781
    %5947 = vst.msk [vmem:[#allocation2 + $0x148] sm:$0xf] %vm4382, %v5783
    %5948 = vst.msk [vmem:[#allocation2 + $0x154] sm:$0xf] %vm4382, %v5785
    %5949 = vst.msk [vmem:[#allocation2 + $0x160] sm:$0xf] %vm4382, %v5787
    %5950 = vst.msk [vmem:[#allocation2 + $0x16c] sm:$0xf] %vm4382, %v5789
    %5951 = vst.msk [vmem:[#allocation2 + $0x178] sm:$0xf] %vm4382, %v5791
    %5952 = vst.msk [vmem:[#allocation2 + $0x184] sm:$0xf] %vm4382, %v5793
    %5953 = vst.msk [vmem:[#allocation2 + $0x190] sm:$0xf] %vm4382, %v5795
    %5954 = vst.msk [vmem:[#allocation2 + $0x19c] sm:$0xf] %vm4382, %v5797
    %5955 = vst.msk [vmem:[#allocation2 + $0x1a8] sm:$0xf] %vm4382, %v5799
    %5956 = vst.msk [vmem:[#allocation2 + $0x1b4] sm:$0xf] %vm4382, %v5801
    %5957 = vst.msk [vmem:[#allocation2 + $0x1c0] sm:$0xf] %vm4382, %v5803
    %5958 = vst.msk [vmem:[#allocation2 + $0x1cc] sm:$0xf] %vm4382, %v5805
    %5959 = vst.msk [vmem:[#allocation2 + $0x1d8] sm:$0xf] %vm4382, %v5807
    %5960 = vst.msk [vmem:[#allocation2 + $0x1e4] sm:$0xf] %vm4382, %v5809
    %5961 = vst.msk [vmem:[#allocation2 + $0x1f0] sm:$0xf] %vm4382, %v5811
    %5962 = vst.msk [vmem:[#allocation2 + $0x1fc] sm:$0xf] %vm4382, %v5813
    %5963 = vst.msk [vmem:[#allocation2 + $0x208] sm:$0xf] %vm4382, %v5815
    %5964 = vst.msk [vmem:[#allocation2 + $0x214] sm:$0xf] %vm4382, %v5817
    %5965 = vst.msk [vmem:[#allocation2 + $0x220] sm:$0xf] %vm4382, %v5819
    %5966 = vst.msk [vmem:[#allocation2 + $0x22c] sm:$0xf] %vm4382, %v5821
    %5967 = vst.msk [vmem:[#allocation2 + $0x238] sm:$0xf] %vm4382, %v5823
    %5968 = vst.msk [vmem:[#allocation2 + $0x244] sm:$0xf] %vm4382, %v5825
    %5969 = vst.msk [vmem:[#allocation2 + $0x250] sm:$0xf] %vm4382, %v5827
    %5970 = vst.msk [vmem:[#allocation2 + $0x25c] sm:$0xf] %vm4382, %v5829
    %5971 = vst.msk [vmem:[#allocation2 + $0x268] sm:$0xf] %vm4382, %v5831
    %5972 = vst.msk [vmem:[#allocation2 + $0x274] sm:$0xf] %vm4382, %v5833
    %5973 = vst.msk [vmem:[#allocation2 + $0x280] sm:$0xf] %vm4382, %v5835
    %5974 = vst.msk [vmem:[#allocation2 + $0x28c] sm:$0xf] %vm4382, %v5837
    %5975 = vst.msk [vmem:[#allocation2 + $0x298] sm:$0xf] %vm4382, %v5839
    %5976 = vst.msk [vmem:[#allocation2 + $0x2a4] sm:$0xf] %vm4382, %v5841
    %5977 = vst.msk [vmem:[#allocation2 + $0x2b0] sm:$0xf] %vm4382, %v5843
    %5978 = vst.msk [vmem:[#allocation2 + $0x2bc] sm:$0xf] %vm4382, %v5845
    %5979 = vst.msk [vmem:[#allocation2 + $0x2c8] sm:$0xf] %vm4382, %v5847
    %5980 = vst.msk [vmem:[#allocation2 + $0x2d4] sm:$0xf] %vm4382, %v5849
    %5981 = vst.msk [vmem:[#allocation2 + $0x2e0] sm:$0xf] %vm4382, %v5851
    %5982 = vst.msk [vmem:[#allocation2 + $0x2ec] sm:$0xf] %vm4382, %v5853
    %5983 = vst.msk [vmem:[#allocation2 + $0x2f8] sm:$0xf] %vm4382, %v5855
    %v5984 = vmul.f32 %v539, %v2522
    %v5985 = vmul.f32 %v540, %v2523
    %v5986 = vmul.f32 %v541, %v2524
    %v5987 = vmul.f32 %v542, %v2525
    %v5988 = vmul.f32 %v543, %v2526
    %v5989 = vmul.f32 %v544, %v2527
    %v5990 = vmul.f32 %v545, %v2528
    %v5991 = vmul.f32 %v546, %v2529
    %v5992 = vmul.f32 %v547, %v2530
    %v5993 = vmul.f32 %v548, %v2531
    %v5994 = vmul.f32 %v549, %v2532
    %v5995 = vmul.f32 %v550, %v2533
    %v5996 = vmul.f32 %v551, %v2534
    %v5997 = vmul.f32 %v552, %v2535
    %v5998 = vmul.f32 %v553, %v2536
    %v5999 = vmul.f32 %v554, %v2537
    %v6000 = vmul.f32 %v555, %v2538
    %v6001 = vmul.f32 %v556, %v2539
    %v6002 = vmul.f32 %v557, %v2540
    %v6003 = vmul.f32 %v558, %v2541
    %v6004 = vmul.f32 %v559, %v2542
    %v6005 = vmul.f32 %v560, %v2543
    %v6006 = vmul.f32 %v561, %v2544
    %v6007 = vmul.f32 %v562, %v2545
    %v6008 = vmul.f32 %v563, %v2546
    %v6009 = vmul.f32 %v564, %v2547
    %v6010 = vmul.f32 %v565, %v2548
    %v6011 = vmul.f32 %v566, %v2549
    %v6012 = vmul.f32 %v567, %v2550
    %v6013 = vmul.f32 %v568, %v2551
    %v6014 = vmul.f32 %v569, %v2552
    %v6015 = vmul.f32 %v570, %v2553
    %v6016 = vmul.f32 %v571, %v2554
    %v6017 = vmul.f32 %v572, %v2555
    %v6018 = vmul.f32 %v573, %v2556
    %v6019 = vmul.f32 %v574, %v2557
    %v6020 = vmul.f32 %v575, %v2558
    %v6021 = vmul.f32 %v576, %v2559
    %v6022 = vmul.f32 %v577, %v2560
    %v6023 = vmul.f32 %v578, %v2561
    %v6024 = vmul.f32 %v579, %v2562
    %v6025 = vmul.f32 %v580, %v2563
    %v6026 = vmul.f32 %v581, %v2564
    %v6027 = vmul.f32 %v582, %v2565
    %v6028 = vmul.f32 %v583, %v2566
    %v6029 = vmul.f32 %v584, %v2567
    %v6030 = vmul.f32 %v585, %v2568
    %v6031 = vmul.f32 %v586, %v2569
    %v6032 = vmul.f32 %v587, %v2570
    %v6033 = vmul.f32 %v588, %v2571
    %v6034 = vmul.f32 %v589, %v2572
    %v6035 = vmul.f32 %v590, %v2573
    %v6036 = vmul.f32 %v591, %v2574
    %v6037 = vmul.f32 %v592, %v2575
    %v6038 = vmul.f32 %v593, %v2576
    %v6039 = vmul.f32 %v594, %v2577
    %v6040 = vmul.f32 %v595, %v2578
    %v6041 = vmul.f32 %v596, %v2579
    %v6042 = vmul.f32 %v597, %v2580
    %v6043 = vmul.f32 %v598, %v2581
    %v6044 = vmul.f32 %v599, %v2582
    %v6045 = vmul.f32 %v600, %v2583
    %v6046 = vmul.f32 %v537, %v2584
    %v6047 = vmul.f32 %v538, %v2585
    %v6048 = vpack.c.bf16 %v5984, %v5984
    %v6049 = vpack.c.bf16 %v5985, %v5985
    %v6050 = vpack.c.bf16 %v5986, %v5986
    %v6051 = vpack.c.bf16 %v5987, %v5987
    %v6052 = vpack.c.bf16 %v5988, %v5988
    %v6053 = vpack.c.bf16 %v5989, %v5989
    %v6054 = vpack.c.bf16 %v5990, %v5990
    %v6055 = vpack.c.bf16 %v5991, %v5991
    %v6056 = vpack.c.bf16 %v5992, %v5992
    %v6057 = vpack.c.bf16 %v5993, %v5993
    %v6058 = vpack.c.bf16 %v5994, %v5994
    %v6059 = vpack.c.bf16 %v5995, %v5995
    %v6060 = vpack.c.bf16 %v5996, %v5996
    %v6061 = vpack.c.bf16 %v5997, %v5997
    %v6062 = vpack.c.bf16 %v5998, %v5998
    %v6063 = vpack.c.bf16 %v5999, %v5999
    %v6064 = vpack.c.bf16 %v6000, %v6000
    %v6065 = vpack.c.bf16 %v6001, %v6001
    %v6066 = vpack.c.bf16 %v6002, %v6002
    %v6067 = vpack.c.bf16 %v6003, %v6003
    %v6068 = vpack.c.bf16 %v6004, %v6004
    %v6069 = vpack.c.bf16 %v6005, %v6005
    %v6070 = vpack.c.bf16 %v6006, %v6006
    %v6071 = vpack.c.bf16 %v6007, %v6007
    %v6072 = vpack.c.bf16 %v6008, %v6008
    %v6073 = vpack.c.bf16 %v6009, %v6009
    %v6074 = vpack.c.bf16 %v6010, %v6010
    %v6075 = vpack.c.bf16 %v6011, %v6011
    %v6076 = vpack.c.bf16 %v6012, %v6012
    %v6077 = vpack.c.bf16 %v6013, %v6013
    %v6078 = vpack.c.bf16 %v6014, %v6014
    %v6079 = vpack.c.bf16 %v6015, %v6015
    %v6080 = vpack.c.bf16 %v6016, %v6016
    %v6081 = vpack.c.bf16 %v6017, %v6017
    %v6082 = vpack.c.bf16 %v6018, %v6018
    %v6083 = vpack.c.bf16 %v6019, %v6019
    %v6084 = vpack.c.bf16 %v6020, %v6020
    %v6085 = vpack.c.bf16 %v6021, %v6021
    %v6086 = vpack.c.bf16 %v6022, %v6022
    %v6087 = vpack.c.bf16 %v6023, %v6023
    %v6088 = vpack.c.bf16 %v6024, %v6024
    %v6089 = vpack.c.bf16 %v6025, %v6025
    %v6090 = vpack.c.bf16 %v6026, %v6026
    %v6091 = vpack.c.bf16 %v6027, %v6027
    %v6092 = vpack.c.bf16 %v6028, %v6028
    %v6093 = vpack.c.bf16 %v6029, %v6029
    %v6094 = vpack.c.bf16 %v6030, %v6030
    %v6095 = vpack.c.bf16 %v6031, %v6031
    %v6096 = vpack.c.bf16 %v6032, %v6032
    %v6097 = vpack.c.bf16 %v6033, %v6033
    %v6098 = vpack.c.bf16 %v6034, %v6034
    %v6099 = vpack.c.bf16 %v6035, %v6035
    %v6100 = vpack.c.bf16 %v6036, %v6036
    %v6101 = vpack.c.bf16 %v6037, %v6037
    %v6102 = vpack.c.bf16 %v6038, %v6038
    %v6103 = vpack.c.bf16 %v6039, %v6039
    %v6104 = vpack.c.bf16 %v6040, %v6040
    %v6105 = vpack.c.bf16 %v6041, %v6041
    %v6106 = vpack.c.bf16 %v6042, %v6042
    %v6107 = vpack.c.bf16 %v6043, %v6043
    %v6108 = vpack.c.bf16 %v6044, %v6044
    %v6109 = vpack.c.bf16 %v6045, %v6045
    %v6110 = vpack.c.bf16 %v6046, %v6046
    %v6111 = vpack.c.bf16 %v6047, %v6047
    %6176 = vrot.lane.b32.xlu0 %v6048, 96
    %v6177 = vpop.permute.xlu0 %6176
    %6178 = vrot.lane.b32.xlu0 %v6049, 96
    %v6179 = vpop.permute.xlu0 %6178
    %6180 = vrot.lane.b32.xlu0 %v6050, 96
    %v6181 = vpop.permute.xlu0 %6180
    %6182 = vrot.lane.b32.xlu0 %v6051, 96
    %v6183 = vpop.permute.xlu0 %6182
    %6184 = vrot.lane.b32.xlu0 %v6052, 96
    %v6185 = vpop.permute.xlu0 %6184
    %6186 = vrot.lane.b32.xlu0 %v6053, 96
    %v6187 = vpop.permute.xlu0 %6186
    %6188 = vrot.lane.b32.xlu0 %v6054, 96
    %v6189 = vpop.permute.xlu0 %6188
    %6190 = vrot.lane.b32.xlu0 %v6055, 96
    %v6191 = vpop.permute.xlu0 %6190
    %6192 = vrot.lane.b32.xlu0 %v6056, 96
    %v6193 = vpop.permute.xlu0 %6192
    %6194 = vrot.lane.b32.xlu0 %v6057, 96
    %v6195 = vpop.permute.xlu0 %6194
    %6196 = vrot.lane.b32.xlu0 %v6058, 96
    %v6197 = vpop.permute.xlu0 %6196
    %6198 = vrot.lane.b32.xlu0 %v6059, 96
    %v6199 = vpop.permute.xlu0 %6198
    %6200 = vrot.lane.b32.xlu0 %v6060, 96
    %v6201 = vpop.permute.xlu0 %6200
    %6202 = vrot.lane.b32.xlu0 %v6061, 96
    %v6203 = vpop.permute.xlu0 %6202
    %6204 = vrot.lane.b32.xlu0 %v6062, 96
    %v6205 = vpop.permute.xlu0 %6204
    %6206 = vrot.lane.b32.xlu0 %v6063, 96
    %v6207 = vpop.permute.xlu0 %6206
    %6208 = vrot.lane.b32.xlu0 %v6064, 96
    %v6209 = vpop.permute.xlu0 %6208
    %6210 = vrot.lane.b32.xlu0 %v6065, 96
    %v6211 = vpop.permute.xlu0 %6210
    %6212 = vrot.lane.b32.xlu0 %v6066, 96
    %v6213 = vpop.permute.xlu0 %6212
    %6214 = vrot.lane.b32.xlu0 %v6067, 96
    %v6215 = vpop.permute.xlu0 %6214
    %6216 = vrot.lane.b32.xlu0 %v6068, 96
    %v6217 = vpop.permute.xlu0 %6216
    %6218 = vrot.lane.b32.xlu0 %v6069, 96
    %v6219 = vpop.permute.xlu0 %6218
    %6220 = vrot.lane.b32.xlu0 %v6070, 96
    %v6221 = vpop.permute.xlu0 %6220
    %6222 = vrot.lane.b32.xlu0 %v6071, 96
    %v6223 = vpop.permute.xlu0 %6222
    %6224 = vrot.lane.b32.xlu0 %v6072, 96
    %v6225 = vpop.permute.xlu0 %6224
    %6226 = vrot.lane.b32.xlu0 %v6073, 96
    %v6227 = vpop.permute.xlu0 %6226
    %6228 = vrot.lane.b32.xlu0 %v6074, 96
    %v6229 = vpop.permute.xlu0 %6228
    %6230 = vrot.lane.b32.xlu0 %v6075, 96
    %v6231 = vpop.permute.xlu0 %6230
    %6232 = vrot.lane.b32.xlu0 %v6076, 96
    %v6233 = vpop.permute.xlu0 %6232
    %6234 = vrot.lane.b32.xlu0 %v6077, 96
    %v6235 = vpop.permute.xlu0 %6234
    %6236 = vrot.lane.b32.xlu0 %v6078, 96
    %v6237 = vpop.permute.xlu0 %6236
    %6238 = vrot.lane.b32.xlu0 %v6079, 96
    %v6239 = vpop.permute.xlu0 %6238
    %6240 = vrot.lane.b32.xlu0 %v6080, 96
    %v6241 = vpop.permute.xlu0 %6240
    %6242 = vrot.lane.b32.xlu0 %v6081, 96
    %v6243 = vpop.permute.xlu0 %6242
    %6244 = vrot.lane.b32.xlu0 %v6082, 96
    %v6245 = vpop.permute.xlu0 %6244
    %6246 = vrot.lane.b32.xlu0 %v6083, 96
    %v6247 = vpop.permute.xlu0 %6246
    %6248 = vrot.lane.b32.xlu0 %v6084, 96
    %v6249 = vpop.permute.xlu0 %6248
    %6250 = vrot.lane.b32.xlu0 %v6085, 96
    %v6251 = vpop.permute.xlu0 %6250
    %6252 = vrot.lane.b32.xlu0 %v6086, 96
    %v6253 = vpop.permute.xlu0 %6252
    %6254 = vrot.lane.b32.xlu0 %v6087, 96
    %v6255 = vpop.permute.xlu0 %6254
    %6256 = vrot.lane.b32.xlu0 %v6088, 96
    %v6257 = vpop.permute.xlu0 %6256
    %6258 = vrot.lane.b32.xlu0 %v6089, 96
    %v6259 = vpop.permute.xlu0 %6258
    %6260 = vrot.lane.b32.xlu0 %v6090, 96
    %v6261 = vpop.permute.xlu0 %6260
    %6262 = vrot.lane.b32.xlu0 %v6091, 96
    %v6263 = vpop.permute.xlu0 %6262
    %6264 = vrot.lane.b32.xlu0 %v6092, 96
    %v6265 = vpop.permute.xlu0 %6264
    %6266 = vrot.lane.b32.xlu0 %v6093, 96
    %v6267 = vpop.permute.xlu0 %6266
    %6268 = vrot.lane.b32.xlu0 %v6094, 96
    %v6269 = vpop.permute.xlu0 %6268
    %6270 = vrot.lane.b32.xlu0 %v6095, 96
    %v6271 = vpop.permute.xlu0 %6270
    %6272 = vrot.lane.b32.xlu0 %v6096, 96
    %v6273 = vpop.permute.xlu0 %6272
    %6274 = vrot.lane.b32.xlu0 %v6097, 96
    %v6275 = vpop.permute.xlu0 %6274
    %6276 = vrot.lane.b32.xlu0 %v6098, 96
    %v6277 = vpop.permute.xlu0 %6276
    %6278 = vrot.lane.b32.xlu0 %v6099, 96
    %v6279 = vpop.permute.xlu0 %6278
    %6280 = vrot.lane.b32.xlu0 %v6100, 96
    %v6281 = vpop.permute.xlu0 %6280
    %6282 = vrot.lane.b32.xlu0 %v6101, 96
    %v6283 = vpop.permute.xlu0 %6282
    %6284 = vrot.lane.b32.xlu0 %v6102, 96
    %v6285 = vpop.permute.xlu0 %6284
    %6286 = vrot.lane.b32.xlu0 %v6103, 96
    %v6287 = vpop.permute.xlu0 %6286
    %6288 = vrot.lane.b32.xlu0 %v6104, 96
    %v6289 = vpop.permute.xlu0 %6288
    %6290 = vrot.lane.b32.xlu0 %v6105, 96
    %v6291 = vpop.permute.xlu0 %6290
    %6292 = vrot.lane.b32.xlu0 %v6106, 96
    %v6293 = vpop.permute.xlu0 %6292
    %6294 = vrot.lane.b32.xlu0 %v6107, 96
    %v6295 = vpop.permute.xlu0 %6294
    %6296 = vrot.lane.b32.xlu0 %v6108, 96
    %v6297 = vpop.permute.xlu0 %6296
    %6298 = vrot.lane.b32.xlu0 %v6109, 96
    %v6299 = vpop.permute.xlu0 %6298
    %6300 = vrot.lane.b32.xlu0 %v6110, 96
    %v6301 = vpop.permute.xlu0 %6300
    %6302 = vrot.lane.b32.xlu0 %v6111, 96
    %v6303 = vpop.permute.xlu0 %6302
    %6368 = vst.msk [vmem:[#allocation2 + $0x4] sm:$0xf] %vm4831, %v6177
    %6369 = vst.msk [vmem:[#allocation2 + $0x10] sm:$0xf] %vm4831, %v6179
    %6370 = vst.msk [vmem:[#allocation2 + $0x1c] sm:$0xf] %vm4831, %v6181
    %6371 = vst.msk [vmem:[#allocation2 + $0x28] sm:$0xf] %vm4831, %v6183
    %6372 = vst.msk [vmem:[#allocation2 + $0x34] sm:$0xf] %vm4831, %v6185
    %6373 = vst.msk [vmem:[#allocation2 + $0x40] sm:$0xf] %vm4831, %v6187
    %6374 = vst.msk [vmem:[#allocation2 + $0x4c] sm:$0xf] %vm4831, %v6189
    %6375 = vst.msk [vmem:[#allocation2 + $0x58] sm:$0xf] %vm4831, %v6191
    %6376 = vst.msk [vmem:[#allocation2 + $0x64] sm:$0xf] %vm4831, %v6193
    %6377 = vst.msk [vmem:[#allocation2 + $0x70] sm:$0xf] %vm4831, %v6195
    %6378 = vst.msk [vmem:[#allocation2 + $0x7c] sm:$0xf] %vm4831, %v6197
    %6379 = vst.msk [vmem:[#allocation2 + $0x88] sm:$0xf] %vm4831, %v6199
    %6380 = vst.msk [vmem:[#allocation2 + $0x94] sm:$0xf] %vm4831, %v6201
    %6381 = vst.msk [vmem:[#allocation2 + $0xa0] sm:$0xf] %vm4831, %v6203
    %6382 = vst.msk [vmem:[#allocation2 + $0xac] sm:$0xf] %vm4831, %v6205
    %6383 = vst.msk [vmem:[#allocation2 + $0xb8] sm:$0xf] %vm4831, %v6207
    %6384 = vst.msk [vmem:[#allocation2 + $0xc4] sm:$0xf] %vm4831, %v6209
    %6385 = vst.msk [vmem:[#allocation2 + $0xd0] sm:$0xf] %vm4831, %v6211
    %6386 = vst.msk [vmem:[#allocation2 + $0xdc] sm:$0xf] %vm4831, %v6213
    %6387 = vst.msk [vmem:[#allocation2 + $0xe8] sm:$0xf] %vm4831, %v6215
    %6388 = vst.msk [vmem:[#allocation2 + $0xf4] sm:$0xf] %vm4831, %v6217
    %6389 = vst.msk [vmem:[#allocation2 + $0x100] sm:$0xf] %vm4831, %v6219
    %6390 = vst.msk [vmem:[#allocation2 + $0x10c] sm:$0xf] %vm4831, %v6221
    %6391 = vst.msk [vmem:[#allocation2 + $0x118] sm:$0xf] %vm4831, %v6223
    %6392 = vst.msk [vmem:[#allocation2 + $0x124] sm:$0xf] %vm4831, %v6225
    %6393 = vst.msk [vmem:[#allocation2 + $0x130] sm:$0xf] %vm4831, %v6227
    %6394 = vst.msk [vmem:[#allocation2 + $0x13c] sm:$0xf] %vm4831, %v6229
    %6395 = vst.msk [vmem:[#allocation2 + $0x148] sm:$0xf] %vm4831, %v6231
    %6396 = vst.msk [vmem:[#allocation2 + $0x154] sm:$0xf] %vm4831, %v6233
    %6397 = vst.msk [vmem:[#allocation2 + $0x160] sm:$0xf] %vm4831, %v6235
    %6398 = vst.msk [vmem:[#allocation2 + $0x16c] sm:$0xf] %vm4831, %v6237
    %6399 = vst.msk [vmem:[#allocation2 + $0x178] sm:$0xf] %vm4831, %v6239
    %6400 = vst.msk [vmem:[#allocation2 + $0x184] sm:$0xf] %vm4831, %v6241
    %6401 = vst.msk [vmem:[#allocation2 + $0x190] sm:$0xf] %vm4831, %v6243
    %6402 = vst.msk [vmem:[#allocation2 + $0x19c] sm:$0xf] %vm4831, %v6245
    %6403 = vst.msk [vmem:[#allocation2 + $0x1a8] sm:$0xf] %vm4831, %v6247
    %6404 = vst.msk [vmem:[#allocation2 + $0x1b4] sm:$0xf] %vm4831, %v6249
    %6405 = vst.msk [vmem:[#allocation2 + $0x1c0] sm:$0xf] %vm4831, %v6251
    %6406 = vst.msk [vmem:[#allocation2 + $0x1cc] sm:$0xf] %vm4831, %v6253
    %6407 = vst.msk [vmem:[#allocation2 + $0x1d8] sm:$0xf] %vm4831, %v6255
    %6408 = vst.msk [vmem:[#allocation2 + $0x1e4] sm:$0xf] %vm4831, %v6257
    %6409 = vst.msk [vmem:[#allocation2 + $0x1f0] sm:$0xf] %vm4831, %v6259
    %6410 = vst.msk [vmem:[#allocation2 + $0x1fc] sm:$0xf] %vm4831, %v6261
    %6411 = vst.msk [vmem:[#allocation2 + $0x208] sm:$0xf] %vm4831, %v6263
    %6412 = vst.msk [vmem:[#allocation2 + $0x214] sm:$0xf] %vm4831, %v6265
    %6413 = vst.msk [vmem:[#allocation2 + $0x220] sm:$0xf] %vm4831, %v6267
    %6414 = vst.msk [vmem:[#allocation2 + $0x22c] sm:$0xf] %vm4831, %v6269
    %6415 = vst.msk [vmem:[#allocation2 + $0x238] sm:$0xf] %vm4831, %v6271
    %6416 = vst.msk [vmem:[#allocation2 + $0x244] sm:$0xf] %vm4831, %v6273
    %6417 = vst.msk [vmem:[#allocation2 + $0x250] sm:$0xf] %vm4831, %v6275
    %6418 = vst.msk [vmem:[#allocation2 + $0x25c] sm:$0xf] %vm4831, %v6277
    %6419 = vst.msk [vmem:[#allocation2 + $0x268] sm:$0xf] %vm4831, %v6279
    %6420 = vst.msk [vmem:[#allocation2 + $0x274] sm:$0xf] %vm4831, %v6281
    %6421 = vst.msk [vmem:[#allocation2 + $0x280] sm:$0xf] %vm4831, %v6283
    %6422 = vst.msk [vmem:[#allocation2 + $0x28c] sm:$0xf] %vm4831, %v6285
    %6423 = vst.msk [vmem:[#allocation2 + $0x298] sm:$0xf] %vm4831, %v6287
    %6424 = vst.msk [vmem:[#allocation2 + $0x2a4] sm:$0xf] %vm4831, %v6289
    %6425 = vst.msk [vmem:[#allocation2 + $0x2b0] sm:$0xf] %vm4831, %v6291
    %6426 = vst.msk [vmem:[#allocation2 + $0x2bc] sm:$0xf] %vm4831, %v6293
    %6427 = vst.msk [vmem:[#allocation2 + $0x2c8] sm:$0xf] %vm4831, %v6295
    %6428 = vst.msk [vmem:[#allocation2 + $0x2d4] sm:$0xf] %vm4831, %v6297
    %6429 = vst.msk [vmem:[#allocation2 + $0x2e0] sm:$0xf] %vm4831, %v6299
    %6430 = vst.msk [vmem:[#allocation2 + $0x2ec] sm:$0xf] %vm4831, %v6301
    %6431 = vst.msk [vmem:[#allocation2 + $0x2f8] sm:$0xf] %vm4831, %v6303
    %v6432 = vmul.f32 %v2522, %v2906
    %v6433 = vmul.f32 %v2523, %v2907
    %v6434 = vmul.f32 %v2524, %v2908
    %v6435 = vmul.f32 %v2525, %v2909
    %v6436 = vmul.f32 %v2526, %v2910
    %v6437 = vmul.f32 %v2527, %v2911
    %v6438 = vmul.f32 %v2528, %v2912
    %v6439 = vmul.f32 %v2529, %v2913
    %v6440 = vmul.f32 %v2530, %v2914
    %v6441 = vmul.f32 %v2531, %v2915
    %v6442 = vmul.f32 %v2532, %v2916
    %v6443 = vmul.f32 %v2533, %v2917
    %v6444 = vmul.f32 %v2534, %v2918
    %v6445 = vmul.f32 %v2535, %v2919
    %v6446 = vmul.f32 %v2536, %v2920
    %v6447 = vmul.f32 %v2537, %v2921
    %v6448 = vmul.f32 %v2538, %v2922
    %v6449 = vmul.f32 %v2539, %v2923
    %v6450 = vmul.f32 %v2540, %v2924
    %v6451 = vmul.f32 %v2541, %v2925
    %v6452 = vmul.f32 %v2542, %v2926
    %v6453 = vmul.f32 %v2543, %v2927
    %v6454 = vmul.f32 %v2544, %v2928
    %v6455 = vmul.f32 %v2545, %v2929
    %v6456 = vmul.f32 %v2546, %v2930
    %v6457 = vmul.f32 %v2547, %v2931
    %v6458 = vmul.f32 %v2548, %v2932
    %v6459 = vmul.f32 %v2549, %v2933
    %v6460 = vmul.f32 %v2550, %v2934
    %v6461 = vmul.f32 %v2551, %v2935
    %v6462 = vmul.f32 %v2552, %v2936
    %v6463 = vmul.f32 %v2553, %v2937
    %v6464 = vmul.f32 %v2554, %v2938
    %v6465 = vmul.f32 %v2555, %v2939
    %v6466 = vmul.f32 %v2556, %v2940
    %v6467 = vmul.f32 %v2557, %v2941
    %v6468 = vmul.f32 %v2558, %v2942
    %v6469 = vmul.f32 %v2559, %v2943
    %v6470 = vmul.f32 %v2560, %v2944
    %v6471 = vmul.f32 %v2561, %v2945
    %v6472 = vmul.f32 %v2562, %v2946
    %v6473 = vmul.f32 %v2563, %v2947
    %v6474 = vmul.f32 %v2564, %v2948
    %v6475 = vmul.f32 %v2565, %v2949
    %v6476 = vmul.f32 %v2566, %v2950
    %v6477 = vmul.f32 %v2567, %v2951
    %v6478 = vmul.f32 %v2568, %v2952
    %v6479 = vmul.f32 %v2569, %v2953
    %v6480 = vmul.f32 %v2570, %v2954
    %v6481 = vmul.f32 %v2571, %v2955
    %v6482 = vmul.f32 %v2572, %v2956
    %v6483 = vmul.f32 %v2573, %v2957
    %v6484 = vmul.f32 %v2574, %v2958
    %v6485 = vmul.f32 %v2575, %v2959
    %v6486 = vmul.f32 %v2576, %v2960
    %v6487 = vmul.f32 %v2577, %v2961
    %v6488 = vmul.f32 %v2578, %v2962
    %v6489 = vmul.f32 %v2579, %v2963
    %v6490 = vmul.f32 %v2580, %v2964
    %v6491 = vmul.f32 %v2581, %v2965
    %v6492 = vmul.f32 %v2582, %v2966
    %v6493 = vmul.f32 %v2583, %v2967
    %v6494 = vmul.f32 %v2584, %v2968
    %v6495 = vmul.f32 %v2585, %v2969
    %v6496 = vmul.f32 %v3930, %v6432
    %v6497 = vmul.f32 %v3929, %v6433
    %v6498 = vmul.f32 %v3928, %v6434
    %v6499 = vmul.f32 %v3927, %v6435
    %v6500 = vmul.f32 %v3926, %v6436
    %v6501 = vmul.f32 %v3925, %v6437
    %v6502 = vmul.f32 %v3924, %v6438
    %v6503 = vmul.f32 %v3923, %v6439
    %v6504 = vmul.f32 %v3922, %v6440
    %v6505 = vmul.f32 %v3921, %v6441
    %v6506 = vmul.f32 %v3920, %v6442
    %v6507 = vmul.f32 %v3919, %v6443
    %v6508 = vmul.f32 %v3918, %v6444
    %v6509 = vmul.f32 %v3917, %v6445
    %v6510 = vmul.f32 %v3916, %v6446
    %v6511 = vmul.f32 %v3915, %v6447
    %v6512 = vmul.f32 %v3914, %v6448
    %v6513 = vmul.f32 %v3913, %v6449
    %v6514 = vmul.f32 %v3912, %v6450
    %v6515 = vmul.f32 %v3911, %v6451
    %v6516 = vmul.f32 %v3910, %v6452
    %v6517 = vmul.f32 %v3909, %v6453
    %v6518 = vmul.f32 %v3908, %v6454
    %v6519 = vmul.f32 %v3907, %v6455
    %v6520 = vmul.f32 %v3906, %v6456
    %v6521 = vmul.f32 %v3905, %v6457
    %v6522 = vmul.f32 %v3904, %v6458
    %v6523 = vmul.f32 %v3903, %v6459
    %v6524 = vmul.f32 %v3902, %v6460
    %v6525 = vmul.f32 %v3901, %v6461
    %v6526 = vmul.f32 %v3900, %v6462
    %v6527 = vmul.f32 %v3899, %v6463
    %v6528 = vmul.f32 %v3898, %v6464
    %v6529 = vmul.f32 %v3897, %v6465
    %v6530 = vmul.f32 %v3896, %v6466
    %v6531 = vmul.f32 %v3895, %v6467
    %v6532 = vmul.f32 %v3894, %v6468
    %v6533 = vmul.f32 %v3893, %v6469
    %v6534 = vmul.f32 %v3892, %v6470
    %v6535 = vmul.f32 %v3891, %v6471
    %v6536 = vmul.f32 %v3890, %v6472
    %v6537 = vmul.f32 %v3889, %v6473
    %v6538 = vmul.f32 %v3888, %v6474
    %v6539 = vmul.f32 %v3887, %v6475
    %v6540 = vmul.f32 %v3886, %v6476
    %v6541 = vmul.f32 %v3885, %v6477
    %v6542 = vmul.f32 %v3884, %v6478
    %v6543 = vmul.f32 %v3883, %v6479
    %v6544 = vmul.f32 %v3882, %v6480
    %v6545 = vmul.f32 %v3881, %v6481
    %v6546 = vmul.f32 %v3880, %v6482
    %v6547 = vmul.f32 %v3879, %v6483
    %v6548 = vmul.f32 %v3878, %v6484
    %v6549 = vmul.f32 %v3877, %v6485
    %v6550 = vmul.f32 %v3876, %v6486
    %v6551 = vmul.f32 %v3875, %v6487
    %v6552 = vmul.f32 %v3874, %v6488
    %v6553 = vmul.f32 %v3873, %v6489
    %v6554 = vmul.f32 %v3872, %v6490
    %v6555 = vmul.f32 %v3871, %v6491
    %v6556 = vmul.f32 %v3870, %v6492
    %v6557 = vmul.f32 %v3933, %v6493
    %v6558 = vmul.f32 %v3932, %v6494
    %v6559 = vmul.f32 %v3931, %v6495
    %v6560 = vpack.c.bf16 %v6496, %v6496
    %v6561 = vpack.c.bf16 %v6497, %v6497
    %v6562 = vpack.c.bf16 %v6498, %v6498
    %v6563 = vpack.c.bf16 %v6499, %v6499
    %v6564 = vpack.c.bf16 %v6500, %v6500
    %v6565 = vpack.c.bf16 %v6501, %v6501
    %v6566 = vpack.c.bf16 %v6502, %v6502
    %v6567 = vpack.c.bf16 %v6503, %v6503
    %v6568 = vpack.c.bf16 %v6504, %v6504
    %v6569 = vpack.c.bf16 %v6505, %v6505
    %v6570 = vpack.c.bf16 %v6506, %v6506
    %v6571 = vpack.c.bf16 %v6507, %v6507
    %v6572 = vpack.c.bf16 %v6508, %v6508
    %v6573 = vpack.c.bf16 %v6509, %v6509
    %v6574 = vpack.c.bf16 %v6510, %v6510
    %v6575 = vpack.c.bf16 %v6511, %v6511
    %v6576 = vpack.c.bf16 %v6512, %v6512
    %v6577 = vpack.c.bf16 %v6513, %v6513
    %v6578 = vpack.c.bf16 %v6514, %v6514
    %v6579 = vpack.c.bf16 %v6515, %v6515
    %v6580 = vpack.c.bf16 %v6516, %v6516
    %v6581 = vpack.c.bf16 %v6517, %v6517
    %v6582 = vpack.c.bf16 %v6518, %v6518
    %v6583 = vpack.c.bf16 %v6519, %v6519
    %v6584 = vpack.c.bf16 %v6520, %v6520
    %v6585 = vpack.c.bf16 %v6521, %v6521
    %v6586 = vpack.c.bf16 %v6522, %v6522
    %v6587 = vpack.c.bf16 %v6523, %v6523
    %v6588 = vpack.c.bf16 %v6524, %v6524
    %v6589 = vpack.c.bf16 %v6525, %v6525
    %v6590 = vpack.c.bf16 %v6526, %v6526
    %v6591 = vpack.c.bf16 %v6527, %v6527
    %v6592 = vpack.c.bf16 %v6528, %v6528
    %v6593 = vpack.c.bf16 %v6529, %v6529
    %v6594 = vpack.c.bf16 %v6530, %v6530
    %v6595 = vpack.c.bf16 %v6531, %v6531
    %v6596 = vpack.c.bf16 %v6532, %v6532
    %v6597 = vpack.c.bf16 %v6533, %v6533
    %v6598 = vpack.c.bf16 %v6534, %v6534
    %v6599 = vpack.c.bf16 %v6535, %v6535
    %v6600 = vpack.c.bf16 %v6536, %v6536
    %v6601 = vpack.c.bf16 %v6537, %v6537
    %v6602 = vpack.c.bf16 %v6538, %v6538
    %v6603 = vpack.c.bf16 %v6539, %v6539
    %v6604 = vpack.c.bf16 %v6540, %v6540
    %v6605 = vpack.c.bf16 %v6541, %v6541
    %v6606 = vpack.c.bf16 %v6542, %v6542
    %v6607 = vpack.c.bf16 %v6543, %v6543
    %v6608 = vpack.c.bf16 %v6544, %v6544
    %v6609 = vpack.c.bf16 %v6545, %v6545
    %v6610 = vpack.c.bf16 %v6546, %v6546
    %v6611 = vpack.c.bf16 %v6547, %v6547
    %v6612 = vpack.c.bf16 %v6548, %v6548
    %v6613 = vpack.c.bf16 %v6549, %v6549
    %v6614 = vpack.c.bf16 %v6550, %v6550
    %v6615 = vpack.c.bf16 %v6551, %v6551
    %v6616 = vpack.c.bf16 %v6552, %v6552
    %v6617 = vpack.c.bf16 %v6553, %v6553
    %v6618 = vpack.c.bf16 %v6554, %v6554
    %v6619 = vpack.c.bf16 %v6555, %v6555
    %v6620 = vpack.c.bf16 %v6556, %v6556
    %v6621 = vpack.c.bf16 %v6557, %v6557
    %v6622 = vpack.c.bf16 %v6558, %v6558
    %v6623 = vpack.c.bf16 %v6559, %v6559
    %6624 = vst.msk [vmem:[#allocation2 + $0x8] sm:$0xf] %vm3291, %v6560
    %6625 = vst.msk [vmem:[#allocation2 + $0x14] sm:$0xf] %vm3291, %v6561
    %6626 = vst.msk [vmem:[#allocation2 + $0x20] sm:$0xf] %vm3291, %v6562
    %6627 = vst.msk [vmem:[#allocation2 + $0x2c] sm:$0xf] %vm3291, %v6563
    %6628 = vst.msk [vmem:[#allocation2 + $0x38] sm:$0xf] %vm3291, %v6564
    %6629 = vst.msk [vmem:[#allocation2 + $0x44] sm:$0xf] %vm3291, %v6565
    %6630 = vst.msk [vmem:[#allocation2 + $0x50] sm:$0xf] %vm3291, %v6566
    %6631 = vst.msk [vmem:[#allocation2 + $0x5c] sm:$0xf] %vm3291, %v6567
    %6632 = vst.msk [vmem:[#allocation2 + $0x68] sm:$0xf] %vm3291, %v6568
    %6633 = vst.msk [vmem:[#allocation2 + $0x74] sm:$0xf] %vm3291, %v6569
    %6634 = vst.msk [vmem:[#allocation2 + $0x80] sm:$0xf] %vm3291, %v6570
    %6635 = vst.msk [vmem:[#allocation2 + $0x8c] sm:$0xf] %vm3291, %v6571
    %6636 = vst.msk [vmem:[#allocation2 + $0x98] sm:$0xf] %vm3291, %v6572
    %6637 = vst.msk [vmem:[#allocation2 + $0xa4] sm:$0xf] %vm3291, %v6573
    %6638 = vst.msk [vmem:[#allocation2 + $0xb0] sm:$0xf] %vm3291, %v6574
    %6639 = vst.msk [vmem:[#allocation2 + $0xbc] sm:$0xf] %vm3291, %v6575
    %6640 = vst.msk [vmem:[#allocation2 + $0xc8] sm:$0xf] %vm3291, %v6576
    %6641 = vst.msk [vmem:[#allocation2 + $0xd4] sm:$0xf] %vm3291, %v6577
    %6642 = vst.msk [vmem:[#allocation2 + $0xe0] sm:$0xf] %vm3291, %v6578
    %6643 = vst.msk [vmem:[#allocation2 + $0xec] sm:$0xf] %vm3291, %v6579
    %6644 = vst.msk [vmem:[#allocation2 + $0xf8] sm:$0xf] %vm3291, %v6580
    %6645 = vst.msk [vmem:[#allocation2 + $0x104] sm:$0xf] %vm3291, %v6581
    %6646 = vst.msk [vmem:[#allocation2 + $0x110] sm:$0xf] %vm3291, %v6582
    %6647 = vst.msk [vmem:[#allocation2 + $0x11c] sm:$0xf] %vm3291, %v6583
    %6648 = vst.msk [vmem:[#allocation2 + $0x128] sm:$0xf] %vm3291, %v6584
    %6649 = vst.msk [vmem:[#allocation2 + $0x134] sm:$0xf] %vm3291, %v6585
    %6650 = vst.msk [vmem:[#allocation2 + $0x140] sm:$0xf] %vm3291, %v6586
    %6651 = vst.msk [vmem:[#allocation2 + $0x14c] sm:$0xf] %vm3291, %v6587
    %6652 = vst.msk [vmem:[#allocation2 + $0x158] sm:$0xf] %vm3291, %v6588
    %6653 = vst.msk [vmem:[#allocation2 + $0x164] sm:$0xf] %vm3291, %v6589
    %6654 = vst.msk [vmem:[#allocation2 + $0x170] sm:$0xf] %vm3291, %v6590
    %6655 = vst.msk [vmem:[#allocation2 + $0x17c] sm:$0xf] %vm3291, %v6591
    %6656 = vst.msk [vmem:[#allocation2 + $0x188] sm:$0xf] %vm3291, %v6592
    %6657 = vst.msk [vmem:[#allocation2 + $0x194] sm:$0xf] %vm3291, %v6593
    %6658 = vst.msk [vmem:[#allocation2 + $0x1a0] sm:$0xf] %vm3291, %v6594
    %6659 = vst.msk [vmem:[#allocation2 + $0x1ac] sm:$0xf] %vm3291, %v6595
    %6660 = vst.msk [vmem:[#allocation2 + $0x1b8] sm:$0xf] %vm3291, %v6596
    %6661 = vst.msk [vmem:[#allocation2 + $0x1c4] sm:$0xf] %vm3291, %v6597
    %6662 = vst.msk [vmem:[#allocation2 + $0x1d0] sm:$0xf] %vm3291, %v6598
    %6663 = vst.msk [vmem:[#allocation2 + $0x1dc] sm:$0xf] %vm3291, %v6599
    %6664 = vst.msk [vmem:[#allocation2 + $0x1e8] sm:$0xf] %vm3291, %v6600
    %6665 = vst.msk [vmem:[#allocation2 + $0x1f4] sm:$0xf] %vm3291, %v6601
    %6666 = vst.msk [vmem:[#allocation2 + $0x200] sm:$0xf] %vm3291, %v6602
    %6667 = vst.msk [vmem:[#allocation2 + $0x20c] sm:$0xf] %vm3291, %v6603
    %6668 = vst.msk [vmem:[#allocation2 + $0x218] sm:$0xf] %vm3291, %v6604
    %6669 = vst.msk [vmem:[#allocation2 + $0x224] sm:$0xf] %vm3291, %v6605
    %6670 = vst.msk [vmem:[#allocation2 + $0x230] sm:$0xf] %vm3291, %v6606
    %6671 = vst.msk [vmem:[#allocation2 + $0x23c] sm:$0xf] %vm3291, %v6607
    %6672 = vst.msk [vmem:[#allocation2 + $0x248] sm:$0xf] %vm3291, %v6608
    %6673 = vst.msk [vmem:[#allocation2 + $0x254] sm:$0xf] %vm3291, %v6609
    %6674 = vst.msk [vmem:[#allocation2 + $0x260] sm:$0xf] %vm3291, %v6610
    %6675 = vst.msk [vmem:[#allocation2 + $0x26c] sm:$0xf] %vm3291, %v6611
    %6676 = vst.msk [vmem:[#allocation2 + $0x278] sm:$0xf] %vm3291, %v6612
    %6677 = vst.msk [vmem:[#allocation2 + $0x284] sm:$0xf] %vm3291, %v6613
    %6678 = vst.msk [vmem:[#allocation2 + $0x290] sm:$0xf] %vm3291, %v6614
    %6679 = vst.msk [vmem:[#allocation2 + $0x29c] sm:$0xf] %vm3291, %v6615
    %6680 = vst.msk [vmem:[#allocation2 + $0x2a8] sm:$0xf] %vm3291, %v6616
    %6681 = vst.msk [vmem:[#allocation2 + $0x2b4] sm:$0xf] %vm3291, %v6617
    %6682 = vst.msk [vmem:[#allocation2 + $0x2c0] sm:$0xf] %vm3291, %v6618
    %6683 = vst.msk [vmem:[#allocation2 + $0x2cc] sm:$0xf] %vm3291, %v6619
    %6684 = vst.msk [vmem:[#allocation2 + $0x2d8] sm:$0xf] %vm3291, %v6620
    %6685 = vst.msk [vmem:[#allocation2 + $0x2e4] sm:$0xf] %vm3291, %v6621
    %6686 = vst.msk [vmem:[#allocation2 + $0x2f0] sm:$0xf] %vm3291, %v6622
    %6687 = vst.msk [vmem:[#allocation2 + $0x2fc] sm:$0xf] %vm3291, %v6623
    %v6688 = vld [vmem:[#allocation2] sm:$0xff]
    %v6689 = vld [vmem:[#allocation2 + $0x8] sm:$0xf]
    %v6690 = vld [vmem:[#allocation2 + $0xc] sm:$0xff]
    %v6691 = vld [vmem:[#allocation2 + $0x14] sm:$0xf]
    %v6692 = vld [vmem:[#allocation2 + $0x18] sm:$0xff]
    %v6693 = vld [vmem:[#allocation2 + $0x20] sm:$0xf]
    %v6694 = vld [vmem:[#allocation2 + $0x24] sm:$0xff]
    %v6695 = vld [vmem:[#allocation2 + $0x2c] sm:$0xf]
    %v6696 = vld [vmem:[#allocation2 + $0x30] sm:$0xff]
    %v6697 = vld [vmem:[#allocation2 + $0x38] sm:$0xf]
    %v6698 = vld [vmem:[#allocation2 + $0x3c] sm:$0xff]
    %v6699 = vld [vmem:[#allocation2 + $0x44] sm:$0xf]
    %v6700 = vld [vmem:[#allocation2 + $0x48] sm:$0xff]
    %v6701 = vld [vmem:[#allocation2 + $0x50] sm:$0xf]
    %v6702 = vld [vmem:[#allocation2 + $0x54] sm:$0xff]
    %v6703 = vld [vmem:[#allocation2 + $0x5c] sm:$0xf]
    %v6704 = vld [vmem:[#allocation2 + $0x60] sm:$0xff]
    %v6705 = vld [vmem:[#allocation2 + $0x68] sm:$0xf]
    %v6706 = vld [vmem:[#allocation2 + $0x6c] sm:$0xff]
    %v6707 = vld [vmem:[#allocation2 + $0x74] sm:$0xf]
    %v6708 = vld [vmem:[#allocation2 + $0x78] sm:$0xff]
    %v6709 = vld [vmem:[#allocation2 + $0x80] sm:$0xf]
    %v6710 = vld [vmem:[#allocation2 + $0x84] sm:$0xff]
    %v6711 = vld [vmem:[#allocation2 + $0x8c] sm:$0xf]
    %v6712 = vld [vmem:[#allocation2 + $0x90] sm:$0xff]
    %v6713 = vld [vmem:[#allocation2 + $0x98] sm:$0xf]
    %v6714 = vld [vmem:[#allocation2 + $0x9c] sm:$0xff]
    %v6715 = vld [vmem:[#allocation2 + $0xa4] sm:$0xf]
    %v6716 = vld [vmem:[#allocation2 + $0xa8] sm:$0xff]
    %v6717 = vld [vmem:[#allocation2 + $0xb0] sm:$0xf]
    %v6718 = vld [vmem:[#allocation2 + $0xb4] sm:$0xff]
    %v6719 = vld [vmem:[#allocation2 + $0xbc] sm:$0xf]
    %v6720 = vld [vmem:[#allocation2 + $0xc0] sm:$0xff]
    %v6721 = vld [vmem:[#allocation2 + $0xc8] sm:$0xf]
    %v6722 = vld [vmem:[#allocation2 + $0xcc] sm:$0xff]
    %v6723 = vld [vmem:[#allocation2 + $0xd4] sm:$0xf]
    %v6724 = vld [vmem:[#allocation2 + $0xd8] sm:$0xff]
    %v6725 = vld [vmem:[#allocation2 + $0xe0] sm:$0xf]
    %v6726 = vld [vmem:[#allocation2 + $0xe4] sm:$0xff]
    %v6727 = vld [vmem:[#allocation2 + $0xec] sm:$0xf]
    %v6728 = vld [vmem:[#allocation2 + $0xf0] sm:$0xff]
    %v6729 = vld [vmem:[#allocation2 + $0xf8] sm:$0xf]
    %v6730 = vld [vmem:[#allocation2 + $0xfc] sm:$0xff]
    %v6731 = vld [vmem:[#allocation2 + $0x104] sm:$0xf]
    %v6732 = vld [vmem:[#allocation2 + $0x108] sm:$0xff]
    %v6733 = vld [vmem:[#allocation2 + $0x110] sm:$0xf]
    %v6734 = vld [vmem:[#allocation2 + $0x114] sm:$0xff]
    %v6735 = vld [vmem:[#allocation2 + $0x11c] sm:$0xf]
    %v6736 = vld [vmem:[#allocation2 + $0x120] sm:$0xff]
    %v6737 = vld [vmem:[#allocation2 + $0x128] sm:$0xf]
    %v6738 = vld [vmem:[#allocation2 + $0x12c] sm:$0xff]
    %v6739 = vld [vmem:[#allocation2 + $0x134] sm:$0xf]
    %v6740 = vld [vmem:[#allocation2 + $0x138] sm:$0xff]
    %v6741 = vld [vmem:[#allocation2 + $0x140] sm:$0xf]
    %v6742 = vld [vmem:[#allocation2 + $0x144] sm:$0xff]
    %v6743 = vld [vmem:[#allocation2 + $0x14c] sm:$0xf]
    %v6744 = vld [vmem:[#allocation2 + $0x150] sm:$0xff]
    %v6745 = vld [vmem:[#allocation2 + $0x158] sm:$0xf]
    %v6746 = vld [vmem:[#allocation2 + $0x15c] sm:$0xff]
    %v6747 = vld [vmem:[#allocation2 + $0x164] sm:$0xf]
    %v6748 = vld [vmem:[#allocation2 + $0x168] sm:$0xff]
    %v6749 = vld [vmem:[#allocation2 + $0x170] sm:$0xf]
    %v6750 = vld [vmem:[#allocation2 + $0x174] sm:$0xff]
    %v6751 = vld [vmem:[#allocation2 + $0x17c] sm:$0xf]
    %v6752 = vld [vmem:[#allocation2 + $0x180] sm:$0xff]
    %v6753 = vld [vmem:[#allocation2 + $0x188] sm:$0xf]
    %v6754 = vld [vmem:[#allocation2 + $0x18c] sm:$0xff]
    %v6755 = vld [vmem:[#allocation2 + $0x194] sm:$0xf]
    %v6756 = vld [vmem:[#allocation2 + $0x198] sm:$0xff]
    %v6757 = vld [vmem:[#allocation2 + $0x1a0] sm:$0xf]
    %v6758 = vld [vmem:[#allocation2 + $0x1a4] sm:$0xff]
    %v6759 = vld [vmem:[#allocation2 + $0x1ac] sm:$0xf]
    %v6760 = vld [vmem:[#allocation2 + $0x1b0] sm:$0xff]
    %v6761 = vld [vmem:[#allocation2 + $0x1b8] sm:$0xf]
    %v6762 = vld [vmem:[#allocation2 + $0x1bc] sm:$0xff]
    %v6763 = vld [vmem:[#allocation2 + $0x1c4] sm:$0xf]
    %v6764 = vld [vmem:[#allocation2 + $0x1c8] sm:$0xff]
    %v6765 = vld [vmem:[#allocation2 + $0x1d0] sm:$0xf]
    %v6766 = vld [vmem:[#allocation2 + $0x1d4] sm:$0xff]
    %v6767 = vld [vmem:[#allocation2 + $0x1dc] sm:$0xf]
    %v6768 = vld [vmem:[#allocation2 + $0x1e0] sm:$0xff]
    %v6769 = vld [vmem:[#allocation2 + $0x1e8] sm:$0xf]
    %v6770 = vld [vmem:[#allocation2 + $0x1ec] sm:$0xff]
    %v6771 = vld [vmem:[#allocation2 + $0x1f4] sm:$0xf]
    %v6772 = vld [vmem:[#allocation2 + $0x1f8] sm:$0xff]
    %v6773 = vld [vmem:[#allocation2 + $0x200] sm:$0xf]
    %v6774 = vld [vmem:[#allocation2 + $0x204] sm:$0xff]
    %v6775 = vld [vmem:[#allocation2 + $0x20c] sm:$0xf]
    %v6776 = vld [vmem:[#allocation2 + $0x210] sm:$0xff]
    %v6777 = vld [vmem:[#allocation2 + $0x218] sm:$0xf]
    %v6778 = vld [vmem:[#allocation2 + $0x21c] sm:$0xff]
    %v6779 = vld [vmem:[#allocation2 + $0x224] sm:$0xf]
    %v6780 = vld [vmem:[#allocation2 + $0x228] sm:$0xff]
    %v6781 = vld [vmem:[#allocation2 + $0x230] sm:$0xf]
    %v6782 = vld [vmem:[#allocation2 + $0x234] sm:$0xff]
    %v6783 = vld [vmem:[#allocation2 + $0x23c] sm:$0xf]
    %v6784 = vld [vmem:[#allocation2 + $0x240] sm:$0xff]
    %v6785 = vld [vmem:[#allocation2 + $0x248] sm:$0xf]
    %v6786 = vld [vmem:[#allocation2 + $0x24c] sm:$0xff]
    %v6787 = vld [vmem:[#allocation2 + $0x254] sm:$0xf]
    %v6788 = vld [vmem:[#allocation2 + $0x258] sm:$0xff]
    %v6789 = vld [vmem:[#allocation2 + $0x260] sm:$0xf]
    %v6790 = vld [vmem:[#allocation2 + $0x264] sm:$0xff]
    %v6791 = vld [vmem:[#allocation2 + $0x26c] sm:$0xf]
    %v6792 = vld [vmem:[#allocation2 + $0x270] sm:$0xff]
    %v6793 = vld [vmem:[#allocation2 + $0x278] sm:$0xf]
    %v6794 = vld [vmem:[#allocation2 + $0x27c] sm:$0xff]
    %v6795 = vld [vmem:[#allocation2 + $0x284] sm:$0xf]
    %v6796 = vld [vmem:[#allocation2 + $0x288] sm:$0xff]
    %v6797 = vld [vmem:[#allocation2 + $0x290] sm:$0xf]
    %v6798 = vld [vmem:[#allocation2 + $0x294] sm:$0xff]
    %v6799 = vld [vmem:[#allocation2 + $0x29c] sm:$0xf]
    %v6800 = vld [vmem:[#allocation2 + $0x2a0] sm:$0xff]
    %v6801 = vld [vmem:[#allocation2 + $0x2a8] sm:$0xf]
    %v6802 = vld [vmem:[#allocation2 + $0x2ac] sm:$0xff]
    %v6803 = vld [vmem:[#allocation2 + $0x2b4] sm:$0xf]
    %v6804 = vld [vmem:[#allocation2 + $0x2b8] sm:$0xff]
    %v6805 = vld [vmem:[#allocation2 + $0x2c0] sm:$0xf]
    %v6806 = vld [vmem:[#allocation2 + $0x2c4] sm:$0xff]
    %v6807 = vld [vmem:[#allocation2 + $0x2cc] sm:$0xf]
    %v6808 = vld [vmem:[#allocation2 + $0x2d0] sm:$0xff]
    %v6809 = vld [vmem:[#allocation2 + $0x2d8] sm:$0xf]
    %v6810 = vld [vmem:[#allocation2 + $0x2dc] sm:$0xff]
    %v6811 = vld [vmem:[#allocation2 + $0x2e4] sm:$0xf]
    %v6812 = vld [vmem:[#allocation2 + $0x2e8] sm:$0xff]
    %v6813 = vld [vmem:[#allocation2 + $0x2f0] sm:$0xf]
    %v6814 = vld [vmem:[#allocation2 + $0x2f4] sm:$0xff]
    %v6815 = vld [vmem:[#allocation2 + $0x2fc] sm:$0xf]
    %v6816 = vld [vmem:[%s3] sm:$0xf]
    %v6817 = vld [vmem:[%s3 + $0x4] sm:$0xf]
    %v6818 = vld [vmem:[%s3 + $0x8] sm:$0xf]
    %v6819 = vld [vmem:[%s3 + $0xc] sm:$0xf]
    %v6820 = vld [vmem:[%s3 + $0x10] sm:$0xf]
    %v6821 = vld [vmem:[%s3 + $0x14] sm:$0xf]
    %v6822 = vld [vmem:[%s3 + $0x18] sm:$0xf]
    %v6823 = vld [vmem:[%s3 + $0x1c] sm:$0xf]
    %v6824 = vld [vmem:[%s3 + $0x20] sm:$0xf]
    %v6825 = vld [vmem:[%s3 + $0x24] sm:$0xf]
    %v6826 = vld [vmem:[%s3 + $0x28] sm:$0xf]
    %v6827 = vld [vmem:[%s3 + $0x2c] sm:$0xf]
    %v6828 = vld [vmem:[%s3 + $0x30] sm:$0xf]
    %v6829 = vld [vmem:[%s3 + $0x34] sm:$0xf]
    %v6830 = vld [vmem:[%s3 + $0x38] sm:$0xf]
    %v6831 = vld [vmem:[%s3 + $0x3c] sm:$0xf]
    %v6832 = vld [vmem:[%s3 + $0x40] sm:$0xf]
    %v6833 = vld [vmem:[%s3 + $0x44] sm:$0xf]
    %v6834 = vld [vmem:[%s3 + $0x48] sm:$0xf]
    %v6835 = vld [vmem:[%s3 + $0x4c] sm:$0xf]
    %v6836 = vld [vmem:[%s3 + $0x50] sm:$0xf]
    %v6837 = vld [vmem:[%s3 + $0x54] sm:$0xf]
    %v6838 = vld [vmem:[%s3 + $0x58] sm:$0xf]
    %v6839 = vld [vmem:[%s3 + $0x5c] sm:$0xf]
    %v6840 = vld [vmem:[%s3 + $0x60] sm:$0xf]
    %v6841 = vld [vmem:[%s3 + $0x64] sm:$0xf]
    %v6842 = vld [vmem:[%s3 + $0x68] sm:$0xf]
    %v6843 = vld [vmem:[%s3 + $0x6c] sm:$0xf]
    %v6844 = vld [vmem:[%s3 + $0x70] sm:$0xf]
    %v6845 = vld [vmem:[%s3 + $0x74] sm:$0xf]
    %v6846 = vld [vmem:[%s3 + $0x78] sm:$0xf]
    %v6847 = vld [vmem:[%s3 + $0x7c] sm:$0xf]
    %v6848 = vld [vmem:[%s3 + $0x80] sm:$0xf]
    %v6849 = vld [vmem:[%s3 + $0x84] sm:$0xf]
    %v6850 = vld [vmem:[%s3 + $0x88] sm:$0xf]
    %v6851 = vld [vmem:[%s3 + $0x8c] sm:$0xf]
    %v6852 = vld [vmem:[%s4] sm:$0x1]
    %v6854 = vperm.slane %v6852, 0
    %v6984 = vunpack.c.l.b16 %v6688
    %v6985 = vunpack.c.h.b16 %v6688
    %v6986 = vunpack.c.l.b16 %v6689
    %v6987 = vunpack.c.l.b16 %v6690
    %v6988 = vunpack.c.h.b16 %v6690
    %v6989 = vunpack.c.l.b16 %v6691
    %v6990 = vunpack.c.l.b16 %v6692
    %v6991 = vunpack.c.h.b16 %v6692
    %v6992 = vunpack.c.l.b16 %v6693
    %v6993 = vunpack.c.l.b16 %v6694
    %v6994 = vunpack.c.h.b16 %v6694
    %v6995 = vunpack.c.l.b16 %v6695
    %v6996 = vunpack.c.l.b16 %v6696
    %v6997 = vunpack.c.h.b16 %v6696
    %v6998 = vunpack.c.l.b16 %v6697
    %v6999 = vunpack.c.l.b16 %v6698
    %v7000 = vunpack.c.h.b16 %v6698
    %v7001 = vunpack.c.l.b16 %v6699
    %v7002 = vunpack.c.l.b16 %v6700
    %v7003 = vunpack.c.h.b16 %v6700
    %v7004 = vunpack.c.l.b16 %v6701
    %v7005 = vunpack.c.l.b16 %v6702
    %v7006 = vunpack.c.h.b16 %v6702
    %v7007 = vunpack.c.l.b16 %v6703
    %v7008 = vunpack.c.l.b16 %v6704
    %v7009 = vunpack.c.h.b16 %v6704
    %v7010 = vunpack.c.l.b16 %v6705
    %v7011 = vunpack.c.l.b16 %v6706
    %v7012 = vunpack.c.h.b16 %v6706
    %v7013 = vunpack.c.l.b16 %v6707
    %v7014 = vunpack.c.l.b16 %v6708
    %v7015 = vunpack.c.h.b16 %v6708
    %v7016 = vunpack.c.l.b16 %v6709
    %v7017 = vunpack.c.l.b16 %v6710
    %v7018 = vunpack.c.h.b16 %v6710
    %v7019 = vunpack.c.l.b16 %v6711
    %v7020 = vunpack.c.l.b16 %v6712
    %v7021 = vunpack.c.h.b16 %v6712
    %v7022 = vunpack.c.l.b16 %v6713
    %v7023 = vunpack.c.l.b16 %v6714
    %v7024 = vunpack.c.h.b16 %v6714
    %v7025 = vunpack.c.l.b16 %v6715
    %v7026 = vunpack.c.l.b16 %v6716
    %v7027 = vunpack.c.h.b16 %v6716
    %v7028 = vunpack.c.l.b16 %v6717
    %v7029 = vunpack.c.l.b16 %v6718
    %v7030 = vunpack.c.h.b16 %v6718
    %v7031 = vunpack.c.l.b16 %v6719
    %v7032 = vunpack.c.l.b16 %v6720
    %v7033 = vunpack.c.h.b16 %v6720
    %v7034 = vunpack.c.l.b16 %v6721
    %v7035 = vunpack.c.l.b16 %v6722
    %v7036 = vunpack.c.h.b16 %v6722
    %v7037 = vunpack.c.l.b16 %v6723
    %v7038 = vunpack.c.l.b16 %v6724
    %v7039 = vunpack.c.h.b16 %v6724
    %v7040 = vunpack.c.l.b16 %v6725
    %v7041 = vunpack.c.l.b16 %v6726
    %v7042 = vunpack.c.h.b16 %v6726
    %v7043 = vunpack.c.l.b16 %v6727
    %v7044 = vunpack.c.l.b16 %v6728
    %v7045 = vunpack.c.h.b16 %v6728
    %v7046 = vunpack.c.l.b16 %v6729
    %v7047 = vunpack.c.l.b16 %v6730
    %v7048 = vunpack.c.h.b16 %v6730
    %v7049 = vunpack.c.l.b16 %v6731
    %v7050 = vunpack.c.l.b16 %v6732
    %v7051 = vunpack.c.h.b16 %v6732
    %v7052 = vunpack.c.l.b16 %v6733
    %v7053 = vunpack.c.l.b16 %v6734
    %v7054 = vunpack.c.h.b16 %v6734
    %v7055 = vunpack.c.l.b16 %v6735
    %v7056 = vunpack.c.l.b16 %v6736
    %v7057 = vunpack.c.h.b16 %v6736
    %v7058 = vunpack.c.l.b16 %v6737
    %v7059 = vunpack.c.l.b16 %v6738
    %v7060 = vunpack.c.h.b16 %v6738
    %v7061 = vunpack.c.l.b16 %v6739
    %v7062 = vunpack.c.l.b16 %v6740
    %v7063 = vunpack.c.h.b16 %v6740
    %v7064 = vunpack.c.l.b16 %v6741
    %v7065 = vunpack.c.l.b16 %v6742
    %v7066 = vunpack.c.h.b16 %v6742
    %v7067 = vunpack.c.l.b16 %v6743
    %v7068 = vunpack.c.l.b16 %v6744
    %v7069 = vunpack.c.h.b16 %v6744
    %v7070 = vunpack.c.l.b16 %v6745
    %v7071 = vunpack.c.l.b16 %v6746
    %v7072 = vunpack.c.h.b16 %v6746
    %v7073 = vunpack.c.l.b16 %v6747
    %v7074 = vunpack.c.l.b16 %v6748
    %v7075 = vunpack.c.h.b16 %v6748
    %v7076 = vunpack.c.l.b16 %v6749
    %v7077 = vunpack.c.l.b16 %v6750
    %v7078 = vunpack.c.h.b16 %v6750
    %v7079 = vunpack.c.l.b16 %v6751
    %v7080 = vunpack.c.l.b16 %v6752
    %v7081 = vunpack.c.h.b16 %v6752
    %v7082 = vunpack.c.l.b16 %v6753
    %v7083 = vunpack.c.l.b16 %v6754
    %v7084 = vunpack.c.h.b16 %v6754
    %v7085 = vunpack.c.l.b16 %v6755
    %v7086 = vunpack.c.l.b16 %v6756
    %v7087 = vunpack.c.h.b16 %v6756
    %v7088 = vunpack.c.l.b16 %v6757
    %v7089 = vunpack.c.l.b16 %v6758
    %v7090 = vunpack.c.h.b16 %v6758
    %v7091 = vunpack.c.l.b16 %v6759
    %v7092 = vunpack.c.l.b16 %v6760
    %v7093 = vunpack.c.h.b16 %v6760
    %v7094 = vunpack.c.l.b16 %v6761
    %v7095 = vunpack.c.l.b16 %v6762
    %v7096 = vunpack.c.h.b16 %v6762
    %v7097 = vunpack.c.l.b16 %v6763
    %v7098 = vunpack.c.l.b16 %v6764
    %v7099 = vunpack.c.h.b16 %v6764
    %v7100 = vunpack.c.l.b16 %v6765
    %v7101 = vunpack.c.l.b16 %v6766
    %v7102 = vunpack.c.h.b16 %v6766
    %v7103 = vunpack.c.l.b16 %v6767
    %v7104 = vunpack.c.l.b16 %v6768
    %v7105 = vunpack.c.h.b16 %v6768
    %v7106 = vunpack.c.l.b16 %v6769
    %v7107 = vunpack.c.l.b16 %v6770
    %v7108 = vunpack.c.h.b16 %v6770
    %v7109 = vunpack.c.l.b16 %v6771
    %v7110 = vunpack.c.l.b16 %v6772
    %v7111 = vunpack.c.h.b16 %v6772
    %v7112 = vunpack.c.l.b16 %v6773
    %v7113 = vunpack.c.l.b16 %v6774
    %v7114 = vunpack.c.h.b16 %v6774
    %v7115 = vunpack.c.l.b16 %v6775
    %v7116 = vunpack.c.l.b16 %v6776
    %v7117 = vunpack.c.h.b16 %v6776
    %v7118 = vunpack.c.l.b16 %v6777
    %v7119 = vunpack.c.l.b16 %v6778
    %v7120 = vunpack.c.h.b16 %v6778
    %v7121 = vunpack.c.l.b16 %v6779
    %v7122 = vunpack.c.l.b16 %v6780
    %v7123 = vunpack.c.h.b16 %v6780
    %v7124 = vunpack.c.l.b16 %v6781
    %v7125 = vunpack.c.l.b16 %v6782
    %v7126 = vunpack.c.h.b16 %v6782
    %v7127 = vunpack.c.l.b16 %v6783
    %v7128 = vunpack.c.l.b16 %v6784
    %v7129 = vunpack.c.h.b16 %v6784
    %v7130 = vunpack.c.l.b16 %v6785
    %v7131 = vunpack.c.l.b16 %v6786
    %v7132 = vunpack.c.h.b16 %v6786
    %v7133 = vunpack.c.l.b16 %v6787
    %v7134 = vunpack.c.l.b16 %v6788
    %v7135 = vunpack.c.h.b16 %v6788
    %v7136 = vunpack.c.l.b16 %v6789
    %v7137 = vunpack.c.l.b16 %v6790
    %v7138 = vunpack.c.h.b16 %v6790
    %v7139 = vunpack.c.l.b16 %v6791
    %v7140 = vunpack.c.l.b16 %v6792
    %v7141 = vunpack.c.h.b16 %v6792
    %v7142 = vunpack.c.l.b16 %v6793
    %v7143 = vunpack.c.l.b16 %v6794
    %v7144 = vunpack.c.h.b16 %v6794
    %v7145 = vunpack.c.l.b16 %v6795
    %v7146 = vunpack.c.l.b16 %v6796
    %v7147 = vunpack.c.h.b16 %v6796
    %v7148 = vunpack.c.l.b16 %v6797
    %v7149 = vunpack.c.l.b16 %v6798
    %v7150 = vunpack.c.h.b16 %v6798
    %v7151 = vunpack.c.l.b16 %v6799
    %v7152 = vunpack.c.l.b16 %v6800
    %v7153 = vunpack.c.h.b16 %v6800
    %v7154 = vunpack.c.l.b16 %v6801
    %v7155 = vunpack.c.l.b16 %v6802
    %v7156 = vunpack.c.h.b16 %v6802
    %v7157 = vunpack.c.l.b16 %v6803
    %v7158 = vunpack.c.l.b16 %v6804
    %v7159 = vunpack.c.h.b16 %v6804
    %v7160 = vunpack.c.l.b16 %v6805
    %v7161 = vunpack.c.l.b16 %v6806
    %v7162 = vunpack.c.h.b16 %v6806
    %v7163 = vunpack.c.l.b16 %v6807
    %v7164 = vunpack.c.l.b16 %v6808
    %v7165 = vunpack.c.h.b16 %v6808
    %v7166 = vunpack.c.l.b16 %v6809
    %v7167 = vunpack.c.l.b16 %v6810
    %v7168 = vunpack.c.h.b16 %v6810
    %v7169 = vunpack.c.l.b16 %v6811
    %v7170 = vunpack.c.l.b16 %v6812
    %v7171 = vunpack.c.h.b16 %v6812
    %v7172 = vunpack.c.l.b16 %v6813
    %v7173 = vunpack.c.l.b16 %v6814
    %v7174 = vunpack.c.h.b16 %v6814
    %v7175 = vunpack.c.l.b16 %v6815
    %v7176 = vpack.c.b16 %v6987, %v6984
    %v7177 = vpack.c.b16 %v6988, %v6985
    %v7178 = vpack.c.b16 %v6989, %v6986
    %v7179 = vpack.c.b16 %v6993, %v6990
    %v7180 = vpack.c.b16 %v6994, %v6991
    %v7181 = vpack.c.b16 %v6995, %v6992
    %v7182 = vpack.c.b16 %v6999, %v6996
    %v7183 = vpack.c.b16 %v7000, %v6997
    %v7184 = vpack.c.b16 %v7001, %v6998
    %v7185 = vpack.c.b16 %v7005, %v7002
    %v7186 = vpack.c.b16 %v7006, %v7003
    %v7187 = vpack.c.b16 %v7007, %v7004
    %v7188 = vpack.c.b16 %v7011, %v7008
    %v7189 = vpack.c.b16 %v7012, %v7009
    %v7190 = vpack.c.b16 %v7013, %v7010
    %v7191 = vpack.c.b16 %v7017, %v7014
    %v7192 = vpack.c.b16 %v7018, %v7015
    %v7193 = vpack.c.b16 %v7019, %v7016
    %v7194 = vpack.c.b16 %v7023, %v7020
    %v7195 = vpack.c.b16 %v7024, %v7021
    %v7196 = vpack.c.b16 %v7025, %v7022
    %v7197 = vpack.c.b16 %v7029, %v7026
    %v7198 = vpack.c.b16 %v7030, %v7027
    %v7199 = vpack.c.b16 %v7031, %v7028
    %v7200 = vpack.c.b16 %v7035, %v7032
    %v7201 = vpack.c.b16 %v7036, %v7033
    %v7202 = vpack.c.b16 %v7037, %v7034
    %v7203 = vpack.c.b16 %v7041, %v7038
    %v7204 = vpack.c.b16 %v7042, %v7039
    %v7205 = vpack.c.b16 %v7043, %v7040
    %v7206 = vpack.c.b16 %v7047, %v7044
    %v7207 = vpack.c.b16 %v7048, %v7045
    %v7208 = vpack.c.b16 %v7049, %v7046
    %v7209 = vpack.c.b16 %v7053, %v7050
    %v7210 = vpack.c.b16 %v7054, %v7051
    %v7211 = vpack.c.b16 %v7055, %v7052
    %v7212 = vpack.c.b16 %v7059, %v7056
    %v7213 = vpack.c.b16 %v7060, %v7057
    %v7214 = vpack.c.b16 %v7061, %v7058
    %v7215 = vpack.c.b16 %v7065, %v7062
    %v7216 = vpack.c.b16 %v7066, %v7063
    %v7217 = vpack.c.b16 %v7067, %v7064
    %v7218 = vpack.c.b16 %v7071, %v7068
    %v7219 = vpack.c.b16 %v7072, %v7069
    %v7220 = vpack.c.b16 %v7073, %v7070
    %v7221 = vpack.c.b16 %v7077, %v7074
    %v7222 = vpack.c.b16 %v7078, %v7075
    %v7223 = vpack.c.b16 %v7079, %v7076
    %v7224 = vpack.c.b16 %v7083, %v7080
    %v7225 = vpack.c.b16 %v7084, %v7081
    %v7226 = vpack.c.b16 %v7085, %v7082
    %v7227 = vpack.c.b16 %v7089, %v7086
    %v7228 = vpack.c.b16 %v7090, %v7087
    %v7229 = vpack.c.b16 %v7091, %v7088
    %v7230 = vpack.c.b16 %v7095, %v7092
    %v7231 = vpack.c.b16 %v7096, %v7093
    %v7232 = vpack.c.b16 %v7097, %v7094
    %v7233 = vpack.c.b16 %v7101, %v7098
    %v7234 = vpack.c.b16 %v7102, %v7099
    %v7235 = vpack.c.b16 %v7103, %v7100
    %v7236 = vpack.c.b16 %v7107, %v7104
    %v7237 = vpack.c.b16 %v7108, %v7105
    %v7238 = vpack.c.b16 %v7109, %v7106
    %v7239 = vpack.c.b16 %v7113, %v7110
    %v7240 = vpack.c.b16 %v7114, %v7111
    %v7241 = vpack.c.b16 %v7115, %v7112
    %v7242 = vpack.c.b16 %v7119, %v7116
    %v7243 = vpack.c.b16 %v7120, %v7117
    %v7244 = vpack.c.b16 %v7121, %v7118
    %v7245 = vpack.c.b16 %v7125, %v7122
    %v7246 = vpack.c.b16 %v7126, %v7123
    %v7247 = vpack.c.b16 %v7127, %v7124
    %v7248 = vpack.c.b16 %v7131, %v7128
    %v7249 = vpack.c.b16 %v7132, %v7129
    %v7250 = vpack.c.b16 %v7133, %v7130
    %v7251 = vpack.c.b16 %v7137, %v7134
    %v7252 = vpack.c.b16 %v7138, %v7135
    %v7253 = vpack.c.b16 %v7139, %v7136
    %v7254 = vpack.c.b16 %v7143, %v7140
    %v7255 = vpack.c.b16 %v7144, %v7141
    %v7256 = vpack.c.b16 %v7145, %v7142
    %v7257 = vpack.c.b16 %v7149, %v7146
    %v7258 = vpack.c.b16 %v7150, %v7147
    %v7259 = vpack.c.b16 %v7151, %v7148
    %v7260 = vpack.c.b16 %v7155, %v7152
    %v7261 = vpack.c.b16 %v7156, %v7153
    %v7262 = vpack.c.b16 %v7157, %v7154
    %v7263 = vpack.c.b16 %v7161, %v7158
    %v7264 = vpack.c.b16 %v7162, %v7159
    %v7265 = vpack.c.b16 %v7163, %v7160
    %v7266 = vpack.c.b16 %v7167, %v7164
    %v7267 = vpack.c.b16 %v7168, %v7165
    %v7268 = vpack.c.b16 %v7169, %v7166
    %v7269 = vpack.c.b16 %v7173, %v7170
    %v7270 = vpack.c.b16 %v7174, %v7171
    %v7271 = vpack.c.b16 %v7175, %v7172
    %v7372 = vunpack.c.l.b16 %v6816
    %v7373 = vunpack.c.l.b16 %v6817
    %v7374 = vunpack.c.l.b16 %v6818
    %v7375 = vunpack.c.l.b16 %v6819
    %v7376 = vunpack.c.l.b16 %v6820
    %v7377 = vunpack.c.l.b16 %v6821
    %v7378 = vunpack.c.l.b16 %v6822
    %v7379 = vunpack.c.l.b16 %v6823
    %v7380 = vunpack.c.l.b16 %v6824
    %v7381 = vunpack.c.l.b16 %v6825
    %v7382 = vunpack.c.l.b16 %v6826
    %v7383 = vunpack.c.l.b16 %v6827
    %v7384 = vunpack.c.l.b16 %v6828
    %v7385 = vunpack.c.l.b16 %v6829
    %v7386 = vunpack.c.l.b16 %v6830
    %v7387 = vunpack.c.l.b16 %v6831
    %v7388 = vunpack.c.l.b16 %v6832
    %v7389 = vunpack.c.l.b16 %v6833
    %v7390 = vunpack.c.l.b16 %v6834
    %v7391 = vunpack.c.l.b16 %v6835
    %v7392 = vunpack.c.l.b16 %v6836
    %v7393 = vunpack.c.l.b16 %v6837
    %v7394 = vunpack.c.l.b16 %v6838
    %v7395 = vunpack.c.l.b16 %v6839
    %v7396 = vunpack.c.l.b16 %v6840
    %v7397 = vunpack.c.l.b16 %v6841
    %v7398 = vunpack.c.l.b16 %v6842
    %v7399 = vunpack.c.l.b16 %v6843
    %v7400 = vunpack.c.l.b16 %v6844
    %v7401 = vunpack.c.l.b16 %v6845
    %v7402 = vunpack.c.l.b16 %v6846
    %v7403 = vunpack.c.l.b16 %v6847
    %v7404 = vunpack.c.l.b16 %v6848
    %v7405 = vunpack.c.l.b16 %v6849
    %v7406 = vunpack.c.l.b16 %v6850
    %v7407 = vunpack.c.l.b16 %v6851
    %v7408 = vpack.c.b16 %v7373, %v7372
    %v7409 = vpack.c.b16 %v7375, %v7374
    %v7410 = vpack.c.b16 %v7377, %v7376
    %v7411 = vpack.c.b16 %v7379, %v7378
    %v7412 = vpack.c.b16 %v7381, %v7380
    %v7413 = vpack.c.b16 %v7383, %v7382
    %v7414 = vpack.c.b16 %v7385, %v7384
    %v7415 = vpack.c.b16 %v7387, %v7386
    %v7416 = vpack.c.b16 %v7389, %v7388
    %v7417 = vpack.c.b16 %v7391, %v7390
    %v7418 = vpack.c.b16 %v7393, %v7392
    %v7419 = vpack.c.b16 %v7395, %v7394
    %v7420 = vpack.c.b16 %v7397, %v7396
    %v7421 = vpack.c.b16 %v7399, %v7398
    %v7422 = vpack.c.b16 %v7401, %v7400
    %v7423 = vpack.c.b16 %v7403, %v7402
    %v7424 = vpack.c.b16 %v7405, %v7404
    %v7425 = vpack.c.b16 %v7407, %v7406
    %vm7444 = vcmask 261120
    %v7446 = vsel %vm7444, %v7178, 0
    %v7449 = vsel %vm7444, %v7181, 0
    %v7452 = vsel %vm7444, %v7184, 0
    %v7455 = vsel %vm7444, %v7187, 0
    %v7458 = vsel %vm7444, %v7190, 0
    %v7461 = vsel %vm7444, %v7193, 0
    %v7464 = vsel %vm7444, %v7196, 0
    %v7467 = vsel %vm7444, %v7199, 0
    %v7470 = vsel %vm7444, %v7202, 0
    %v7473 = vsel %vm7444, %v7205, 0
    %v7476 = vsel %vm7444, %v7208, 0
    %v7479 = vsel %vm7444, %v7211, 0
    %v7482 = vsel %vm7444, %v7214, 0
    %v7485 = vsel %vm7444, %v7217, 0
    %v7488 = vsel %vm7444, %v7220, 0
    %v7491 = vsel %vm7444, %v7223, 0
    %v7494 = vsel %vm7444, %v7226, 0
    %v7497 = vsel %vm7444, %v7229, 0
    %v7500 = vsel %vm7444, %v7232, 0
    %v7503 = vsel %vm7444, %v7235, 0
    %v7506 = vsel %vm7444, %v7238, 0
    %v7509 = vsel %vm7444, %v7241, 0
    %v7512 = vsel %vm7444, %v7244, 0
    %v7515 = vsel %vm7444, %v7247, 0
    %v7518 = vsel %vm7444, %v7250, 0
    %v7521 = vsel %vm7444, %v7253, 0
    %v7524 = vsel %vm7444, %v7256, 0
    %v7527 = vsel %vm7444, %v7259, 0
    %v7530 = vsel %vm7444, %v7262, 0
    %v7533 = vsel %vm7444, %v7265, 0
    %v7536 = vsel %vm7444, %v7268, 0
    %v7539 = vsel %vm7444, %v7271, 0
    %7541 = vmatpush.bf16.msra.mxu0 %v7415
    %7542 = vmatpush.bf16.msra.mxu0 %v7414
    %7543 = vmatpush.bf16.msra.mxu0 %v7413
    %7544 = vmatpush.bf16.msra.mxu0 %v7412
    %7545 = vmatpush.bf16.msra.mxu0 %v7411
    %7546 = vmatpush.bf16.msra.mxu0 %v7410
    %7547 = vmatpush.bf16.msra.mxu0 %v7409
    %7548 = vmatpush.bf16.msra.mxu0 %v7408
    %7549 = vmatmul.bf16.gmra.mxu0 %v7176
    %v7550 = vpop.f32.mrf.mxu0
    %v7551 = vadd.f32 %v6854, %v7550
    %v7552 = vpop.f32.mrf.mxu0
    %v7553 = vadd.f32 %v6854, %v7552
    %7554 = vmatmul.bf16.gmra.mxu0 %v7179
    %v7555 = vpop.f32.mrf.mxu0
    %v7556 = vadd.f32 %v6854, %v7555
    %v7557 = vpop.f32.mrf.mxu0
    %v7558 = vadd.f32 %v6854, %v7557
    %7559 = vmatmul.bf16.gmra.mxu0 %v7182
    %v7560 = vpop.f32.mrf.mxu0
    %v7561 = vadd.f32 %v6854, %v7560
    %v7562 = vpop.f32.mrf.mxu0
    %v7563 = vadd.f32 %v6854, %v7562
    %7564 = vmatmul.bf16.gmra.mxu0 %v7185
    %v7565 = vpop.f32.mrf.mxu0
    %v7566 = vadd.f32 %v6854, %v7565
    %v7567 = vpop.f32.mrf.mxu0
    %v7568 = vadd.f32 %v6854, %v7567
    %7569 = vmatmul.bf16.gmra.mxu0 %v7188
    %v7570 = vpop.f32.mrf.mxu0
    %v7571 = vadd.f32 %v6854, %v7570
    %v7572 = vpop.f32.mrf.mxu0
    %v7573 = vadd.f32 %v6854, %v7572
    %7574 = vmatmul.bf16.gmra.mxu0 %v7191
    %v7575 = vpop.f32.mrf.mxu0
    %v7576 = vadd.f32 %v6854, %v7575
    %v7577 = vpop.f32.mrf.mxu0
    %v7578 = vadd.f32 %v6854, %v7577
    %7579 = vmatmul.bf16.gmra.mxu0 %v7194
    %v7580 = vpop.f32.mrf.mxu0
    %v7581 = vadd.f32 %v6854, %v7580
    %v7582 = vpop.f32.mrf.mxu0
    %v7583 = vadd.f32 %v6854, %v7582
    %7584 = vmatmul.bf16.gmra.mxu0 %v7197
    %v7585 = vpop.f32.mrf.mxu0
    %v7586 = vadd.f32 %v6854, %v7585
    %v7587 = vpop.f32.mrf.mxu0
    %v7588 = vadd.f32 %v6854, %v7587
    %7589 = vmatmul.bf16.gmra.mxu0 %v7200
    %v7590 = vpop.f32.mrf.mxu0
    %v7591 = vadd.f32 %v6854, %v7590
    %v7592 = vpop.f32.mrf.mxu0
    %v7593 = vadd.f32 %v6854, %v7592
    %7594 = vmatmul.bf16.gmra.mxu0 %v7203
    %v7595 = vpop.f32.mrf.mxu0
    %v7596 = vadd.f32 %v6854, %v7595
    %v7597 = vpop.f32.mrf.mxu0
    %v7598 = vadd.f32 %v6854, %v7597
    %7599 = vmatmul.bf16.gmra.mxu0 %v7206
    %v7600 = vpop.f32.mrf.mxu0
    %v7601 = vadd.f32 %v6854, %v7600
    %v7602 = vpop.f32.mrf.mxu0
    %v7603 = vadd.f32 %v6854, %v7602
    %7604 = vmatmul.bf16.gmra.mxu0 %v7209
    %v7605 = vpop.f32.mrf.mxu0
    %v7606 = vadd.f32 %v6854, %v7605
    %v7607 = vpop.f32.mrf.mxu0
    %v7608 = vadd.f32 %v6854, %v7607
    %7609 = vmatmul.bf16.gmra.mxu0 %v7212
    %v7610 = vpop.f32.mrf.mxu0
    %v7611 = vadd.f32 %v6854, %v7610
    %v7612 = vpop.f32.mrf.mxu0
    %v7613 = vadd.f32 %v6854, %v7612
    %7614 = vmatmul.bf16.gmra.mxu0 %v7215
    %v7615 = vpop.f32.mrf.mxu0
    %v7616 = vadd.f32 %v6854, %v7615
    %v7617 = vpop.f32.mrf.mxu0
    %v7618 = vadd.f32 %v6854, %v7617
    %7619 = vmatmul.bf16.gmra.mxu0 %v7218
    %v7620 = vpop.f32.mrf.mxu0
    %v7621 = vadd.f32 %v6854, %v7620
    %v7622 = vpop.f32.mrf.mxu0
    %v7623 = vadd.f32 %v6854, %v7622
    %7624 = vmatmul.bf16.gmra.mxu0 %v7221
    %v7625 = vpop.f32.mrf.mxu0
    %v7626 = vadd.f32 %v6854, %v7625
    %v7627 = vpop.f32.mrf.mxu0
    %v7628 = vadd.f32 %v6854, %v7627
    %7629 = vmatmul.bf16.gmra.mxu0 %v7224
    %v7630 = vpop.f32.mrf.mxu0
    %v7631 = vadd.f32 %v6854, %v7630
    %v7632 = vpop.f32.mrf.mxu0
    %v7633 = vadd.f32 %v6854, %v7632
    %7634 = vmatmul.bf16.gmra.mxu0 %v7227
    %v7635 = vpop.f32.mrf.mxu0
    %v7636 = vadd.f32 %v6854, %v7635
    %v7637 = vpop.f32.mrf.mxu0
    %v7638 = vadd.f32 %v6854, %v7637
    %7639 = vmatmul.bf16.gmra.mxu0 %v7230
    %v7640 = vpop.f32.mrf.mxu0
    %v7641 = vadd.f32 %v6854, %v7640
    %v7642 = vpop.f32.mrf.mxu0
    %v7643 = vadd.f32 %v6854, %v7642
    %7644 = vmatmul.bf16.gmra.mxu0 %v7233
    %v7645 = vpop.f32.mrf.mxu0
    %v7646 = vadd.f32 %v6854, %v7645
    %v7647 = vpop.f32.mrf.mxu0
    %v7648 = vadd.f32 %v6854, %v7647
    %7649 = vmatmul.bf16.gmra.mxu0 %v7236
    %v7650 = vpop.f32.mrf.mxu0
    %v7651 = vadd.f32 %v6854, %v7650
    %v7652 = vpop.f32.mrf.mxu0
    %v7653 = vadd.f32 %v6854, %v7652
    %7654 = vmatmul.bf16.gmra.mxu0 %v7239
    %v7655 = vpop.f32.mrf.mxu0
    %v7656 = vadd.f32 %v6854, %v7655
    %v7657 = vpop.f32.mrf.mxu0
    %v7658 = vadd.f32 %v6854, %v7657
    %7659 = vmatmul.bf16.gmra.mxu0 %v7242
    %v7660 = vpop.f32.mrf.mxu0
    %v7661 = vadd.f32 %v6854, %v7660
    %v7662 = vpop.f32.mrf.mxu0
    %v7663 = vadd.f32 %v6854, %v7662
    %7664 = vmatmul.bf16.gmra.mxu0 %v7245
    %v7665 = vpop.f32.mrf.mxu0
    %v7666 = vadd.f32 %v6854, %v7665
    %v7667 = vpop.f32.mrf.mxu0
    %v7668 = vadd.f32 %v6854, %v7667
    %7669 = vmatmul.bf16.gmra.mxu0 %v7248
    %v7670 = vpop.f32.mrf.mxu0
    %v7671 = vadd.f32 %v6854, %v7670
    %v7672 = vpop.f32.mrf.mxu0
    %v7673 = vadd.f32 %v6854, %v7672
    %7674 = vmatmul.bf16.gmra.mxu0 %v7251
    %v7675 = vpop.f32.mrf.mxu0
    %v7676 = vadd.f32 %v6854, %v7675
    %v7677 = vpop.f32.mrf.mxu0
    %v7678 = vadd.f32 %v6854, %v7677
    %7679 = vmatmul.bf16.gmra.mxu0 %v7254
    %v7680 = vpop.f32.mrf.mxu0
    %v7681 = vadd.f32 %v6854, %v7680
    %v7682 = vpop.f32.mrf.mxu0
    %v7683 = vadd.f32 %v6854, %v7682
    %7684 = vmatmul.bf16.gmra.mxu0 %v7257
    %v7685 = vpop.f32.mrf.mxu0
    %v7686 = vadd.f32 %v6854, %v7685
    %v7687 = vpop.f32.mrf.mxu0
    %v7688 = vadd.f32 %v6854, %v7687
    %7689 = vmatmul.bf16.gmra.mxu0 %v7260
    %v7690 = vpop.f32.mrf.mxu0
    %v7691 = vadd.f32 %v6854, %v7690
    %v7692 = vpop.f32.mrf.mxu0
    %v7693 = vadd.f32 %v6854, %v7692
    %7694 = vmatmul.bf16.gmra.mxu0 %v7263
    %v7695 = vpop.f32.mrf.mxu0
    %v7696 = vadd.f32 %v6854, %v7695
    %v7697 = vpop.f32.mrf.mxu0
    %v7698 = vadd.f32 %v6854, %v7697
    %7699 = vmatmul.bf16.gmra.mxu0 %v7266
    %v7700 = vpop.f32.mrf.mxu0
    %v7701 = vadd.f32 %v6854, %v7700
    %v7702 = vpop.f32.mrf.mxu0
    %v7703 = vadd.f32 %v6854, %v7702
    %7704 = vmatmul.bf16.gmra.mxu0 %v7269
    %v7705 = vpop.f32.mrf.mxu0
    %v7706 = vadd.f32 %v6854, %v7705
    %v7707 = vpop.f32.mrf.mxu0
    %v7708 = vadd.f32 %v6854, %v7707
    %7709 = vdwg.mxu0
    %7710 = vmatpush.bf16.msra.mxu0 %v7423
    %7711 = vmatpush.bf16.msra.mxu0 %v7422
    %7712 = vmatpush.bf16.msra.mxu0 %v7421
    %7713 = vmatpush.bf16.msra.mxu0 %v7420
    %7714 = vmatpush.bf16.msra.mxu0 %v7419
    %7715 = vmatpush.bf16.msra.mxu0 %v7418
    %7716 = vmatpush.bf16.msra.mxu0 %v7417
    %7717 = vmatpush.bf16.msra.mxu0 %v7416
    %7718 = vmatmul.bf16.gmra.mxu0 %v7177
    %v7719 = vpop.f32.mrf.mxu0
    %v7720 = vadd.f32 %v7551, %v7719
    %v7721 = vpop.f32.mrf.mxu0
    %v7722 = vadd.f32 %v7553, %v7721
    %7723 = vmatmul.bf16.gmra.mxu0 %v7180
    %v7724 = vpop.f32.mrf.mxu0
    %v7725 = vadd.f32 %v7556, %v7724
    %v7726 = vpop.f32.mrf.mxu0
    %v7727 = vadd.f32 %v7558, %v7726
    %7728 = vmatmul.bf16.gmra.mxu0 %v7183
    %v7729 = vpop.f32.mrf.mxu0
    %v7730 = vadd.f32 %v7561, %v7729
    %v7731 = vpop.f32.mrf.mxu0
    %v7732 = vadd.f32 %v7563, %v7731
    %7733 = vmatmul.bf16.gmra.mxu0 %v7186
    %v7734 = vpop.f32.mrf.mxu0
    %v7735 = vadd.f32 %v7566, %v7734
    %v7736 = vpop.f32.mrf.mxu0
    %v7737 = vadd.f32 %v7568, %v7736
    %7738 = vmatmul.bf16.gmra.mxu0 %v7189
    %v7739 = vpop.f32.mrf.mxu0
    %v7740 = vadd.f32 %v7571, %v7739
    %v7741 = vpop.f32.mrf.mxu0
    %v7742 = vadd.f32 %v7573, %v7741
    %7743 = vmatmul.bf16.gmra.mxu0 %v7192
    %v7744 = vpop.f32.mrf.mxu0
    %v7745 = vadd.f32 %v7576, %v7744
    %v7746 = vpop.f32.mrf.mxu0
    %v7747 = vadd.f32 %v7578, %v7746
    %7748 = vmatmul.bf16.gmra.mxu0 %v7195
    %v7749 = vpop.f32.mrf.mxu0
    %v7750 = vadd.f32 %v7581, %v7749
    %v7751 = vpop.f32.mrf.mxu0
    %v7752 = vadd.f32 %v7583, %v7751
    %7753 = vmatmul.bf16.gmra.mxu0 %v7198
    %v7754 = vpop.f32.mrf.mxu0
    %v7755 = vadd.f32 %v7586, %v7754
    %v7756 = vpop.f32.mrf.mxu0
    %v7757 = vadd.f32 %v7588, %v7756
    %7758 = vmatmul.bf16.gmra.mxu0 %v7201
    %v7759 = vpop.f32.mrf.mxu0
    %v7760 = vadd.f32 %v7591, %v7759
    %v7761 = vpop.f32.mrf.mxu0
    %v7762 = vadd.f32 %v7593, %v7761
    %7763 = vmatmul.bf16.gmra.mxu0 %v7204
    %v7764 = vpop.f32.mrf.mxu0
    %v7765 = vadd.f32 %v7596, %v7764
    %v7766 = vpop.f32.mrf.mxu0
    %v7767 = vadd.f32 %v7598, %v7766
    %7768 = vmatmul.bf16.gmra.mxu0 %v7207
    %v7769 = vpop.f32.mrf.mxu0
    %v7770 = vadd.f32 %v7601, %v7769
    %v7771 = vpop.f32.mrf.mxu0
    %v7772 = vadd.f32 %v7603, %v7771
    %7773 = vmatmul.bf16.gmra.mxu0 %v7210
    %v7774 = vpop.f32.mrf.mxu0
    %v7775 = vadd.f32 %v7606, %v7774
    %v7776 = vpop.f32.mrf.mxu0
    %v7777 = vadd.f32 %v7608, %v7776
    %7778 = vmatmul.bf16.gmra.mxu0 %v7213
    %v7779 = vpop.f32.mrf.mxu0
    %v7780 = vadd.f32 %v7611, %v7779
    %v7781 = vpop.f32.mrf.mxu0
    %v7782 = vadd.f32 %v7613, %v7781
    %7783 = vmatmul.bf16.gmra.mxu0 %v7216
    %v7784 = vpop.f32.mrf.mxu0
    %v7785 = vadd.f32 %v7616, %v7784
    %v7786 = vpop.f32.mrf.mxu0
    %v7787 = vadd.f32 %v7618, %v7786
    %7788 = vmatmul.bf16.gmra.mxu0 %v7219
    %v7789 = vpop.f32.mrf.mxu0
    %v7790 = vadd.f32 %v7621, %v7789
    %v7791 = vpop.f32.mrf.mxu0
    %v7792 = vadd.f32 %v7623, %v7791
    %7793 = vmatmul.bf16.gmra.mxu0 %v7222
    %v7794 = vpop.f32.mrf.mxu0
    %v7795 = vadd.f32 %v7626, %v7794
    %v7796 = vpop.f32.mrf.mxu0
    %v7797 = vadd.f32 %v7628, %v7796
    %7798 = vmatmul.bf16.gmra.mxu0 %v7225
    %v7799 = vpop.f32.mrf.mxu0
    %v7800 = vadd.f32 %v7631, %v7799
    %v7801 = vpop.f32.mrf.mxu0
    %v7802 = vadd.f32 %v7633, %v7801
    %7803 = vmatmul.bf16.gmra.mxu0 %v7228
    %v7804 = vpop.f32.mrf.mxu0
    %v7805 = vadd.f32 %v7636, %v7804
    %v7806 = vpop.f32.mrf.mxu0
    %v7807 = vadd.f32 %v7638, %v7806
    %7808 = vmatmul.bf16.gmra.mxu0 %v7231
    %v7809 = vpop.f32.mrf.mxu0
    %v7810 = vadd.f32 %v7641, %v7809
    %v7811 = vpop.f32.mrf.mxu0
    %v7812 = vadd.f32 %v7643, %v7811
    %7813 = vmatmul.bf16.gmra.mxu0 %v7234
    %v7814 = vpop.f32.mrf.mxu0
    %v7815 = vadd.f32 %v7646, %v7814
    %v7816 = vpop.f32.mrf.mxu0
    %v7817 = vadd.f32 %v7648, %v7816
    %7818 = vmatmul.bf16.gmra.mxu0 %v7237
    %v7819 = vpop.f32.mrf.mxu0
    %v7820 = vadd.f32 %v7651, %v7819
    %v7821 = vpop.f32.mrf.mxu0
    %v7822 = vadd.f32 %v7653, %v7821
    %7823 = vmatmul.bf16.gmra.mxu0 %v7240
    %v7824 = vpop.f32.mrf.mxu0
    %v7825 = vadd.f32 %v7656, %v7824
    %v7826 = vpop.f32.mrf.mxu0
    %v7827 = vadd.f32 %v7658, %v7826
    %7828 = vmatmul.bf16.gmra.mxu0 %v7243
    %v7829 = vpop.f32.mrf.mxu0
    %v7830 = vadd.f32 %v7661, %v7829
    %v7831 = vpop.f32.mrf.mxu0
    %v7832 = vadd.f32 %v7663, %v7831
    %7833 = vmatmul.bf16.gmra.mxu0 %v7246
    %v7834 = vpop.f32.mrf.mxu0
    %v7835 = vadd.f32 %v7666, %v7834
    %v7836 = vpop.f32.mrf.mxu0
    %v7837 = vadd.f32 %v7668, %v7836
    %7838 = vmatmul.bf16.gmra.mxu0 %v7249
    %v7839 = vpop.f32.mrf.mxu0
    %v7840 = vadd.f32 %v7671, %v7839
    %v7841 = vpop.f32.mrf.mxu0
    %v7842 = vadd.f32 %v7673, %v7841
    %7843 = vmatmul.bf16.gmra.mxu0 %v7252
    %v7844 = vpop.f32.mrf.mxu0
    %v7845 = vadd.f32 %v7676, %v7844
    %v7846 = vpop.f32.mrf.mxu0
    %v7847 = vadd.f32 %v7678, %v7846
    %7848 = vmatmul.bf16.gmra.mxu0 %v7255
    %v7849 = vpop.f32.mrf.mxu0
    %v7850 = vadd.f32 %v7681, %v7849
    %v7851 = vpop.f32.mrf.mxu0
    %v7852 = vadd.f32 %v7683, %v7851
    %7853 = vmatmul.bf16.gmra.mxu0 %v7258
    %v7854 = vpop.f32.mrf.mxu0
    %v7855 = vadd.f32 %v7686, %v7854
    %v7856 = vpop.f32.mrf.mxu0
    %v7857 = vadd.f32 %v7688, %v7856
    %7858 = vmatmul.bf16.gmra.mxu0 %v7261
    %v7859 = vpop.f32.mrf.mxu0
    %v7860 = vadd.f32 %v7691, %v7859
    %v7861 = vpop.f32.mrf.mxu0
    %v7862 = vadd.f32 %v7693, %v7861
    %7863 = vmatmul.bf16.gmra.mxu0 %v7264
    %v7864 = vpop.f32.mrf.mxu0
    %v7865 = vadd.f32 %v7696, %v7864
    %v7866 = vpop.f32.mrf.mxu0
    %v7867 = vadd.f32 %v7698, %v7866
    %7868 = vmatmul.bf16.gmra.mxu0 %v7267
    %v7869 = vpop.f32.mrf.mxu0
    %v7870 = vadd.f32 %v7701, %v7869
    %v7871 = vpop.f32.mrf.mxu0
    %v7872 = vadd.f32 %v7703, %v7871
    %7873 = vmatmul.bf16.gmra.mxu0 %v7270
    %v7874 = vpop.f32.mrf.mxu0
    %v7875 = vadd.f32 %v7706, %v7874
    %v7876 = vpop.f32.mrf.mxu0
    %v7877 = vadd.f32 %v7708, %v7876
    %7878 = vdwg.mxu0
    %7879 = vmatpush.bf16.msra.mxu0 0
    %7880 = vmatpush.bf16.msra.mxu0 0
    %7881 = vmatpush.bf16.msra.mxu0 0
    %7882 = vmatpush.bf16.msra.mxu0 0
    %7883 = vmatpush.bf16.msra.mxu0 0
    %7884 = vmatpush.bf16.msra.mxu0 0
    %7885 = vmatpush.bf16.msra.mxu0 %v7425
    %7886 = vmatpush.bf16.msra.mxu0 %v7424
    %7887 = vmatmul.bf16.gmra.mxu0 %v7446
    %v7888 = vpop.f32.mrf.mxu0
    %v7889 = vadd.f32 %v7720, %v7888
    %v7890 = vpop.f32.mrf.mxu0
    %v7891 = vadd.f32 %v7722, %v7890
    %7892 = vmatmul.bf16.gmra.mxu0 %v7449
    %v7893 = vpop.f32.mrf.mxu0
    %v7894 = vadd.f32 %v7725, %v7893
    %v7895 = vpop.f32.mrf.mxu0
    %v7896 = vadd.f32 %v7727, %v7895
    %7897 = vmatmul.bf16.gmra.mxu0 %v7452
    %v7898 = vpop.f32.mrf.mxu0
    %v7899 = vadd.f32 %v7730, %v7898
    %v7900 = vpop.f32.mrf.mxu0
    %v7901 = vadd.f32 %v7732, %v7900
    %7902 = vmatmul.bf16.gmra.mxu0 %v7455
    %v7903 = vpop.f32.mrf.mxu0
    %v7904 = vadd.f32 %v7735, %v7903
    %v7905 = vpop.f32.mrf.mxu0
    %v7906 = vadd.f32 %v7737, %v7905
    %7907 = vmatmul.bf16.gmra.mxu0 %v7458
    %v7908 = vpop.f32.mrf.mxu0
    %v7909 = vadd.f32 %v7740, %v7908
    %v7910 = vpop.f32.mrf.mxu0
    %v7911 = vadd.f32 %v7742, %v7910
    %7912 = vmatmul.bf16.gmra.mxu0 %v7461
    %v7913 = vpop.f32.mrf.mxu0
    %v7914 = vadd.f32 %v7745, %v7913
    %v7915 = vpop.f32.mrf.mxu0
    %v7916 = vadd.f32 %v7747, %v7915
    %7917 = vmatmul.bf16.gmra.mxu0 %v7464
    %v7918 = vpop.f32.mrf.mxu0
    %v7919 = vadd.f32 %v7750, %v7918
    %v7920 = vpop.f32.mrf.mxu0
    %v7921 = vadd.f32 %v7752, %v7920
    %7922 = vmatmul.bf16.gmra.mxu0 %v7467
    %v7923 = vpop.f32.mrf.mxu0
    %v7924 = vadd.f32 %v7755, %v7923
    %v7925 = vpop.f32.mrf.mxu0
    %v7926 = vadd.f32 %v7757, %v7925
    %7927 = vmatmul.bf16.gmra.mxu0 %v7470
    %v7928 = vpop.f32.mrf.mxu0
    %v7929 = vadd.f32 %v7760, %v7928
    %v7930 = vpop.f32.mrf.mxu0
    %v7931 = vadd.f32 %v7762, %v7930
    %7932 = vmatmul.bf16.gmra.mxu0 %v7473
    %v7933 = vpop.f32.mrf.mxu0
    %v7934 = vadd.f32 %v7765, %v7933
    %v7935 = vpop.f32.mrf.mxu0
    %v7936 = vadd.f32 %v7767, %v7935
    %7937 = vmatmul.bf16.gmra.mxu0 %v7476
    %v7938 = vpop.f32.mrf.mxu0
    %v7939 = vadd.f32 %v7770, %v7938
    %v7940 = vpop.f32.mrf.mxu0
    %v7941 = vadd.f32 %v7772, %v7940
    %7942 = vmatmul.bf16.gmra.mxu0 %v7479
    %v7943 = vpop.f32.mrf.mxu0
    %v7944 = vadd.f32 %v7775, %v7943
    %v7945 = vpop.f32.mrf.mxu0
    %v7946 = vadd.f32 %v7777, %v7945
    %7947 = vmatmul.bf16.gmra.mxu0 %v7482
    %v7948 = vpop.f32.mrf.mxu0
    %v7949 = vadd.f32 %v7780, %v7948
    %v7950 = vpop.f32.mrf.mxu0
    %v7951 = vadd.f32 %v7782, %v7950
    %7952 = vmatmul.bf16.gmra.mxu0 %v7485
    %v7953 = vpop.f32.mrf.mxu0
    %v7954 = vadd.f32 %v7785, %v7953
    %v7955 = vpop.f32.mrf.mxu0
    %v7956 = vadd.f32 %v7787, %v7955
    %7957 = vmatmul.bf16.gmra.mxu0 %v7488
    %v7958 = vpop.f32.mrf.mxu0
    %v7959 = vadd.f32 %v7790, %v7958
    %v7960 = vpop.f32.mrf.mxu0
    %v7961 = vadd.f32 %v7792, %v7960
    %7962 = vmatmul.bf16.gmra.mxu0 %v7491
    %v7963 = vpop.f32.mrf.mxu0
    %v7964 = vadd.f32 %v7795, %v7963
    %v7965 = vpop.f32.mrf.mxu0
    %v7966 = vadd.f32 %v7797, %v7965
    %7967 = vmatmul.bf16.gmra.mxu0 %v7494
    %v7968 = vpop.f32.mrf.mxu0
    %v7969 = vadd.f32 %v7800, %v7968
    %v7970 = vpop.f32.mrf.mxu0
    %v7971 = vadd.f32 %v7802, %v7970
    %7972 = vmatmul.bf16.gmra.mxu0 %v7497
    %v7973 = vpop.f32.mrf.mxu0
    %v7974 = vadd.f32 %v7805, %v7973
    %v7975 = vpop.f32.mrf.mxu0
    %v7976 = vadd.f32 %v7807, %v7975
    %7977 = vmatmul.bf16.gmra.mxu0 %v7500
    %v7978 = vpop.f32.mrf.mxu0
    %v7979 = vadd.f32 %v7810, %v7978
    %v7980 = vpop.f32.mrf.mxu0
    %v7981 = vadd.f32 %v7812, %v7980
    %7982 = vmatmul.bf16.gmra.mxu0 %v7503
    %v7983 = vpop.f32.mrf.mxu0
    %v7984 = vadd.f32 %v7815, %v7983
    %v7985 = vpop.f32.mrf.mxu0
    %v7986 = vadd.f32 %v7817, %v7985
    %7987 = vmatmul.bf16.gmra.mxu0 %v7506
    %v7988 = vpop.f32.mrf.mxu0
    %v7989 = vadd.f32 %v7820, %v7988
    %v7990 = vpop.f32.mrf.mxu0
    %v7991 = vadd.f32 %v7822, %v7990
    %7992 = vmatmul.bf16.gmra.mxu0 %v7509
    %v7993 = vpop.f32.mrf.mxu0
    %v7994 = vadd.f32 %v7825, %v7993
    %v7995 = vpop.f32.mrf.mxu0
    %v7996 = vadd.f32 %v7827, %v7995
    %7997 = vmatmul.bf16.gmra.mxu0 %v7512
    %v7998 = vpop.f32.mrf.mxu0
    %v7999 = vadd.f32 %v7830, %v7998
    %v8000 = vpop.f32.mrf.mxu0
    %v8001 = vadd.f32 %v7832, %v8000
    %8002 = vmatmul.bf16.gmra.mxu0 %v7515
    %v8003 = vpop.f32.mrf.mxu0
    %v8004 = vadd.f32 %v7835, %v8003
    %v8005 = vpop.f32.mrf.mxu0
    %v8006 = vadd.f32 %v7837, %v8005
    %8007 = vmatmul.bf16.gmra.mxu0 %v7518
    %v8008 = vpop.f32.mrf.mxu0
    %v8009 = vadd.f32 %v7840, %v8008
    %v8010 = vpop.f32.mrf.mxu0
    %v8011 = vadd.f32 %v7842, %v8010
    %8012 = vmatmul.bf16.gmra.mxu0 %v7521
    %v8013 = vpop.f32.mrf.mxu0
    %v8014 = vadd.f32 %v7845, %v8013
    %v8015 = vpop.f32.mrf.mxu0
    %v8016 = vadd.f32 %v7847, %v8015
    %8017 = vmatmul.bf16.gmra.mxu0 %v7524
    %v8018 = vpop.f32.mrf.mxu0
    %v8019 = vadd.f32 %v7850, %v8018
    %v8020 = vpop.f32.mrf.mxu0
    %v8021 = vadd.f32 %v7852, %v8020
    %8022 = vmatmul.bf16.gmra.mxu0 %v7527
    %v8023 = vpop.f32.mrf.mxu0
    %v8024 = vadd.f32 %v7855, %v8023
    %v8025 = vpop.f32.mrf.mxu0
    %v8026 = vadd.f32 %v7857, %v8025
    %8027 = vmatmul.bf16.gmra.mxu0 %v7530
    %v8028 = vpop.f32.mrf.mxu0
    %v8029 = vadd.f32 %v7860, %v8028
    %v8030 = vpop.f32.mrf.mxu0
    %v8031 = vadd.f32 %v7862, %v8030
    %8032 = vmatmul.bf16.gmra.mxu0 %v7533
    %v8033 = vpop.f32.mrf.mxu0
    %v8034 = vadd.f32 %v7865, %v8033
    %v8035 = vpop.f32.mrf.mxu0
    %v8036 = vadd.f32 %v7867, %v8035
    %8037 = vmatmul.bf16.gmra.mxu0 %v7536
    %v8038 = vpop.f32.mrf.mxu0
    %v8039 = vadd.f32 %v7870, %v8038
    %v8040 = vpop.f32.mrf.mxu0
    %v8041 = vadd.f32 %v7872, %v8040
    %8042 = vmatmul.bf16.gmra.mxu0 %v7539
    %v8043 = vpop.f32.mrf.mxu0
    %v8044 = vadd.f32 %v7875, %v8043
    %v8045 = vpop.f32.mrf.mxu0
    %v8046 = vadd.f32 %v7877, %v8045
    %8047 = vdwg.mxu0
    %v8048 = vmax.f32 %v7889, 0.0
    %v8049 = vmax.f32 %v7891, 0.0
    %v8050 = vmax.f32 %v7894, 0.0
    %v8051 = vmax.f32 %v7896, 0.0
    %v8052 = vmax.f32 %v7899, 0.0
    %v8053 = vmax.f32 %v7901, 0.0
    %v8054 = vmax.f32 %v7904, 0.0
    %v8055 = vmax.f32 %v7906, 0.0
    %v8056 = vmax.f32 %v7909, 0.0
    %v8057 = vmax.f32 %v7911, 0.0
    %v8058 = vmax.f32 %v7914, 0.0
    %v8059 = vmax.f32 %v7916, 0.0
    %v8060 = vmax.f32 %v7919, 0.0
    %v8061 = vmax.f32 %v7921, 0.0
    %v8062 = vmax.f32 %v7924, 0.0
    %v8063 = vmax.f32 %v7926, 0.0
    %v8064 = vmax.f32 %v7929, 0.0
    %v8065 = vmax.f32 %v7931, 0.0
    %v8066 = vmax.f32 %v7934, 0.0
    %v8067 = vmax.f32 %v7936, 0.0
    %v8068 = vmax.f32 %v7939, 0.0
    %v8069 = vmax.f32 %v7941, 0.0
    %v8070 = vmax.f32 %v7944, 0.0
    %v8071 = vmax.f32 %v7946, 0.0
    %v8072 = vmax.f32 %v7949, 0.0
    %v8073 = vmax.f32 %v7951, 0.0
    %v8074 = vmax.f32 %v7954, 0.0
    %v8075 = vmax.f32 %v7956, 0.0
    %v8076 = vmax.f32 %v7959, 0.0
    %v8077 = vmax.f32 %v7961, 0.0
    %v8078 = vmax.f32 %v7964, 0.0
    %v8079 = vmax.f32 %v7966, 0.0
    %v8080 = vmax.f32 %v7969, 0.0
    %v8081 = vmax.f32 %v7971, 0.0
    %v8082 = vmax.f32 %v7974, 0.0
    %v8083 = vmax.f32 %v7976, 0.0
    %v8084 = vmax.f32 %v7979, 0.0
    %v8085 = vmax.f32 %v7981, 0.0
    %v8086 = vmax.f32 %v7984, 0.0
    %v8087 = vmax.f32 %v7986, 0.0
    %v8088 = vmax.f32 %v7989, 0.0
    %v8089 = vmax.f32 %v7991, 0.0
    %v8090 = vmax.f32 %v7994, 0.0
    %v8091 = vmax.f32 %v7996, 0.0
    %v8092 = vmax.f32 %v7999, 0.0
    %v8093 = vmax.f32 %v8001, 0.0
    %v8094 = vmax.f32 %v8004, 0.0
    %v8095 = vmax.f32 %v8006, 0.0
    %v8096 = vmax.f32 %v8009, 0.0
    %v8097 = vmax.f32 %v8011, 0.0
    %v8098 = vmax.f32 %v8014, 0.0
    %v8099 = vmax.f32 %v8016, 0.0
    %v8100 = vmax.f32 %v8019, 0.0
    %v8101 = vmax.f32 %v8021, 0.0
    %v8102 = vmax.f32 %v8024, 0.0
    %v8103 = vmax.f32 %v8026, 0.0
    %v8104 = vmax.f32 %v8029, 0.0
    %v8105 = vmax.f32 %v8031, 0.0
    %v8106 = vmax.f32 %v8034, 0.0
    %v8107 = vmax.f32 %v8036, 0.0
    %v8108 = vmax.f32 %v8039, 0.0
    %v8109 = vmax.f32 %v8041, 0.0
    %v8110 = vmax.f32 %v8044, 0.0
    %v8111 = vmax.f32 %v8046, 0.0
    %v8112 = vpack.c.bf16 %v8049, %v8048
    %v8113 = vpack.c.bf16 %v8051, %v8050
    %v8114 = vpack.c.bf16 %v8053, %v8052
    %v8115 = vpack.c.bf16 %v8055, %v8054
    %v8116 = vpack.c.bf16 %v8057, %v8056
    %v8117 = vpack.c.bf16 %v8059, %v8058
    %v8118 = vpack.c.bf16 %v8061, %v8060
    %v8119 = vpack.c.bf16 %v8063, %v8062
    %v8120 = vpack.c.bf16 %v8065, %v8064
    %v8121 = vpack.c.bf16 %v8067, %v8066
    %v8122 = vpack.c.bf16 %v8069, %v8068
    %v8123 = vpack.c.bf16 %v8071, %v8070
    %v8124 = vpack.c.bf16 %v8073, %v8072
    %v8125 = vpack.c.bf16 %v8075, %v8074
    %v8126 = vpack.c.bf16 %v8077, %v8076
    %v8127 = vpack.c.bf16 %v8079, %v8078
    %v8128 = vpack.c.bf16 %v8081, %v8080
    %v8129 = vpack.c.bf16 %v8083, %v8082
    %v8130 = vpack.c.bf16 %v8085, %v8084
    %v8131 = vpack.c.bf16 %v8087, %v8086
    %v8132 = vpack.c.bf16 %v8089, %v8088
    %v8133 = vpack.c.bf16 %v8091, %v8090
    %v8134 = vpack.c.bf16 %v8093, %v8092
    %v8135 = vpack.c.bf16 %v8095, %v8094
    %v8136 = vpack.c.bf16 %v8097, %v8096
    %v8137 = vpack.c.bf16 %v8099, %v8098
    %v8138 = vpack.c.bf16 %v8101, %v8100
    %v8139 = vpack.c.bf16 %v8103, %v8102
    %v8140 = vpack.c.bf16 %v8105, %v8104
    %v8141 = vpack.c.bf16 %v8107, %v8106
    %v8142 = vpack.c.bf16 %v8109, %v8108
    %v8143 = vpack.c.bf16 %v8111, %v8110
    %v8144 = vld [vmem:[%s5] sm:$0xf]
    %v8145 = vld [vmem:[%s5 + $0x4] sm:$0xf]
    %v8146 = vld [vmem:[%s5 + $0x8] sm:$0xf]
    %v8147 = vld [vmem:[%s5 + $0xc] sm:$0xf]
    %v8148 = vld [vmem:[%s6] sm:$0x1]
    %v8150 = vperm.slane %v8148, 0
    %v8156 = vunpack.c.l.b16 %v8144
    %v8157 = vunpack.c.l.b16 %v8145
    %v8158 = vunpack.c.l.b16 %v8146
    %v8159 = vunpack.c.l.b16 %v8147
    %v8160 = vpack.c.b16 %v8157, %v8156
    %v8161 = vpack.c.b16 %v8159, %v8158
    %v8165 = vsel %vm7444, %v8112, 0
    %v8168 = vsel %vm7444, %v8113, 0
    %v8171 = vsel %vm7444, %v8114, 0
    %v8174 = vsel %vm7444, %v8115, 0
    %v8177 = vsel %vm7444, %v8116, 0
    %v8180 = vsel %vm7444, %v8117, 0
    %v8183 = vsel %vm7444, %v8118, 0
    %v8186 = vsel %vm7444, %v8119, 0
    %v8189 = vsel %vm7444, %v8120, 0
    %v8192 = vsel %vm7444, %v8121, 0
    %v8195 = vsel %vm7444, %v8122, 0
    %v8198 = vsel %vm7444, %v8123, 0
    %v8201 = vsel %vm7444, %v8124, 0
    %v8204 = vsel %vm7444, %v8125, 0
    %v8207 = vsel %vm7444, %v8126, 0
    %v8210 = vsel %vm7444, %v8127, 0
    %v8213 = vsel %vm7444, %v8128, 0
    %v8216 = vsel %vm7444, %v8129, 0
    %v8219 = vsel %vm7444, %v8130, 0
    %v8222 = vsel %vm7444, %v8131, 0
    %v8225 = vsel %vm7444, %v8132, 0
    %v8228 = vsel %vm7444, %v8133, 0
    %v8231 = vsel %vm7444, %v8134, 0
    %v8234 = vsel %vm7444, %v8135, 0
    %v8237 = vsel %vm7444, %v8136, 0
    %v8240 = vsel %vm7444, %v8137, 0
    %v8243 = vsel %vm7444, %v8138, 0
    %v8246 = vsel %vm7444, %v8139, 0
    %v8249 = vsel %vm7444, %v8140, 0
    %v8252 = vsel %vm7444, %v8141, 0
    %v8255 = vsel %vm7444, %v8142, 0
    %v8258 = vsel %vm7444, %v8143, 0
    %8260 = vmatpush.bf16.msra.mxu0 0
    %8261 = vmatpush.bf16.msra.mxu0 0
    %8262 = vmatpush.bf16.msra.mxu0 0
    %8263 = vmatpush.bf16.msra.mxu0 0
    %8264 = vmatpush.bf16.msra.mxu0 0
    %8265 = vmatpush.bf16.msra.mxu0 0
    %8266 = vmatpush.bf16.msra.mxu0 %v8161
    %8267 = vmatpush.bf16.msra.mxu0 %v8160
    %8268 = vmatmul.bf16.gmra.mxu0 %v8165
    %v8269 = vpop.f32.mrf.mxu0
    %v8270 = vadd.f32 %v8150, %v8269
    %v8271 = vpop.f32.mrf.mxu0
    %v8272 = vadd.f32 %v8150, %v8271
    %8273 = vmatmul.bf16.gmra.mxu0 %v8168
    %v8274 = vpop.f32.mrf.mxu0
    %v8275 = vadd.f32 %v8150, %v8274
    %v8276 = vpop.f32.mrf.mxu0
    %v8277 = vadd.f32 %v8150, %v8276
    %8278 = vmatmul.bf16.gmra.mxu0 %v8171
    %v8279 = vpop.f32.mrf.mxu0
    %v8280 = vadd.f32 %v8150, %v8279
    %v8281 = vpop.f32.mrf.mxu0
    %v8282 = vadd.f32 %v8150, %v8281
    %8283 = vmatmul.bf16.gmra.mxu0 %v8174
    %v8284 = vpop.f32.mrf.mxu0
    %v8285 = vadd.f32 %v8150, %v8284
    %v8286 = vpop.f32.mrf.mxu0
    %v8287 = vadd.f32 %v8150, %v8286
    %8288 = vmatmul.bf16.gmra.mxu0 %v8177
    %v8289 = vpop.f32.mrf.mxu0
    %v8290 = vadd.f32 %v8150, %v8289
    %v8291 = vpop.f32.mrf.mxu0
    %v8292 = vadd.f32 %v8150, %v8291
    %8293 = vmatmul.bf16.gmra.mxu0 %v8180
    %v8294 = vpop.f32.mrf.mxu0
    %v8295 = vadd.f32 %v8150, %v8294
    %v8296 = vpop.f32.mrf.mxu0
    %v8297 = vadd.f32 %v8150, %v8296
    %8298 = vmatmul.bf16.gmra.mxu0 %v8183
    %v8299 = vpop.f32.mrf.mxu0
    %v8300 = vadd.f32 %v8150, %v8299
    %v8301 = vpop.f32.mrf.mxu0
    %v8302 = vadd.f32 %v8150, %v8301
    %8303 = vmatmul.bf16.gmra.mxu0 %v8186
    %v8304 = vpop.f32.mrf.mxu0
    %v8305 = vadd.f32 %v8150, %v8304
    %v8306 = vpop.f32.mrf.mxu0
    %v8307 = vadd.f32 %v8150, %v8306
    %8308 = vmatmul.bf16.gmra.mxu0 %v8189
    %v8309 = vpop.f32.mrf.mxu0
    %v8310 = vadd.f32 %v8150, %v8309
    %v8311 = vpop.f32.mrf.mxu0
    %v8312 = vadd.f32 %v8150, %v8311
    %8313 = vmatmul.bf16.gmra.mxu0 %v8192
    %v8314 = vpop.f32.mrf.mxu0
    %v8315 = vadd.f32 %v8150, %v8314
    %v8316 = vpop.f32.mrf.mxu0
    %v8317 = vadd.f32 %v8150, %v8316
    %8318 = vmatmul.bf16.gmra.mxu0 %v8195
    %v8319 = vpop.f32.mrf.mxu0
    %v8320 = vadd.f32 %v8150, %v8319
    %v8321 = vpop.f32.mrf.mxu0
    %v8322 = vadd.f32 %v8150, %v8321
    %8323 = vmatmul.bf16.gmra.mxu0 %v8198
    %v8324 = vpop.f32.mrf.mxu0
    %v8325 = vadd.f32 %v8150, %v8324
    %v8326 = vpop.f32.mrf.mxu0
    %v8327 = vadd.f32 %v8150, %v8326
    %8328 = vmatmul.bf16.gmra.mxu0 %v8201
    %v8329 = vpop.f32.mrf.mxu0
    %v8330 = vadd.f32 %v8150, %v8329
    %v8331 = vpop.f32.mrf.mxu0
    %v8332 = vadd.f32 %v8150, %v8331
    %8333 = vmatmul.bf16.gmra.mxu0 %v8204
    %v8334 = vpop.f32.mrf.mxu0
    %v8335 = vadd.f32 %v8150, %v8334
    %v8336 = vpop.f32.mrf.mxu0
    %v8337 = vadd.f32 %v8150, %v8336
    %8338 = vmatmul.bf16.gmra.mxu0 %v8207
    %v8339 = vpop.f32.mrf.mxu0
    %v8340 = vadd.f32 %v8150, %v8339
    %v8341 = vpop.f32.mrf.mxu0
    %v8342 = vadd.f32 %v8150, %v8341
    %8343 = vmatmul.bf16.gmra.mxu0 %v8210
    %v8344 = vpop.f32.mrf.mxu0
    %v8345 = vadd.f32 %v8150, %v8344
    %v8346 = vpop.f32.mrf.mxu0
    %v8347 = vadd.f32 %v8150, %v8346
    %8348 = vmatmul.bf16.gmra.mxu0 %v8213
    %v8349 = vpop.f32.mrf.mxu0
    %v8350 = vadd.f32 %v8150, %v8349
    %v8351 = vpop.f32.mrf.mxu0
    %v8352 = vadd.f32 %v8150, %v8351
    %8353 = vmatmul.bf16.gmra.mxu0 %v8216
    %v8354 = vpop.f32.mrf.mxu0
    %v8355 = vadd.f32 %v8150, %v8354
    %v8356 = vpop.f32.mrf.mxu0
    %v8357 = vadd.f32 %v8150, %v8356
    %8358 = vmatmul.bf16.gmra.mxu0 %v8219
    %v8359 = vpop.f32.mrf.mxu0
    %v8360 = vadd.f32 %v8150, %v8359
    %v8361 = vpop.f32.mrf.mxu0
    %v8362 = vadd.f32 %v8150, %v8361
    %8363 = vmatmul.bf16.gmra.mxu0 %v8222
    %v8364 = vpop.f32.mrf.mxu0
    %v8365 = vadd.f32 %v8150, %v8364
    %v8366 = vpop.f32.mrf.mxu0
    %v8367 = vadd.f32 %v8150, %v8366
    %8368 = vmatmul.bf16.gmra.mxu0 %v8225
    %v8369 = vpop.f32.mrf.mxu0
    %v8370 = vadd.f32 %v8150, %v8369
    %v8371 = vpop.f32.mrf.mxu0
    %v8372 = vadd.f32 %v8150, %v8371
    %8373 = vmatmul.bf16.gmra.mxu0 %v8228
    %v8374 = vpop.f32.mrf.mxu0
    %v8375 = vadd.f32 %v8150, %v8374
    %v8376 = vpop.f32.mrf.mxu0
    %v8377 = vadd.f32 %v8150, %v8376
    %8378 = vmatmul.bf16.gmra.mxu0 %v8231
    %v8379 = vpop.f32.mrf.mxu0
    %v8380 = vadd.f32 %v8150, %v8379
    %v8381 = vpop.f32.mrf.mxu0
    %v8382 = vadd.f32 %v8150, %v8381
    %8383 = vmatmul.bf16.gmra.mxu0 %v8234
    %v8384 = vpop.f32.mrf.mxu0
    %v8385 = vadd.f32 %v8150, %v8384
    %v8386 = vpop.f32.mrf.mxu0
    %v8387 = vadd.f32 %v8150, %v8386
    %8388 = vmatmul.bf16.gmra.mxu0 %v8237
    %v8389 = vpop.f32.mrf.mxu0
    %v8390 = vadd.f32 %v8150, %v8389
    %v8391 = vpop.f32.mrf.mxu0
    %v8392 = vadd.f32 %v8150, %v8391
    %8393 = vmatmul.bf16.gmra.mxu0 %v8240
    %v8394 = vpop.f32.mrf.mxu0
    %v8395 = vadd.f32 %v8150, %v8394
    %v8396 = vpop.f32.mrf.mxu0
    %v8397 = vadd.f32 %v8150, %v8396
    %8398 = vmatmul.bf16.gmra.mxu0 %v8243
    %v8399 = vpop.f32.mrf.mxu0
    %v8400 = vadd.f32 %v8150, %v8399
    %v8401 = vpop.f32.mrf.mxu0
    %v8402 = vadd.f32 %v8150, %v8401
    %8403 = vmatmul.bf16.gmra.mxu0 %v8246
    %v8404 = vpop.f32.mrf.mxu0
    %v8405 = vadd.f32 %v8150, %v8404
    %v8406 = vpop.f32.mrf.mxu0
    %v8407 = vadd.f32 %v8150, %v8406
    %8408 = vmatmul.bf16.gmra.mxu0 %v8249
    %v8409 = vpop.f32.mrf.mxu0
    %v8410 = vadd.f32 %v8150, %v8409
    %v8411 = vpop.f32.mrf.mxu0
    %v8412 = vadd.f32 %v8150, %v8411
    %8413 = vmatmul.bf16.gmra.mxu0 %v8252
    %v8414 = vpop.f32.mrf.mxu0
    %v8415 = vadd.f32 %v8150, %v8414
    %v8416 = vpop.f32.mrf.mxu0
    %v8417 = vadd.f32 %v8150, %v8416
    %8418 = vmatmul.bf16.gmra.mxu0 %v8255
    %v8419 = vpop.f32.mrf.mxu0
    %v8420 = vadd.f32 %v8150, %v8419
    %v8421 = vpop.f32.mrf.mxu0
    %v8422 = vadd.f32 %v8150, %v8421
    %8423 = vmatmul.bf16.gmra.mxu0 %v8258
    %v8424 = vpop.f32.mrf.mxu0
    %v8425 = vadd.f32 %v8150, %v8424
    %v8426 = vpop.f32.mrf.mxu0
    %v8427 = vadd.f32 %v8150, %v8426
    %8428 = vdwg.mxu0
    %v8429 = vunpack.c.l.bf16 %v44
    %v8430 = vunpack.c.l.bf16 %v45
    %v8431 = vunpack.c.l.bf16 %v46
    %v8432 = vunpack.c.l.bf16 %v47
    %v8433 = vunpack.c.l.bf16 %v48
    %v8434 = vunpack.c.l.bf16 %v49
    %v8435 = vunpack.c.l.bf16 %v50
    %v8436 = vunpack.c.l.bf16 %v51
    %v8437 = vunpack.c.l.bf16 %v52
    %v8438 = vunpack.c.l.bf16 %v53
    %v8439 = vunpack.c.l.bf16 %v54
    %v8440 = vunpack.c.l.bf16 %v55
    %v8441 = vunpack.c.l.bf16 %v56
    %v8442 = vunpack.c.l.bf16 %v57
    %v8443 = vunpack.c.l.bf16 %v58
    %v8444 = vunpack.c.l.bf16 %v59
    %v8445 = vunpack.c.l.bf16 %v60
    %v8446 = vunpack.c.l.bf16 %v61
    %v8447 = vunpack.c.l.bf16 %v62
    %v8448 = vunpack.c.l.bf16 %v63
    %v8449 = vunpack.c.l.bf16 %v64
    %v8450 = vunpack.c.l.bf16 %v65
    %v8451 = vunpack.c.l.bf16 %v66
    %v8452 = vunpack.c.l.bf16 %v67
    %v8453 = vunpack.c.l.bf16 %v68
    %v8454 = vunpack.c.l.bf16 %v69
    %v8455 = vunpack.c.l.bf16 %v70
    %v8456 = vunpack.c.l.bf16 %v71
    %v8457 = vunpack.c.l.bf16 %v72
    %v8458 = vunpack.c.l.bf16 %v73
    %v8459 = vunpack.c.l.bf16 %v74
    %v8460 = vunpack.c.l.bf16 %v75
    %v8461 = vunpack.c.l.bf16 %v76
    %v8462 = vunpack.c.l.bf16 %v77
    %v8463 = vunpack.c.l.bf16 %v78
    %v8464 = vunpack.c.l.bf16 %v79
    %v8465 = vunpack.c.l.bf16 %v80
    %v8466 = vunpack.c.l.bf16 %v81
    %v8467 = vunpack.c.l.bf16 %v82
    %v8468 = vunpack.c.l.bf16 %v83
    %v8469 = vunpack.c.l.bf16 %v84
    %v8470 = vunpack.c.l.bf16 %v85
    %v8471 = vunpack.c.l.bf16 %v86
    %v8472 = vunpack.c.l.bf16 %v87
    %v8473 = vunpack.c.l.bf16 %v88
    %v8474 = vunpack.c.l.bf16 %v89
    %v8475 = vunpack.c.l.bf16 %v90
    %v8476 = vunpack.c.l.bf16 %v91
    %v8477 = vunpack.c.l.bf16 %v92
    %v8478 = vunpack.c.l.bf16 %v93
    %v8479 = vunpack.c.l.bf16 %v94
    %v8480 = vunpack.c.l.bf16 %v95
    %v8481 = vunpack.c.l.bf16 %v96
    %v8482 = vunpack.c.l.bf16 %v97
    %v8483 = vunpack.c.l.bf16 %v98
    %v8484 = vunpack.c.l.bf16 %v99
    %v8485 = vunpack.c.l.bf16 %v100
    %v8486 = vunpack.c.l.bf16 %v101
    %v8487 = vunpack.c.l.bf16 %v102
    %v8488 = vunpack.c.l.bf16 %v103
    %v8489 = vunpack.c.l.bf16 %v104
    %v8490 = vunpack.c.l.bf16 %v105
    %v8491 = vunpack.c.l.bf16 %v106
    %v8492 = vunpack.c.l.bf16 %v107
    %v8493 = vadd.f32 %v8270, %v8429
    %v8494 = vadd.f32 %v8272, %v8430
    %v8495 = vadd.f32 %v8275, %v8431
    %v8496 = vadd.f32 %v8277, %v8432
    %v8497 = vadd.f32 %v8280, %v8433
    %v8498 = vadd.f32 %v8282, %v8434
    %v8499 = vadd.f32 %v8285, %v8435
    %v8500 = vadd.f32 %v8287, %v8436
    %v8501 = vadd.f32 %v8290, %v8437
    %v8502 = vadd.f32 %v8292, %v8438
    %v8503 = vadd.f32 %v8295, %v8439
    %v8504 = vadd.f32 %v8297, %v8440
    %v8505 = vadd.f32 %v8300, %v8441
    %v8506 = vadd.f32 %v8302, %v8442
    %v8507 = vadd.f32 %v8305, %v8443
    %v8508 = vadd.f32 %v8307, %v8444
    %v8509 = vadd.f32 %v8310, %v8445
    %v8510 = vadd.f32 %v8312, %v8446
    %v8511 = vadd.f32 %v8315, %v8447
    %v8512 = vadd.f32 %v8317, %v8448
    %v8513 = vadd.f32 %v8320, %v8449
    %v8514 = vadd.f32 %v8322, %v8450
    %v8515 = vadd.f32 %v8325, %v8451
    %v8516 = vadd.f32 %v8327, %v8452
    %v8517 = vadd.f32 %v8330, %v8453
    %v8518 = vadd.f32 %v8332, %v8454
    %v8519 = vadd.f32 %v8335, %v8455
    %v8520 = vadd.f32 %v8337, %v8456
    %v8521 = vadd.f32 %v8340, %v8457
    %v8522 = vadd.f32 %v8342, %v8458
    %v8523 = vadd.f32 %v8345, %v8459
    %v8524 = vadd.f32 %v8347, %v8460
    %v8525 = vadd.f32 %v8350, %v8461
    %v8526 = vadd.f32 %v8352, %v8462
    %v8527 = vadd.f32 %v8355, %v8463
    %v8528 = vadd.f32 %v8357, %v8464
    %v8529 = vadd.f32 %v8360, %v8465
    %v8530 = vadd.f32 %v8362, %v8466
    %v8531 = vadd.f32 %v8365, %v8467
    %v8532 = vadd.f32 %v8367, %v8468
    %v8533 = vadd.f32 %v8370, %v8469
    %v8534 = vadd.f32 %v8372, %v8470
    %v8535 = vadd.f32 %v8375, %v8471
    %v8536 = vadd.f32 %v8377, %v8472
    %v8537 = vadd.f32 %v8380, %v8473
    %v8538 = vadd.f32 %v8382, %v8474
    %v8539 = vadd.f32 %v8385, %v8475
    %v8540 = vadd.f32 %v8387, %v8476
    %v8541 = vadd.f32 %v8390, %v8477
    %v8542 = vadd.f32 %v8392, %v8478
    %v8543 = vadd.f32 %v8395, %v8479
    %v8544 = vadd.f32 %v8397, %v8480
    %v8545 = vadd.f32 %v8400, %v8481
    %v8546 = vadd.f32 %v8402, %v8482
    %v8547 = vadd.f32 %v8405, %v8483
    %v8548 = vadd.f32 %v8407, %v8484
    %v8549 = vadd.f32 %v8410, %v8485
    %v8550 = vadd.f32 %v8412, %v8486
    %v8551 = vadd.f32 %v8415, %v8487
    %v8552 = vadd.f32 %v8417, %v8488
    %v8553 = vadd.f32 %v8420, %v8489
    %v8554 = vadd.f32 %v8422, %v8490
    %v8555 = vadd.f32 %v8425, %v8491
    %v8556 = vadd.f32 %v8427, %v8492
    %v8557 = vmax.f32 %v8493, 0.0
    %v8558 = vmax.f32 %v8494, 0.0
    %v8559 = vmax.f32 %v8495, 0.0
    %v8560 = vmax.f32 %v8496, 0.0
    %v8561 = vmax.f32 %v8497, 0.0
    %v8562 = vmax.f32 %v8498, 0.0
    %v8563 = vmax.f32 %v8499, 0.0
    %v8564 = vmax.f32 %v8500, 0.0
    %v8565 = vmax.f32 %v8501, 0.0
    %v8566 = vmax.f32 %v8502, 0.0
    %v8567 = vmax.f32 %v8503, 0.0
    %v8568 = vmax.f32 %v8504, 0.0
    %v8569 = vmax.f32 %v8505, 0.0
    %v8570 = vmax.f32 %v8506, 0.0
    %v8571 = vmax.f32 %v8507, 0.0
    %v8572 = vmax.f32 %v8508, 0.0
    %v8573 = vmax.f32 %v8509, 0.0
    %v8574 = vmax.f32 %v8510, 0.0
    %v8575 = vmax.f32 %v8511, 0.0
    %v8576 = vmax.f32 %v8512, 0.0
    %v8577 = vmax.f32 %v8513, 0.0
    %v8578 = vmax.f32 %v8514, 0.0
    %v8579 = vmax.f32 %v8515, 0.0
    %v8580 = vmax.f32 %v8516, 0.0
    %v8581 = vmax.f32 %v8517, 0.0
    %v8582 = vmax.f32 %v8518, 0.0
    %v8583 = vmax.f32 %v8519, 0.0
    %v8584 = vmax.f32 %v8520, 0.0
    %v8585 = vmax.f32 %v8521, 0.0
    %v8586 = vmax.f32 %v8522, 0.0
    %v8587 = vmax.f32 %v8523, 0.0
    %v8588 = vmax.f32 %v8524, 0.0
    %v8589 = vmax.f32 %v8525, 0.0
    %v8590 = vmax.f32 %v8526, 0.0
    %v8591 = vmax.f32 %v8527, 0.0
    %v8592 = vmax.f32 %v8528, 0.0
    %v8593 = vmax.f32 %v8529, 0.0
    %v8594 = vmax.f32 %v8530, 0.0
    %v8595 = vmax.f32 %v8531, 0.0
    %v8596 = vmax.f32 %v8532, 0.0
    %v8597 = vmax.f32 %v8533, 0.0
    %v8598 = vmax.f32 %v8534, 0.0
    %v8599 = vmax.f32 %v8535, 0.0
    %v8600 = vmax.f32 %v8536, 0.0
    %v8601 = vmax.f32 %v8537, 0.0
    %v8602 = vmax.f32 %v8538, 0.0
    %v8603 = vmax.f32 %v8539, 0.0
    %v8604 = vmax.f32 %v8540, 0.0
    %v8605 = vmax.f32 %v8541, 0.0
    %v8606 = vmax.f32 %v8542, 0.0
    %v8607 = vmax.f32 %v8543, 0.0
    %v8608 = vmax.f32 %v8544, 0.0
    %v8609 = vmax.f32 %v8545, 0.0
    %v8610 = vmax.f32 %v8546, 0.0
    %v8611 = vmax.f32 %v8547, 0.0
    %v8612 = vmax.f32 %v8548, 0.0
    %v8613 = vmax.f32 %v8549, 0.0
    %v8614 = vmax.f32 %v8550, 0.0
    %v8615 = vmax.f32 %v8551, 0.0
    %v8616 = vmax.f32 %v8552, 0.0
    %v8617 = vmax.f32 %v8553, 0.0
    %v8618 = vmax.f32 %v8554, 0.0
    %v8619 = vmax.f32 %v8555, 0.0
    %v8620 = vmax.f32 %v8556, 0.0
    %v8621 = vpack.c.bf16 %v8557, %v8557
    %v8622 = vpack.c.bf16 %v8558, %v8558
    %v8623 = vpack.c.bf16 %v8559, %v8559
    %v8624 = vpack.c.bf16 %v8560, %v8560
    %v8625 = vpack.c.bf16 %v8561, %v8561
    %v8626 = vpack.c.bf16 %v8562, %v8562
    %v8627 = vpack.c.bf16 %v8563, %v8563
    %v8628 = vpack.c.bf16 %v8564, %v8564
    %v8629 = vpack.c.bf16 %v8565, %v8565
    %v8630 = vpack.c.bf16 %v8566, %v8566
    %v8631 = vpack.c.bf16 %v8567, %v8567
    %v8632 = vpack.c.bf16 %v8568, %v8568
    %v8633 = vpack.c.bf16 %v8569, %v8569
    %v8634 = vpack.c.bf16 %v8570, %v8570
    %v8635 = vpack.c.bf16 %v8571, %v8571
    %v8636 = vpack.c.bf16 %v8572, %v8572
    %v8637 = vpack.c.bf16 %v8573, %v8573
    %v8638 = vpack.c.bf16 %v8574, %v8574
    %v8639 = vpack.c.bf16 %v8575, %v8575
    %v8640 = vpack.c.bf16 %v8576, %v8576
    %v8641 = vpack.c.bf16 %v8577, %v8577
    %v8642 = vpack.c.bf16 %v8578, %v8578
    %v8643 = vpack.c.bf16 %v8579, %v8579
    %v8644 = vpack.c.bf16 %v8580, %v8580
    %v8645 = vpack.c.bf16 %v8581, %v8581
    %v8646 = vpack.c.bf16 %v8582, %v8582
    %v8647 = vpack.c.bf16 %v8583, %v8583
    %v8648 = vpack.c.bf16 %v8584, %v8584
    %v8649 = vpack.c.bf16 %v8585, %v8585
    %v8650 = vpack.c.bf16 %v8586, %v8586
    %v8651 = vpack.c.bf16 %v8587, %v8587
    %v8652 = vpack.c.bf16 %v8588, %v8588
    %v8653 = vpack.c.bf16 %v8589, %v8589
    %v8654 = vpack.c.bf16 %v8590, %v8590
    %v8655 = vpack.c.bf16 %v8591, %v8591
    %v8656 = vpack.c.bf16 %v8592, %v8592
    %v8657 = vpack.c.bf16 %v8593, %v8593
    %v8658 = vpack.c.bf16 %v8594, %v8594
    %v8659 = vpack.c.bf16 %v8595, %v8595
    %v8660 = vpack.c.bf16 %v8596, %v8596
    %v8661 = vpack.c.bf16 %v8597, %v8597
    %v8662 = vpack.c.bf16 %v8598, %v8598
    %v8663 = vpack.c.bf16 %v8599, %v8599
    %v8664 = vpack.c.bf16 %v8600, %v8600
    %v8665 = vpack.c.bf16 %v8601, %v8601
    %v8666 = vpack.c.bf16 %v8602, %v8602
    %v8667 = vpack.c.bf16 %v8603, %v8603
    %v8668 = vpack.c.bf16 %v8604, %v8604
    %v8669 = vpack.c.bf16 %v8605, %v8605
    %v8670 = vpack.c.bf16 %v8606, %v8606
    %v8671 = vpack.c.bf16 %v8607, %v8607
    %v8672 = vpack.c.bf16 %v8608, %v8608
    %v8673 = vpack.c.bf16 %v8609, %v8609
    %v8674 = vpack.c.bf16 %v8610, %v8610
    %v8675 = vpack.c.bf16 %v8611, %v8611
    %v8676 = vpack.c.bf16 %v8612, %v8612
    %v8677 = vpack.c.bf16 %v8613, %v8613
    %v8678 = vpack.c.bf16 %v8614, %v8614
    %v8679 = vpack.c.bf16 %v8615, %v8615
    %v8680 = vpack.c.bf16 %v8616, %v8616
    %v8681 = vpack.c.bf16 %v8617, %v8617
    %v8682 = vpack.c.bf16 %v8618, %v8618
    %v8683 = vpack.c.bf16 %v8619, %v8619
    %v8684 = vpack.c.bf16 %v8620, %v8620
    %8685 = vst [vmem:[#allocation6] sm:$0xf] %v8621
    %8686 = vst [vmem:[#allocation6 + $0x4] sm:$0xf] %v8622
    %8687 = vst [vmem:[#allocation6 + $0x8] sm:$0xf] %v8623
    %8688 = vst [vmem:[#allocation6 + $0xc] sm:$0xf] %v8624
    %8689 = vst [vmem:[#allocation6 + $0x10] sm:$0xf] %v8625
    %8690 = vst [vmem:[#allocation6 + $0x14] sm:$0xf] %v8626
    %8691 = vst [vmem:[#allocation6 + $0x18] sm:$0xf] %v8627
    %8692 = vst [vmem:[#allocation6 + $0x1c] sm:$0xf] %v8628
    %8693 = vst [vmem:[#allocation6 + $0x20] sm:$0xf] %v8629
    %8694 = vst [vmem:[#allocation6 + $0x24] sm:$0xf] %v8630
    %8695 = vst [vmem:[#allocation6 + $0x28] sm:$0xf] %v8631
    %8696 = vst [vmem:[#allocation6 + $0x2c] sm:$0xf] %v8632
    %8697 = vst [vmem:[#allocation6 + $0x30] sm:$0xf] %v8633
    %8698 = vst [vmem:[#allocation6 + $0x34] sm:$0xf] %v8634
    %8699 = vst [vmem:[#allocation6 + $0x38] sm:$0xf] %v8635
    %8700 = vst [vmem:[#allocation6 + $0x3c] sm:$0xf] %v8636
    %8701 = vst [vmem:[#allocation6 + $0x40] sm:$0xf] %v8637
    %8702 = vst [vmem:[#allocation6 + $0x44] sm:$0xf] %v8638
    %8703 = vst [vmem:[#allocation6 + $0x48] sm:$0xf] %v8639
    %8704 = vst [vmem:[#allocation6 + $0x4c] sm:$0xf] %v8640
    %8705 = vst [vmem:[#allocation6 + $0x50] sm:$0xf] %v8641
    %8706 = vst [vmem:[#allocation6 + $0x54] sm:$0xf] %v8642
    %8707 = vst [vmem:[#allocation6 + $0x58] sm:$0xf] %v8643
    %8708 = vst [vmem:[#allocation6 + $0x5c] sm:$0xf] %v8644
    %8709 = vst [vmem:[#allocation6 + $0x60] sm:$0xf] %v8645
    %8710 = vst [vmem:[#allocation6 + $0x64] sm:$0xf] %v8646
    %8711 = vst [vmem:[#allocation6 + $0x68] sm:$0xf] %v8647
    %8712 = vst [vmem:[#allocation6 + $0x6c] sm:$0xf] %v8648
    %8713 = vst [vmem:[#allocation6 + $0x70] sm:$0xf] %v8649
    %8714 = vst [vmem:[#allocation6 + $0x74] sm:$0xf] %v8650
    %8715 = vst [vmem:[#allocation6 + $0x78] sm:$0xf] %v8651
    %8716 = vst [vmem:[#allocation6 + $0x7c] sm:$0xf] %v8652
    %8717 = vst [vmem:[#allocation6 + $0x80] sm:$0xf] %v8653
    %8718 = vst [vmem:[#allocation6 + $0x84] sm:$0xf] %v8654
    %8719 = vst [vmem:[#allocation6 + $0x88] sm:$0xf] %v8655
    %8720 = vst [vmem:[#allocation6 + $0x8c] sm:$0xf] %v8656
    %8721 = vst [vmem:[#allocation6 + $0x90] sm:$0xf] %v8657
    %8722 = vst [vmem:[#allocation6 + $0x94] sm:$0xf] %v8658
    %8723 = vst [vmem:[#allocation6 + $0x98] sm:$0xf] %v8659
    %8724 = vst [vmem:[#allocation6 + $0x9c] sm:$0xf] %v8660
    %8725 = vst [vmem:[#allocation6 + $0xa0] sm:$0xf] %v8661
    %8726 = vst [vmem:[#allocation6 + $0xa4] sm:$0xf] %v8662
    %8727 = vst [vmem:[#allocation6 + $0xa8] sm:$0xf] %v8663
    %8728 = vst [vmem:[#allocation6 + $0xac] sm:$0xf] %v8664
    %8729 = vst [vmem:[#allocation6 + $0xb0] sm:$0xf] %v8665
    %8730 = vst [vmem:[#allocation6 + $0xb4] sm:$0xf] %v8666
    %8731 = vst [vmem:[#allocation6 + $0xb8] sm:$0xf] %v8667
    %8732 = vst [vmem:[#allocation6 + $0xbc] sm:$0xf] %v8668
    %8733 = vst [vmem:[#allocation6 + $0xc0] sm:$0xf] %v8669
    %8734 = vst [vmem:[#allocation6 + $0xc4] sm:$0xf] %v8670
    %8735 = vst [vmem:[#allocation6 + $0xc8] sm:$0xf] %v8671
    %8736 = vst [vmem:[#allocation6 + $0xcc] sm:$0xf] %v8672
    %8737 = vst [vmem:[#allocation6 + $0xd0] sm:$0xf] %v8673
    %8738 = vst [vmem:[#allocation6 + $0xd4] sm:$0xf] %v8674
    %8739 = vst [vmem:[#allocation6 + $0xd8] sm:$0xf] %v8675
    %8740 = vst [vmem:[#allocation6 + $0xdc] sm:$0xf] %v8676
    %8741 = vst [vmem:[#allocation6 + $0xe0] sm:$0xf] %v8677
    %8742 = vst [vmem:[#allocation6 + $0xe4] sm:$0xf] %v8678
    %8743 = vst [vmem:[#allocation6 + $0xe8] sm:$0xf] %v8679
    %8744 = vst [vmem:[#allocation6 + $0xec] sm:$0xf] %v8680
    %8745 = vst [vmem:[#allocation6 + $0xf0] sm:$0xf] %v8681
    %8746 = vst [vmem:[#allocation6 + $0xf4] sm:$0xf] %v8682
    %8747 = vst [vmem:[#allocation6 + $0xf8] sm:$0xf] %v8683
    %8748 = vst [vmem:[#allocation6 + $0xfc] sm:$0xf] %v8684
    // Predicated region
    $region34: #{tpu_custom_call.1} parent=1 // pred_check
      _
    $region35: #{tpu_custom_call.1} parent=1 // pred_check_branch
      %8750 = sbr.rel (0) target = $region37
    $region36: #{tpu_custom_call.1} parent=1 // pred_region
      %8752 = vsyncadd [#allocation5], 0
      %s8753 = sshll.u32 [#allocation6], 4
      %s8754 = int_to_ptr.vmem [resolvable:$true] %s8753
      %s8755 = sshll.u32 %s7, 4
      %s8756 = int_to_ptr.hbm [resolvable:$true] %s8755
      %8761 = dma.vmem_to_hbm [thread:$0]  %s8754, 4096, %s8756, [#allocation5], 64, 64, 4
    $region37: #{tpu_custom_call.1} parent=1 // pred_fallthru
      _
    // Predicated region
    $region38: #{tpu_custom_call.1} parent=1 // pred_check
      _
    $region39: #{tpu_custom_call.1} parent=1 // pred_check_branch
      %8763 = sbr.rel (0) target = $region41
    $region40: #{tpu_custom_call.1} parent=1 // pred_region
      %8765 = dma.done [#allocation5], 4096
    $region41: #{tpu_custom_call.1} parent=1 // pred_fallthru
      _
    %8766 = vsyncpa [#allocation4], 1
    %8767 = vsyncpa [#allocation5], 1

</llo_original>
